<compile_context>
chip_gen: v5e
topology: v5e:2x2
jax: 0.10.0
libtpu: 0.0.40
codegen_flags: <defaults>
</compile_context>

<pallas_src>
import functools

import numpy as np
import jax
import jax.numpy as jnp
from jax.experimental import pallas as pl
from jax.experimental.pallas import tpu as pltpu

BN_EPS = 1e-5
OUT_PAD = 128            # lane-dense final projection width (real channels = 3)
MAX_ROWS_PER_STEP = 1024  # cap on M = Bt*L rows per grid step (VMEM bound)


# --------------------------------------------------------------------------
# Fused Pallas kernel: whole network for Bt batch elements per grid step.
# --------------------------------------------------------------------------
def _fused_forward_kernel(x_ref, *refs, shortcut_flags, matmul_dtype):
    o_ref = refs[-1]
    it = iter(refs[:-1])

    def nxt():
        return next(it)

    Bt, L, cin = x_ref.shape
    M = Bt * L
    dt = matmul_dtype

    # Flatten the folded batch elements into M = Bt*L matmul rows.
    x = x_ref[...].reshape(M, cin).astype(jnp.float32)

    # Per-sample boundary masks, hoisted once and reused by every k=3 conv.
    # pos == row index within its own sample, so taps never leak across the
    # batch elements folded into this grid step.
    pos = jax.lax.broadcasted_iota(jnp.int32, (M, 1), 0) % L
    not_first = (pos != 0).astype(jnp.float32)      # zeroes the l-1 tap at l == 0
    not_last = (pos != L - 1).astype(jnp.float32)   # zeroes the l+1 tap at l == L-1

    def dot(a, w_ref):
        return jnp.dot(a, w_ref[...], preferred_element_type=jnp.float32)

    def taps3(a):
        # a: (M, C) f32 activation -> (mid, l-1 tap, l+1 tap) in matmul dtype.
        # Rolls/masks run in f32 (packed-dtype sublane rotate is not
        # universally lowered); MXU operands are cast once per tap.
        # TODO(synk): cast before the rolls where 16-bit sublane roll is
        #             supported -> halves XLU bytes for the 256-ch blocks.
        prev = pltpu.roll(a, shift=1, axis=0) * not_first
        nxt_tap = pltpu.roll(a, shift=M - 1, axis=0) * not_last
        return a.astype(dt), prev.astype(dt), nxt_tap.astype(dt)

    def conv3_bn(am, ap, an):
        # Conv1d(k=3, pad=1) as three accumulated per-tap MXU dots (no lane
        # concat / relayout) + folded BatchNorm/bias epilogue in f32.
        wp, wm, wn, sc, sh = nxt(), nxt(), nxt(), nxt(), nxt()
        acc = dot(am, wm) + dot(ap, wp) + dot(an, wn)
        return acc * sc[...] + sh[...]

    # Stem: conv3 + BN + relu.
    xm, xp, xn = taps3(x)
    h = jnp.maximum(conv3_bn(xm, xp, xn), 0.0)          # f32 (M, 32)

    # Residual blocks.
    for has_shortcut in shortcut_flags:
        hm, hp, hn = taps3(h)
        out = jnp.maximum(conv3_bn(hm, hp, hn), 0.0)    # conv1 + bn1 + relu
        om, op_, on = taps3(out)
        out = conv3_bn(om, op_, on)                     # conv2 + bn2
        if has_shortcut:
            wsc, bsc = nxt(), nxt()
            sc = dot(hm, wsc) + bsc[...]                # 1x1 conv shortcut (reuses hm cast)
        else:
            sc = h
        h = jnp.maximum(out + sc, 0.0)

    # Final 1x1 projection, zero-padded to 128 lanes (unmasked lane-dense
    # stores); the 3 real channels are sliced off outside the kernel.
    wf, bf_ = nxt(), nxt()
    y = dot(h.astype(dt), wf) + bf_[...]
    o_ref[...] = y.reshape(Bt, L, y.shape[-1]).astype(o_ref.dtype)


# --------------------------------------------------------------------------
# Host-side parameter packing and the pallas_call wrapper.
# --------------------------------------------------------------------------
def _fold_bn(conv, bn):
    inv = 1.0 / jnp.sqrt(bn["var"] + BN_EPS)
    scale = bn["gamma"] * inv
    shift = bn["beta"] - bn["mean"] * scale + conv["b"] * scale
    return (scale.reshape(1, -1).astype(jnp.float32),
            shift.reshape(1, -1).astype(jnp.float32))


def forward_pallas(params, x, matmul_dtype=jnp.bfloat16, single_buffer_weights=True):
    """Fused TRANSAID2k forward.  x: (B, L, 4) channels-last. Returns (B, L, 3)."""
    B, L, cin = x.shape
    assert cin == params["conv1"]["w"].shape[1]

    flat = []

    def add_taps(w3):   # (3, Cin, Cout) -> three per-tap (Cin, Cout) matrices
        w3 = jnp.asarray(w3).astype(matmul_dtype)
        flat.extend([w3[0], w3[1], w3[2]])   # l-1 tap, l tap, l+1 tap

    def add_w(w):
        flat.append(jnp.asarray(w).astype(matmul_dtype))

    def add_f32(a):
        flat.append(jnp.asarray(a).astype(jnp.float32))

    # Stem.
    s, t = _fold_bn(params["conv1"], params["bn1"])
    add_taps(params["conv1"]["w"]); add_f32(s); add_f32(t)

    # Residual blocks (packing order must match the kernel's consumption order:
    # conv1 taps/scale/shift, conv2 taps/scale/shift, then optional shortcut).
    shortcut_flags = []
    for blk in params["blocks"]:
        s1, t1 = _fold_bn(blk["conv1"], blk["bn1"])
        s2, t2 = _fold_bn(blk["conv2"], blk["bn2"])
        add_taps(blk["conv1"]["w"]); add_f32(s1); add_f32(t1)
        add_taps(blk["conv2"]["w"]); add_f32(s2); add_f32(t2)
        has_sc = "shortcut" in blk
        shortcut_flags.append(has_sc)
        if has_sc:
            add_w(blk["shortcut"]["w"])
            add_f32(blk["shortcut"]["b"].reshape(1, -1))

    # Final 1x1 projection, zero-padded to a lane-dense 128-wide output.
    wf = params["conv2"]["w"]                  # (256, 3)
    bf_ = params["conv2"]["b"].reshape(1, -1)  # (1, 3)
    cout = wf.shape[-1]
    add_w(jnp.pad(wf, ((0, 0), (0, OUT_PAD - cout))))
    add_f32(jnp.pad(bf_, ((0, 0), (0, OUT_PAD - cout))))

    # Fold batch elements into one grid step so the MXU sees M = Bt*L rows per
    # push (amortizes per-step overhead at small L) while capping the per-step
    # activation working set (important under v7x's 64 MiB VMEM).
    Bt = 1
    if L % 8 == 0:
        for d in range(B, 0, -1):
            if B % d == 0 and d * L <= MAX_ROWS_PER_STEP:
                Bt = d
                break
    grid = (B // Bt,)

    kernel = functools.partial(_fused_forward_kernel,
                               shortcut_flags=tuple(shortcut_flags),
                               matmul_dtype=matmul_dtype)

    def wspec(shape):
        # Grid-invariant weight/scale/shift blocks: constant index map keeps
        # them resident in VMEM; single-buffering frees the 2x headroom.
        if single_buffer_weights:
            return pl.BlockSpec(shape, lambda b: (0, 0),
                                pipeline_mode=pl.Buffered(1))
        return pl.BlockSpec(shape, lambda b: (0, 0))

    in_specs = [pl.BlockSpec((Bt, L, cin), lambda b: (b, 0, 0))]
    in_specs += [wspec(p.shape) for p in flat]

    out = pl.pallas_call(
        kernel,
        out_shape=jax.ShapeDtypeStruct((B, L, OUT_PAD), jnp.float32),
        grid=grid,
        in_specs=in_specs,
        out_specs=pl.BlockSpec((Bt, L, OUT_PAD), lambda b: (b, 0, 0)),
        compiler_params=pltpu.CompilerParams(
            # One batch chunk per TensorCore where megacore is available.
            # TODO(synk): pltpu.CORE_PARALLEL on v7x when grid % num_cores == 0.
            dimension_semantics=("parallel",),
            # Raise v5e's 16 MiB default scoped limit; stays below v7x's 64 MiB.
            vmem_limit_bytes=48 * 1024 * 1024,
        ),
    )(x.astype(jnp.float32), *flat)
    return out[:, :, :cout]


# --------------------------------------------------------------------------
# Parameters (deterministic, synthetic).
# --------------------------------------------------------------------------
def init_params(key):
    keys = iter(jax.random.split(key, 128))

    def conv3(cin, cout):
        w = jax.random.normal(next(keys), (3, cin, cout), jnp.float32) / np.sqrt(3 * cin)
        b = 0.1 * jax.random.normal(next(keys), (cout,), jnp.float32)
        return {"w": w, "b": b}

    def conv1(cin, cout):
        w = jax.random.normal(next(keys), (cin, cout), jnp.float32) / np.sqrt(cin)
        b = 0.1 * jax.random.normal(next(keys), (cout,), jnp.float32)
        return {"w": w, "b": b}

    def bn(c):
        return {
            "gamma": 1.0 + 0.1 * jax.random.normal(next(keys), (c,), jnp.float32),
            "beta": 0.1 * jax.random.normal(next(keys), (c,), jnp.float32),
            "mean": 0.1 * jax.random.normal(next(keys), (c,), jnp.float32),
            "var": jax.random.uniform(next(keys), (c,), jnp.float32, 0.5, 1.5),
        }

    params = {"conv1": conv3(4, 32), "bn1": bn(32), "blocks": [], "conv2": conv1(256, 3)}
    for cin, cout in [(32, 32), (32, 64), (64, 128), (128, 256)]:
        blk = {
            "conv1": conv3(cin, cout), "bn1": bn(cout),
            "conv2": conv3(cout, cout), "bn2": bn(cout),
        }
        if cin != cout:
            blk["shortcut"] = conv1(cin, cout)
        params["blocks"].append(blk)
    return params


# --------------------------------------------------------------------------
# Pure-JAX reference (mirrors the PyTorch forward, inference-mode BN).
# --------------------------------------------------------------------------
def _ref_conv1d(x_blc, w, b, k):
    x_ncl = jnp.transpose(x_blc, (0, 2, 1))
    if k == 1:
        w_oik = jnp.transpose(w, (1, 0))[:, :, None]
        pad = 0
    else:
        w_oik = jnp.transpose(w, (2, 1, 0))
        pad = 1
    y = jax.lax.conv_general_dilated(
        x_ncl, w_oik, (1,), [(pad, pad)], dimension_numbers=("NCH", "OIH", "NCH"))
    y = y + b[None, :, None]
    return jnp.transpose(y, (0, 2, 1))


def _ref_bn(x_blc, bn):
    return (x_blc - bn["mean"]) / jnp.sqrt(bn["var"] + BN_EPS) * bn["gamma"] + bn["beta"]


def forward_ref(params, x):
    h = jax.nn.relu(_ref_bn(_ref_conv1d(x, params["conv1"]["w"], params["conv1"]["b"], 3),
                            params["bn1"]))
    for blk in params["blocks"]:
        out = jax.nn.relu(_ref_bn(_ref_conv1d(h, blk["conv1"]["w"], blk["conv1"]["b"], 3),
                                  blk["bn1"]))
        out = _ref_bn(_ref_conv1d(out, blk["conv2"]["w"], blk["conv2"]["b"], 3), blk["bn2"])
        if "shortcut" in blk:
            sc = _ref_conv1d(h, blk["shortcut"]["w"], blk["shortcut"]["b"], 1)
        else:
            sc = h
        h = jax.nn.relu(out + sc)
    return _ref_conv1d(h, params["conv2"]["w"], params["conv2"]["b"], 1)


# --------------------------------------------------------------------------
if __name__ == "__main__":
    key = jax.random.PRNGKey(0)
    kx, kp = jax.random.split(key)
    B, L = 2, 16
    x = jax.random.normal(kx, (B, L, 4), jnp.float32)   # (batch, seq, 4 channels)
    params = init_params(kp)

    ref = np.asarray(forward_ref(params, x))

    fwd = jax.jit(forward_pallas,
                  static_argnames=("matmul_dtype", "single_buffer_weights"))

    def run(matmul_dtype):
        try:
            y = fwd(params, x, matmul_dtype=matmul_dtype, single_buffer_weights=True)
            return np.asarray(jax.block_until_ready(y))
        except Exception:
            # pl.Buffered(1) single-buffered weights not supported by this jax
            # version -> fall back to default double buffering.
            y = fwd(params, x, matmul_dtype=matmul_dtype, single_buffer_weights=False)
            return np.asarray(jax.block_until_ready(y))

    # 1) Structural/numerical check with f32 MXU operands (tight tolerance).
    out_f32 = run(jnp.float32)
    assert out_f32.shape == (B, L, 3)
    np.testing.assert_allclose(out_f32, ref, rtol=2e-3, atol=2e-3)

    # 2) Production path: bf16 MXU operands, f32 accumulation.  Drift is
    #    bf16 input/weight rounding only -> loose tolerance vs f32 reference.
    out_bf16 = run(jnp.bfloat16)
    assert out_bf16.shape == (B, L, 3)
    scale = float(np.max(np.abs(ref))) + 1e-6
    np.testing.assert_allclose(out_bf16, ref, rtol=5e-2, atol=5e-2 * scale)

    print("KERNEL_OK")
</pallas_src>

<mosaic_0001>
module attributes {stable_mosaic.version = 11 : i64} {
  func.func @_fused_forward_kernel(%arg0: i32, %arg1: memref<2x16x4xf32, #tpu.memory_space<vmem>>, %arg2: memref<4x32xf32, #tpu.memory_space<vmem>>, %arg3: memref<4x32xf32, #tpu.memory_space<vmem>>, %arg4: memref<4x32xf32, #tpu.memory_space<vmem>>, %arg5: memref<1x32xf32, #tpu.memory_space<vmem>>, %arg6: memref<1x32xf32, #tpu.memory_space<vmem>>, %arg7: memref<32x32xf32, #tpu.memory_space<vmem>>, %arg8: memref<32x32xf32, #tpu.memory_space<vmem>>, %arg9: memref<32x32xf32, #tpu.memory_space<vmem>>, %arg10: memref<1x32xf32, #tpu.memory_space<vmem>>, %arg11: memref<1x32xf32, #tpu.memory_space<vmem>>, %arg12: memref<32x32xf32, #tpu.memory_space<vmem>>, %arg13: memref<32x32xf32, #tpu.memory_space<vmem>>, %arg14: memref<32x32xf32, #tpu.memory_space<vmem>>, %arg15: memref<1x32xf32, #tpu.memory_space<vmem>>, %arg16: memref<1x32xf32, #tpu.memory_space<vmem>>, %arg17: memref<32x64xf32, #tpu.memory_space<vmem>>, %arg18: memref<32x64xf32, #tpu.memory_space<vmem>>, %arg19: memref<32x64xf32, #tpu.memory_space<vmem>>, %arg20: memref<1x64xf32, #tpu.memory_space<vmem>>, %arg21: memref<1x64xf32, #tpu.memory_space<vmem>>, %arg22: memref<64x64xf32, #tpu.memory_space<vmem>>, %arg23: memref<64x64xf32, #tpu.memory_space<vmem>>, %arg24: memref<64x64xf32, #tpu.memory_space<vmem>>, %arg25: memref<1x64xf32, #tpu.memory_space<vmem>>, %arg26: memref<1x64xf32, #tpu.memory_space<vmem>>, %arg27: memref<32x64xf32, #tpu.memory_space<vmem>>, %arg28: memref<1x64xf32, #tpu.memory_space<vmem>>, %arg29: memref<64x128xf32, #tpu.memory_space<vmem>>, %arg30: memref<64x128xf32, #tpu.memory_space<vmem>>, %arg31: memref<64x128xf32, #tpu.memory_space<vmem>>, %arg32: memref<1x128xf32, #tpu.memory_space<vmem>>, %arg33: memref<1x128xf32, #tpu.memory_space<vmem>>, %arg34: memref<128x128xf32, #tpu.memory_space<vmem>>, %arg35: memref<128x128xf32, #tpu.memory_space<vmem>>, %arg36: memref<128x128xf32, #tpu.memory_space<vmem>>, %arg37: memref<1x128xf32, #tpu.memory_space<vmem>>, %arg38: memref<1x128xf32, #tpu.memory_space<vmem>>, %arg39: memref<64x128xf32, #tpu.memory_space<vmem>>, %arg40: memref<1x128xf32, #tpu.memory_space<vmem>>, %arg41: memref<128x256xf32, #tpu.memory_space<vmem>>, %arg42: memref<128x256xf32, #tpu.memory_space<vmem>>, %arg43: memref<128x256xf32, #tpu.memory_space<vmem>>, %arg44: memref<1x256xf32, #tpu.memory_space<vmem>>, %arg45: memref<1x256xf32, #tpu.memory_space<vmem>>, %arg46: memref<256x256xf32, #tpu.memory_space<vmem>>, %arg47: memref<256x256xf32, #tpu.memory_space<vmem>>, %arg48: memref<256x256xf32, #tpu.memory_space<vmem>>, %arg49: memref<1x256xf32, #tpu.memory_space<vmem>>, %arg50: memref<1x256xf32, #tpu.memory_space<vmem>>, %arg51: memref<128x256xf32, #tpu.memory_space<vmem>>, %arg52: memref<1x256xf32, #tpu.memory_space<vmem>>, %arg53: memref<256x128xf32, #tpu.memory_space<vmem>>, %arg54: memref<1x128xf32, #tpu.memory_space<vmem>>, %arg55: memref<2x16x128xf32, #tpu.memory_space<vmem>>) attributes {dimension_semantics = [#tpu.dimension_semantics<parallel>], iteration_bounds = array<i64: 1>, scalar_prefetch = 0 : i64, scratch_operands = 0 : i64, tpu.core_type = #tpu.core_type<tc>, window_params = [{transform_indices = @transform_0, window_bounds = array<i64: 2, 16, 4>}, {pipeline_mode = #tpu.pipeline_mode<synchronous>, transform_indices = @transform_1, window_bounds = array<i64: 4, 32>}, {pipeline_mode = #tpu.pipeline_mode<synchronous>, transform_indices = @transform_2, window_bounds = array<i64: 4, 32>}, {pipeline_mode = #tpu.pipeline_mode<synchronous>, transform_indices = @transform_3, window_bounds = array<i64: 4, 32>}, {pipeline_mode = #tpu.pipeline_mode<synchronous>, transform_indices = @transform_4, window_bounds = array<i64: 1, 32>}, {pipeline_mode = #tpu.pipeline_mode<synchronous>, transform_indices = @transform_5, window_bounds = array<i64: 1, 32>}, {pipeline_mode = #tpu.pipeline_mode<synchronous>, transform_indices = @transform_6, window_bounds = array<i64: 32, 32>}, {pipeline_mode = #tpu.pipeline_mode<synchronous>, transform_indices = @transform_7, window_bounds = array<i64: 32, 32>}, {pipeline_mode = #tpu.pipeline_mode<synchronous>, transform_indices = @transform_8, window_bounds = array<i64: 32, 32>}, {pipeline_mode = #tpu.pipeline_mode<synchronous>, transform_indices = @transform_9, window_bounds = array<i64: 1, 32>}, {pipeline_mode = #tpu.pipeline_mode<synchronous>, transform_indices = @transform_10, window_bounds = array<i64: 1, 32>}, {pipeline_mode = #tpu.pipeline_mode<synchronous>, transform_indices = @transform_11, window_bounds = array<i64: 32, 32>}, {pipeline_mode = #tpu.pipeline_mode<synchronous>, transform_indices = @transform_12, window_bounds = array<i64: 32, 32>}, {pipeline_mode = #tpu.pipeline_mode<synchronous>, transform_indices = @transform_13, window_bounds = array<i64: 32, 32>}, {pipeline_mode = #tpu.pipeline_mode<synchronous>, transform_indices = @transform_14, window_bounds = array<i64: 1, 32>}, {pipeline_mode = #tpu.pipeline_mode<synchronous>, transform_indices = @transform_15, window_bounds = array<i64: 1, 32>}, {pipeline_mode = #tpu.pipeline_mode<synchronous>, transform_indices = @transform_16, window_bounds = array<i64: 32, 64>}, {pipeline_mode = #tpu.pipeline_mode<synchronous>, transform_indices = @transform_17, window_bounds = array<i64: 32, 64>}, {pipeline_mode = #tpu.pipeline_mode<synchronous>, transform_indices = @transform_18, window_bounds = array<i64: 32, 64>}, {pipeline_mode = #tpu.pipeline_mode<synchronous>, transform_indices = @transform_19, window_bounds = array<i64: 1, 64>}, {pipeline_mode = #tpu.pipeline_mode<synchronous>, transform_indices = @transform_20, window_bounds = array<i64: 1, 64>}, {pipeline_mode = #tpu.pipeline_mode<synchronous>, transform_indices = @transform_21, window_bounds = array<i64: 64, 64>}, {pipeline_mode = #tpu.pipeline_mode<synchronous>, transform_indices = @transform_22, window_bounds = array<i64: 64, 64>}, {pipeline_mode = #tpu.pipeline_mode<synchronous>, transform_indices = @transform_23, window_bounds = array<i64: 64, 64>}, {pipeline_mode = #tpu.pipeline_mode<synchronous>, transform_indices = @transform_24, window_bounds = array<i64: 1, 64>}, {pipeline_mode = #tpu.pipeline_mode<synchronous>, transform_indices = @transform_25, window_bounds = array<i64: 1, 64>}, {pipeline_mode = #tpu.pipeline_mode<synchronous>, transform_indices = @transform_26, window_bounds = array<i64: 32, 64>}, {pipeline_mode = #tpu.pipeline_mode<synchronous>, transform_indices = @transform_27, window_bounds = array<i64: 1, 64>}, {pipeline_mode = #tpu.pipeline_mode<synchronous>, transform_indices = @transform_28, window_bounds = array<i64: 64, 128>}, {pipeline_mode = #tpu.pipeline_mode<synchronous>, transform_indices = @transform_29, window_bounds = array<i64: 64, 128>}, {pipeline_mode = #tpu.pipeline_mode<synchronous>, transform_indices = @transform_30, window_bounds = array<i64: 64, 128>}, {pipeline_mode = #tpu.pipeline_mode<synchronous>, transform_indices = @transform_31, window_bounds = array<i64: 1, 128>}, {pipeline_mode = #tpu.pipeline_mode<synchronous>, transform_indices = @transform_32, window_bounds = array<i64: 1, 128>}, {pipeline_mode = #tpu.pipeline_mode<synchronous>, transform_indices = @transform_33, window_bounds = array<i64: 128, 128>}, {pipeline_mode = #tpu.pipeline_mode<synchronous>, transform_indices = @transform_34, window_bounds = array<i64: 128, 128>}, {pipeline_mode = #tpu.pipeline_mode<synchronous>, transform_indices = @transform_35, window_bounds = array<i64: 128, 128>}, {pipeline_mode = #tpu.pipeline_mode<synchronous>, transform_indices = @transform_36, window_bounds = array<i64: 1, 128>}, {pipeline_mode = #tpu.pipeline_mode<synchronous>, transform_indices = @transform_37, window_bounds = array<i64: 1, 128>}, {pipeline_mode = #tpu.pipeline_mode<synchronous>, transform_indices = @transform_38, window_bounds = array<i64: 64, 128>}, {pipeline_mode = #tpu.pipeline_mode<synchronous>, transform_indices = @transform_39, window_bounds = array<i64: 1, 128>}, {pipeline_mode = #tpu.pipeline_mode<synchronous>, transform_indices = @transform_40, window_bounds = array<i64: 128, 256>}, {pipeline_mode = #tpu.pipeline_mode<synchronous>, transform_indices = @transform_41, window_bounds = array<i64: 128, 256>}, {pipeline_mode = #tpu.pipeline_mode<synchronous>, transform_indices = @transform_42, window_bounds = array<i64: 128, 256>}, {pipeline_mode = #tpu.pipeline_mode<synchronous>, transform_indices = @transform_43, window_bounds = array<i64: 1, 256>}, {pipeline_mode = #tpu.pipeline_mode<synchronous>, transform_indices = @transform_44, window_bounds = array<i64: 1, 256>}, {pipeline_mode = #tpu.pipeline_mode<synchronous>, transform_indices = @transform_45, window_bounds = array<i64: 256, 256>}, {pipeline_mode = #tpu.pipeline_mode<synchronous>, transform_indices = @transform_46, window_bounds = array<i64: 256, 256>}, {pipeline_mode = #tpu.pipeline_mode<synchronous>, transform_indices = @transform_47, window_bounds = array<i64: 256, 256>}, {pipeline_mode = #tpu.pipeline_mode<synchronous>, transform_indices = @transform_48, window_bounds = array<i64: 1, 256>}, {pipeline_mode = #tpu.pipeline_mode<synchronous>, transform_indices = @transform_49, window_bounds = array<i64: 1, 256>}, {pipeline_mode = #tpu.pipeline_mode<synchronous>, transform_indices = @transform_50, window_bounds = array<i64: 128, 256>}, {pipeline_mode = #tpu.pipeline_mode<synchronous>, transform_indices = @transform_51, window_bounds = array<i64: 1, 256>}, {pipeline_mode = #tpu.pipeline_mode<synchronous>, transform_indices = @transform_52, window_bounds = array<i64: 256, 128>}, {pipeline_mode = #tpu.pipeline_mode<synchronous>, transform_indices = @transform_53, window_bounds = array<i64: 1, 128>}, {transform_indices = @transform_54, window_bounds = array<i64: 2, 16, 128>}]} {
    %c0 = arith.constant 0 : index
    %c0_0 = arith.constant 0 : index
    %c0_1 = arith.constant 0 : index
    %0 = vector.load %arg1[%c0, %c0_0, %c0_1] : memref<2x16x4xf32, #tpu.memory_space<vmem>>, vector<2x16x4xf32>
    %1 = vector.shape_cast %0 : vector<2x16x4xf32> to vector<32x4xf32>
    %2 = tpu.iota {dimensions = array<i32: 0>} : vector<32x1xi32>
    %c16_i32 = arith.constant 16 : i32
    %c0_i32 = arith.constant 0 : i32
    %3 = arith.cmpi eq, %c16_i32, %c0_i32 : i32
    %c1_i32 = arith.constant 1 : i32
    %4 = arith.select %3, %c1_i32, %c16_i32 : i32
    %5 = vector.broadcast %4 : i32 to vector<32x1xi32>
    %6 = arith.remsi %2, %5 : vector<32x1xi32>
    %c0_i32_2 = arith.constant 0 : i32
    %7 = vector.broadcast %c0_i32_2 : i32 to vector<32x1xi32>
    %8 = arith.cmpi ne, %6, %7 : vector<32x1xi32>
    %c0_i32_3 = arith.constant 0 : i32
    %9 = vector.broadcast %c0_i32_3 : i32 to vector<32x1xi32>
    %10 = arith.cmpi slt, %6, %9 : vector<32x1xi32>
    %c0_i32_4 = arith.constant 0 : i32
    %11 = arith.cmpi slt, %4, %c0_i32_4 : i32
    %12 = vector.broadcast %11 : i1 to vector<32x1xi1>
    %13 = vector.broadcast %12 : vector<32x1xi1> to vector<32x1xi1>
    %14 = arith.xori %10, %13 : vector<32x1xi1>
    %15 = arith.andi %14, %8 : vector<32x1xi1>
    %16 = vector.broadcast %4 : i32 to vector<32x1xi32>
    %17 = arith.addi %6, %16 : vector<32x1xi32>
    %18 = arith.select %15, %17, %6 : vector<32x1xi1>, vector<32x1xi32>
    %c0_i32_5 = arith.constant 0 : i32
    %19 = vector.broadcast %c0_i32_5 : i32 to vector<32x1xi32>
    %20 = arith.cmpi ne, %18, %19 : vector<32x1xi32>
    %21 = arith.extui %20 : vector<32x1xi1> to vector<32x1xi32>
    %22 = arith.sitofp %21 : vector<32x1xi32> to vector<32x1xf32>
    %c15_i32 = arith.constant 15 : i32
    %23 = vector.broadcast %c15_i32 : i32 to vector<32x1xi32>
    %24 = arith.cmpi ne, %18, %23 : vector<32x1xi32>
    %25 = arith.extui %24 : vector<32x1xi1> to vector<32x1xi32>
    %26 = arith.sitofp %25 : vector<32x1xi32> to vector<32x1xf32>
    %c1_i32_6 = arith.constant 1 : i32
    %27 = tpu.dynamic_rotate %1 by %c1_i32_6 dim 0 : vector<32x4xf32>, i32 -> vector<32x4xf32>
    %28 = vector.broadcast %22 : vector<32x1xf32> to vector<32x4xf32>
    %29 = arith.mulf %27, %28 : vector<32x4xf32>
    %c31_i32 = arith.constant 31 : i32
    %30 = tpu.dynamic_rotate %1 by %c31_i32 dim 0 : vector<32x4xf32>, i32 -> vector<32x4xf32>
    %31 = vector.broadcast %26 : vector<32x1xf32> to vector<32x4xf32>
    %32 = arith.mulf %30, %31 : vector<32x4xf32>
    %c0_7 = arith.constant 0 : index
    %c0_8 = arith.constant 0 : index
    %33 = vector.load %arg3[%c0_7, %c0_8] : memref<4x32xf32, #tpu.memory_space<vmem>>, vector<4x32xf32>
    %cst = arith.constant dense<0.000000e+00> : vector<32x32xf32>
    %34 = tpu.matmul %1, %33, %cst {dimension_numbers = #tpu.dot_dimension_numbers<[1], [0], [0], [1], [0, 0, 1, 1], [], []>} : vector<32x4xf32>, vector<4x32xf32>, vector<32x32xf32> -> vector<32x32xf32>
    %c0_9 = arith.constant 0 : index
    %c0_10 = arith.constant 0 : index
    %35 = vector.load %arg2[%c0_9, %c0_10] : memref<4x32xf32, #tpu.memory_space<vmem>>, vector<4x32xf32>
    %cst_11 = arith.constant dense<0.000000e+00> : vector<32x32xf32>
    %36 = tpu.matmul %29, %35, %cst_11 {dimension_numbers = #tpu.dot_dimension_numbers<[1], [0], [0], [1], [0, 0, 1, 1], [], []>} : vector<32x4xf32>, vector<4x32xf32>, vector<32x32xf32> -> vector<32x32xf32>
    %37 = arith.addf %34, %36 : vector<32x32xf32>
    %c0_12 = arith.constant 0 : index
    %c0_13 = arith.constant 0 : index
    %38 = vector.load %arg4[%c0_12, %c0_13] : memref<4x32xf32, #tpu.memory_space<vmem>>, vector<4x32xf32>
    %cst_14 = arith.constant dense<0.000000e+00> : vector<32x32xf32>
    %39 = tpu.matmul %32, %38, %cst_14 {dimension_numbers = #tpu.dot_dimension_numbers<[1], [0], [0], [1], [0, 0, 1, 1], [], []>} : vector<32x4xf32>, vector<4x32xf32>, vector<32x32xf32> -> vector<32x32xf32>
    %40 = arith.addf %37, %39 : vector<32x32xf32>
    %c0_15 = arith.constant 0 : index
    %c0_16 = arith.constant 0 : index
    %41 = vector.load %arg5[%c0_15, %c0_16] : memref<1x32xf32, #tpu.memory_space<vmem>>, vector<1x32xf32>
    %42 = vector.broadcast %41 : vector<1x32xf32> to vector<32x32xf32>
    %43 = arith.mulf %40, %42 : vector<32x32xf32>
    %c0_17 = arith.constant 0 : index
    %c0_18 = arith.constant 0 : index
    %44 = vector.load %arg6[%c0_17, %c0_18] : memref<1x32xf32, #tpu.memory_space<vmem>>, vector<1x32xf32>
    %45 = vector.broadcast %44 : vector<1x32xf32> to vector<32x32xf32>
    %46 = arith.addf %43, %45 : vector<32x32xf32>
    %cst_19 = arith.constant 0.000000e+00 : f32
    %47 = vector.broadcast %cst_19 : f32 to vector<32x32xf32>
    %48 = arith.maximumf %46, %47 : vector<32x32xf32>
    %c1_i32_20 = arith.constant 1 : i32
    %49 = tpu.dynamic_rotate %48 by %c1_i32_20 dim 0 : vector<32x32xf32>, i32 -> vector<32x32xf32>
    %50 = vector.broadcast %22 : vector<32x1xf32> to vector<32x32xf32>
    %51 = arith.mulf %49, %50 : vector<32x32xf32>
    %c31_i32_21 = arith.constant 31 : i32
    %52 = tpu.dynamic_rotate %48 by %c31_i32_21 dim 0 : vector<32x32xf32>, i32 -> vector<32x32xf32>
    %53 = vector.broadcast %26 : vector<32x1xf32> to vector<32x32xf32>
    %54 = arith.mulf %52, %53 : vector<32x32xf32>
    %c0_22 = arith.constant 0 : index
    %c0_23 = arith.constant 0 : index
    %55 = vector.load %arg8[%c0_22, %c0_23] : memref<32x32xf32, #tpu.memory_space<vmem>>, vector<32x32xf32>
    %cst_24 = arith.constant dense<0.000000e+00> : vector<32x32xf32>
    %56 = tpu.matmul %48, %55, %cst_24 {dimension_numbers = #tpu.dot_dimension_numbers<[1], [0], [0], [1], [0, 0, 1, 1], [], []>} : vector<32x32xf32>, vector<32x32xf32>, vector<32x32xf32> -> vector<32x32xf32>
    %c0_25 = arith.constant 0 : index
    %c0_26 = arith.constant 0 : index
    %57 = vector.load %arg7[%c0_25, %c0_26] : memref<32x32xf32, #tpu.memory_space<vmem>>, vector<32x32xf32>
    %cst_27 = arith.constant dense<0.000000e+00> : vector<32x32xf32>
    %58 = tpu.matmul %51, %57, %cst_27 {dimension_numbers = #tpu.dot_dimension_numbers<[1], [0], [0], [1], [0, 0, 1, 1], [], []>} : vector<32x32xf32>, vector<32x32xf32>, vector<32x32xf32> -> vector<32x32xf32>
    %59 = arith.addf %56, %58 : vector<32x32xf32>
    %c0_28 = arith.constant 0 : index
    %c0_29 = arith.constant 0 : index
    %60 = vector.load %arg9[%c0_28, %c0_29] : memref<32x32xf32, #tpu.memory_space<vmem>>, vector<32x32xf32>
    %cst_30 = arith.constant dense<0.000000e+00> : vector<32x32xf32>
    %61 = tpu.matmul %54, %60, %cst_30 {dimension_numbers = #tpu.dot_dimension_numbers<[1], [0], [0], [1], [0, 0, 1, 1], [], []>} : vector<32x32xf32>, vector<32x32xf32>, vector<32x32xf32> -> vector<32x32xf32>
    %62 = arith.addf %59, %61 : vector<32x32xf32>
    %c0_31 = arith.constant 0 : index
    %c0_32 = arith.constant 0 : index
    %63 = vector.load %arg10[%c0_31, %c0_32] : memref<1x32xf32, #tpu.memory_space<vmem>>, vector<1x32xf32>
    %64 = vector.broadcast %63 : vector<1x32xf32> to vector<32x32xf32>
    %65 = arith.mulf %62, %64 : vector<32x32xf32>
    %c0_33 = arith.constant 0 : index
    %c0_34 = arith.constant 0 : index
    %66 = vector.load %arg11[%c0_33, %c0_34] : memref<1x32xf32, #tpu.memory_space<vmem>>, vector<1x32xf32>
    %67 = vector.broadcast %66 : vector<1x32xf32> to vector<32x32xf32>
    %68 = arith.addf %65, %67 : vector<32x32xf32>
    %cst_35 = arith.constant 0.000000e+00 : f32
    %69 = vector.broadcast %cst_35 : f32 to vector<32x32xf32>
    %70 = arith.maximumf %68, %69 : vector<32x32xf32>
    %c1_i32_36 = arith.constant 1 : i32
    %71 = tpu.dynamic_rotate %70 by %c1_i32_36 dim 0 : vector<32x32xf32>, i32 -> vector<32x32xf32>
    %72 = vector.broadcast %22 : vector<32x1xf32> to vector<32x32xf32>
    %73 = arith.mulf %71, %72 : vector<32x32xf32>
    %c31_i32_37 = arith.constant 31 : i32
    %74 = tpu.dynamic_rotate %70 by %c31_i32_37 dim 0 : vector<32x32xf32>, i32 -> vector<32x32xf32>
    %75 = vector.broadcast %26 : vector<32x1xf32> to vector<32x32xf32>
    %76 = arith.mulf %74, %75 : vector<32x32xf32>
    %c0_38 = arith.constant 0 : index
    %c0_39 = arith.constant 0 : index
    %77 = vector.load %arg13[%c0_38, %c0_39] : memref<32x32xf32, #tpu.memory_space<vmem>>, vector<32x32xf32>
    %cst_40 = arith.constant dense<0.000000e+00> : vector<32x32xf32>
    %78 = tpu.matmul %70, %77, %cst_40 {dimension_numbers = #tpu.dot_dimension_numbers<[1], [0], [0], [1], [0, 0, 1, 1], [], []>} : vector<32x32xf32>, vector<32x32xf32>, vector<32x32xf32> -> vector<32x32xf32>
    %c0_41 = arith.constant 0 : index
    %c0_42 = arith.constant 0 : index
    %79 = vector.load %arg12[%c0_41, %c0_42] : memref<32x32xf32, #tpu.memory_space<vmem>>, vector<32x32xf32>
    %cst_43 = arith.constant dense<0.000000e+00> : vector<32x32xf32>
    %80 = tpu.matmul %73, %79, %cst_43 {dimension_numbers = #tpu.dot_dimension_numbers<[1], [0], [0], [1], [0, 0, 1, 1], [], []>} : vector<32x32xf32>, vector<32x32xf32>, vector<32x32xf32> -> vector<32x32xf32>
    %81 = arith.addf %78, %80 : vector<32x32xf32>
    %c0_44 = arith.constant 0 : index
    %c0_45 = arith.constant 0 : index
    %82 = vector.load %arg14[%c0_44, %c0_45] : memref<32x32xf32, #tpu.memory_space<vmem>>, vector<32x32xf32>
    %cst_46 = arith.constant dense<0.000000e+00> : vector<32x32xf32>
    %83 = tpu.matmul %76, %82, %cst_46 {dimension_numbers = #tpu.dot_dimension_numbers<[1], [0], [0], [1], [0, 0, 1, 1], [], []>} : vector<32x32xf32>, vector<32x32xf32>, vector<32x32xf32> -> vector<32x32xf32>
    %84 = arith.addf %81, %83 : vector<32x32xf32>
    %c0_47 = arith.constant 0 : index
    %c0_48 = arith.constant 0 : index
    %85 = vector.load %arg15[%c0_47, %c0_48] : memref<1x32xf32, #tpu.memory_space<vmem>>, vector<1x32xf32>
    %86 = vector.broadcast %85 : vector<1x32xf32> to vector<32x32xf32>
    %87 = arith.mulf %84, %86 : vector<32x32xf32>
    %c0_49 = arith.constant 0 : index
    %c0_50 = arith.constant 0 : index
    %88 = vector.load %arg16[%c0_49, %c0_50] : memref<1x32xf32, #tpu.memory_space<vmem>>, vector<1x32xf32>
    %89 = vector.broadcast %88 : vector<1x32xf32> to vector<32x32xf32>
    %90 = arith.addf %87, %89 : vector<32x32xf32>
    %91 = arith.addf %90, %48 : vector<32x32xf32>
    %cst_51 = arith.constant 0.000000e+00 : f32
    %92 = vector.broadcast %cst_51 : f32 to vector<32x32xf32>
    %93 = arith.maximumf %91, %92 : vector<32x32xf32>
    %c1_i32_52 = arith.constant 1 : i32
    %94 = tpu.dynamic_rotate %93 by %c1_i32_52 dim 0 : vector<32x32xf32>, i32 -> vector<32x32xf32>
    %95 = vector.broadcast %22 : vector<32x1xf32> to vector<32x32xf32>
    %96 = arith.mulf %94, %95 : vector<32x32xf32>
    %c31_i32_53 = arith.constant 31 : i32
    %97 = tpu.dynamic_rotate %93 by %c31_i32_53 dim 0 : vector<32x32xf32>, i32 -> vector<32x32xf32>
    %98 = vector.broadcast %26 : vector<32x1xf32> to vector<32x32xf32>
    %99 = arith.mulf %97, %98 : vector<32x32xf32>
    %c0_54 = arith.constant 0 : index
    %c0_55 = arith.constant 0 : index
    %100 = vector.load %arg18[%c0_54, %c0_55] : memref<32x64xf32, #tpu.memory_space<vmem>>, vector<32x64xf32>
    %cst_56 = arith.constant dense<0.000000e+00> : vector<32x64xf32>
    %101 = tpu.matmul %93, %100, %cst_56 {dimension_numbers = #tpu.dot_dimension_numbers<[1], [0], [0], [1], [0, 0, 1, 1], [], []>} : vector<32x32xf32>, vector<32x64xf32>, vector<32x64xf32> -> vector<32x64xf32>
    %c0_57 = arith.constant 0 : index
    %c0_58 = arith.constant 0 : index
    %102 = vector.load %arg17[%c0_57, %c0_58] : memref<32x64xf32, #tpu.memory_space<vmem>>, vector<32x64xf32>
    %cst_59 = arith.constant dense<0.000000e+00> : vector<32x64xf32>
    %103 = tpu.matmul %96, %102, %cst_59 {dimension_numbers = #tpu.dot_dimension_numbers<[1], [0], [0], [1], [0, 0, 1, 1], [], []>} : vector<32x32xf32>, vector<32x64xf32>, vector<32x64xf32> -> vector<32x64xf32>
    %104 = arith.addf %101, %103 : vector<32x64xf32>
    %c0_60 = arith.constant 0 : index
    %c0_61 = arith.constant 0 : index
    %105 = vector.load %arg19[%c0_60, %c0_61] : memref<32x64xf32, #tpu.memory_space<vmem>>, vector<32x64xf32>
    %cst_62 = arith.constant dense<0.000000e+00> : vector<32x64xf32>
    %106 = tpu.matmul %99, %105, %cst_62 {dimension_numbers = #tpu.dot_dimension_numbers<[1], [0], [0], [1], [0, 0, 1, 1], [], []>} : vector<32x32xf32>, vector<32x64xf32>, vector<32x64xf32> -> vector<32x64xf32>
    %107 = arith.addf %104, %106 : vector<32x64xf32>
    %c0_63 = arith.constant 0 : index
    %c0_64 = arith.constant 0 : index
    %108 = vector.load %arg20[%c0_63, %c0_64] : memref<1x64xf32, #tpu.memory_space<vmem>>, vector<1x64xf32>
    %109 = vector.broadcast %108 : vector<1x64xf32> to vector<32x64xf32>
    %110 = arith.mulf %107, %109 : vector<32x64xf32>
    %c0_65 = arith.constant 0 : index
    %c0_66 = arith.constant 0 : index
    %111 = vector.load %arg21[%c0_65, %c0_66] : memref<1x64xf32, #tpu.memory_space<vmem>>, vector<1x64xf32>
    %112 = vector.broadcast %111 : vector<1x64xf32> to vector<32x64xf32>
    %113 = arith.addf %110, %112 : vector<32x64xf32>
    %cst_67 = arith.constant 0.000000e+00 : f32
    %114 = vector.broadcast %cst_67 : f32 to vector<32x64xf32>
    %115 = arith.maximumf %113, %114 : vector<32x64xf32>
    %c1_i32_68 = arith.constant 1 : i32
    %116 = tpu.dynamic_rotate %115 by %c1_i32_68 dim 0 : vector<32x64xf32>, i32 -> vector<32x64xf32>
    %117 = vector.broadcast %22 : vector<32x1xf32> to vector<32x64xf32>
    %118 = arith.mulf %116, %117 : vector<32x64xf32>
    %c31_i32_69 = arith.constant 31 : i32
    %119 = tpu.dynamic_rotate %115 by %c31_i32_69 dim 0 : vector<32x64xf32>, i32 -> vector<32x64xf32>
    %120 = vector.broadcast %26 : vector<32x1xf32> to vector<32x64xf32>
    %121 = arith.mulf %119, %120 : vector<32x64xf32>
    %c0_70 = arith.constant 0 : index
    %c0_71 = arith.constant 0 : index
    %122 = vector.load %arg23[%c0_70, %c0_71] : memref<64x64xf32, #tpu.memory_space<vmem>>, vector<64x64xf32>
    %cst_72 = arith.constant dense<0.000000e+00> : vector<32x64xf32>
    %123 = tpu.matmul %115, %122, %cst_72 {dimension_numbers = #tpu.dot_dimension_numbers<[1], [0], [0], [1], [0, 0, 1, 1], [], []>} : vector<32x64xf32>, vector<64x64xf32>, vector<32x64xf32> -> vector<32x64xf32>
    %c0_73 = arith.constant 0 : index
    %c0_74 = arith.constant 0 : index
    %124 = vector.load %arg22[%c0_73, %c0_74] : memref<64x64xf32, #tpu.memory_space<vmem>>, vector<64x64xf32>
    %cst_75 = arith.constant dense<0.000000e+00> : vector<32x64xf32>
    %125 = tpu.matmul %118, %124, %cst_75 {dimension_numbers = #tpu.dot_dimension_numbers<[1], [0], [0], [1], [0, 0, 1, 1], [], []>} : vector<32x64xf32>, vector<64x64xf32>, vector<32x64xf32> -> vector<32x64xf32>
    %126 = arith.addf %123, %125 : vector<32x64xf32>
    %c0_76 = arith.constant 0 : index
    %c0_77 = arith.constant 0 : index
    %127 = vector.load %arg24[%c0_76, %c0_77] : memref<64x64xf32, #tpu.memory_space<vmem>>, vector<64x64xf32>
    %cst_78 = arith.constant dense<0.000000e+00> : vector<32x64xf32>
    %128 = tpu.matmul %121, %127, %cst_78 {dimension_numbers = #tpu.dot_dimension_numbers<[1], [0], [0], [1], [0, 0, 1, 1], [], []>} : vector<32x64xf32>, vector<64x64xf32>, vector<32x64xf32> -> vector<32x64xf32>
    %129 = arith.addf %126, %128 : vector<32x64xf32>
    %c0_79 = arith.constant 0 : index
    %c0_80 = arith.constant 0 : index
    %130 = vector.load %arg25[%c0_79, %c0_80] : memref<1x64xf32, #tpu.memory_space<vmem>>, vector<1x64xf32>
    %131 = vector.broadcast %130 : vector<1x64xf32> to vector<32x64xf32>
    %132 = arith.mulf %129, %131 : vector<32x64xf32>
    %c0_81 = arith.constant 0 : index
    %c0_82 = arith.constant 0 : index
    %133 = vector.load %arg26[%c0_81, %c0_82] : memref<1x64xf32, #tpu.memory_space<vmem>>, vector<1x64xf32>
    %134 = vector.broadcast %133 : vector<1x64xf32> to vector<32x64xf32>
    %135 = arith.addf %132, %134 : vector<32x64xf32>
    %c0_83 = arith.constant 0 : index
    %c0_84 = arith.constant 0 : index
    %136 = vector.load %arg27[%c0_83, %c0_84] : memref<32x64xf32, #tpu.memory_space<vmem>>, vector<32x64xf32>
    %cst_85 = arith.constant dense<0.000000e+00> : vector<32x64xf32>
    %137 = tpu.matmul %93, %136, %cst_85 {dimension_numbers = #tpu.dot_dimension_numbers<[1], [0], [0], [1], [0, 0, 1, 1], [], []>} : vector<32x32xf32>, vector<32x64xf32>, vector<32x64xf32> -> vector<32x64xf32>
    %c0_86 = arith.constant 0 : index
    %c0_87 = arith.constant 0 : index
    %138 = vector.load %arg28[%c0_86, %c0_87] : memref<1x64xf32, #tpu.memory_space<vmem>>, vector<1x64xf32>
    %139 = vector.broadcast %138 : vector<1x64xf32> to vector<32x64xf32>
    %140 = arith.addf %137, %139 : vector<32x64xf32>
    %141 = arith.addf %135, %140 : vector<32x64xf32>
    %cst_88 = arith.constant 0.000000e+00 : f32
    %142 = vector.broadcast %cst_88 : f32 to vector<32x64xf32>
    %143 = arith.maximumf %141, %142 : vector<32x64xf32>
    %c1_i32_89 = arith.constant 1 : i32
    %144 = tpu.dynamic_rotate %143 by %c1_i32_89 dim 0 : vector<32x64xf32>, i32 -> vector<32x64xf32>
    %145 = vector.broadcast %22 : vector<32x1xf32> to vector<32x64xf32>
    %146 = arith.mulf %144, %145 : vector<32x64xf32>
    %c31_i32_90 = arith.constant 31 : i32
    %147 = tpu.dynamic_rotate %143 by %c31_i32_90 dim 0 : vector<32x64xf32>, i32 -> vector<32x64xf32>
    %148 = vector.broadcast %26 : vector<32x1xf32> to vector<32x64xf32>
    %149 = arith.mulf %147, %148 : vector<32x64xf32>
    %c0_91 = arith.constant 0 : index
    %c0_92 = arith.constant 0 : index
    %150 = vector.load %arg30[%c0_91, %c0_92] : memref<64x128xf32, #tpu.memory_space<vmem>>, vector<64x128xf32>
    %cst_93 = arith.constant dense<0.000000e+00> : vector<32x128xf32>
    %151 = tpu.matmul %143, %150, %cst_93 {dimension_numbers = #tpu.dot_dimension_numbers<[1], [0], [0], [1], [0, 0, 1, 1], [], []>} : vector<32x64xf32>, vector<64x128xf32>, vector<32x128xf32> -> vector<32x128xf32>
    %c0_94 = arith.constant 0 : index
    %c0_95 = arith.constant 0 : index
    %152 = vector.load %arg29[%c0_94, %c0_95] : memref<64x128xf32, #tpu.memory_space<vmem>>, vector<64x128xf32>
    %cst_96 = arith.constant dense<0.000000e+00> : vector<32x128xf32>
    %153 = tpu.matmul %146, %152, %cst_96 {dimension_numbers = #tpu.dot_dimension_numbers<[1], [0], [0], [1], [0, 0, 1, 1], [], []>} : vector<32x64xf32>, vector<64x128xf32>, vector<32x128xf32> -> vector<32x128xf32>
    %154 = arith.addf %151, %153 : vector<32x128xf32>
    %c0_97 = arith.constant 0 : index
    %c0_98 = arith.constant 0 : index
    %155 = vector.load %arg31[%c0_97, %c0_98] : memref<64x128xf32, #tpu.memory_space<vmem>>, vector<64x128xf32>
    %cst_99 = arith.constant dense<0.000000e+00> : vector<32x128xf32>
    %156 = tpu.matmul %149, %155, %cst_99 {dimension_numbers = #tpu.dot_dimension_numbers<[1], [0], [0], [1], [0, 0, 1, 1], [], []>} : vector<32x64xf32>, vector<64x128xf32>, vector<32x128xf32> -> vector<32x128xf32>
    %157 = arith.addf %154, %156 : vector<32x128xf32>
    %c0_100 = arith.constant 0 : index
    %c0_101 = arith.constant 0 : index
    %158 = vector.load %arg32[%c0_100, %c0_101] : memref<1x128xf32, #tpu.memory_space<vmem>>, vector<1x128xf32>
    %159 = vector.broadcast %158 : vector<1x128xf32> to vector<32x128xf32>
    %160 = arith.mulf %157, %159 : vector<32x128xf32>
    %c0_102 = arith.constant 0 : index
    %c0_103 = arith.constant 0 : index
    %161 = vector.load %arg33[%c0_102, %c0_103] : memref<1x128xf32, #tpu.memory_space<vmem>>, vector<1x128xf32>
    %162 = vector.broadcast %161 : vector<1x128xf32> to vector<32x128xf32>
    %163 = arith.addf %160, %162 : vector<32x128xf32>
    %cst_104 = arith.constant 0.000000e+00 : f32
    %164 = vector.broadcast %cst_104 : f32 to vector<32x128xf32>
    %165 = arith.maximumf %163, %164 : vector<32x128xf32>
    %c1_i32_105 = arith.constant 1 : i32
    %166 = tpu.dynamic_rotate %165 by %c1_i32_105 dim 0 : vector<32x128xf32>, i32 -> vector<32x128xf32>
    %167 = vector.broadcast %22 : vector<32x1xf32> to vector<32x128xf32>
    %168 = arith.mulf %166, %167 : vector<32x128xf32>
    %c31_i32_106 = arith.constant 31 : i32
    %169 = tpu.dynamic_rotate %165 by %c31_i32_106 dim 0 : vector<32x128xf32>, i32 -> vector<32x128xf32>
    %170 = vector.broadcast %26 : vector<32x1xf32> to vector<32x128xf32>
    %171 = arith.mulf %169, %170 : vector<32x128xf32>
    %c0_107 = arith.constant 0 : index
    %c0_108 = arith.constant 0 : index
    %172 = vector.load %arg35[%c0_107, %c0_108] : memref<128x128xf32, #tpu.memory_space<vmem>>, vector<128x128xf32>
    %cst_109 = arith.constant dense<0.000000e+00> : vector<32x128xf32>
    %173 = tpu.matmul %165, %172, %cst_109 {dimension_numbers = #tpu.dot_dimension_numbers<[1], [0], [0], [1], [0, 0, 1, 1], [], []>} : vector<32x128xf32>, vector<128x128xf32>, vector<32x128xf32> -> vector<32x128xf32>
    %c0_110 = arith.constant 0 : index
    %c0_111 = arith.constant 0 : index
    %174 = vector.load %arg34[%c0_110, %c0_111] : memref<128x128xf32, #tpu.memory_space<vmem>>, vector<128x128xf32>
    %cst_112 = arith.constant dense<0.000000e+00> : vector<32x128xf32>
    %175 = tpu.matmul %168, %174, %cst_112 {dimension_numbers = #tpu.dot_dimension_numbers<[1], [0], [0], [1], [0, 0, 1, 1], [], []>} : vector<32x128xf32>, vector<128x128xf32>, vector<32x128xf32> -> vector<32x128xf32>
    %176 = arith.addf %173, %175 : vector<32x128xf32>
    %c0_113 = arith.constant 0 : index
    %c0_114 = arith.constant 0 : index
    %177 = vector.load %arg36[%c0_113, %c0_114] : memref<128x128xf32, #tpu.memory_space<vmem>>, vector<128x128xf32>
    %cst_115 = arith.constant dense<0.000000e+00> : vector<32x128xf32>
    %178 = tpu.matmul %171, %177, %cst_115 {dimension_numbers = #tpu.dot_dimension_numbers<[1], [0], [0], [1], [0, 0, 1, 1], [], []>} : vector<32x128xf32>, vector<128x128xf32>, vector<32x128xf32> -> vector<32x128xf32>
    %179 = arith.addf %176, %178 : vector<32x128xf32>
    %c0_116 = arith.constant 0 : index
    %c0_117 = arith.constant 0 : index
    %180 = vector.load %arg37[%c0_116, %c0_117] : memref<1x128xf32, #tpu.memory_space<vmem>>, vector<1x128xf32>
    %181 = vector.broadcast %180 : vector<1x128xf32> to vector<32x128xf32>
    %182 = arith.mulf %179, %181 : vector<32x128xf32>
    %c0_118 = arith.constant 0 : index
    %c0_119 = arith.constant 0 : index
    %183 = vector.load %arg38[%c0_118, %c0_119] : memref<1x128xf32, #tpu.memory_space<vmem>>, vector<1x128xf32>
    %184 = vector.broadcast %183 : vector<1x128xf32> to vector<32x128xf32>
    %185 = arith.addf %182, %184 : vector<32x128xf32>
    %c0_120 = arith.constant 0 : index
    %c0_121 = arith.constant 0 : index
    %186 = vector.load %arg39[%c0_120, %c0_121] : memref<64x128xf32, #tpu.memory_space<vmem>>, vector<64x128xf32>
    %cst_122 = arith.constant dense<0.000000e+00> : vector<32x128xf32>
    %187 = tpu.matmul %143, %186, %cst_122 {dimension_numbers = #tpu.dot_dimension_numbers<[1], [0], [0], [1], [0, 0, 1, 1], [], []>} : vector<32x64xf32>, vector<64x128xf32>, vector<32x128xf32> -> vector<32x128xf32>
    %c0_123 = arith.constant 0 : index
    %c0_124 = arith.constant 0 : index
    %188 = vector.load %arg40[%c0_123, %c0_124] : memref<1x128xf32, #tpu.memory_space<vmem>>, vector<1x128xf32>
    %189 = vector.broadcast %188 : vector<1x128xf32> to vector<32x128xf32>
    %190 = arith.addf %187, %189 : vector<32x128xf32>
    %191 = arith.addf %185, %190 : vector<32x128xf32>
    %cst_125 = arith.constant 0.000000e+00 : f32
    %192 = vector.broadcast %cst_125 : f32 to vector<32x128xf32>
    %193 = arith.maximumf %191, %192 : vector<32x128xf32>
    %c1_i32_126 = arith.constant 1 : i32
    %194 = tpu.dynamic_rotate %193 by %c1_i32_126 dim 0 : vector<32x128xf32>, i32 -> vector<32x128xf32>
    %195 = vector.broadcast %22 : vector<32x1xf32> to vector<32x128xf32>
    %196 = arith.mulf %194, %195 : vector<32x128xf32>
    %c31_i32_127 = arith.constant 31 : i32
    %197 = tpu.dynamic_rotate %193 by %c31_i32_127 dim 0 : vector<32x128xf32>, i32 -> vector<32x128xf32>
    %198 = vector.broadcast %26 : vector<32x1xf32> to vector<32x128xf32>
    %199 = arith.mulf %197, %198 : vector<32x128xf32>
    %c0_128 = arith.constant 0 : index
    %c0_129 = arith.constant 0 : index
    %200 = vector.load %arg42[%c0_128, %c0_129] : memref<128x256xf32, #tpu.memory_space<vmem>>, vector<128x256xf32>
    %cst_130 = arith.constant dense<0.000000e+00> : vector<32x256xf32>
    %201 = tpu.matmul %193, %200, %cst_130 {dimension_numbers = #tpu.dot_dimension_numbers<[1], [0], [0], [1], [0, 0, 1, 1], [], []>} : vector<32x128xf32>, vector<128x256xf32>, vector<32x256xf32> -> vector<32x256xf32>
    %c0_131 = arith.constant 0 : index
    %c0_132 = arith.constant 0 : index
    %202 = vector.load %arg41[%c0_131, %c0_132] : memref<128x256xf32, #tpu.memory_space<vmem>>, vector<128x256xf32>
    %cst_133 = arith.constant dense<0.000000e+00> : vector<32x256xf32>
    %203 = tpu.matmul %196, %202, %cst_133 {dimension_numbers = #tpu.dot_dimension_numbers<[1], [0], [0], [1], [0, 0, 1, 1], [], []>} : vector<32x128xf32>, vector<128x256xf32>, vector<32x256xf32> -> vector<32x256xf32>
    %204 = arith.addf %201, %203 : vector<32x256xf32>
    %c0_134 = arith.constant 0 : index
    %c0_135 = arith.constant 0 : index
    %205 = vector.load %arg43[%c0_134, %c0_135] : memref<128x256xf32, #tpu.memory_space<vmem>>, vector<128x256xf32>
    %cst_136 = arith.constant dense<0.000000e+00> : vector<32x256xf32>
    %206 = tpu.matmul %199, %205, %cst_136 {dimension_numbers = #tpu.dot_dimension_numbers<[1], [0], [0], [1], [0, 0, 1, 1], [], []>} : vector<32x128xf32>, vector<128x256xf32>, vector<32x256xf32> -> vector<32x256xf32>
    %207 = arith.addf %204, %206 : vector<32x256xf32>
    %c0_137 = arith.constant 0 : index
    %c0_138 = arith.constant 0 : index
    %208 = vector.load %arg44[%c0_137, %c0_138] : memref<1x256xf32, #tpu.memory_space<vmem>>, vector<1x256xf32>
    %209 = vector.broadcast %208 : vector<1x256xf32> to vector<32x256xf32>
    %210 = arith.mulf %207, %209 : vector<32x256xf32>
    %c0_139 = arith.constant 0 : index
    %c0_140 = arith.constant 0 : index
    %211 = vector.load %arg45[%c0_139, %c0_140] : memref<1x256xf32, #tpu.memory_space<vmem>>, vector<1x256xf32>
    %212 = vector.broadcast %211 : vector<1x256xf32> to vector<32x256xf32>
    %213 = arith.addf %210, %212 : vector<32x256xf32>
    %cst_141 = arith.constant 0.000000e+00 : f32
    %214 = vector.broadcast %cst_141 : f32 to vector<32x256xf32>
    %215 = arith.maximumf %213, %214 : vector<32x256xf32>
    %c1_i32_142 = arith.constant 1 : i32
    %216 = tpu.dynamic_rotate %215 by %c1_i32_142 dim 0 : vector<32x256xf32>, i32 -> vector<32x256xf32>
    %217 = vector.broadcast %22 : vector<32x1xf32> to vector<32x256xf32>
    %218 = arith.mulf %216, %217 : vector<32x256xf32>
    %c31_i32_143 = arith.constant 31 : i32
    %219 = tpu.dynamic_rotate %215 by %c31_i32_143 dim 0 : vector<32x256xf32>, i32 -> vector<32x256xf32>
    %220 = vector.broadcast %26 : vector<32x1xf32> to vector<32x256xf32>
    %221 = arith.mulf %219, %220 : vector<32x256xf32>
    %c0_144 = arith.constant 0 : index
    %c0_145 = arith.constant 0 : index
    %222 = vector.load %arg47[%c0_144, %c0_145] : memref<256x256xf32, #tpu.memory_space<vmem>>, vector<256x256xf32>
    %cst_146 = arith.constant dense<0.000000e+00> : vector<32x256xf32>
    %223 = tpu.matmul %215, %222, %cst_146 {dimension_numbers = #tpu.dot_dimension_numbers<[1], [0], [0], [1], [0, 0, 1, 1], [], []>} : vector<32x256xf32>, vector<256x256xf32>, vector<32x256xf32> -> vector<32x256xf32>
    %c0_147 = arith.constant 0 : index
    %c0_148 = arith.constant 0 : index
    %224 = vector.load %arg46[%c0_147, %c0_148] : memref<256x256xf32, #tpu.memory_space<vmem>>, vector<256x256xf32>
    %cst_149 = arith.constant dense<0.000000e+00> : vector<32x256xf32>
    %225 = tpu.matmul %218, %224, %cst_149 {dimension_numbers = #tpu.dot_dimension_numbers<[1], [0], [0], [1], [0, 0, 1, 1], [], []>} : vector<32x256xf32>, vector<256x256xf32>, vector<32x256xf32> -> vector<32x256xf32>
    %226 = arith.addf %223, %225 : vector<32x256xf32>
    %c0_150 = arith.constant 0 : index
    %c0_151 = arith.constant 0 : index
    %227 = vector.load %arg48[%c0_150, %c0_151] : memref<256x256xf32, #tpu.memory_space<vmem>>, vector<256x256xf32>
    %cst_152 = arith.constant dense<0.000000e+00> : vector<32x256xf32>
    %228 = tpu.matmul %221, %227, %cst_152 {dimension_numbers = #tpu.dot_dimension_numbers<[1], [0], [0], [1], [0, 0, 1, 1], [], []>} : vector<32x256xf32>, vector<256x256xf32>, vector<32x256xf32> -> vector<32x256xf32>
    %229 = arith.addf %226, %228 : vector<32x256xf32>
    %c0_153 = arith.constant 0 : index
    %c0_154 = arith.constant 0 : index
    %230 = vector.load %arg49[%c0_153, %c0_154] : memref<1x256xf32, #tpu.memory_space<vmem>>, vector<1x256xf32>
    %231 = vector.broadcast %230 : vector<1x256xf32> to vector<32x256xf32>
    %232 = arith.mulf %229, %231 : vector<32x256xf32>
    %c0_155 = arith.constant 0 : index
    %c0_156 = arith.constant 0 : index
    %233 = vector.load %arg50[%c0_155, %c0_156] : memref<1x256xf32, #tpu.memory_space<vmem>>, vector<1x256xf32>
    %234 = vector.broadcast %233 : vector<1x256xf32> to vector<32x256xf32>
    %235 = arith.addf %232, %234 : vector<32x256xf32>
    %c0_157 = arith.constant 0 : index
    %c0_158 = arith.constant 0 : index
    %236 = vector.load %arg51[%c0_157, %c0_158] : memref<128x256xf32, #tpu.memory_space<vmem>>, vector<128x256xf32>
    %cst_159 = arith.constant dense<0.000000e+00> : vector<32x256xf32>
    %237 = tpu.matmul %193, %236, %cst_159 {dimension_numbers = #tpu.dot_dimension_numbers<[1], [0], [0], [1], [0, 0, 1, 1], [], []>} : vector<32x128xf32>, vector<128x256xf32>, vector<32x256xf32> -> vector<32x256xf32>
    %c0_160 = arith.constant 0 : index
    %c0_161 = arith.constant 0 : index
    %238 = vector.load %arg52[%c0_160, %c0_161] : memref<1x256xf32, #tpu.memory_space<vmem>>, vector<1x256xf32>
    %239 = vector.broadcast %238 : vector<1x256xf32> to vector<32x256xf32>
    %240 = arith.addf %237, %239 : vector<32x256xf32>
    %241 = arith.addf %235, %240 : vector<32x256xf32>
    %cst_162 = arith.constant 0.000000e+00 : f32
    %242 = vector.broadcast %cst_162 : f32 to vector<32x256xf32>
    %243 = arith.maximumf %241, %242 : vector<32x256xf32>
    %c0_163 = arith.constant 0 : index
    %c0_164 = arith.constant 0 : index
    %244 = vector.load %arg53[%c0_163, %c0_164] : memref<256x128xf32, #tpu.memory_space<vmem>>, vector<256x128xf32>
    %cst_165 = arith.constant dense<0.000000e+00> : vector<32x128xf32>
    %245 = tpu.matmul %243, %244, %cst_165 {dimension_numbers = #tpu.dot_dimension_numbers<[1], [0], [0], [1], [0, 0, 1, 1], [], []>} : vector<32x256xf32>, vector<256x128xf32>, vector<32x128xf32> -> vector<32x128xf32>
    %c0_166 = arith.constant 0 : index
    %c0_167 = arith.constant 0 : index
    %246 = vector.load %arg54[%c0_166, %c0_167] : memref<1x128xf32, #tpu.memory_space<vmem>>, vector<1x128xf32>
    %247 = vector.broadcast %246 : vector<1x128xf32> to vector<32x128xf32>
    %248 = arith.addf %245, %247 : vector<32x128xf32>
    %249 = vector.shape_cast %248 : vector<32x128xf32> to vector<2x16x128xf32>
    %c0_168 = arith.constant 0 : index
    %c0_169 = arith.constant 0 : index
    %c0_170 = arith.constant 0 : index
    %250 = vector.load %arg55[%c0_168, %c0_169, %c0_170] : memref<2x16x128xf32, #tpu.memory_space<vmem>>, vector<2x16x128xf32>
    tpu.vector_store %arg55[%c0_168, %c0_169, %c0_170], %249 {strides = array<i32>} : memref<2x16x128xf32, #tpu.memory_space<vmem>>, vector<2x16x128xf32>,
    return
  }
  func.func @transform_0(%arg0: i32) -> (i32, i32, i32) {
    %c0_i32 = arith.constant 0 : i32
    %c0_i32_0 = arith.constant 0 : i32
    %c0_i32_1 = arith.constant 0 : i32
    return %arg0, %c0_i32, %c0_i32_0 : i32, i32, i32
  }
  func.func @transform_1(%arg0: i32) -> (i32, i32) {
    %c0_i32 = arith.constant 0 : i32
    %c0_i32_0 = arith.constant 0 : i32
    %c0_i32_1 = arith.constant 0 : i32
    return %c0_i32, %c0_i32_0 : i32, i32
  }
  func.func @transform_2(%arg0: i32) -> (i32, i32) {
    %c0_i32 = arith.constant 0 : i32
    %c0_i32_0 = arith.constant 0 : i32
    %c0_i32_1 = arith.constant 0 : i32
    return %c0_i32, %c0_i32_0 : i32, i32
  }
  func.func @transform_3(%arg0: i32) -> (i32, i32) {
    %c0_i32 = arith.constant 0 : i32
    %c0_i32_0 = arith.constant 0 : i32
    %c0_i32_1 = arith.constant 0 : i32
    return %c0_i32, %c0_i32_0 : i32, i32
  }
  func.func @transform_4(%arg0: i32) -> (i32, i32) {
    %c0_i32 = arith.constant 0 : i32
    %c0_i32_0 = arith.constant 0 : i32
    %c0_i32_1 = arith.constant 0 : i32
    return %c0_i32, %c0_i32_0 : i32, i32
  }
  func.func @transform_5(%arg0: i32) -> (i32, i32) {
    %c0_i32 = arith.constant 0 : i32
    %c0_i32_0 = arith.constant 0 : i32
    %c0_i32_1 = arith.constant 0 : i32
    return %c0_i32, %c0_i32_0 : i32, i32
  }
  func.func @transform_6(%arg0: i32) -> (i32, i32) {
    %c0_i32 = arith.constant 0 : i32
    %c0_i32_0 = arith.constant 0 : i32
    %c0_i32_1 = arith.constant 0 : i32
    return %c0_i32, %c0_i32_0 : i32, i32
  }
  func.func @transform_7(%arg0: i32) -> (i32, i32) {
    %c0_i32 = arith.constant 0 : i32
    %c0_i32_0 = arith.constant 0 : i32
    %c0_i32_1 = arith.constant 0 : i32
    return %c0_i32, %c0_i32_0 : i32, i32
  }
  func.func @transform_8(%arg0: i32) -> (i32, i32) {
    %c0_i32 = arith.constant 0 : i32
    %c0_i32_0 = arith.constant 0 : i32
    %c0_i32_1 = arith.constant 0 : i32
    return %c0_i32, %c0_i32_0 : i32, i32
  }
  func.func @transform_9(%arg0: i32) -> (i32, i32) {
    %c0_i32 = arith.constant 0 : i32
    %c0_i32_0 = arith.constant 0 : i32
    %c0_i32_1 = arith.constant 0 : i32
    return %c0_i32, %c0_i32_0 : i32, i32
  }
  func.func @transform_10(%arg0: i32) -> (i32, i32) {
    %c0_i32 = arith.constant 0 : i32
    %c0_i32_0 = arith.constant 0 : i32
    %c0_i32_1 = arith.constant 0 : i32
    return %c0_i32, %c0_i32_0 : i32, i32
  }
  func.func @transform_11(%arg0: i32) -> (i32, i32) {
    %c0_i32 = arith.constant 0 : i32
    %c0_i32_0 = arith.constant 0 : i32
    %c0_i32_1 = arith.constant 0 : i32
    return %c0_i32, %c0_i32_0 : i32, i32
  }
  func.func @transform_12(%arg0: i32) -> (i32, i32) {
    %c0_i32 = arith.constant 0 : i32
    %c0_i32_0 = arith.constant 0 : i32
    %c0_i32_1 = arith.constant 0 : i32
    return %c0_i32, %c0_i32_0 : i32, i32
  }
  func.func @transform_13(%arg0: i32) -> (i32, i32) {
    %c0_i32 = arith.constant 0 : i32
    %c0_i32_0 = arith.constant 0 : i32
    %c0_i32_1 = arith.constant 0 : i32
    return %c0_i32, %c0_i32_0 : i32, i32
  }
  func.func @transform_14(%arg0: i32) -> (i32, i32) {
    %c0_i32 = arith.constant 0 : i32
    %c0_i32_0 = arith.constant 0 : i32
    %c0_i32_1 = arith.constant 0 : i32
    return %c0_i32, %c0_i32_0 : i32, i32
  }
  func.func @transform_15(%arg0: i32) -> (i32, i32) {
    %c0_i32 = arith.constant 0 : i32
    %c0_i32_0 = arith.constant 0 : i32
    %c0_i32_1 = arith.constant 0 : i32
    return %c0_i32, %c0_i32_0 : i32, i32
  }
  func.func @transform_16(%arg0: i32) -> (i32, i32) {
    %c0_i32 = arith.constant 0 : i32
    %c0_i32_0 = arith.constant 0 : i32
    %c0_i32_1 = arith.constant 0 : i32
    return %c0_i32, %c0_i32_0 : i32, i32
  }
  func.func @transform_17(%arg0: i32) -> (i32, i32) {
    %c0_i32 = arith.constant 0 : i32
    %c0_i32_0 = arith.constant 0 : i32
    %c0_i32_1 = arith.constant 0 : i32
    return %c0_i32, %c0_i32_0 : i32, i32
  }
  func.func @transform_18(%arg0: i32) -> (i32, i32) {
    %c0_i32 = arith.constant 0 : i32
    %c0_i32_0 = arith.constant 0 : i32
    %c0_i32_1 = arith.constant 0 : i32
    return %c0_i32, %c0_i32_0 : i32, i32
  }
  func.func @transform_19(%arg0: i32) -> (i32, i32) {
    %c0_i32 = arith.constant 0 : i32
    %c0_i32_0 = arith.constant 0 : i32
    %c0_i32_1 = arith.constant 0 : i32
    return %c0_i32, %c0_i32_0 : i32, i32
  }
  func.func @transform_20(%arg0: i32) -> (i32, i32) {
    %c0_i32 = arith.constant 0 : i32
    %c0_i32_0 = arith.constant 0 : i32
    %c0_i32_1 = arith.constant 0 : i32
    return %c0_i32, %c0_i32_0 : i32, i32
  }
  func.func @transform_21(%arg0: i32) -> (i32, i32) {
    %c0_i32 = arith.constant 0 : i32
    %c0_i32_0 = arith.constant 0 : i32
    %c0_i32_1 = arith.constant 0 : i32
    return %c0_i32, %c0_i32_0 : i32, i32
  }
  func.func @transform_22(%arg0: i32) -> (i32, i32) {
    %c0_i32 = arith.constant 0 : i32
    %c0_i32_0 = arith.constant 0 : i32
    %c0_i32_1 = arith.constant 0 : i32
    return %c0_i32, %c0_i32_0 : i32, i32
  }
  func.func @transform_23(%arg0: i32) -> (i32, i32) {
    %c0_i32 = arith.constant 0 : i32
    %c0_i32_0 = arith.constant 0 : i32
    %c0_i32_1 = arith.constant 0 : i32
    return %c0_i32, %c0_i32_0 : i32, i32
  }
  func.func @transform_24(%arg0: i32) -> (i32, i32) {
    %c0_i32 = arith.constant 0 : i32
    %c0_i32_0 = arith.constant 0 : i32
    %c0_i32_1 = arith.constant 0 : i32
    return %c0_i32, %c0_i32_0 : i32, i32
  }
  func.func @transform_25(%arg0: i32) -> (i32, i32) {
    %c0_i32 = arith.constant 0 : i32
    %c0_i32_0 = arith.constant 0 : i32
    %c0_i32_1 = arith.constant 0 : i32
    return %c0_i32, %c0_i32_0 : i32, i32
  }
  func.func @transform_26(%arg0: i32) -> (i32, i32) {
    %c0_i32 = arith.constant 0 : i32
    %c0_i32_0 = arith.constant 0 : i32
    %c0_i32_1 = arith.constant 0 : i32
    return %c0_i32, %c0_i32_0 : i32, i32
  }
  func.func @transform_27(%arg0: i32) -> (i32, i32) {
    %c0_i32 = arith.constant 0 : i32
    %c0_i32_0 = arith.constant 0 : i32
    %c0_i32_1 = arith.constant 0 : i32
    return %c0_i32, %c0_i32_0 : i32, i32
  }
  func.func @transform_28(%arg0: i32) -> (i32, i32) {
    %c0_i32 = arith.constant 0 : i32
    %c0_i32_0 = arith.constant 0 : i32
    %c0_i32_1 = arith.constant 0 : i32
    return %c0_i32, %c0_i32_0 : i32, i32
  }
  func.func @transform_29(%arg0: i32) -> (i32, i32) {
    %c0_i32 = arith.constant 0 : i32
    %c0_i32_0 = arith.constant 0 : i32
    %c0_i32_1 = arith.constant 0 : i32
    return %c0_i32, %c0_i32_0 : i32, i32
  }
  func.func @transform_30(%arg0: i32) -> (i32, i32) {
    %c0_i32 = arith.constant 0 : i32
    %c0_i32_0 = arith.constant 0 : i32
    %c0_i32_1 = arith.constant 0 : i32
    return %c0_i32, %c0_i32_0 : i32, i32
  }
  func.func @transform_31(%arg0: i32) -> (i32, i32) {
    %c0_i32 = arith.constant 0 : i32
    %c0_i32_0 = arith.constant 0 : i32
    %c0_i32_1 = arith.constant 0 : i32
    return %c0_i32, %c0_i32_0 : i32, i32
  }
  func.func @transform_32(%arg0: i32) -> (i32, i32) {
    %c0_i32 = arith.constant 0 : i32
    %c0_i32_0 = arith.constant 0 : i32
    %c0_i32_1 = arith.constant 0 : i32
    return %c0_i32, %c0_i32_0 : i32, i32
  }
  func.func @transform_33(%arg0: i32) -> (i32, i32) {
    %c0_i32 = arith.constant 0 : i32
    %c0_i32_0 = arith.constant 0 : i32
    %c0_i32_1 = arith.constant 0 : i32
    return %c0_i32, %c0_i32_0 : i32, i32
  }
  func.func @transform_34(%arg0: i32) -> (i32, i32) {
    %c0_i32 = arith.constant 0 : i32
    %c0_i32_0 = arith.constant 0 : i32
    %c0_i32_1 = arith.constant 0 : i32
    return %c0_i32, %c0_i32_0 : i32, i32
  }
  func.func @transform_35(%arg0: i32) -> (i32, i32) {
    %c0_i32 = arith.constant 0 : i32
    %c0_i32_0 = arith.constant 0 : i32
    %c0_i32_1 = arith.constant 0 : i32
    return %c0_i32, %c0_i32_0 : i32, i32
  }
  func.func @transform_36(%arg0: i32) -> (i32, i32) {
    %c0_i32 = arith.constant 0 : i32
    %c0_i32_0 = arith.constant 0 : i32
    %c0_i32_1 = arith.constant 0 : i32
    return %c0_i32, %c0_i32_0 : i32, i32
  }
  func.func @transform_37(%arg0: i32) -> (i32, i32) {
    %c0_i32 = arith.constant 0 : i32
    %c0_i32_0 = arith.constant 0 : i32
    %c0_i32_1 = arith.constant 0 : i32
    return %c0_i32, %c0_i32_0 : i32, i32
  }
  func.func @transform_38(%arg0: i32) -> (i32, i32) {
    %c0_i32 = arith.constant 0 : i32
    %c0_i32_0 = arith.constant 0 : i32
    %c0_i32_1 = arith.constant 0 : i32
    return %c0_i32, %c0_i32_0 : i32, i32
  }
  func.func @transform_39(%arg0: i32) -> (i32, i32) {
    %c0_i32 = arith.constant 0 : i32
    %c0_i32_0 = arith.constant 0 : i32
    %c0_i32_1 = arith.constant 0 : i32
    return %c0_i32, %c0_i32_0 : i32, i32
  }
  func.func @transform_40(%arg0: i32) -> (i32, i32) {
    %c0_i32 = arith.constant 0 : i32
    %c0_i32_0 = arith.constant 0 : i32
    %c0_i32_1 = arith.constant 0 : i32
    return %c0_i32, %c0_i32_0 : i32, i32
  }
  func.func @transform_41(%arg0: i32) -> (i32, i32) {
    %c0_i32 = arith.constant 0 : i32
    %c0_i32_0 = arith.constant 0 : i32
    %c0_i32_1 = arith.constant 0 : i32
    return %c0_i32, %c0_i32_0 : i32, i32
  }
  func.func @transform_42(%arg0: i32) -> (i32, i32) {
    %c0_i32 = arith.constant 0 : i32
    %c0_i32_0 = arith.constant 0 : i32
    %c0_i32_1 = arith.constant 0 : i32
    return %c0_i32, %c0_i32_0 : i32, i32
  }
  func.func @transform_43(%arg0: i32) -> (i32, i32) {
    %c0_i32 = arith.constant 0 : i32
    %c0_i32_0 = arith.constant 0 : i32
    %c0_i32_1 = arith.constant 0 : i32
    return %c0_i32, %c0_i32_0 : i32, i32
  }
  func.func @transform_44(%arg0: i32) -> (i32, i32) {
    %c0_i32 = arith.constant 0 : i32
    %c0_i32_0 = arith.constant 0 : i32
    %c0_i32_1 = arith.constant 0 : i32
    return %c0_i32, %c0_i32_0 : i32, i32
  }
  func.func @transform_45(%arg0: i32) -> (i32, i32) {
    %c0_i32 = arith.constant 0 : i32
    %c0_i32_0 = arith.constant 0 : i32
    %c0_i32_1 = arith.constant 0 : i32
    return %c0_i32, %c0_i32_0 : i32, i32
  }
  func.func @transform_46(%arg0: i32) -> (i32, i32) {
    %c0_i32 = arith.constant 0 : i32
    %c0_i32_0 = arith.constant 0 : i32
    %c0_i32_1 = arith.constant 0 : i32
    return %c0_i32, %c0_i32_0 : i32, i32
  }
  func.func @transform_47(%arg0: i32) -> (i32, i32) {
    %c0_i32 = arith.constant 0 : i32
    %c0_i32_0 = arith.constant 0 : i32
    %c0_i32_1 = arith.constant 0 : i32
    return %c0_i32, %c0_i32_0 : i32, i32
  }
  func.func @transform_48(%arg0: i32) -> (i32, i32) {
    %c0_i32 = arith.constant 0 : i32
    %c0_i32_0 = arith.constant 0 : i32
    %c0_i32_1 = arith.constant 0 : i32
    return %c0_i32, %c0_i32_0 : i32, i32
  }
  func.func @transform_49(%arg0: i32) -> (i32, i32) {
    %c0_i32 = arith.constant 0 : i32
    %c0_i32_0 = arith.constant 0 : i32
    %c0_i32_1 = arith.constant 0 : i32
    return %c0_i32, %c0_i32_0 : i32, i32
  }
  func.func @transform_50(%arg0: i32) -> (i32, i32) {
    %c0_i32 = arith.constant 0 : i32
    %c0_i32_0 = arith.constant 0 : i32
    %c0_i32_1 = arith.constant 0 : i32
    return %c0_i32, %c0_i32_0 : i32, i32
  }
  func.func @transform_51(%arg0: i32) -> (i32, i32) {
    %c0_i32 = arith.constant 0 : i32
    %c0_i32_0 = arith.constant 0 : i32
    %c0_i32_1 = arith.constant 0 : i32
    return %c0_i32, %c0_i32_0 : i32, i32
  }
  func.func @transform_52(%arg0: i32) -> (i32, i32) {
    %c0_i32 = arith.constant 0 : i32
    %c0_i32_0 = arith.constant 0 : i32
    %c0_i32_1 = arith.constant 0 : i32
    return %c0_i32, %c0_i32_0 : i32, i32
  }
  func.func @transform_53(%arg0: i32) -> (i32, i32) {
    %c0_i32 = arith.constant 0 : i32
    %c0_i32_0 = arith.constant 0 : i32
    %c0_i32_1 = arith.constant 0 : i32
    return %c0_i32, %c0_i32_0 : i32, i32
  }
  func.func @transform_54(%arg0: i32) -> (i32, i32, i32) {
    %c0_i32 = arith.constant 0 : i32
    %c0_i32_0 = arith.constant 0 : i32
    %c0_i32_1 = arith.constant 0 : i32
    return %arg0, %c0_i32, %c0_i32_0 : i32, i32, i32
  }
}

module attributes {stable_mosaic.version = 11 : i64} {
  func.func @_fused_forward_kernel(%arg0: i32, %arg1: memref<2x16x4xf32, #tpu.memory_space<vmem>>, %arg2: memref<4x32xf32, #tpu.memory_space<vmem>>, %arg3: memref<4x32xf32, #tpu.memory_space<vmem>>, %arg4: memref<4x32xf32, #tpu.memory_space<vmem>>, %arg5: memref<1x32xf32, #tpu.memory_space<vmem>>, %arg6: memref<1x32xf32, #tpu.memory_space<vmem>>, %arg7: memref<32x32xf32, #tpu.memory_space<vmem>>, %arg8: memref<32x32xf32, #tpu.memory_space<vmem>>, %arg9: memref<32x32xf32, #tpu.memory_space<vmem>>, %arg10: memref<1x32xf32, #tpu.memory_space<vmem>>, %arg11: memref<1x32xf32, #tpu.memory_space<vmem>>, %arg12: memref<32x32xf32, #tpu.memory_space<vmem>>, %arg13: memref<32x32xf32, #tpu.memory_space<vmem>>, %arg14: memref<32x32xf32, #tpu.memory_space<vmem>>, %arg15: memref<1x32xf32, #tpu.memory_space<vmem>>, %arg16: memref<1x32xf32, #tpu.memory_space<vmem>>, %arg17: memref<32x64xf32, #tpu.memory_space<vmem>>, %arg18: memref<32x64xf32, #tpu.memory_space<vmem>>, %arg19: memref<32x64xf32, #tpu.memory_space<vmem>>, %arg20: memref<1x64xf32, #tpu.memory_space<vmem>>, %arg21: memref<1x64xf32, #tpu.memory_space<vmem>>, %arg22: memref<64x64xf32, #tpu.memory_space<vmem>>, %arg23: memref<64x64xf32, #tpu.memory_space<vmem>>, %arg24: memref<64x64xf32, #tpu.memory_space<vmem>>, %arg25: memref<1x64xf32, #tpu.memory_space<vmem>>, %arg26: memref<1x64xf32, #tpu.memory_space<vmem>>, %arg27: memref<32x64xf32, #tpu.memory_space<vmem>>, %arg28: memref<1x64xf32, #tpu.memory_space<vmem>>, %arg29: memref<64x128xf32, #tpu.memory_space<vmem>>, %arg30: memref<64x128xf32, #tpu.memory_space<vmem>>, %arg31: memref<64x128xf32, #tpu.memory_space<vmem>>, %arg32: memref<1x128xf32, #tpu.memory_space<vmem>>, %arg33: memref<1x128xf32, #tpu.memory_space<vmem>>, %arg34: memref<128x128xf32, #tpu.memory_space<vmem>>, %arg35: memref<128x128xf32, #tpu.memory_space<vmem>>, %arg36: memref<128x128xf32, #tpu.memory_space<vmem>>, %arg37: memref<1x128xf32, #tpu.memory_space<vmem>>, %arg38: memref<1x128xf32, #tpu.memory_space<vmem>>, %arg39: memref<64x128xf32, #tpu.memory_space<vmem>>, %arg40: memref<1x128xf32, #tpu.memory_space<vmem>>, %arg41: memref<128x256xf32, #tpu.memory_space<vmem>>, %arg42: memref<128x256xf32, #tpu.memory_space<vmem>>, %arg43: memref<128x256xf32, #tpu.memory_space<vmem>>, %arg44: memref<1x256xf32, #tpu.memory_space<vmem>>, %arg45: memref<1x256xf32, #tpu.memory_space<vmem>>, %arg46: memref<256x256xf32, #tpu.memory_space<vmem>>, %arg47: memref<256x256xf32, #tpu.memory_space<vmem>>, %arg48: memref<256x256xf32, #tpu.memory_space<vmem>>, %arg49: memref<1x256xf32, #tpu.memory_space<vmem>>, %arg50: memref<1x256xf32, #tpu.memory_space<vmem>>, %arg51: memref<128x256xf32, #tpu.memory_space<vmem>>, %arg52: memref<1x256xf32, #tpu.memory_space<vmem>>, %arg53: memref<256x128xf32, #tpu.memory_space<vmem>>, %arg54: memref<1x128xf32, #tpu.memory_space<vmem>>, %arg55: memref<2x16x128xf32, #tpu.memory_space<vmem>>) attributes {dimension_semantics = [#tpu.dimension_semantics<parallel>], iteration_bounds = array<i64: 1>, scalar_prefetch = 0 : i64, scratch_operands = 0 : i64, tpu.core_type = #tpu.core_type<tc>, window_params = [{transform_indices = @transform_0, window_bounds = array<i64: 2, 16, 4>}, {pipeline_mode = #tpu.pipeline_mode<synchronous>, transform_indices = @transform_1, window_bounds = array<i64: 4, 32>}, {pipeline_mode = #tpu.pipeline_mode<synchronous>, transform_indices = @transform_2, window_bounds = array<i64: 4, 32>}, {pipeline_mode = #tpu.pipeline_mode<synchronous>, transform_indices = @transform_3, window_bounds = array<i64: 4, 32>}, {pipeline_mode = #tpu.pipeline_mode<synchronous>, transform_indices = @transform_4, window_bounds = array<i64: 1, 32>}, {pipeline_mode = #tpu.pipeline_mode<synchronous>, transform_indices = @transform_5, window_bounds = array<i64: 1, 32>}, {pipeline_mode = #tpu.pipeline_mode<synchronous>, transform_indices = @transform_6, window_bounds = array<i64: 32, 32>}, {pipeline_mode = #tpu.pipeline_mode<synchronous>, transform_indices = @transform_7, window_bounds = array<i64: 32, 32>}, {pipeline_mode = #tpu.pipeline_mode<synchronous>, transform_indices = @transform_8, window_bounds = array<i64: 32, 32>}, {pipeline_mode = #tpu.pipeline_mode<synchronous>, transform_indices = @transform_9, window_bounds = array<i64: 1, 32>}, {pipeline_mode = #tpu.pipeline_mode<synchronous>, transform_indices = @transform_10, window_bounds = array<i64: 1, 32>}, {pipeline_mode = #tpu.pipeline_mode<synchronous>, transform_indices = @transform_11, window_bounds = array<i64: 32, 32>}, {pipeline_mode = #tpu.pipeline_mode<synchronous>, transform_indices = @transform_12, window_bounds = array<i64: 32, 32>}, {pipeline_mode = #tpu.pipeline_mode<synchronous>, transform_indices = @transform_13, window_bounds = array<i64: 32, 32>}, {pipeline_mode = #tpu.pipeline_mode<synchronous>, transform_indices = @transform_14, window_bounds = array<i64: 1, 32>}, {pipeline_mode = #tpu.pipeline_mode<synchronous>, transform_indices = @transform_15, window_bounds = array<i64: 1, 32>}, {pipeline_mode = #tpu.pipeline_mode<synchronous>, transform_indices = @transform_16, window_bounds = array<i64: 32, 64>}, {pipeline_mode = #tpu.pipeline_mode<synchronous>, transform_indices = @transform_17, window_bounds = array<i64: 32, 64>}, {pipeline_mode = #tpu.pipeline_mode<synchronous>, transform_indices = @transform_18, window_bounds = array<i64: 32, 64>}, {pipeline_mode = #tpu.pipeline_mode<synchronous>, transform_indices = @transform_19, window_bounds = array<i64: 1, 64>}, {pipeline_mode = #tpu.pipeline_mode<synchronous>, transform_indices = @transform_20, window_bounds = array<i64: 1, 64>}, {pipeline_mode = #tpu.pipeline_mode<synchronous>, transform_indices = @transform_21, window_bounds = array<i64: 64, 64>}, {pipeline_mode = #tpu.pipeline_mode<synchronous>, transform_indices = @transform_22, window_bounds = array<i64: 64, 64>}, {pipeline_mode = #tpu.pipeline_mode<synchronous>, transform_indices = @transform_23, window_bounds = array<i64: 64, 64>}, {pipeline_mode = #tpu.pipeline_mode<synchronous>, transform_indices = @transform_24, window_bounds = array<i64: 1, 64>}, {pipeline_mode = #tpu.pipeline_mode<synchronous>, transform_indices = @transform_25, window_bounds = array<i64: 1, 64>}, {pipeline_mode = #tpu.pipeline_mode<synchronous>, transform_indices = @transform_26, window_bounds = array<i64: 32, 64>}, {pipeline_mode = #tpu.pipeline_mode<synchronous>, transform_indices = @transform_27, window_bounds = array<i64: 1, 64>}, {pipeline_mode = #tpu.pipeline_mode<synchronous>, transform_indices = @transform_28, window_bounds = array<i64: 64, 128>}, {pipeline_mode = #tpu.pipeline_mode<synchronous>, transform_indices = @transform_29, window_bounds = array<i64: 64, 128>}, {pipeline_mode = #tpu.pipeline_mode<synchronous>, transform_indices = @transform_30, window_bounds = array<i64: 64, 128>}, {pipeline_mode = #tpu.pipeline_mode<synchronous>, transform_indices = @transform_31, window_bounds = array<i64: 1, 128>}, {pipeline_mode = #tpu.pipeline_mode<synchronous>, transform_indices = @transform_32, window_bounds = array<i64: 1, 128>}, {pipeline_mode = #tpu.pipeline_mode<synchronous>, transform_indices = @transform_33, window_bounds = array<i64: 128, 128>}, {pipeline_mode = #tpu.pipeline_mode<synchronous>, transform_indices = @transform_34, window_bounds = array<i64: 128, 128>}, {pipeline_mode = #tpu.pipeline_mode<synchronous>, transform_indices = @transform_35, window_bounds = array<i64: 128, 128>}, {pipeline_mode = #tpu.pipeline_mode<synchronous>, transform_indices = @transform_36, window_bounds = array<i64: 1, 128>}, {pipeline_mode = #tpu.pipeline_mode<synchronous>, transform_indices = @transform_37, window_bounds = array<i64: 1, 128>}, {pipeline_mode = #tpu.pipeline_mode<synchronous>, transform_indices = @transform_38, window_bounds = array<i64: 64, 128>}, {pipeline_mode = #tpu.pipeline_mode<synchronous>, transform_indices = @transform_39, window_bounds = array<i64: 1, 128>}, {pipeline_mode = #tpu.pipeline_mode<synchronous>, transform_indices = @transform_40, window_bounds = array<i64: 128, 256>}, {pipeline_mode = #tpu.pipeline_mode<synchronous>, transform_indices = @transform_41, window_bounds = array<i64: 128, 256>}, {pipeline_mode = #tpu.pipeline_mode<synchronous>, transform_indices = @transform_42, window_bounds = array<i64: 128, 256>}, {pipeline_mode = #tpu.pipeline_mode<synchronous>, transform_indices = @transform_43, window_bounds = array<i64: 1, 256>}, {pipeline_mode = #tpu.pipeline_mode<synchronous>, transform_indices = @transform_44, window_bounds = array<i64: 1, 256>}, {pipeline_mode = #tpu.pipeline_mode<synchronous>, transform_indices = @transform_45, window_bounds = array<i64: 256, 256>}, {pipeline_mode = #tpu.pipeline_mode<synchronous>, transform_indices = @transform_46, window_bounds = array<i64: 256, 256>}, {pipeline_mode = #tpu.pipeline_mode<synchronous>, transform_indices = @transform_47, window_bounds = array<i64: 256, 256>}, {pipeline_mode = #tpu.pipeline_mode<synchronous>, transform_indices = @transform_48, window_bounds = array<i64: 1, 256>}, {pipeline_mode = #tpu.pipeline_mode<synchronous>, transform_indices = @transform_49, window_bounds = array<i64: 1, 256>}, {pipeline_mode = #tpu.pipeline_mode<synchronous>, transform_indices = @transform_50, window_bounds = array<i64: 128, 256>}, {pipeline_mode = #tpu.pipeline_mode<synchronous>, transform_indices = @transform_51, window_bounds = array<i64: 1, 256>}, {pipeline_mode = #tpu.pipeline_mode<synchronous>, transform_indices = @transform_52, window_bounds = array<i64: 256, 128>}, {pipeline_mode = #tpu.pipeline_mode<synchronous>, transform_indices = @transform_53, window_bounds = array<i64: 1, 128>}, {transform_indices = @transform_54, window_bounds = array<i64: 2, 16, 128>}]} {
    %c0 = arith.constant 0 : index
    %c0_0 = arith.constant 0 : index
    %c0_1 = arith.constant 0 : index
    %0 = vector.load %arg1[%c0, %c0_0, %c0_1] : memref<2x16x4xf32, #tpu.memory_space<vmem>>, vector<2x16x4xf32>
    %1 = vector.shape_cast %0 : vector<2x16x4xf32> to vector<32x4xf32>
    %2 = tpu.iota {dimensions = array<i32: 0>} : vector<32x1xi32>
    %c16_i32 = arith.constant 16 : i32
    %c0_i32 = arith.constant 0 : i32
    %3 = arith.cmpi eq, %c16_i32, %c0_i32 : i32
    %c1_i32 = arith.constant 1 : i32
    %4 = arith.select %3, %c1_i32, %c16_i32 : i32
    %5 = vector.broadcast %4 : i32 to vector<32x1xi32>
    %6 = arith.remsi %2, %5 : vector<32x1xi32>
    %c0_i32_2 = arith.constant 0 : i32
    %7 = vector.broadcast %c0_i32_2 : i32 to vector<32x1xi32>
    %8 = arith.cmpi ne, %6, %7 : vector<32x1xi32>
    %c0_i32_3 = arith.constant 0 : i32
    %9 = vector.broadcast %c0_i32_3 : i32 to vector<32x1xi32>
    %10 = arith.cmpi slt, %6, %9 : vector<32x1xi32>
    %c0_i32_4 = arith.constant 0 : i32
    %11 = arith.cmpi slt, %4, %c0_i32_4 : i32
    %12 = vector.broadcast %11 : i1 to vector<32x1xi1>
    %13 = vector.broadcast %12 : vector<32x1xi1> to vector<32x1xi1>
    %14 = arith.xori %10, %13 : vector<32x1xi1>
    %15 = arith.andi %14, %8 : vector<32x1xi1>
    %16 = vector.broadcast %4 : i32 to vector<32x1xi32>
    %17 = arith.addi %6, %16 : vector<32x1xi32>
    %18 = arith.select %15, %17, %6 : vector<32x1xi1>, vector<32x1xi32>
    %c0_i32_5 = arith.constant 0 : i32
    %19 = vector.broadcast %c0_i32_5 : i32 to vector<32x1xi32>
    %20 = arith.cmpi ne, %18, %19 : vector<32x1xi32>
    %21 = arith.extui %20 : vector<32x1xi1> to vector<32x1xi32>
    %22 = arith.sitofp %21 : vector<32x1xi32> to vector<32x1xf32>
    %c15_i32 = arith.constant 15 : i32
    %23 = vector.broadcast %c15_i32 : i32 to vector<32x1xi32>
    %24 = arith.cmpi ne, %18, %23 : vector<32x1xi32>
    %25 = arith.extui %24 : vector<32x1xi1> to vector<32x1xi32>
    %26 = arith.sitofp %25 : vector<32x1xi32> to vector<32x1xf32>
    %c1_i32_6 = arith.constant 1 : i32
    %27 = tpu.dynamic_rotate %1 by %c1_i32_6 dim 0 : vector<32x4xf32>, i32 -> vector<32x4xf32>
    %28 = vector.broadcast %22 : vector<32x1xf32> to vector<32x4xf32>
    %29 = arith.mulf %27, %28 : vector<32x4xf32>
    %c31_i32 = arith.constant 31 : i32
    %30 = tpu.dynamic_rotate %1 by %c31_i32 dim 0 : vector<32x4xf32>, i32 -> vector<32x4xf32>
    %31 = vector.broadcast %26 : vector<32x1xf32> to vector<32x4xf32>
    %32 = arith.mulf %30, %31 : vector<32x4xf32>
    %c0_7 = arith.constant 0 : index
    %c0_8 = arith.constant 0 : index
    %33 = vector.load %arg3[%c0_7, %c0_8] : memref<4x32xf32, #tpu.memory_space<vmem>>, vector<4x32xf32>
    %cst = arith.constant dense<0.000000e+00> : vector<32x32xf32>
    %34 = tpu.matmul %1, %33, %cst {dimension_numbers = #tpu.dot_dimension_numbers<[1], [0], [0], [1], [0, 0, 1, 1], [], []>} : vector<32x4xf32>, vector<4x32xf32>, vector<32x32xf32> -> vector<32x32xf32>
    %c0_9 = arith.constant 0 : index
    %c0_10 = arith.constant 0 : index
    %35 = vector.load %arg2[%c0_9, %c0_10] : memref<4x32xf32, #tpu.memory_space<vmem>>, vector<4x32xf32>
    %cst_11 = arith.constant dense<0.000000e+00> : vector<32x32xf32>
    %36 = tpu.matmul %29, %35, %cst_11 {dimension_numbers = #tpu.dot_dimension_numbers<[1], [0], [0], [1], [0, 0, 1, 1], [], []>} : vector<32x4xf32>, vector<4x32xf32>, vector<32x32xf32> -> vector<32x32xf32>
    %37 = arith.addf %34, %36 : vector<32x32xf32>
    %c0_12 = arith.constant 0 : index
    %c0_13 = arith.constant 0 : index
    %38 = vector.load %arg4[%c0_12, %c0_13] : memref<4x32xf32, #tpu.memory_space<vmem>>, vector<4x32xf32>
    %cst_14 = arith.constant dense<0.000000e+00> : vector<32x32xf32>
    %39 = tpu.matmul %32, %38, %cst_14 {dimension_numbers = #tpu.dot_dimension_numbers<[1], [0], [0], [1], [0, 0, 1, 1], [], []>} : vector<32x4xf32>, vector<4x32xf32>, vector<32x32xf32> -> vector<32x32xf32>
    %40 = arith.addf %37, %39 : vector<32x32xf32>
    %c0_15 = arith.constant 0 : index
    %c0_16 = arith.constant 0 : index
    %41 = vector.load %arg5[%c0_15, %c0_16] : memref<1x32xf32, #tpu.memory_space<vmem>>, vector<1x32xf32>
    %42 = vector.broadcast %41 : vector<1x32xf32> to vector<32x32xf32>
    %43 = arith.mulf %40, %42 : vector<32x32xf32>
    %c0_17 = arith.constant 0 : index
    %c0_18 = arith.constant 0 : index
    %44 = vector.load %arg6[%c0_17, %c0_18] : memref<1x32xf32, #tpu.memory_space<vmem>>, vector<1x32xf32>
    %45 = vector.broadcast %44 : vector<1x32xf32> to vector<32x32xf32>
    %46 = arith.addf %43, %45 : vector<32x32xf32>
    %cst_19 = arith.constant 0.000000e+00 : f32
    %47 = vector.broadcast %cst_19 : f32 to vector<32x32xf32>
    %48 = arith.maximumf %46, %47 : vector<32x32xf32>
    %c1_i32_20 = arith.constant 1 : i32
    %49 = tpu.dynamic_rotate %48 by %c1_i32_20 dim 0 : vector<32x32xf32>, i32 -> vector<32x32xf32>
    %50 = vector.broadcast %22 : vector<32x1xf32> to vector<32x32xf32>
    %51 = arith.mulf %49, %50 : vector<32x32xf32>
    %c31_i32_21 = arith.constant 31 : i32
    %52 = tpu.dynamic_rotate %48 by %c31_i32_21 dim 0 : vector<32x32xf32>, i32 -> vector<32x32xf32>
    %53 = vector.broadcast %26 : vector<32x1xf32> to vector<32x32xf32>
    %54 = arith.mulf %52, %53 : vector<32x32xf32>
    %c0_22 = arith.constant 0 : index
    %c0_23 = arith.constant 0 : index
    %55 = vector.load %arg8[%c0_22, %c0_23] : memref<32x32xf32, #tpu.memory_space<vmem>>, vector<32x32xf32>
    %cst_24 = arith.constant dense<0.000000e+00> : vector<32x32xf32>
    %56 = tpu.matmul %48, %55, %cst_24 {dimension_numbers = #tpu.dot_dimension_numbers<[1], [0], [0], [1], [0, 0, 1, 1], [], []>} : vector<32x32xf32>, vector<32x32xf32>, vector<32x32xf32> -> vector<32x32xf32>
    %c0_25 = arith.constant 0 : index
    %c0_26 = arith.constant 0 : index
    %57 = vector.load %arg7[%c0_25, %c0_26] : memref<32x32xf32, #tpu.memory_space<vmem>>, vector<32x32xf32>
    %cst_27 = arith.constant dense<0.000000e+00> : vector<32x32xf32>
    %58 = tpu.matmul %51, %57, %cst_27 {dimension_numbers = #tpu.dot_dimension_numbers<[1], [0], [0], [1], [0, 0, 1, 1], [], []>} : vector<32x32xf32>, vector<32x32xf32>, vector<32x32xf32> -> vector<32x32xf32>
    %59 = arith.addf %56, %58 : vector<32x32xf32>
    %c0_28 = arith.constant 0 : index
    %c0_29 = arith.constant 0 : index
    %60 = vector.load %arg9[%c0_28, %c0_29] : memref<32x32xf32, #tpu.memory_space<vmem>>, vector<32x32xf32>
    %cst_30 = arith.constant dense<0.000000e+00> : vector<32x32xf32>
    %61 = tpu.matmul %54, %60, %cst_30 {dimension_numbers = #tpu.dot_dimension_numbers<[1], [0], [0], [1], [0, 0, 1, 1], [], []>} : vector<32x32xf32>, vector<32x32xf32>, vector<32x32xf32> -> vector<32x32xf32>
    %62 = arith.addf %59, %61 : vector<32x32xf32>
    %c0_31 = arith.constant 0 : index
    %c0_32 = arith.constant 0 : index
    %63 = vector.load %arg10[%c0_31, %c0_32] : memref<1x32xf32, #tpu.memory_space<vmem>>, vector<1x32xf32>
    %64 = vector.broadcast %63 : vector<1x32xf32> to vector<32x32xf32>
    %65 = arith.mulf %62, %64 : vector<32x32xf32>
    %c0_33 = arith.constant 0 : index
    %c0_34 = arith.constant 0 : index
    %66 = vector.load %arg11[%c0_33, %c0_34] : memref<1x32xf32, #tpu.memory_space<vmem>>, vector<1x32xf32>
    %67 = vector.broadcast %66 : vector<1x32xf32> to vector<32x32xf32>
    %68 = arith.addf %65, %67 : vector<32x32xf32>
    %cst_35 = arith.constant 0.000000e+00 : f32
    %69 = vector.broadcast %cst_35 : f32 to vector<32x32xf32>
    %70 = arith.maximumf %68, %69 : vector<32x32xf32>
    %c1_i32_36 = arith.constant 1 : i32
    %71 = tpu.dynamic_rotate %70 by %c1_i32_36 dim 0 : vector<32x32xf32>, i32 -> vector<32x32xf32>
    %72 = vector.broadcast %22 : vector<32x1xf32> to vector<32x32xf32>
    %73 = arith.mulf %71, %72 : vector<32x32xf32>
    %c31_i32_37 = arith.constant 31 : i32
    %74 = tpu.dynamic_rotate %70 by %c31_i32_37 dim 0 : vector<32x32xf32>, i32 -> vector<32x32xf32>
    %75 = vector.broadcast %26 : vector<32x1xf32> to vector<32x32xf32>
    %76 = arith.mulf %74, %75 : vector<32x32xf32>
    %c0_38 = arith.constant 0 : index
    %c0_39 = arith.constant 0 : index
    %77 = vector.load %arg13[%c0_38, %c0_39] : memref<32x32xf32, #tpu.memory_space<vmem>>, vector<32x32xf32>
    %cst_40 = arith.constant dense<0.000000e+00> : vector<32x32xf32>
    %78 = tpu.matmul %70, %77, %cst_40 {dimension_numbers = #tpu.dot_dimension_numbers<[1], [0], [0], [1], [0, 0, 1, 1], [], []>} : vector<32x32xf32>, vector<32x32xf32>, vector<32x32xf32> -> vector<32x32xf32>
    %c0_41 = arith.constant 0 : index
    %c0_42 = arith.constant 0 : index
    %79 = vector.load %arg12[%c0_41, %c0_42] : memref<32x32xf32, #tpu.memory_space<vmem>>, vector<32x32xf32>
    %cst_43 = arith.constant dense<0.000000e+00> : vector<32x32xf32>
    %80 = tpu.matmul %73, %79, %cst_43 {dimension_numbers = #tpu.dot_dimension_numbers<[1], [0], [0], [1], [0, 0, 1, 1], [], []>} : vector<32x32xf32>, vector<32x32xf32>, vector<32x32xf32> -> vector<32x32xf32>
    %81 = arith.addf %78, %80 : vector<32x32xf32>
    %c0_44 = arith.constant 0 : index
    %c0_45 = arith.constant 0 : index
    %82 = vector.load %arg14[%c0_44, %c0_45] : memref<32x32xf32, #tpu.memory_space<vmem>>, vector<32x32xf32>
    %cst_46 = arith.constant dense<0.000000e+00> : vector<32x32xf32>
    %83 = tpu.matmul %76, %82, %cst_46 {dimension_numbers = #tpu.dot_dimension_numbers<[1], [0], [0], [1], [0, 0, 1, 1], [], []>} : vector<32x32xf32>, vector<32x32xf32>, vector<32x32xf32> -> vector<32x32xf32>
    %84 = arith.addf %81, %83 : vector<32x32xf32>
    %c0_47 = arith.constant 0 : index
    %c0_48 = arith.constant 0 : index
    %85 = vector.load %arg15[%c0_47, %c0_48] : memref<1x32xf32, #tpu.memory_space<vmem>>, vector<1x32xf32>
    %86 = vector.broadcast %85 : vector<1x32xf32> to vector<32x32xf32>
    %87 = arith.mulf %84, %86 : vector<32x32xf32>
    %c0_49 = arith.constant 0 : index
    %c0_50 = arith.constant 0 : index
    %88 = vector.load %arg16[%c0_49, %c0_50] : memref<1x32xf32, #tpu.memory_space<vmem>>, vector<1x32xf32>
    %89 = vector.broadcast %88 : vector<1x32xf32> to vector<32x32xf32>
    %90 = arith.addf %87, %89 : vector<32x32xf32>
    %91 = arith.addf %90, %48 : vector<32x32xf32>
    %cst_51 = arith.constant 0.000000e+00 : f32
    %92 = vector.broadcast %cst_51 : f32 to vector<32x32xf32>
    %93 = arith.maximumf %91, %92 : vector<32x32xf32>
    %c1_i32_52 = arith.constant 1 : i32
    %94 = tpu.dynamic_rotate %93 by %c1_i32_52 dim 0 : vector<32x32xf32>, i32 -> vector<32x32xf32>
    %95 = vector.broadcast %22 : vector<32x1xf32> to vector<32x32xf32>
    %96 = arith.mulf %94, %95 : vector<32x32xf32>
    %c31_i32_53 = arith.constant 31 : i32
    %97 = tpu.dynamic_rotate %93 by %c31_i32_53 dim 0 : vector<32x32xf32>, i32 -> vector<32x32xf32>
    %98 = vector.broadcast %26 : vector<32x1xf32> to vector<32x32xf32>
    %99 = arith.mulf %97, %98 : vector<32x32xf32>
    %c0_54 = arith.constant 0 : index
    %c0_55 = arith.constant 0 : index
    %100 = vector.load %arg18[%c0_54, %c0_55] : memref<32x64xf32, #tpu.memory_space<vmem>>, vector<32x64xf32>
    %cst_56 = arith.constant dense<0.000000e+00> : vector<32x64xf32>
    %101 = tpu.matmul %93, %100, %cst_56 {dimension_numbers = #tpu.dot_dimension_numbers<[1], [0], [0], [1], [0, 0, 1, 1], [], []>} : vector<32x32xf32>, vector<32x64xf32>, vector<32x64xf32> -> vector<32x64xf32>
    %c0_57 = arith.constant 0 : index
    %c0_58 = arith.constant 0 : index
    %102 = vector.load %arg17[%c0_57, %c0_58] : memref<32x64xf32, #tpu.memory_space<vmem>>, vector<32x64xf32>
    %cst_59 = arith.constant dense<0.000000e+00> : vector<32x64xf32>
    %103 = tpu.matmul %96, %102, %cst_59 {dimension_numbers = #tpu.dot_dimension_numbers<[1], [0], [0], [1], [0, 0, 1, 1], [], []>} : vector<32x32xf32>, vector<32x64xf32>, vector<32x64xf32> -> vector<32x64xf32>
    %104 = arith.addf %101, %103 : vector<32x64xf32>
    %c0_60 = arith.constant 0 : index
    %c0_61 = arith.constant 0 : index
    %105 = vector.load %arg19[%c0_60, %c0_61] : memref<32x64xf32, #tpu.memory_space<vmem>>, vector<32x64xf32>
    %cst_62 = arith.constant dense<0.000000e+00> : vector<32x64xf32>
    %106 = tpu.matmul %99, %105, %cst_62 {dimension_numbers = #tpu.dot_dimension_numbers<[1], [0], [0], [1], [0, 0, 1, 1], [], []>} : vector<32x32xf32>, vector<32x64xf32>, vector<32x64xf32> -> vector<32x64xf32>
    %107 = arith.addf %104, %106 : vector<32x64xf32>
    %c0_63 = arith.constant 0 : index
    %c0_64 = arith.constant 0 : index
    %108 = vector.load %arg20[%c0_63, %c0_64] : memref<1x64xf32, #tpu.memory_space<vmem>>, vector<1x64xf32>
    %109 = vector.broadcast %108 : vector<1x64xf32> to vector<32x64xf32>
    %110 = arith.mulf %107, %109 : vector<32x64xf32>
    %c0_65 = arith.constant 0 : index
    %c0_66 = arith.constant 0 : index
    %111 = vector.load %arg21[%c0_65, %c0_66] : memref<1x64xf32, #tpu.memory_space<vmem>>, vector<1x64xf32>
    %112 = vector.broadcast %111 : vector<1x64xf32> to vector<32x64xf32>
    %113 = arith.addf %110, %112 : vector<32x64xf32>
    %cst_67 = arith.constant 0.000000e+00 : f32
    %114 = vector.broadcast %cst_67 : f32 to vector<32x64xf32>
    %115 = arith.maximumf %113, %114 : vector<32x64xf32>
    %c1_i32_68 = arith.constant 1 : i32
    %116 = tpu.dynamic_rotate %115 by %c1_i32_68 dim 0 : vector<32x64xf32>, i32 -> vector<32x64xf32>
    %117 = vector.broadcast %22 : vector<32x1xf32> to vector<32x64xf32>
    %118 = arith.mulf %116, %117 : vector<32x64xf32>
    %c31_i32_69 = arith.constant 31 : i32
    %119 = tpu.dynamic_rotate %115 by %c31_i32_69 dim 0 : vector<32x64xf32>, i32 -> vector<32x64xf32>
    %120 = vector.broadcast %26 : vector<32x1xf32> to vector<32x64xf32>
    %121 = arith.mulf %119, %120 : vector<32x64xf32>
    %c0_70 = arith.constant 0 : index
    %c0_71 = arith.constant 0 : index
    %122 = vector.load %arg23[%c0_70, %c0_71] : memref<64x64xf32, #tpu.memory_space<vmem>>, vector<64x64xf32>
    %cst_72 = arith.constant dense<0.000000e+00> : vector<32x64xf32>
    %123 = tpu.matmul %115, %122, %cst_72 {dimension_numbers = #tpu.dot_dimension_numbers<[1], [0], [0], [1], [0, 0, 1, 1], [], []>} : vector<32x64xf32>, vector<64x64xf32>, vector<32x64xf32> -> vector<32x64xf32>
    %c0_73 = arith.constant 0 : index
    %c0_74 = arith.constant 0 : index
    %124 = vector.load %arg22[%c0_73, %c0_74] : memref<64x64xf32, #tpu.memory_space<vmem>>, vector<64x64xf32>
    %cst_75 = arith.constant dense<0.000000e+00> : vector<32x64xf32>
    %125 = tpu.matmul %118, %124, %cst_75 {dimension_numbers = #tpu.dot_dimension_numbers<[1], [0], [0], [1], [0, 0, 1, 1], [], []>} : vector<32x64xf32>, vector<64x64xf32>, vector<32x64xf32> -> vector<32x64xf32>
    %126 = arith.addf %123, %125 : vector<32x64xf32>
    %c0_76 = arith.constant 0 : index
    %c0_77 = arith.constant 0 : index
    %127 = vector.load %arg24[%c0_76, %c0_77] : memref<64x64xf32, #tpu.memory_space<vmem>>, vector<64x64xf32>
    %cst_78 = arith.constant dense<0.000000e+00> : vector<32x64xf32>
    %128 = tpu.matmul %121, %127, %cst_78 {dimension_numbers = #tpu.dot_dimension_numbers<[1], [0], [0], [1], [0, 0, 1, 1], [], []>} : vector<32x64xf32>, vector<64x64xf32>, vector<32x64xf32> -> vector<32x64xf32>
    %129 = arith.addf %126, %128 : vector<32x64xf32>
    %c0_79 = arith.constant 0 : index
    %c0_80 = arith.constant 0 : index
    %130 = vector.load %arg25[%c0_79, %c0_80] : memref<1x64xf32, #tpu.memory_space<vmem>>, vector<1x64xf32>
    %131 = vector.broadcast %130 : vector<1x64xf32> to vector<32x64xf32>
    %132 = arith.mulf %129, %131 : vector<32x64xf32>
    %c0_81 = arith.constant 0 : index
    %c0_82 = arith.constant 0 : index
    %133 = vector.load %arg26[%c0_81, %c0_82] : memref<1x64xf32, #tpu.memory_space<vmem>>, vector<1x64xf32>
    %134 = vector.broadcast %133 : vector<1x64xf32> to vector<32x64xf32>
    %135 = arith.addf %132, %134 : vector<32x64xf32>
    %c0_83 = arith.constant 0 : index
    %c0_84 = arith.constant 0 : index
    %136 = vector.load %arg27[%c0_83, %c0_84] : memref<32x64xf32, #tpu.memory_space<vmem>>, vector<32x64xf32>
    %cst_85 = arith.constant dense<0.000000e+00> : vector<32x64xf32>
    %137 = tpu.matmul %93, %136, %cst_85 {dimension_numbers = #tpu.dot_dimension_numbers<[1], [0], [0], [1], [0, 0, 1, 1], [], []>} : vector<32x32xf32>, vector<32x64xf32>, vector<32x64xf32> -> vector<32x64xf32>
    %c0_86 = arith.constant 0 : index
    %c0_87 = arith.constant 0 : index
    %138 = vector.load %arg28[%c0_86, %c0_87] : memref<1x64xf32, #tpu.memory_space<vmem>>, vector<1x64xf32>
    %139 = vector.broadcast %138 : vector<1x64xf32> to vector<32x64xf32>
    %140 = arith.addf %137, %139 : vector<32x64xf32>
    %141 = arith.addf %135, %140 : vector<32x64xf32>
    %cst_88 = arith.constant 0.000000e+00 : f32
    %142 = vector.broadcast %cst_88 : f32 to vector<32x64xf32>
    %143 = arith.maximumf %141, %142 : vector<32x64xf32>
    %c1_i32_89 = arith.constant 1 : i32
    %144 = tpu.dynamic_rotate %143 by %c1_i32_89 dim 0 : vector<32x64xf32>, i32 -> vector<32x64xf32>
    %145 = vector.broadcast %22 : vector<32x1xf32> to vector<32x64xf32>
    %146 = arith.mulf %144, %145 : vector<32x64xf32>
    %c31_i32_90 = arith.constant 31 : i32
    %147 = tpu.dynamic_rotate %143 by %c31_i32_90 dim 0 : vector<32x64xf32>, i32 -> vector<32x64xf32>
    %148 = vector.broadcast %26 : vector<32x1xf32> to vector<32x64xf32>
    %149 = arith.mulf %147, %148 : vector<32x64xf32>
    %c0_91 = arith.constant 0 : index
    %c0_92 = arith.constant 0 : index
    %150 = vector.load %arg30[%c0_91, %c0_92] : memref<64x128xf32, #tpu.memory_space<vmem>>, vector<64x128xf32>
    %cst_93 = arith.constant dense<0.000000e+00> : vector<32x128xf32>
    %151 = tpu.matmul %143, %150, %cst_93 {dimension_numbers = #tpu.dot_dimension_numbers<[1], [0], [0], [1], [0, 0, 1, 1], [], []>} : vector<32x64xf32>, vector<64x128xf32>, vector<32x128xf32> -> vector<32x128xf32>
    %c0_94 = arith.constant 0 : index
    %c0_95 = arith.constant 0 : index
    %152 = vector.load %arg29[%c0_94, %c0_95] : memref<64x128xf32, #tpu.memory_space<vmem>>, vector<64x128xf32>
    %cst_96 = arith.constant dense<0.000000e+00> : vector<32x128xf32>
    %153 = tpu.matmul %146, %152, %cst_96 {dimension_numbers = #tpu.dot_dimension_numbers<[1], [0], [0], [1], [0, 0, 1, 1], [], []>} : vector<32x64xf32>, vector<64x128xf32>, vector<32x128xf32> -> vector<32x128xf32>
    %154 = arith.addf %151, %153 : vector<32x128xf32>
    %c0_97 = arith.constant 0 : index
    %c0_98 = arith.constant 0 : index
    %155 = vector.load %arg31[%c0_97, %c0_98] : memref<64x128xf32, #tpu.memory_space<vmem>>, vector<64x128xf32>
    %cst_99 = arith.constant dense<0.000000e+00> : vector<32x128xf32>
    %156 = tpu.matmul %149, %155, %cst_99 {dimension_numbers = #tpu.dot_dimension_numbers<[1], [0], [0], [1], [0, 0, 1, 1], [], []>} : vector<32x64xf32>, vector<64x128xf32>, vector<32x128xf32> -> vector<32x128xf32>
    %157 = arith.addf %154, %156 : vector<32x128xf32>
    %c0_100 = arith.constant 0 : index
    %c0_101 = arith.constant 0 : index
    %158 = vector.load %arg32[%c0_100, %c0_101] : memref<1x128xf32, #tpu.memory_space<vmem>>, vector<1x128xf32>
    %159 = vector.broadcast %158 : vector<1x128xf32> to vector<32x128xf32>
    %160 = arith.mulf %157, %159 : vector<32x128xf32>
    %c0_102 = arith.constant 0 : index
    %c0_103 = arith.constant 0 : index
    %161 = vector.load %arg33[%c0_102, %c0_103] : memref<1x128xf32, #tpu.memory_space<vmem>>, vector<1x128xf32>
    %162 = vector.broadcast %161 : vector<1x128xf32> to vector<32x128xf32>
    %163 = arith.addf %160, %162 : vector<32x128xf32>
    %cst_104 = arith.constant 0.000000e+00 : f32
    %164 = vector.broadcast %cst_104 : f32 to vector<32x128xf32>
    %165 = arith.maximumf %163, %164 : vector<32x128xf32>
    %c1_i32_105 = arith.constant 1 : i32
    %166 = tpu.dynamic_rotate %165 by %c1_i32_105 dim 0 : vector<32x128xf32>, i32 -> vector<32x128xf32>
    %167 = vector.broadcast %22 : vector<32x1xf32> to vector<32x128xf32>
    %168 = arith.mulf %166, %167 : vector<32x128xf32>
    %c31_i32_106 = arith.constant 31 : i32
    %169 = tpu.dynamic_rotate %165 by %c31_i32_106 dim 0 : vector<32x128xf32>, i32 -> vector<32x128xf32>
    %170 = vector.broadcast %26 : vector<32x1xf32> to vector<32x128xf32>
    %171 = arith.mulf %169, %170 : vector<32x128xf32>
    %c0_107 = arith.constant 0 : index
    %c0_108 = arith.constant 0 : index
    %172 = vector.load %arg35[%c0_107, %c0_108] : memref<128x128xf32, #tpu.memory_space<vmem>>, vector<128x128xf32>
    %cst_109 = arith.constant dense<0.000000e+00> : vector<32x128xf32>
    %173 = tpu.matmul %165, %172, %cst_109 {dimension_numbers = #tpu.dot_dimension_numbers<[1], [0], [0], [1], [0, 0, 1, 1], [], []>} : vector<32x128xf32>, vector<128x128xf32>, vector<32x128xf32> -> vector<32x128xf32>
    %c0_110 = arith.constant 0 : index
    %c0_111 = arith.constant 0 : index
    %174 = vector.load %arg34[%c0_110, %c0_111] : memref<128x128xf32, #tpu.memory_space<vmem>>, vector<128x128xf32>
    %cst_112 = arith.constant dense<0.000000e+00> : vector<32x128xf32>
    %175 = tpu.matmul %168, %174, %cst_112 {dimension_numbers = #tpu.dot_dimension_numbers<[1], [0], [0], [1], [0, 0, 1, 1], [], []>} : vector<32x128xf32>, vector<128x128xf32>, vector<32x128xf32> -> vector<32x128xf32>
    %176 = arith.addf %173, %175 : vector<32x128xf32>
    %c0_113 = arith.constant 0 : index
    %c0_114 = arith.constant 0 : index
    %177 = vector.load %arg36[%c0_113, %c0_114] : memref<128x128xf32, #tpu.memory_space<vmem>>, vector<128x128xf32>
    %cst_115 = arith.constant dense<0.000000e+00> : vector<32x128xf32>
    %178 = tpu.matmul %171, %177, %cst_115 {dimension_numbers = #tpu.dot_dimension_numbers<[1], [0], [0], [1], [0, 0, 1, 1], [], []>} : vector<32x128xf32>, vector<128x128xf32>, vector<32x128xf32> -> vector<32x128xf32>
    %179 = arith.addf %176, %178 : vector<32x128xf32>
    %c0_116 = arith.constant 0 : index
    %c0_117 = arith.constant 0 : index
    %180 = vector.load %arg37[%c0_116, %c0_117] : memref<1x128xf32, #tpu.memory_space<vmem>>, vector<1x128xf32>
    %181 = vector.broadcast %180 : vector<1x128xf32> to vector<32x128xf32>
    %182 = arith.mulf %179, %181 : vector<32x128xf32>
    %c0_118 = arith.constant 0 : index
    %c0_119 = arith.constant 0 : index
    %183 = vector.load %arg38[%c0_118, %c0_119] : memref<1x128xf32, #tpu.memory_space<vmem>>, vector<1x128xf32>
    %184 = vector.broadcast %183 : vector<1x128xf32> to vector<32x128xf32>
    %185 = arith.addf %182, %184 : vector<32x128xf32>
    %c0_120 = arith.constant 0 : index
    %c0_121 = arith.constant 0 : index
    %186 = vector.load %arg39[%c0_120, %c0_121] : memref<64x128xf32, #tpu.memory_space<vmem>>, vector<64x128xf32>
    %cst_122 = arith.constant dense<0.000000e+00> : vector<32x128xf32>
    %187 = tpu.matmul %143, %186, %cst_122 {dimension_numbers = #tpu.dot_dimension_numbers<[1], [0], [0], [1], [0, 0, 1, 1], [], []>} : vector<32x64xf32>, vector<64x128xf32>, vector<32x128xf32> -> vector<32x128xf32>
    %c0_123 = arith.constant 0 : index
    %c0_124 = arith.constant 0 : index
    %188 = vector.load %arg40[%c0_123, %c0_124] : memref<1x128xf32, #tpu.memory_space<vmem>>, vector<1x128xf32>
    %189 = vector.broadcast %188 : vector<1x128xf32> to vector<32x128xf32>
    %190 = arith.addf %187, %189 : vector<32x128xf32>
    %191 = arith.addf %185, %190 : vector<32x128xf32>
    %cst_125 = arith.constant 0.000000e+00 : f32
    %192 = vector.broadcast %cst_125 : f32 to vector<32x128xf32>
    %193 = arith.maximumf %191, %192 : vector<32x128xf32>
    %c1_i32_126 = arith.constant 1 : i32
    %194 = tpu.dynamic_rotate %193 by %c1_i32_126 dim 0 : vector<32x128xf32>, i32 -> vector<32x128xf32>
    %195 = vector.broadcast %22 : vector<32x1xf32> to vector<32x128xf32>
    %196 = arith.mulf %194, %195 : vector<32x128xf32>
    %c31_i32_127 = arith.constant 31 : i32
    %197 = tpu.dynamic_rotate %193 by %c31_i32_127 dim 0 : vector<32x128xf32>, i32 -> vector<32x128xf32>
    %198 = vector.broadcast %26 : vector<32x1xf32> to vector<32x128xf32>
    %199 = arith.mulf %197, %198 : vector<32x128xf32>
    %c0_128 = arith.constant 0 : index
    %c0_129 = arith.constant 0 : index
    %200 = vector.load %arg42[%c0_128, %c0_129] : memref<128x256xf32, #tpu.memory_space<vmem>>, vector<128x256xf32>
    %cst_130 = arith.constant dense<0.000000e+00> : vector<32x256xf32>
    %201 = tpu.matmul %193, %200, %cst_130 {dimension_numbers = #tpu.dot_dimension_numbers<[1], [0], [0], [1], [0, 0, 1, 1], [], []>} : vector<32x128xf32>, vector<128x256xf32>, vector<32x256xf32> -> vector<32x256xf32>
    %c0_131 = arith.constant 0 : index
    %c0_132 = arith.constant 0 : index
    %202 = vector.load %arg41[%c0_131, %c0_132] : memref<128x256xf32, #tpu.memory_space<vmem>>, vector<128x256xf32>
    %cst_133 = arith.constant dense<0.000000e+00> : vector<32x256xf32>
    %203 = tpu.matmul %196, %202, %cst_133 {dimension_numbers = #tpu.dot_dimension_numbers<[1], [0], [0], [1], [0, 0, 1, 1], [], []>} : vector<32x128xf32>, vector<128x256xf32>, vector<32x256xf32> -> vector<32x256xf32>
    %204 = arith.addf %201, %203 : vector<32x256xf32>
    %c0_134 = arith.constant 0 : index
    %c0_135 = arith.constant 0 : index
    %205 = vector.load %arg43[%c0_134, %c0_135] : memref<128x256xf32, #tpu.memory_space<vmem>>, vector<128x256xf32>
    %cst_136 = arith.constant dense<0.000000e+00> : vector<32x256xf32>
    %206 = tpu.matmul %199, %205, %cst_136 {dimension_numbers = #tpu.dot_dimension_numbers<[1], [0], [0], [1], [0, 0, 1, 1], [], []>} : vector<32x128xf32>, vector<128x256xf32>, vector<32x256xf32> -> vector<32x256xf32>
    %207 = arith.addf %204, %206 : vector<32x256xf32>
    %c0_137 = arith.constant 0 : index
    %c0_138 = arith.constant 0 : index
    %208 = vector.load %arg44[%c0_137, %c0_138] : memref<1x256xf32, #tpu.memory_space<vmem>>, vector<1x256xf32>
    %209 = vector.broadcast %208 : vector<1x256xf32> to vector<32x256xf32>
    %210 = arith.mulf %207, %209 : vector<32x256xf32>
    %c0_139 = arith.constant 0 : index
    %c0_140 = arith.constant 0 : index
    %211 = vector.load %arg45[%c0_139, %c0_140] : memref<1x256xf32, #tpu.memory_space<vmem>>, vector<1x256xf32>
    %212 = vector.broadcast %211 : vector<1x256xf32> to vector<32x256xf32>
    %213 = arith.addf %210, %212 : vector<32x256xf32>
    %cst_141 = arith.constant 0.000000e+00 : f32
    %214 = vector.broadcast %cst_141 : f32 to vector<32x256xf32>
    %215 = arith.maximumf %213, %214 : vector<32x256xf32>
    %c1_i32_142 = arith.constant 1 : i32
    %216 = tpu.dynamic_rotate %215 by %c1_i32_142 dim 0 : vector<32x256xf32>, i32 -> vector<32x256xf32>
    %217 = vector.broadcast %22 : vector<32x1xf32> to vector<32x256xf32>
    %218 = arith.mulf %216, %217 : vector<32x256xf32>
    %c31_i32_143 = arith.constant 31 : i32
    %219 = tpu.dynamic_rotate %215 by %c31_i32_143 dim 0 : vector<32x256xf32>, i32 -> vector<32x256xf32>
    %220 = vector.broadcast %26 : vector<32x1xf32> to vector<32x256xf32>
    %221 = arith.mulf %219, %220 : vector<32x256xf32>
    %c0_144 = arith.constant 0 : index
    %c0_145 = arith.constant 0 : index
    %222 = vector.load %arg47[%c0_144, %c0_145] : memref<256x256xf32, #tpu.memory_space<vmem>>, vector<256x256xf32>
    %cst_146 = arith.constant dense<0.000000e+00> : vector<32x256xf32>
    %223 = tpu.matmul %215, %222, %cst_146 {dimension_numbers = #tpu.dot_dimension_numbers<[1], [0], [0], [1], [0, 0, 1, 1], [], []>} : vector<32x256xf32>, vector<256x256xf32>, vector<32x256xf32> -> vector<32x256xf32>
    %c0_147 = arith.constant 0 : index
    %c0_148 = arith.constant 0 : index
    %224 = vector.load %arg46[%c0_147, %c0_148] : memref<256x256xf32, #tpu.memory_space<vmem>>, vector<256x256xf32>
    %cst_149 = arith.constant dense<0.000000e+00> : vector<32x256xf32>
    %225 = tpu.matmul %218, %224, %cst_149 {dimension_numbers = #tpu.dot_dimension_numbers<[1], [0], [0], [1], [0, 0, 1, 1], [], []>} : vector<32x256xf32>, vector<256x256xf32>, vector<32x256xf32> -> vector<32x256xf32>
    %226 = arith.addf %223, %225 : vector<32x256xf32>
    %c0_150 = arith.constant 0 : index
    %c0_151 = arith.constant 0 : index
    %227 = vector.load %arg48[%c0_150, %c0_151] : memref<256x256xf32, #tpu.memory_space<vmem>>, vector<256x256xf32>
    %cst_152 = arith.constant dense<0.000000e+00> : vector<32x256xf32>
    %228 = tpu.matmul %221, %227, %cst_152 {dimension_numbers = #tpu.dot_dimension_numbers<[1], [0], [0], [1], [0, 0, 1, 1], [], []>} : vector<32x256xf32>, vector<256x256xf32>, vector<32x256xf32> -> vector<32x256xf32>
    %229 = arith.addf %226, %228 : vector<32x256xf32>
    %c0_153 = arith.constant 0 : index
    %c0_154 = arith.constant 0 : index
    %230 = vector.load %arg49[%c0_153, %c0_154] : memref<1x256xf32, #tpu.memory_space<vmem>>, vector<1x256xf32>
    %231 = vector.broadcast %230 : vector<1x256xf32> to vector<32x256xf32>
    %232 = arith.mulf %229, %231 : vector<32x256xf32>
    %c0_155 = arith.constant 0 : index
    %c0_156 = arith.constant 0 : index
    %233 = vector.load %arg50[%c0_155, %c0_156] : memref<1x256xf32, #tpu.memory_space<vmem>>, vector<1x256xf32>
    %234 = vector.broadcast %233 : vector<1x256xf32> to vector<32x256xf32>
    %235 = arith.addf %232, %234 : vector<32x256xf32>
    %c0_157 = arith.constant 0 : index
    %c0_158 = arith.constant 0 : index
    %236 = vector.load %arg51[%c0_157, %c0_158] : memref<128x256xf32, #tpu.memory_space<vmem>>, vector<128x256xf32>
    %cst_159 = arith.constant dense<0.000000e+00> : vector<32x256xf32>
    %237 = tpu.matmul %193, %236, %cst_159 {dimension_numbers = #tpu.dot_dimension_numbers<[1], [0], [0], [1], [0, 0, 1, 1], [], []>} : vector<32x128xf32>, vector<128x256xf32>, vector<32x256xf32> -> vector<32x256xf32>
    %c0_160 = arith.constant 0 : index
    %c0_161 = arith.constant 0 : index
    %238 = vector.load %arg52[%c0_160, %c0_161] : memref<1x256xf32, #tpu.memory_space<vmem>>, vector<1x256xf32>
    %239 = vector.broadcast %238 : vector<1x256xf32> to vector<32x256xf32>
    %240 = arith.addf %237, %239 : vector<32x256xf32>
    %241 = arith.addf %235, %240 : vector<32x256xf32>
    %cst_162 = arith.constant 0.000000e+00 : f32
    %242 = vector.broadcast %cst_162 : f32 to vector<32x256xf32>
    %243 = arith.maximumf %241, %242 : vector<32x256xf32>
    %c0_163 = arith.constant 0 : index
    %c0_164 = arith.constant 0 : index
    %244 = vector.load %arg53[%c0_163, %c0_164] : memref<256x128xf32, #tpu.memory_space<vmem>>, vector<256x128xf32>
    %cst_165 = arith.constant dense<0.000000e+00> : vector<32x128xf32>
    %245 = tpu.matmul %243, %244, %cst_165 {dimension_numbers = #tpu.dot_dimension_numbers<[1], [0], [0], [1], [0, 0, 1, 1], [], []>} : vector<32x256xf32>, vector<256x128xf32>, vector<32x128xf32> -> vector<32x128xf32>
    %c0_166 = arith.constant 0 : index
    %c0_167 = arith.constant 0 : index
    %246 = vector.load %arg54[%c0_166, %c0_167] : memref<1x128xf32, #tpu.memory_space<vmem>>, vector<1x128xf32>
    %247 = vector.broadcast %246 : vector<1x128xf32> to vector<32x128xf32>
    %248 = arith.addf %245, %247 : vector<32x128xf32>
    %249 = vector.shape_cast %248 : vector<32x128xf32> to vector<2x16x128xf32>
    %c0_168 = arith.constant 0 : index
    %c0_169 = arith.constant 0 : index
    %c0_170 = arith.constant 0 : index
    %250 = vector.load %arg55[%c0_168, %c0_169, %c0_170] : memref<2x16x128xf32, #tpu.memory_space<vmem>>, vector<2x16x128xf32>
    tpu.vector_store %arg55[%c0_168, %c0_169, %c0_170], %249 {strides = array<i32>} : memref<2x16x128xf32, #tpu.memory_space<vmem>>, vector<2x16x128xf32>,
    return
  }
  func.func @transform_0(%arg0: i32) -> (i32, i32, i32) {
    %c0_i32 = arith.constant 0 : i32
    %c0_i32_0 = arith.constant 0 : i32
    %c0_i32_1 = arith.constant 0 : i32
    return %arg0, %c0_i32, %c0_i32_0 : i32, i32, i32
  }
  func.func @transform_1(%arg0: i32) -> (i32, i32) {
    %c0_i32 = arith.constant 0 : i32
    %c0_i32_0 = arith.constant 0 : i32
    %c0_i32_1 = arith.constant 0 : i32
    return %c0_i32, %c0_i32_0 : i32, i32
  }
  func.func @transform_2(%arg0: i32) -> (i32, i32) {
    %c0_i32 = arith.constant 0 : i32
    %c0_i32_0 = arith.constant 0 : i32
    %c0_i32_1 = arith.constant 0 : i32
    return %c0_i32, %c0_i32_0 : i32, i32
  }
  func.func @transform_3(%arg0: i32) -> (i32, i32) {
    %c0_i32 = arith.constant 0 : i32
    %c0_i32_0 = arith.constant 0 : i32
    %c0_i32_1 = arith.constant 0 : i32
    return %c0_i32, %c0_i32_0 : i32, i32
  }
  func.func @transform_4(%arg0: i32) -> (i32, i32) {
    %c0_i32 = arith.constant 0 : i32
    %c0_i32_0 = arith.constant 0 : i32
    %c0_i32_1 = arith.constant 0 : i32
    return %c0_i32, %c0_i32_0 : i32, i32
  }
  func.func @transform_5(%arg0: i32) -> (i32, i32) {
    %c0_i32 = arith.constant 0 : i32
    %c0_i32_0 = arith.constant 0 : i32
    %c0_i32_1 = arith.constant 0 : i32
    return %c0_i32, %c0_i32_0 : i32, i32
  }
  func.func @transform_6(%arg0: i32) -> (i32, i32) {
    %c0_i32 = arith.constant 0 : i32
    %c0_i32_0 = arith.constant 0 : i32
    %c0_i32_1 = arith.constant 0 : i32
    return %c0_i32, %c0_i32_0 : i32, i32
  }
  func.func @transform_7(%arg0: i32) -> (i32, i32) {
    %c0_i32 = arith.constant 0 : i32
    %c0_i32_0 = arith.constant 0 : i32
    %c0_i32_1 = arith.constant 0 : i32
    return %c0_i32, %c0_i32_0 : i32, i32
  }
  func.func @transform_8(%arg0: i32) -> (i32, i32) {
    %c0_i32 = arith.constant 0 : i32
    %c0_i32_0 = arith.constant 0 : i32
    %c0_i32_1 = arith.constant 0 : i32
    return %c0_i32, %c0_i32_0 : i32, i32
  }
  func.func @transform_9(%arg0: i32) -> (i32, i32) {
    %c0_i32 = arith.constant 0 : i32
    %c0_i32_0 = arith.constant 0 : i32
    %c0_i32_1 = arith.constant 0 : i32
    return %c0_i32, %c0_i32_0 : i32, i32
  }
  func.func @transform_10(%arg0: i32) -> (i32, i32) {
    %c0_i32 = arith.constant 0 : i32
    %c0_i32_0 = arith.constant 0 : i32
    %c0_i32_1 = arith.constant 0 : i32
    return %c0_i32, %c0_i32_0 : i32, i32
  }
  func.func @transform_11(%arg0: i32) -> (i32, i32) {
    %c0_i32 = arith.constant 0 : i32
    %c0_i32_0 = arith.constant 0 : i32
    %c0_i32_1 = arith.constant 0 : i32
    return %c0_i32, %c0_i32_0 : i32, i32
  }
  func.func @transform_12(%arg0: i32) -> (i32, i32) {
    %c0_i32 = arith.constant 0 : i32
    %c0_i32_0 = arith.constant 0 : i32
    %c0_i32_1 = arith.constant 0 : i32
    return %c0_i32, %c0_i32_0 : i32, i32
  }
  func.func @transform_13(%arg0: i32) -> (i32, i32) {
    %c0_i32 = arith.constant 0 : i32
    %c0_i32_0 = arith.constant 0 : i32
    %c0_i32_1 = arith.constant 0 : i32
    return %c0_i32, %c0_i32_0 : i32, i32
  }
  func.func @transform_14(%arg0: i32) -> (i32, i32) {
    %c0_i32 = arith.constant 0 : i32
    %c0_i32_0 = arith.constant 0 : i32
    %c0_i32_1 = arith.constant 0 : i32
    return %c0_i32, %c0_i32_0 : i32, i32
  }
  func.func @transform_15(%arg0: i32) -> (i32, i32) {
    %c0_i32 = arith.constant 0 : i32
    %c0_i32_0 = arith.constant 0 : i32
    %c0_i32_1 = arith.constant 0 : i32
    return %c0_i32, %c0_i32_0 : i32, i32
  }
  func.func @transform_16(%arg0: i32) -> (i32, i32) {
    %c0_i32 = arith.constant 0 : i32
    %c0_i32_0 = arith.constant 0 : i32
    %c0_i32_1 = arith.constant 0 : i32
    return %c0_i32, %c0_i32_0 : i32, i32
  }
  func.func @transform_17(%arg0: i32) -> (i32, i32) {
    %c0_i32 = arith.constant 0 : i32
    %c0_i32_0 = arith.constant 0 : i32
    %c0_i32_1 = arith.constant 0 : i32
    return %c0_i32, %c0_i32_0 : i32, i32
  }
  func.func @transform_18(%arg0: i32) -> (i32, i32) {
    %c0_i32 = arith.constant 0 : i32
    %c0_i32_0 = arith.constant 0 : i32
    %c0_i32_1 = arith.constant 0 : i32
    return %c0_i32, %c0_i32_0 : i32, i32
  }
  func.func @transform_19(%arg0: i32) -> (i32, i32) {
    %c0_i32 = arith.constant 0 : i32
    %c0_i32_0 = arith.constant 0 : i32
    %c0_i32_1 = arith.constant 0 : i32
    return %c0_i32, %c0_i32_0 : i32, i32
  }
  func.func @transform_20(%arg0: i32) -> (i32, i32) {
    %c0_i32 = arith.constant 0 : i32
    %c0_i32_0 = arith.constant 0 : i32
    %c0_i32_1 = arith.constant 0 : i32
    return %c0_i32, %c0_i32_0 : i32, i32
  }
  func.func @transform_21(%arg0: i32) -> (i32, i32) {
    %c0_i32 = arith.constant 0 : i32
    %c0_i32_0 = arith.constant 0 : i32
    %c0_i32_1 = arith.constant 0 : i32
    return %c0_i32, %c0_i32_0 : i32, i32
  }
  func.func @transform_22(%arg0: i32) -> (i32, i32) {
    %c0_i32 = arith.constant 0 : i32
    %c0_i32_0 = arith.constant 0 : i32
    %c0_i32_1 = arith.constant 0 : i32
    return %c0_i32, %c0_i32_0 : i32, i32
  }
  func.func @transform_23(%arg0: i32) -> (i32, i32) {
    %c0_i32 = arith.constant 0 : i32
    %c0_i32_0 = arith.constant 0 : i32
    %c0_i32_1 = arith.constant 0 : i32
    return %c0_i32, %c0_i32_0 : i32, i32
  }
  func.func @transform_24(%arg0: i32) -> (i32, i32) {
    %c0_i32 = arith.constant 0 : i32
    %c0_i32_0 = arith.constant 0 : i32
    %c0_i32_1 = arith.constant 0 : i32
    return %c0_i32, %c0_i32_0 : i32, i32
  }
  func.func @transform_25(%arg0: i32) -> (i32, i32) {
    %c0_i32 = arith.constant 0 : i32
    %c0_i32_0 = arith.constant 0 : i32
    %c0_i32_1 = arith.constant 0 : i32
    return %c0_i32, %c0_i32_0 : i32, i32
  }
  func.func @transform_26(%arg0: i32) -> (i32, i32) {
    %c0_i32 = arith.constant 0 : i32
    %c0_i32_0 = arith.constant 0 : i32
    %c0_i32_1 = arith.constant 0 : i32
    return %c0_i32, %c0_i32_0 : i32, i32
  }
  func.func @transform_27(%arg0: i32) -> (i32, i32) {
    %c0_i32 = arith.constant 0 : i32
    %c0_i32_0 = arith.constant 0 : i32
    %c0_i32_1 = arith.constant 0 : i32
    return %c0_i32, %c0_i32_0 : i32, i32
  }
  func.func @transform_28(%arg0: i32) -> (i32, i32) {
    %c0_i32 = arith.constant 0 : i32
    %c0_i32_0 = arith.constant 0 : i32
    %c0_i32_1 = arith.constant 0 : i32
    return %c0_i32, %c0_i32_0 : i32, i32
  }
  func.func @transform_29(%arg0: i32) -> (i32, i32) {
    %c0_i32 = arith.constant 0 : i32
    %c0_i32_0 = arith.constant 0 : i32
    %c0_i32_1 = arith.constant 0 : i32
    return %c0_i32, %c0_i32_0 : i32, i32
  }
  func.func @transform_30(%arg0: i32) -> (i32, i32) {
    %c0_i32 = arith.constant 0 : i32
    %c0_i32_0 = arith.constant 0 : i32
    %c0_i32_1 = arith.constant 0 : i32
    return %c0_i32, %c0_i32_0 : i32, i32
  }
  func.func @transform_31(%arg0: i32) -> (i32, i32) {
    %c0_i32 = arith.constant 0 : i32
    %c0_i32_0 = arith.constant 0 : i32
    %c0_i32_1 = arith.constant 0 : i32
    return %c0_i32, %c0_i32_0 : i32, i32
  }
  func.func @transform_32(%arg0: i32) -> (i32, i32) {
    %c0_i32 = arith.constant 0 : i32
    %c0_i32_0 = arith.constant 0 : i32
    %c0_i32_1 = arith.constant 0 : i32
    return %c0_i32, %c0_i32_0 : i32, i32
  }
  func.func @transform_33(%arg0: i32) -> (i32, i32) {
    %c0_i32 = arith.constant 0 : i32
    %c0_i32_0 = arith.constant 0 : i32
    %c0_i32_1 = arith.constant 0 : i32
    return %c0_i32, %c0_i32_0 : i32, i32
  }
  func.func @transform_34(%arg0: i32) -> (i32, i32) {
    %c0_i32 = arith.constant 0 : i32
    %c0_i32_0 = arith.constant 0 : i32
    %c0_i32_1 = arith.constant 0 : i32
    return %c0_i32, %c0_i32_0 : i32, i32
  }
  func.func @transform_35(%arg0: i32) -> (i32, i32) {
    %c0_i32 = arith.constant 0 : i32
    %c0_i32_0 = arith.constant 0 : i32
    %c0_i32_1 = arith.constant 0 : i32
    return %c0_i32, %c0_i32_0 : i32, i32
  }
  func.func @transform_36(%arg0: i32) -> (i32, i32) {
    %c0_i32 = arith.constant 0 : i32
    %c0_i32_0 = arith.constant 0 : i32
    %c0_i32_1 = arith.constant 0 : i32
    return %c0_i32, %c0_i32_0 : i32, i32
  }
  func.func @transform_37(%arg0: i32) -> (i32, i32) {
    %c0_i32 = arith.constant 0 : i32
    %c0_i32_0 = arith.constant 0 : i32
    %c0_i32_1 = arith.constant 0 : i32
    return %c0_i32, %c0_i32_0 : i32, i32
  }
  func.func @transform_38(%arg0: i32) -> (i32, i32) {
    %c0_i32 = arith.constant 0 : i32
    %c0_i32_0 = arith.constant 0 : i32
    %c0_i32_1 = arith.constant 0 : i32
    return %c0_i32, %c0_i32_0 : i32, i32
  }
  func.func @transform_39(%arg0: i32) -> (i32, i32) {
    %c0_i32 = arith.constant 0 : i32
    %c0_i32_0 = arith.constant 0 : i32
    %c0_i32_1 = arith.constant 0 : i32
    return %c0_i32, %c0_i32_0 : i32, i32
  }
  func.func @transform_40(%arg0: i32) -> (i32, i32) {
    %c0_i32 = arith.constant 0 : i32
    %c0_i32_0 = arith.constant 0 : i32
    %c0_i32_1 = arith.constant 0 : i32
    return %c0_i32, %c0_i32_0 : i32, i32
  }
  func.func @transform_41(%arg0: i32) -> (i32, i32) {
    %c0_i32 = arith.constant 0 : i32
    %c0_i32_0 = arith.constant 0 : i32
    %c0_i32_1 = arith.constant 0 : i32
    return %c0_i32, %c0_i32_0 : i32, i32
  }
  func.func @transform_42(%arg0: i32) -> (i32, i32) {
    %c0_i32 = arith.constant 0 : i32
    %c0_i32_0 = arith.constant 0 : i32
    %c0_i32_1 = arith.constant 0 : i32
    return %c0_i32, %c0_i32_0 : i32, i32
  }
  func.func @transform_43(%arg0: i32) -> (i32, i32) {
    %c0_i32 = arith.constant 0 : i32
    %c0_i32_0 = arith.constant 0 : i32
    %c0_i32_1 = arith.constant 0 : i32
    return %c0_i32, %c0_i32_0 : i32, i32
  }
  func.func @transform_44(%arg0: i32) -> (i32, i32) {
    %c0_i32 = arith.constant 0 : i32
    %c0_i32_0 = arith.constant 0 : i32
    %c0_i32_1 = arith.constant 0 : i32
    return %c0_i32, %c0_i32_0 : i32, i32
  }
  func.func @transform_45(%arg0: i32) -> (i32, i32) {
    %c0_i32 = arith.constant 0 : i32
    %c0_i32_0 = arith.constant 0 : i32
    %c0_i32_1 = arith.constant 0 : i32
    return %c0_i32, %c0_i32_0 : i32, i32
  }
  func.func @transform_46(%arg0: i32) -> (i32, i32) {
    %c0_i32 = arith.constant 0 : i32
    %c0_i32_0 = arith.constant 0 : i32
    %c0_i32_1 = arith.constant 0 : i32
    return %c0_i32, %c0_i32_0 : i32, i32
  }
  func.func @transform_47(%arg0: i32) -> (i32, i32) {
    %c0_i32 = arith.constant 0 : i32
    %c0_i32_0 = arith.constant 0 : i32
    %c0_i32_1 = arith.constant 0 : i32
    return %c0_i32, %c0_i32_0 : i32, i32
  }
  func.func @transform_48(%arg0: i32) -> (i32, i32) {
    %c0_i32 = arith.constant 0 : i32
    %c0_i32_0 = arith.constant 0 : i32
    %c0_i32_1 = arith.constant 0 : i32
    return %c0_i32, %c0_i32_0 : i32, i32
  }
  func.func @transform_49(%arg0: i32) -> (i32, i32) {
    %c0_i32 = arith.constant 0 : i32
    %c0_i32_0 = arith.constant 0 : i32
    %c0_i32_1 = arith.constant 0 : i32
    return %c0_i32, %c0_i32_0 : i32, i32
  }
  func.func @transform_50(%arg0: i32) -> (i32, i32) {
    %c0_i32 = arith.constant 0 : i32
    %c0_i32_0 = arith.constant 0 : i32
    %c0_i32_1 = arith.constant 0 : i32
    return %c0_i32, %c0_i32_0 : i32, i32
  }
  func.func @transform_51(%arg0: i32) -> (i32, i32) {
    %c0_i32 = arith.constant 0 : i32
    %c0_i32_0 = arith.constant 0 : i32
    %c0_i32_1 = arith.constant 0 : i32
    return %c0_i32, %c0_i32_0 : i32, i32
  }
  func.func @transform_52(%arg0: i32) -> (i32, i32) {
    %c0_i32 = arith.constant 0 : i32
    %c0_i32_0 = arith.constant 0 : i32
    %c0_i32_1 = arith.constant 0 : i32
    return %c0_i32, %c0_i32_0 : i32, i32
  }
  func.func @transform_53(%arg0: i32) -> (i32, i32) {
    %c0_i32 = arith.constant 0 : i32
    %c0_i32_0 = arith.constant 0 : i32
    %c0_i32_1 = arith.constant 0 : i32
    return %c0_i32, %c0_i32_0 : i32, i32
  }
  func.func @transform_54(%arg0: i32) -> (i32, i32, i32) {
    %c0_i32 = arith.constant 0 : i32
    %c0_i32_0 = arith.constant 0 : i32
    %c0_i32_1 = arith.constant 0 : i32
    return %arg0, %c0_i32, %c0_i32_0 : i32, i32, i32
  }
}

</mosaic_0001>

<llo_original>
// kernel: forward_pallas.1
$region0: #{forward_pallas.1}
  #allocation0 [shape = 'u32[]', space=smem, size = 0x4, offset = 0x4, fixed_abs, tag = 'smem constant byte address 0x4 - core index']
  #allocation1 [shape = 'u32[72,128]{1,0:T(1,128)}', space=vmem, size = 0x9000, scoped, tag = 'internal scratch']
  %s0 = inlined_call_operand.smem [shape: u32[55], index: -1, kind: input, shape index: {}]
  %s1 = sld [smem:[%s0]]
  %s2 = scalar_lea.smem %s0, 1
  %s3 = sld [smem:[%s2]]
  %s4 = scalar_lea.smem %s0, 2
  %s5 = sld [smem:[%s4]]
  %s6 = scalar_lea.smem %s0, 3
  %s7 = sld [smem:[%s6]]
  %s8 = scalar_lea.smem %s0, 4
  %s9 = sld [smem:[%s8]]
  %s10 = scalar_lea.smem %s0, 5
  %s11 = sld [smem:[%s10]]
  %s12 = scalar_lea.smem %s0, 6
  %s13 = sld [smem:[%s12]]
  %s14 = scalar_lea.smem %s0, 7
  %s15 = sld [smem:[%s14]]
  %s16 = scalar_lea.smem %s0, 8
  %s17 = sld [smem:[%s16]]
  %s18 = scalar_lea.smem %s0, 9
  %s19 = sld [smem:[%s18]]
  %s20 = scalar_lea.smem %s0, 10
  %s21 = sld [smem:[%s20]]
  %s22 = scalar_lea.smem %s0, 11
  %s23 = sld [smem:[%s22]]
  %s24 = scalar_lea.smem %s0, 12
  %s25 = sld [smem:[%s24]]
  %s26 = scalar_lea.smem %s0, 13
  %s27 = sld [smem:[%s26]]
  %s28 = scalar_lea.smem %s0, 14
  %s29 = sld [smem:[%s28]]
  %s30 = scalar_lea.smem %s0, 15
  %s31 = sld [smem:[%s30]]
  %s32 = scalar_lea.smem %s0, 16
  %s33 = sld [smem:[%s32]]
  %s34 = scalar_lea.smem %s0, 17
  %s35 = sld [smem:[%s34]]
  %s36 = scalar_lea.smem %s0, 18
  %s37 = sld [smem:[%s36]]
  %s38 = scalar_lea.smem %s0, 19
  %s39 = sld [smem:[%s38]]
  %s40 = scalar_lea.smem %s0, 20
  %s41 = sld [smem:[%s40]]
  %s42 = scalar_lea.smem %s0, 21
  %s43 = sld [smem:[%s42]]
  %s44 = scalar_lea.smem %s0, 22
  %s45 = sld [smem:[%s44]]
  %s46 = scalar_lea.smem %s0, 23
  %s47 = sld [smem:[%s46]]
  %s48 = scalar_lea.smem %s0, 24
  %s49 = sld [smem:[%s48]]
  %s50 = scalar_lea.smem %s0, 25
  %s51 = sld [smem:[%s50]]
  %s52 = scalar_lea.smem %s0, 26
  %s53 = sld [smem:[%s52]]
  %s54 = scalar_lea.smem %s0, 27
  %s55 = sld [smem:[%s54]]
  %s56 = scalar_lea.smem %s0, 28
  %s57 = sld [smem:[%s56]]
  %s58 = scalar_lea.smem %s0, 29
  %s59 = sld [smem:[%s58]]
  %s60 = scalar_lea.smem %s0, 30
  %s61 = sld [smem:[%s60]]
  %s62 = scalar_lea.smem %s0, 31
  %s63 = sld [smem:[%s62]]
  %s64 = scalar_lea.smem %s0, 32
  %s65 = sld [smem:[%s64]]
  %s66 = scalar_lea.smem %s0, 33
  %s67 = sld [smem:[%s66]]
  %s68 = scalar_lea.smem %s0, 34
  %s69 = sld [smem:[%s68]]
  %s70 = scalar_lea.smem %s0, 35
  %s71 = sld [smem:[%s70]]
  %s72 = scalar_lea.smem %s0, 36
  %s73 = sld [smem:[%s72]]
  %s74 = scalar_lea.smem %s0, 37
  %s75 = sld [smem:[%s74]]
  %s76 = scalar_lea.smem %s0, 38
  %s77 = sld [smem:[%s76]]
  %s78 = scalar_lea.smem %s0, 39
  %s79 = sld [smem:[%s78]]
  %s80 = scalar_lea.smem %s0, 40
  %s81 = sld [smem:[%s80]]
  %s82 = scalar_lea.smem %s0, 41
  %s83 = sld [smem:[%s82]]
  %s84 = scalar_lea.smem %s0, 42
  %s85 = sld [smem:[%s84]]
  %s86 = scalar_lea.smem %s0, 43
  %s87 = sld [smem:[%s86]]
  %s88 = scalar_lea.smem %s0, 44
  %s89 = sld [smem:[%s88]]
  %s90 = scalar_lea.smem %s0, 45
  %s91 = sld [smem:[%s90]]
  %s92 = scalar_lea.smem %s0, 46
  %s93 = sld [smem:[%s92]]
  %s94 = scalar_lea.smem %s0, 47
  %s95 = sld [smem:[%s94]]
  %s96 = scalar_lea.smem %s0, 48
  %s97 = sld [smem:[%s96]]
  %s98 = scalar_lea.smem %s0, 49
  %s99 = sld [smem:[%s98]]
  %s100 = scalar_lea.smem %s0, 50
  %s101 = sld [smem:[%s100]]
  %s102 = scalar_lea.smem %s0, 51
  %s103 = sld [smem:[%s102]]
  %s104 = scalar_lea.smem %s0, 52
  %s105 = sld [smem:[%s104]]
  %s106 = scalar_lea.smem %s0, 53
  %s107 = sld [smem:[%s106]]
  %s108 = scalar_lea.smem %s0, 54
  %s109 = sld [smem:[%s108]]
  %s110 = sld [smem:[#allocation0]]
  $region226: #{forward_pallas.1} parent=0
    _
  %s112 = ssub.s32 1, %s110
  %s113 = scalar_select 0, %s112, %s110
  // Predicated region
  $region2: #{forward_pallas.1} parent=0 // pred_check
    _
  $region3: #{forward_pallas.1} parent=0 // pred_check_branch
    %115 = sbr.rel (0) target = $region5
  $region4: #{forward_pallas.1} parent=0 // pred_region
    _
  $region5: #{forward_pallas.1} parent=0 // pred_fallthru
    _
  // Predicated region
  $region6: #{forward_pallas.1} parent=0 // pred_check
    _
  $region7: #{forward_pallas.1} parent=0 // pred_check_branch
    %117 = sbr.rel (0) target = $region9
  $region8: #{forward_pallas.1} parent=0 // pred_region
    _
  $region9: #{forward_pallas.1} parent=0 // pred_fallthru
    _
  // Predicated region
  $region10: #{forward_pallas.1} parent=0 // pred_check
    _
  $region11: #{forward_pallas.1} parent=0 // pred_check_branch
    %119 = sbr.rel (0) target = $region13
  $region12: #{forward_pallas.1} parent=0 // pred_region
    _
  $region13: #{forward_pallas.1} parent=0 // pred_fallthru
    _
  // Predicated region
  $region14: #{forward_pallas.1} parent=0 // pred_check
    _
  $region15: #{forward_pallas.1} parent=0 // pred_check_branch
    %121 = sbr.rel (0) target = $region17
  $region16: #{forward_pallas.1} parent=0 // pred_region
    _
  $region17: #{forward_pallas.1} parent=0 // pred_fallthru
    _
  // Predicated region
  $region18: #{forward_pallas.1} parent=0 // pred_check
    _
  $region19: #{forward_pallas.1} parent=0 // pred_check_branch
    %123 = sbr.rel (0) target = $region21
  $region20: #{forward_pallas.1} parent=0 // pred_region
    _
  $region21: #{forward_pallas.1} parent=0 // pred_fallthru
    _
  // Predicated region
  $region22: #{forward_pallas.1} parent=0 // pred_check
    _
  $region23: #{forward_pallas.1} parent=0 // pred_check_branch
    %125 = sbr.rel (0) target = $region25
  $region24: #{forward_pallas.1} parent=0 // pred_region
    _
  $region25: #{forward_pallas.1} parent=0 // pred_fallthru
    _
  // Predicated region
  $region26: #{forward_pallas.1} parent=0 // pred_check
    _
  $region27: #{forward_pallas.1} parent=0 // pred_check_branch
    %127 = sbr.rel (0) target = $region29
  $region28: #{forward_pallas.1} parent=0 // pred_region
    _
  $region29: #{forward_pallas.1} parent=0 // pred_fallthru
    _
  // Predicated region
  $region30: #{forward_pallas.1} parent=0 // pred_check
    _
  $region31: #{forward_pallas.1} parent=0 // pred_check_branch
    %129 = sbr.rel (0) target = $region33
  $region32: #{forward_pallas.1} parent=0 // pred_region
    _
  $region33: #{forward_pallas.1} parent=0 // pred_fallthru
    _
  // Predicated region
  $region34: #{forward_pallas.1} parent=0 // pred_check
    _
  $region35: #{forward_pallas.1} parent=0 // pred_check_branch
    %131 = sbr.rel (0) target = $region37
  $region36: #{forward_pallas.1} parent=0 // pred_region
    _
  $region37: #{forward_pallas.1} parent=0 // pred_fallthru
    _
  // Predicated region
  $region38: #{forward_pallas.1} parent=0 // pred_check
    _
  $region39: #{forward_pallas.1} parent=0 // pred_check_branch
    %133 = sbr.rel (0) target = $region41
  $region40: #{forward_pallas.1} parent=0 // pred_region
    _
  $region41: #{forward_pallas.1} parent=0 // pred_fallthru
    _
  // Predicated region
  $region42: #{forward_pallas.1} parent=0 // pred_check
    _
  $region43: #{forward_pallas.1} parent=0 // pred_check_branch
    %135 = sbr.rel (0) target = $region45
  $region44: #{forward_pallas.1} parent=0 // pred_region
    _
  $region45: #{forward_pallas.1} parent=0 // pred_fallthru
    _
  // Predicated region
  $region46: #{forward_pallas.1} parent=0 // pred_check
    _
  $region47: #{forward_pallas.1} parent=0 // pred_check_branch
    %137 = sbr.rel (0) target = $region49
  $region48: #{forward_pallas.1} parent=0 // pred_region
    _
  $region49: #{forward_pallas.1} parent=0 // pred_fallthru
    _
  // Predicated region
  $region50: #{forward_pallas.1} parent=0 // pred_check
    _
  $region51: #{forward_pallas.1} parent=0 // pred_check_branch
    %139 = sbr.rel (0) target = $region53
  $region52: #{forward_pallas.1} parent=0 // pred_region
    _
  $region53: #{forward_pallas.1} parent=0 // pred_fallthru
    _
  // Predicated region
  $region54: #{forward_pallas.1} parent=0 // pred_check
    _
  $region55: #{forward_pallas.1} parent=0 // pred_check_branch
    %141 = sbr.rel (0) target = $region57
  $region56: #{forward_pallas.1} parent=0 // pred_region
    _
  $region57: #{forward_pallas.1} parent=0 // pred_fallthru
    _
  // Predicated region
  $region58: #{forward_pallas.1} parent=0 // pred_check
    _
  $region59: #{forward_pallas.1} parent=0 // pred_check_branch
    %143 = sbr.rel (0) target = $region61
  $region60: #{forward_pallas.1} parent=0 // pred_region
    _
  $region61: #{forward_pallas.1} parent=0 // pred_fallthru
    _
  // Predicated region
  $region62: #{forward_pallas.1} parent=0 // pred_check
    _
  $region63: #{forward_pallas.1} parent=0 // pred_check_branch
    %145 = sbr.rel (0) target = $region65
  $region64: #{forward_pallas.1} parent=0 // pred_region
    _
  $region65: #{forward_pallas.1} parent=0 // pred_fallthru
    _
  // Predicated region
  $region66: #{forward_pallas.1} parent=0 // pred_check
    _
  $region67: #{forward_pallas.1} parent=0 // pred_check_branch
    %147 = sbr.rel (0) target = $region69
  $region68: #{forward_pallas.1} parent=0 // pred_region
    _
  $region69: #{forward_pallas.1} parent=0 // pred_fallthru
    _
  // Predicated region
  $region70: #{forward_pallas.1} parent=0 // pred_check
    _
  $region71: #{forward_pallas.1} parent=0 // pred_check_branch
    %149 = sbr.rel (0) target = $region73
  $region72: #{forward_pallas.1} parent=0 // pred_region
    _
  $region73: #{forward_pallas.1} parent=0 // pred_fallthru
    _
  // Predicated region
  $region74: #{forward_pallas.1} parent=0 // pred_check
    _
  $region75: #{forward_pallas.1} parent=0 // pred_check_branch
    %151 = sbr.rel (0) target = $region77
  $region76: #{forward_pallas.1} parent=0 // pred_region
    _
  $region77: #{forward_pallas.1} parent=0 // pred_fallthru
    _
  // Predicated region
  $region78: #{forward_pallas.1} parent=0 // pred_check
    _
  $region79: #{forward_pallas.1} parent=0 // pred_check_branch
    %153 = sbr.rel (0) target = $region81
  $region80: #{forward_pallas.1} parent=0 // pred_region
    _
  $region81: #{forward_pallas.1} parent=0 // pred_fallthru
    _
  // Predicated region
  $region82: #{forward_pallas.1} parent=0 // pred_check
    _
  $region83: #{forward_pallas.1} parent=0 // pred_check_branch
    %155 = sbr.rel (0) target = $region85
  $region84: #{forward_pallas.1} parent=0 // pred_region
    _
  $region85: #{forward_pallas.1} parent=0 // pred_fallthru
    _
  // Predicated region
  $region86: #{forward_pallas.1} parent=0 // pred_check
    _
  $region87: #{forward_pallas.1} parent=0 // pred_check_branch
    %157 = sbr.rel (0) target = $region89
  $region88: #{forward_pallas.1} parent=0 // pred_region
    _
  $region89: #{forward_pallas.1} parent=0 // pred_fallthru
    _
  // Predicated region
  $region90: #{forward_pallas.1} parent=0 // pred_check
    _
  $region91: #{forward_pallas.1} parent=0 // pred_check_branch
    %159 = sbr.rel (0) target = $region93
  $region92: #{forward_pallas.1} parent=0 // pred_region
    _
  $region93: #{forward_pallas.1} parent=0 // pred_fallthru
    _
  // Predicated region
  $region94: #{forward_pallas.1} parent=0 // pred_check
    _
  $region95: #{forward_pallas.1} parent=0 // pred_check_branch
    %161 = sbr.rel (0) target = $region97
  $region96: #{forward_pallas.1} parent=0 // pred_region
    _
  $region97: #{forward_pallas.1} parent=0 // pred_fallthru
    _
  // Predicated region
  $region98: #{forward_pallas.1} parent=0 // pred_check
    _
  $region99: #{forward_pallas.1} parent=0 // pred_check_branch
    %163 = sbr.rel (0) target = $region101
  $region100: #{forward_pallas.1} parent=0 // pred_region
    _
  $region101: #{forward_pallas.1} parent=0 // pred_fallthru
    _
  // Predicated region
  $region102: #{forward_pallas.1} parent=0 // pred_check
    _
  $region103: #{forward_pallas.1} parent=0 // pred_check_branch
    %165 = sbr.rel (0) target = $region105
  $region104: #{forward_pallas.1} parent=0 // pred_region
    _
  $region105: #{forward_pallas.1} parent=0 // pred_fallthru
    _
  // Predicated region
  $region106: #{forward_pallas.1} parent=0 // pred_check
    _
  $region107: #{forward_pallas.1} parent=0 // pred_check_branch
    %167 = sbr.rel (0) target = $region109
  $region108: #{forward_pallas.1} parent=0 // pred_region
    _
  $region109: #{forward_pallas.1} parent=0 // pred_fallthru
    _
  // Predicated region
  $region110: #{forward_pallas.1} parent=0 // pred_check
    _
  $region111: #{forward_pallas.1} parent=0 // pred_check_branch
    %169 = sbr.rel (0) target = $region113
  $region112: #{forward_pallas.1} parent=0 // pred_region
    _
  $region113: #{forward_pallas.1} parent=0 // pred_fallthru
    _
  // Predicated region
  $region114: #{forward_pallas.1} parent=0 // pred_check
    _
  $region115: #{forward_pallas.1} parent=0 // pred_check_branch
    %171 = sbr.rel (0) target = $region117
  $region116: #{forward_pallas.1} parent=0 // pred_region
    _
  $region117: #{forward_pallas.1} parent=0 // pred_fallthru
    _
  // Predicated region
  $region118: #{forward_pallas.1} parent=0 // pred_check
    _
  $region119: #{forward_pallas.1} parent=0 // pred_check_branch
    %173 = sbr.rel (0) target = $region121
  $region120: #{forward_pallas.1} parent=0 // pred_region
    _
  $region121: #{forward_pallas.1} parent=0 // pred_fallthru
    _
  // Predicated region
  $region122: #{forward_pallas.1} parent=0 // pred_check
    _
  $region123: #{forward_pallas.1} parent=0 // pred_check_branch
    %175 = sbr.rel (0) target = $region125
  $region124: #{forward_pallas.1} parent=0 // pred_region
    _
  $region125: #{forward_pallas.1} parent=0 // pred_fallthru
    _
  // Predicated region
  $region126: #{forward_pallas.1} parent=0 // pred_check
    _
  $region127: #{forward_pallas.1} parent=0 // pred_check_branch
    %177 = sbr.rel (0) target = $region129
  $region128: #{forward_pallas.1} parent=0 // pred_region
    _
  $region129: #{forward_pallas.1} parent=0 // pred_fallthru
    _
  // Predicated region
  $region130: #{forward_pallas.1} parent=0 // pred_check
    _
  $region131: #{forward_pallas.1} parent=0 // pred_check_branch
    %179 = sbr.rel (0) target = $region133
  $region132: #{forward_pallas.1} parent=0 // pred_region
    _
  $region133: #{forward_pallas.1} parent=0 // pred_fallthru
    _
  // Predicated region
  $region134: #{forward_pallas.1} parent=0 // pred_check
    _
  $region135: #{forward_pallas.1} parent=0 // pred_check_branch
    %181 = sbr.rel (0) target = $region137
  $region136: #{forward_pallas.1} parent=0 // pred_region
    _
  $region137: #{forward_pallas.1} parent=0 // pred_fallthru
    _
  // Predicated region
  $region138: #{forward_pallas.1} parent=0 // pred_check
    _
  $region139: #{forward_pallas.1} parent=0 // pred_check_branch
    %183 = sbr.rel (0) target = $region141
  $region140: #{forward_pallas.1} parent=0 // pred_region
    _
  $region141: #{forward_pallas.1} parent=0 // pred_fallthru
    _
  // Predicated region
  $region142: #{forward_pallas.1} parent=0 // pred_check
    _
  $region143: #{forward_pallas.1} parent=0 // pred_check_branch
    %185 = sbr.rel (0) target = $region145
  $region144: #{forward_pallas.1} parent=0 // pred_region
    _
  $region145: #{forward_pallas.1} parent=0 // pred_fallthru
    _
  // Predicated region
  $region146: #{forward_pallas.1} parent=0 // pred_check
    _
  $region147: #{forward_pallas.1} parent=0 // pred_check_branch
    %187 = sbr.rel (0) target = $region149
  $region148: #{forward_pallas.1} parent=0 // pred_region
    _
  $region149: #{forward_pallas.1} parent=0 // pred_fallthru
    _
  // Predicated region
  $region150: #{forward_pallas.1} parent=0 // pred_check
    _
  $region151: #{forward_pallas.1} parent=0 // pred_check_branch
    %189 = sbr.rel (0) target = $region153
  $region152: #{forward_pallas.1} parent=0 // pred_region
    _
  $region153: #{forward_pallas.1} parent=0 // pred_fallthru
    _
  // Predicated region
  $region154: #{forward_pallas.1} parent=0 // pred_check
    _
  $region155: #{forward_pallas.1} parent=0 // pred_check_branch
    %191 = sbr.rel (0) target = $region157
  $region156: #{forward_pallas.1} parent=0 // pred_region
    _
  $region157: #{forward_pallas.1} parent=0 // pred_fallthru
    _
  // Predicated region
  $region158: #{forward_pallas.1} parent=0 // pred_check
    _
  $region159: #{forward_pallas.1} parent=0 // pred_check_branch
    %193 = sbr.rel (0) target = $region161
  $region160: #{forward_pallas.1} parent=0 // pred_region
    _
  $region161: #{forward_pallas.1} parent=0 // pred_fallthru
    _
  // Predicated region
  $region162: #{forward_pallas.1} parent=0 // pred_check
    _
  $region163: #{forward_pallas.1} parent=0 // pred_check_branch
    %195 = sbr.rel (0) target = $region165
  $region164: #{forward_pallas.1} parent=0 // pred_region
    _
  $region165: #{forward_pallas.1} parent=0 // pred_fallthru
    _
  // Predicated region
  $region166: #{forward_pallas.1} parent=0 // pred_check
    _
  $region167: #{forward_pallas.1} parent=0 // pred_check_branch
    %197 = sbr.rel (0) target = $region169
  $region168: #{forward_pallas.1} parent=0 // pred_region
    _
  $region169: #{forward_pallas.1} parent=0 // pred_fallthru
    _
  // Predicated region
  $region170: #{forward_pallas.1} parent=0 // pred_check
    _
  $region171: #{forward_pallas.1} parent=0 // pred_check_branch
    %199 = sbr.rel (0) target = $region173
  $region172: #{forward_pallas.1} parent=0 // pred_region
    _
  $region173: #{forward_pallas.1} parent=0 // pred_fallthru
    _
  // Predicated region
  $region174: #{forward_pallas.1} parent=0 // pred_check
    _
  $region175: #{forward_pallas.1} parent=0 // pred_check_branch
    %201 = sbr.rel (0) target = $region177
  $region176: #{forward_pallas.1} parent=0 // pred_region
    _
  $region177: #{forward_pallas.1} parent=0 // pred_fallthru
    _
  // Predicated region
  $region178: #{forward_pallas.1} parent=0 // pred_check
    _
  $region179: #{forward_pallas.1} parent=0 // pred_check_branch
    %203 = sbr.rel (0) target = $region181
  $region180: #{forward_pallas.1} parent=0 // pred_region
    _
  $region181: #{forward_pallas.1} parent=0 // pred_fallthru
    _
  // Predicated region
  $region182: #{forward_pallas.1} parent=0 // pred_check
    _
  $region183: #{forward_pallas.1} parent=0 // pred_check_branch
    %205 = sbr.rel (0) target = $region185
  $region184: #{forward_pallas.1} parent=0 // pred_region
    _
  $region185: #{forward_pallas.1} parent=0 // pred_fallthru
    _
  // Predicated region
  $region186: #{forward_pallas.1} parent=0 // pred_check
    _
  $region187: #{forward_pallas.1} parent=0 // pred_check_branch
    %207 = sbr.rel (0) target = $region189
  $region188: #{forward_pallas.1} parent=0 // pred_region
    _
  $region189: #{forward_pallas.1} parent=0 // pred_fallthru
    _
  // Predicated region
  $region190: #{forward_pallas.1} parent=0 // pred_check
    _
  $region191: #{forward_pallas.1} parent=0 // pred_check_branch
    %209 = sbr.rel (0) target = $region193
  $region192: #{forward_pallas.1} parent=0 // pred_region
    _
  $region193: #{forward_pallas.1} parent=0 // pred_fallthru
    _
  // Predicated region
  $region194: #{forward_pallas.1} parent=0 // pred_check
    _
  $region195: #{forward_pallas.1} parent=0 // pred_check_branch
    %211 = sbr.rel (0) target = $region197
  $region196: #{forward_pallas.1} parent=0 // pred_region
    _
  $region197: #{forward_pallas.1} parent=0 // pred_fallthru
    _
  // Predicated region
  $region198: #{forward_pallas.1} parent=0 // pred_check
    _
  $region199: #{forward_pallas.1} parent=0 // pred_check_branch
    %213 = sbr.rel (0) target = $region201
  $region200: #{forward_pallas.1} parent=0 // pred_region
    _
  $region201: #{forward_pallas.1} parent=0 // pred_fallthru
    _
  // Predicated region
  $region202: #{forward_pallas.1} parent=0 // pred_check
    _
  $region203: #{forward_pallas.1} parent=0 // pred_check_branch
    %215 = sbr.rel (0) target = $region205
  $region204: #{forward_pallas.1} parent=0 // pred_region
    _
  $region205: #{forward_pallas.1} parent=0 // pred_fallthru
    _
  // Predicated region
  $region206: #{forward_pallas.1} parent=0 // pred_check
    _
  $region207: #{forward_pallas.1} parent=0 // pred_check_branch
    %217 = sbr.rel (0) target = $region209
  $region208: #{forward_pallas.1} parent=0 // pred_region
    _
  $region209: #{forward_pallas.1} parent=0 // pred_fallthru
    _
  // Predicated region
  $region210: #{forward_pallas.1} parent=0 // pred_check
    _
  $region211: #{forward_pallas.1} parent=0 // pred_check_branch
    %219 = sbr.rel (0) target = $region213
  $region212: #{forward_pallas.1} parent=0 // pred_region
    _
  $region213: #{forward_pallas.1} parent=0 // pred_fallthru
    _
  // Predicated region
  $region214: #{forward_pallas.1} parent=0 // pred_check
    _
  $region215: #{forward_pallas.1} parent=0 // pred_check_branch
    %221 = sbr.rel (0) target = $region217
  $region216: #{forward_pallas.1} parent=0 // pred_region
    _
  $region217: #{forward_pallas.1} parent=0 // pred_fallthru
    _
  %v222 = vld [vmem:[%s1] sm:$0xff]
  %v223 = vld [vmem:[%s1 + $0x8] sm:$0xff]
  %v224 = vld [vmem:[%s1 + $0x10] sm:$0xff]
  %v225 = vld [vmem:[%s1 + $0x18] sm:$0xff]
  %v226 = vlaneseq
  %v227 = vshrl.u32 %v226, 7
  %v228 = vadd.s32 %v227, 8
  %v229 = vadd.s32 %v227, 16
  %v230 = vadd.s32 %v227, 24
  %vm231 = vcmp.lt.s32.totalorder %v227, 0
  %v232 = vsub.s32 0, %v227
  %v233 = vsel %vm231, %v232, %v227
  %v234 = vshrl.u32 %v233, 4
  %v235 = vand.u32 %v233, 15
  %v236 = vsub.s32 0, %v235
  %v237 = vsel %vm231, %v236, %v235
  %vm238 = vcmp.lt.s32.totalorder %v228, 0
  %v239 = vsub.s32 0, %v228
  %v240 = vsel %vm238, %v239, %v228
  %v241 = vshrl.u32 %v240, 4
  %v242 = vand.u32 %v240, 15
  %v243 = vsub.s32 0, %v242
  %v244 = vsel %vm238, %v243, %v242
  %vm245 = vcmp.lt.s32.totalorder %v229, 0
  %v246 = vsub.s32 0, %v229
  %v247 = vsel %vm245, %v246, %v229
  %v248 = vshrl.u32 %v247, 4
  %v249 = vand.u32 %v247, 15
  %v250 = vsub.s32 0, %v249
  %v251 = vsel %vm245, %v250, %v249
  %vm252 = vcmp.lt.s32.totalorder %v230, 0
  %v253 = vsub.s32 0, %v230
  %v254 = vsel %vm252, %v253, %v230
  %v255 = vshrl.u32 %v254, 4
  %v256 = vand.u32 %v254, 15
  %v257 = vsub.s32 0, %v256
  %v258 = vsel %vm252, %v257, %v256
  %vm259 = vcmp.ne.s32.totalorder %v237, 0
  %vm260 = vcmp.ne.s32.totalorder %v244, 0
  %vm261 = vcmp.ne.s32.totalorder %v251, 0
  %vm262 = vcmp.ne.s32.totalorder %v258, 0
  %vm263 = vcmp.lt.s32.totalorder %v237, 0
  %vm264 = vcmp.lt.s32.totalorder %v244, 0
  %vm265 = vcmp.lt.s32.totalorder %v251, 0
  %vm266 = vcmp.lt.s32.totalorder %v258, 0
  %vm267 = vmand %vm263, %vm259
  %vm268 = vmand %vm264, %vm260
  %vm269 = vmand %vm265, %vm261
  %vm270 = vmand %vm266, %vm262
  %v271 = vadd.s32 %v237, 16
  %v272 = vadd.s32 %v244, 16
  %v273 = vadd.s32 %v251, 16
  %v274 = vadd.s32 %v258, 16
  %v275 = vsel %vm267, %v271, %v237
  %v276 = vsel %vm268, %v272, %v244
  %v277 = vsel %vm269, %v273, %v251
  %v278 = vsel %vm270, %v274, %v258
  %vm279 = vcmp.ne.s32.totalorder %v275, 0
  %vm280 = vcmp.ne.s32.totalorder %v276, 0
  %vm281 = vcmp.ne.s32.totalorder %v277, 0
  %vm282 = vcmp.ne.s32.totalorder %v278, 0
  %v283 = vsel %vm279, 1, 0
  %v284 = vsel %vm280, 1, 0
  %v285 = vsel %vm281, 1, 0
  %v286 = vsel %vm282, 1, 0
  %v287 = vcvt.s32.f32 %v283
  %v288 = vcvt.s32.f32 %v284
  %v289 = vcvt.s32.f32 %v285
  %v290 = vcvt.s32.f32 %v286
  %vm291 = vcmp.ne.s32.totalorder %v275, 15
  %vm292 = vcmp.ne.s32.totalorder %v276, 15
  %vm293 = vcmp.ne.s32.totalorder %v277, 15
  %vm294 = vcmp.ne.s32.totalorder %v278, 15
  %v295 = vsel %vm291, 1, 0
  %v296 = vsel %vm292, 1, 0
  %v297 = vsel %vm293, 1, 0
  %v298 = vsel %vm294, 1, 0
  %v299 = vcvt.s32.f32 %v295
  %v300 = vcvt.s32.f32 %v296
  %v301 = vcvt.s32.f32 %v297
  %v302 = vcvt.s32.f32 %v298
  %v303 = vrot.slane %v222, 7
  %v304 = vrot.slane %v223, 7
  %v305 = vrot.slane %v224, 7
  %v306 = vrot.slane %v225, 7
  %vm307 = vcmp.lt.s32.totalorder %v227, 1
  %v308 = vsel %vm307, %v305, %v306
  %v309 = vsel %vm307, %v304, %v305
  %v310 = vsel %vm307, %v303, %v304
  %v311 = vsel %vm307, %v306, %v303
  %v312 = vmul.f32 %v311, %v287
  %v313 = vmul.f32 %v310, %v288
  %v314 = vmul.f32 %v309, %v289
  %v315 = vmul.f32 %v308, %v290
  %v316 = vrot.slane %v222, 1
  %v317 = vrot.slane %v223, 1
  %v318 = vrot.slane %v224, 1
  %v319 = vrot.slane %v225, 1
  %vm320 = vcmp.lt.s32.totalorder %v227, 7
  %v321 = vsel %vm320, %v318, %v319
  %v322 = vsel %vm320, %v317, %v318
  %v323 = vsel %vm320, %v316, %v317
  %v324 = vsel %vm320, %v319, %v316
  %v325 = vmul.f32 %v323, %v299
  %v326 = vmul.f32 %v322, %v300
  %v327 = vmul.f32 %v321, %v301
  %v328 = vmul.f32 %v324, %v302
  %v329 = vld [vmem:[%s5] sm:$0xf]
  %v330 = vld [vmem:[%s3] sm:$0xf]
  %vm331 = vcmask 31744
  %v333 = vsel %vm331, %v312, 0
  %v336 = vsel %vm331, %v313, 0
  %v339 = vsel %vm331, %v314, 0
  %v342 = vsel %vm331, %v315, 0
  %vm344 = vcmask 1043456
  %v346 = vsel %vm344, %v330, 0
  %348 = vmatpush.msra.mxu0 0.0
  %349 = vmatpush.msra.mxu0 0.0
  %350 = vmatpush.msra.mxu0 0.0
  %351 = vmatpush.msra.mxu0 0.0
  %352 = vmatpush.msra.mxu0 0.0
  %353 = vmatpush.msra.mxu0 0.0
  %354 = vmatpush.msra.mxu0 0.0
  %355 = vmatpush.msra.mxu0 0.0
  %356 = vmatpush.msra.mxu0 0.0
  %357 = vmatpush.msra.mxu0 0.0
  %358 = vmatpush.msra.mxu0 0.0
  %359 = vmatpush.msra.mxu0 0.0
  %360 = vmatpush.msra.mxu0 0.0
  %361 = vmatpush.msra.mxu0 0.0
  %362 = vmatpush.msra.mxu0 0.0
  %363 = vmatpush.msra.mxu0 %v346
  %364 = vmatmul.f32.gmra.mxu0 %v333
  %v365 = vpop.f32.mrf.mxu0
  %v366 = vadd.f32 0.0, %v365
  %367 = vmatmul.f32.gmra.mxu0 %v336
  %v368 = vpop.f32.mrf.mxu0
  %v369 = vadd.f32 0.0, %v368
  %370 = vmatmul.f32.gmra.mxu0 %v339
  %v371 = vpop.f32.mrf.mxu0
  %v372 = vadd.f32 0.0, %v371
  %373 = vmatmul.f32.gmra.mxu0 %v342
  %v374 = vpop.f32.mrf.mxu0
  %v375 = vadd.f32 0.0, %v374
  %376 = vdwg.mxu0
  %v378 = vsel %vm331, %v222, 0
  %v381 = vsel %vm331, %v223, 0
  %v384 = vsel %vm331, %v224, 0
  %v387 = vsel %vm331, %v225, 0
  %v390 = vsel %vm344, %v329, 0
  %392 = vmatpush.msra.mxu0 0.0
  %393 = vmatpush.msra.mxu0 0.0
  %394 = vmatpush.msra.mxu0 0.0
  %395 = vmatpush.msra.mxu0 0.0
  %396 = vmatpush.msra.mxu0 0.0
  %397 = vmatpush.msra.mxu0 0.0
  %398 = vmatpush.msra.mxu0 0.0
  %399 = vmatpush.msra.mxu0 0.0
  %400 = vmatpush.msra.mxu0 0.0
  %401 = vmatpush.msra.mxu0 0.0
  %402 = vmatpush.msra.mxu0 0.0
  %403 = vmatpush.msra.mxu0 0.0
  %404 = vmatpush.msra.mxu0 0.0
  %405 = vmatpush.msra.mxu0 0.0
  %406 = vmatpush.msra.mxu0 0.0
  %407 = vmatpush.msra.mxu0 %v390
  %408 = vmatmul.f32.gmra.mxu0 %v378
  %v409 = vpop.f32.mrf.mxu0
  %v410 = vadd.f32 %v366, %v409
  %411 = vmatmul.f32.gmra.mxu0 %v381
  %v412 = vpop.f32.mrf.mxu0
  %v413 = vadd.f32 %v369, %v412
  %414 = vmatmul.f32.gmra.mxu0 %v384
  %v415 = vpop.f32.mrf.mxu0
  %v416 = vadd.f32 %v372, %v415
  %417 = vmatmul.f32.gmra.mxu0 %v387
  %v418 = vpop.f32.mrf.mxu0
  %v419 = vadd.f32 %v375, %v418
  %420 = vdwg.mxu0
  %v421 = vld [vmem:[%s7] sm:$0xf]
  %v423 = vsel %vm331, %v325, 0
  %v426 = vsel %vm331, %v326, 0
  %v429 = vsel %vm331, %v327, 0
  %v432 = vsel %vm331, %v328, 0
  %v435 = vsel %vm344, %v421, 0
  %437 = vmatpush.msra.mxu0 0.0
  %438 = vmatpush.msra.mxu0 0.0
  %439 = vmatpush.msra.mxu0 0.0
  %440 = vmatpush.msra.mxu0 0.0
  %441 = vmatpush.msra.mxu0 0.0
  %442 = vmatpush.msra.mxu0 0.0
  %443 = vmatpush.msra.mxu0 0.0
  %444 = vmatpush.msra.mxu0 0.0
  %445 = vmatpush.msra.mxu0 0.0
  %446 = vmatpush.msra.mxu0 0.0
  %447 = vmatpush.msra.mxu0 0.0
  %448 = vmatpush.msra.mxu0 0.0
  %449 = vmatpush.msra.mxu0 0.0
  %450 = vmatpush.msra.mxu0 0.0
  %451 = vmatpush.msra.mxu0 0.0
  %452 = vmatpush.msra.mxu0 %v435
  %453 = vmatmul.f32.gmra.mxu0 %v423
  %v454 = vpop.f32.mrf.mxu0
  %v455 = vadd.f32 0.0, %v454
  %456 = vmatmul.f32.gmra.mxu0 %v426
  %v457 = vpop.f32.mrf.mxu0
  %v458 = vadd.f32 0.0, %v457
  %459 = vmatmul.f32.gmra.mxu0 %v429
  %v460 = vpop.f32.mrf.mxu0
  %v461 = vadd.f32 0.0, %v460
  %462 = vmatmul.f32.gmra.mxu0 %v432
  %v463 = vpop.f32.mrf.mxu0
  %v464 = vadd.f32 0.0, %v463
  %465 = vdwg.mxu0
  %v466 = vadd.f32 %v410, %v455
  %v467 = vadd.f32 %v413, %v458
  %v468 = vadd.f32 %v416, %v461
  %v469 = vadd.f32 %v419, %v464
  %v470 = vld [vmem:[%s9] sm:$0x1]
  %v472 = vperm.slane %v470, 0
  %v474 = vmul.f32 %v466, %v472
  %v475 = vmul.f32 %v467, %v472
  %v476 = vmul.f32 %v468, %v472
  %v477 = vmul.f32 %v469, %v472
  %v478 = vld [vmem:[%s11] sm:$0x1]
  %v480 = vperm.slane %v478, 0
  %v482 = vadd.f32 %v474, %v480
  %v483 = vadd.f32 %v475, %v480
  %v484 = vadd.f32 %v476, %v480
  %v485 = vadd.f32 %v477, %v480
  %v486 = vmax.f32 %v482, 0.0
  %v487 = vmax.f32 %v483, 0.0
  %v488 = vmax.f32 %v484, 0.0
  %v489 = vmax.f32 %v485, 0.0
  %v490 = vrot.slane %v486, 7
  %v491 = vrot.slane %v487, 7
  %v492 = vrot.slane %v488, 7
  %v493 = vrot.slane %v489, 7
  %v494 = vsel %vm307, %v492, %v493
  %v495 = vsel %vm307, %v491, %v492
  %v496 = vsel %vm307, %v490, %v491
  %v497 = vsel %vm307, %v493, %v490
  %v498 = vmul.f32 %v497, %v287
  %v499 = vmul.f32 %v496, %v288
  %v500 = vmul.f32 %v495, %v289
  %v501 = vmul.f32 %v494, %v290
  %v502 = vrot.slane %v486, 1
  %v503 = vrot.slane %v487, 1
  %v504 = vrot.slane %v488, 1
  %v505 = vrot.slane %v489, 1
  %v506 = vsel %vm320, %v504, %v505
  %v507 = vsel %vm320, %v503, %v504
  %v508 = vsel %vm320, %v502, %v503
  %v509 = vsel %vm320, %v505, %v502
  %v510 = vmul.f32 %v508, %v299
  %v511 = vmul.f32 %v507, %v300
  %v512 = vmul.f32 %v506, %v301
  %v513 = vmul.f32 %v509, %v302
  %v514 = vld [vmem:[%s15] sm:$0xff]
  %v515 = vld [vmem:[%s15 + $0x8] sm:$0xff]
  %v516 = vld [vmem:[%s15 + $0x10] sm:$0xff]
  %v517 = vld [vmem:[%s15 + $0x18] sm:$0xff]
  %v518 = vld [vmem:[%s13] sm:$0xff]
  %v519 = vld [vmem:[%s13 + $0x8] sm:$0xff]
  %v520 = vld [vmem:[%s13 + $0x10] sm:$0xff]
  %v521 = vld [vmem:[%s13 + $0x18] sm:$0xff]
  %vm522 = vcmask 261120
  %v524 = vsel %vm522, %v498, 0
  %v527 = vsel %vm522, %v499, 0
  %v530 = vsel %vm522, %v500, 0
  %v533 = vsel %vm522, %v501, 0
  %535 = vmatpush.msra.mxu0 0.0
  %536 = vmatpush.msra.mxu0 0.0
  %537 = vmatpush.msra.mxu0 0.0
  %538 = vmatpush.msra.mxu0 0.0
  %539 = vmatpush.msra.mxu0 0.0
  %540 = vmatpush.msra.mxu0 0.0
  %541 = vmatpush.msra.mxu0 0.0
  %542 = vmatpush.msra.mxu0 0.0
  %543 = vmatpush.msra.mxu0 0.0
  %544 = vmatpush.msra.mxu0 0.0
  %545 = vmatpush.msra.mxu0 0.0
  %546 = vmatpush.msra.mxu0 0.0
  %547 = vmatpush.msra.mxu0 %v521
  %548 = vmatpush.msra.mxu0 %v520
  %549 = vmatpush.msra.mxu0 %v519
  %550 = vmatpush.msra.mxu0 %v518
  %551 = vmatmul.f32.gmra.mxu0 %v524
  %v552 = vpop.f32.mrf.mxu0
  %v553 = vadd.f32 0.0, %v552
  %554 = vmatmul.f32.gmra.mxu0 %v527
  %v555 = vpop.f32.mrf.mxu0
  %v556 = vadd.f32 0.0, %v555
  %557 = vmatmul.f32.gmra.mxu0 %v530
  %v558 = vpop.f32.mrf.mxu0
  %v559 = vadd.f32 0.0, %v558
  %560 = vmatmul.f32.gmra.mxu0 %v533
  %v561 = vpop.f32.mrf.mxu0
  %v562 = vadd.f32 0.0, %v561
  %563 = vdwg.mxu0
  %v565 = vsel %vm522, %v486, 0
  %v568 = vsel %vm522, %v487, 0
  %v571 = vsel %vm522, %v488, 0
  %v574 = vsel %vm522, %v489, 0
  %576 = vmatpush.msra.mxu0 0.0
  %577 = vmatpush.msra.mxu0 0.0
  %578 = vmatpush.msra.mxu0 0.0
  %579 = vmatpush.msra.mxu0 0.0
  %580 = vmatpush.msra.mxu0 0.0
  %581 = vmatpush.msra.mxu0 0.0
  %582 = vmatpush.msra.mxu0 0.0
  %583 = vmatpush.msra.mxu0 0.0
  %584 = vmatpush.msra.mxu0 0.0
  %585 = vmatpush.msra.mxu0 0.0
  %586 = vmatpush.msra.mxu0 0.0
  %587 = vmatpush.msra.mxu0 0.0
  %588 = vmatpush.msra.mxu0 %v517
  %589 = vmatpush.msra.mxu0 %v516
  %590 = vmatpush.msra.mxu0 %v515
  %591 = vmatpush.msra.mxu0 %v514
  %592 = vmatmul.f32.gmra.mxu0 %v565
  %v593 = vpop.f32.mrf.mxu0
  %v594 = vadd.f32 %v553, %v593
  %595 = vmatmul.f32.gmra.mxu0 %v568
  %v596 = vpop.f32.mrf.mxu0
  %v597 = vadd.f32 %v556, %v596
  %598 = vmatmul.f32.gmra.mxu0 %v571
  %v599 = vpop.f32.mrf.mxu0
  %v600 = vadd.f32 %v559, %v599
  %601 = vmatmul.f32.gmra.mxu0 %v574
  %v602 = vpop.f32.mrf.mxu0
  %v603 = vadd.f32 %v562, %v602
  %604 = vdwg.mxu0
  %v605 = vld [vmem:[%s17] sm:$0xff]
  %v606 = vld [vmem:[%s17 + $0x8] sm:$0xff]
  %v607 = vld [vmem:[%s17 + $0x10] sm:$0xff]
  %v608 = vld [vmem:[%s17 + $0x18] sm:$0xff]
  %v610 = vsel %vm522, %v510, 0
  %v613 = vsel %vm522, %v511, 0
  %v616 = vsel %vm522, %v512, 0
  %v619 = vsel %vm522, %v513, 0
  %621 = vmatpush.msra.mxu0 0.0
  %622 = vmatpush.msra.mxu0 0.0
  %623 = vmatpush.msra.mxu0 0.0
  %624 = vmatpush.msra.mxu0 0.0
  %625 = vmatpush.msra.mxu0 0.0
  %626 = vmatpush.msra.mxu0 0.0
  %627 = vmatpush.msra.mxu0 0.0
  %628 = vmatpush.msra.mxu0 0.0
  %629 = vmatpush.msra.mxu0 0.0
  %630 = vmatpush.msra.mxu0 0.0
  %631 = vmatpush.msra.mxu0 0.0
  %632 = vmatpush.msra.mxu0 0.0
  %633 = vmatpush.msra.mxu0 %v608
  %634 = vmatpush.msra.mxu0 %v607
  %635 = vmatpush.msra.mxu0 %v606
  %636 = vmatpush.msra.mxu0 %v605
  %637 = vmatmul.f32.gmra.mxu0 %v610
  %v638 = vpop.f32.mrf.mxu0
  %v639 = vadd.f32 0.0, %v638
  %640 = vmatmul.f32.gmra.mxu0 %v613
  %v641 = vpop.f32.mrf.mxu0
  %v642 = vadd.f32 0.0, %v641
  %643 = vmatmul.f32.gmra.mxu0 %v616
  %v644 = vpop.f32.mrf.mxu0
  %v645 = vadd.f32 0.0, %v644
  %646 = vmatmul.f32.gmra.mxu0 %v619
  %v647 = vpop.f32.mrf.mxu0
  %v648 = vadd.f32 0.0, %v647
  %649 = vdwg.mxu0
  %v650 = vadd.f32 %v594, %v639
  %v651 = vadd.f32 %v597, %v642
  %v652 = vadd.f32 %v600, %v645
  %v653 = vadd.f32 %v603, %v648
  %v654 = vld [vmem:[%s19] sm:$0x1]
  %v656 = vperm.slane %v654, 0
  %v658 = vmul.f32 %v650, %v656
  %v659 = vmul.f32 %v651, %v656
  %v660 = vmul.f32 %v652, %v656
  %v661 = vmul.f32 %v653, %v656
  %v662 = vld [vmem:[%s21] sm:$0x1]
  %v664 = vperm.slane %v662, 0
  %v666 = vadd.f32 %v658, %v664
  %v667 = vadd.f32 %v659, %v664
  %v668 = vadd.f32 %v660, %v664
  %v669 = vadd.f32 %v661, %v664
  %v670 = vmax.f32 %v666, 0.0
  %v671 = vmax.f32 %v667, 0.0
  %v672 = vmax.f32 %v668, 0.0
  %v673 = vmax.f32 %v669, 0.0
  %v674 = vrot.slane %v670, 7
  %v675 = vrot.slane %v671, 7
  %v676 = vrot.slane %v672, 7
  %v677 = vrot.slane %v673, 7
  %v678 = vsel %vm307, %v676, %v677
  %v679 = vsel %vm307, %v675, %v676
  %v680 = vsel %vm307, %v674, %v675
  %v681 = vsel %vm307, %v677, %v674
  %v682 = vmul.f32 %v681, %v287
  %v683 = vmul.f32 %v680, %v288
  %v684 = vmul.f32 %v679, %v289
  %v685 = vmul.f32 %v678, %v290
  %v686 = vrot.slane %v670, 1
  %v687 = vrot.slane %v671, 1
  %v688 = vrot.slane %v672, 1
  %v689 = vrot.slane %v673, 1
  %v690 = vsel %vm320, %v688, %v689
  %v691 = vsel %vm320, %v687, %v688
  %v692 = vsel %vm320, %v686, %v687
  %v693 = vsel %vm320, %v689, %v686
  %v694 = vmul.f32 %v692, %v299
  %v695 = vmul.f32 %v691, %v300
  %v696 = vmul.f32 %v690, %v301
  %v697 = vmul.f32 %v693, %v302
  %v698 = vld [vmem:[%s25] sm:$0xff]
  %v699 = vld [vmem:[%s25 + $0x8] sm:$0xff]
  %v700 = vld [vmem:[%s25 + $0x10] sm:$0xff]
  %v701 = vld [vmem:[%s25 + $0x18] sm:$0xff]
  %v702 = vld [vmem:[%s23] sm:$0xff]
  %v703 = vld [vmem:[%s23 + $0x8] sm:$0xff]
  %v704 = vld [vmem:[%s23 + $0x10] sm:$0xff]
  %v705 = vld [vmem:[%s23 + $0x18] sm:$0xff]
  %v707 = vsel %vm522, %v682, 0
  %v710 = vsel %vm522, %v683, 0
  %v713 = vsel %vm522, %v684, 0
  %v716 = vsel %vm522, %v685, 0
  %718 = vmatpush.msra.mxu0 0.0
  %719 = vmatpush.msra.mxu0 0.0
  %720 = vmatpush.msra.mxu0 0.0
  %721 = vmatpush.msra.mxu0 0.0
  %722 = vmatpush.msra.mxu0 0.0
  %723 = vmatpush.msra.mxu0 0.0
  %724 = vmatpush.msra.mxu0 0.0
  %725 = vmatpush.msra.mxu0 0.0
  %726 = vmatpush.msra.mxu0 0.0
  %727 = vmatpush.msra.mxu0 0.0
  %728 = vmatpush.msra.mxu0 0.0
  %729 = vmatpush.msra.mxu0 0.0
  %730 = vmatpush.msra.mxu0 %v705
  %731 = vmatpush.msra.mxu0 %v704
  %732 = vmatpush.msra.mxu0 %v703
  %733 = vmatpush.msra.mxu0 %v702
  %734 = vmatmul.f32.gmra.mxu0 %v707
  %v735 = vpop.f32.mrf.mxu0
  %v736 = vadd.f32 0.0, %v735
  %737 = vmatmul.f32.gmra.mxu0 %v710
  %v738 = vpop.f32.mrf.mxu0
  %v739 = vadd.f32 0.0, %v738
  %740 = vmatmul.f32.gmra.mxu0 %v713
  %v741 = vpop.f32.mrf.mxu0
  %v742 = vadd.f32 0.0, %v741
  %743 = vmatmul.f32.gmra.mxu0 %v716
  %v744 = vpop.f32.mrf.mxu0
  %v745 = vadd.f32 0.0, %v744
  %746 = vdwg.mxu0
  %v748 = vsel %vm522, %v670, 0
  %v751 = vsel %vm522, %v671, 0
  %v754 = vsel %vm522, %v672, 0
  %v757 = vsel %vm522, %v673, 0
  %759 = vmatpush.msra.mxu0 0.0
  %760 = vmatpush.msra.mxu0 0.0
  %761 = vmatpush.msra.mxu0 0.0
  %762 = vmatpush.msra.mxu0 0.0
  %763 = vmatpush.msra.mxu0 0.0
  %764 = vmatpush.msra.mxu0 0.0
  %765 = vmatpush.msra.mxu0 0.0
  %766 = vmatpush.msra.mxu0 0.0
  %767 = vmatpush.msra.mxu0 0.0
  %768 = vmatpush.msra.mxu0 0.0
  %769 = vmatpush.msra.mxu0 0.0
  %770 = vmatpush.msra.mxu0 0.0
  %771 = vmatpush.msra.mxu0 %v701
  %772 = vmatpush.msra.mxu0 %v700
  %773 = vmatpush.msra.mxu0 %v699
  %774 = vmatpush.msra.mxu0 %v698
  %775 = vmatmul.f32.gmra.mxu0 %v748
  %v776 = vpop.f32.mrf.mxu0
  %v777 = vadd.f32 %v736, %v776
  %778 = vmatmul.f32.gmra.mxu0 %v751
  %v779 = vpop.f32.mrf.mxu0
  %v780 = vadd.f32 %v739, %v779
  %781 = vmatmul.f32.gmra.mxu0 %v754
  %v782 = vpop.f32.mrf.mxu0
  %v783 = vadd.f32 %v742, %v782
  %784 = vmatmul.f32.gmra.mxu0 %v757
  %v785 = vpop.f32.mrf.mxu0
  %v786 = vadd.f32 %v745, %v785
  %787 = vdwg.mxu0
  %v788 = vld [vmem:[%s27] sm:$0xff]
  %v789 = vld [vmem:[%s27 + $0x8] sm:$0xff]
  %v790 = vld [vmem:[%s27 + $0x10] sm:$0xff]
  %v791 = vld [vmem:[%s27 + $0x18] sm:$0xff]
  %v793 = vsel %vm522, %v694, 0
  %v796 = vsel %vm522, %v695, 0
  %v799 = vsel %vm522, %v696, 0
  %v802 = vsel %vm522, %v697, 0
  %804 = vmatpush.msra.mxu0 0.0
  %805 = vmatpush.msra.mxu0 0.0
  %806 = vmatpush.msra.mxu0 0.0
  %807 = vmatpush.msra.mxu0 0.0
  %808 = vmatpush.msra.mxu0 0.0
  %809 = vmatpush.msra.mxu0 0.0
  %810 = vmatpush.msra.mxu0 0.0
  %811 = vmatpush.msra.mxu0 0.0
  %812 = vmatpush.msra.mxu0 0.0
  %813 = vmatpush.msra.mxu0 0.0
  %814 = vmatpush.msra.mxu0 0.0
  %815 = vmatpush.msra.mxu0 0.0
  %816 = vmatpush.msra.mxu0 %v791
  %817 = vmatpush.msra.mxu0 %v790
  %818 = vmatpush.msra.mxu0 %v789
  %819 = vmatpush.msra.mxu0 %v788
  %820 = vmatmul.f32.gmra.mxu0 %v793
  %v821 = vpop.f32.mrf.mxu0
  %v822 = vadd.f32 0.0, %v821
  %823 = vmatmul.f32.gmra.mxu0 %v796
  %v824 = vpop.f32.mrf.mxu0
  %v825 = vadd.f32 0.0, %v824
  %826 = vmatmul.f32.gmra.mxu0 %v799
  %v827 = vpop.f32.mrf.mxu0
  %v828 = vadd.f32 0.0, %v827
  %829 = vmatmul.f32.gmra.mxu0 %v802
  %v830 = vpop.f32.mrf.mxu0
  %v831 = vadd.f32 0.0, %v830
  %832 = vdwg.mxu0
  %v833 = vadd.f32 %v777, %v822
  %v834 = vadd.f32 %v780, %v825
  %v835 = vadd.f32 %v783, %v828
  %v836 = vadd.f32 %v786, %v831
  %v837 = vld [vmem:[%s29] sm:$0x1]
  %v839 = vperm.slane %v837, 0
  %v841 = vmul.f32 %v833, %v839
  %v842 = vmul.f32 %v834, %v839
  %v843 = vmul.f32 %v835, %v839
  %v844 = vmul.f32 %v836, %v839
  %v845 = vld [vmem:[%s31] sm:$0x1]
  %v847 = vperm.slane %v845, 0
  %v849 = vadd.f32 %v841, %v847
  %v850 = vadd.f32 %v842, %v847
  %v851 = vadd.f32 %v843, %v847
  %v852 = vadd.f32 %v844, %v847
  %v853 = vadd.f32 %v849, %v486
  %v854 = vadd.f32 %v850, %v487
  %v855 = vadd.f32 %v851, %v488
  %v856 = vadd.f32 %v852, %v489
  %v857 = vmax.f32 %v853, 0.0
  %v858 = vmax.f32 %v854, 0.0
  %v859 = vmax.f32 %v855, 0.0
  %v860 = vmax.f32 %v856, 0.0
  %v861 = vrot.slane %v857, 7
  %v862 = vrot.slane %v858, 7
  %v863 = vrot.slane %v859, 7
  %v864 = vrot.slane %v860, 7
  %v865 = vsel %vm307, %v863, %v864
  %v866 = vsel %vm307, %v862, %v863
  %v867 = vsel %vm307, %v861, %v862
  %v868 = vsel %vm307, %v864, %v861
  %v869 = vmul.f32 %v868, %v287
  %v870 = vmul.f32 %v867, %v288
  %v871 = vmul.f32 %v866, %v289
  %v872 = vmul.f32 %v865, %v290
  %v873 = vrot.slane %v857, 1
  %v874 = vrot.slane %v858, 1
  %v875 = vrot.slane %v859, 1
  %v876 = vrot.slane %v860, 1
  %v877 = vsel %vm320, %v875, %v876
  %v878 = vsel %vm320, %v874, %v875
  %v879 = vsel %vm320, %v873, %v874
  %v880 = vsel %vm320, %v876, %v873
  %v881 = vmul.f32 %v879, %v299
  %v882 = vmul.f32 %v878, %v300
  %v883 = vmul.f32 %v877, %v301
  %v884 = vmul.f32 %v880, %v302
  %v885 = vld [vmem:[%s35] sm:$0xff]
  %v886 = vld [vmem:[%s35 + $0x8] sm:$0xff]
  %v887 = vld [vmem:[%s35 + $0x10] sm:$0xff]
  %v888 = vld [vmem:[%s35 + $0x18] sm:$0xff]
  %v889 = vld [vmem:[%s33] sm:$0xff]
  %v890 = vld [vmem:[%s33 + $0x8] sm:$0xff]
  %v891 = vld [vmem:[%s33 + $0x10] sm:$0xff]
  %v892 = vld [vmem:[%s33 + $0x18] sm:$0xff]
  %v894 = vsel %vm522, %v869, 0
  %v897 = vsel %vm522, %v870, 0
  %v900 = vsel %vm522, %v871, 0
  %v903 = vsel %vm522, %v872, 0
  %905 = vmatpush.msra.mxu0 0.0
  %906 = vmatpush.msra.mxu0 0.0
  %907 = vmatpush.msra.mxu0 0.0
  %908 = vmatpush.msra.mxu0 0.0
  %909 = vmatpush.msra.mxu0 0.0
  %910 = vmatpush.msra.mxu0 0.0
  %911 = vmatpush.msra.mxu0 0.0
  %912 = vmatpush.msra.mxu0 0.0
  %913 = vmatpush.msra.mxu0 0.0
  %914 = vmatpush.msra.mxu0 0.0
  %915 = vmatpush.msra.mxu0 0.0
  %916 = vmatpush.msra.mxu0 0.0
  %917 = vmatpush.msra.mxu0 %v892
  %918 = vmatpush.msra.mxu0 %v891
  %919 = vmatpush.msra.mxu0 %v890
  %920 = vmatpush.msra.mxu0 %v889
  %921 = vmatmul.f32.gmra.mxu0 %v894
  %v922 = vpop.f32.mrf.mxu0
  %v923 = vadd.f32 0.0, %v922
  %924 = vmatmul.f32.gmra.mxu0 %v897
  %v925 = vpop.f32.mrf.mxu0
  %v926 = vadd.f32 0.0, %v925
  %927 = vmatmul.f32.gmra.mxu0 %v900
  %v928 = vpop.f32.mrf.mxu0
  %v929 = vadd.f32 0.0, %v928
  %930 = vmatmul.f32.gmra.mxu0 %v903
  %v931 = vpop.f32.mrf.mxu0
  %v932 = vadd.f32 0.0, %v931
  %933 = vdwg.mxu0
  %v935 = vsel %vm522, %v857, 0
  %v938 = vsel %vm522, %v858, 0
  %v941 = vsel %vm522, %v859, 0
  %v944 = vsel %vm522, %v860, 0
  %946 = vmatpush.msra.mxu0 0.0
  %947 = vmatpush.msra.mxu0 0.0
  %948 = vmatpush.msra.mxu0 0.0
  %949 = vmatpush.msra.mxu0 0.0
  %950 = vmatpush.msra.mxu0 0.0
  %951 = vmatpush.msra.mxu0 0.0
  %952 = vmatpush.msra.mxu0 0.0
  %953 = vmatpush.msra.mxu0 0.0
  %954 = vmatpush.msra.mxu0 0.0
  %955 = vmatpush.msra.mxu0 0.0
  %956 = vmatpush.msra.mxu0 0.0
  %957 = vmatpush.msra.mxu0 0.0
  %958 = vmatpush.msra.mxu0 %v888
  %959 = vmatpush.msra.mxu0 %v887
  %960 = vmatpush.msra.mxu0 %v886
  %961 = vmatpush.msra.mxu0 %v885
  %962 = vmatmul.f32.gmra.mxu0 %v935
  %v963 = vpop.f32.mrf.mxu0
  %v964 = vadd.f32 %v923, %v963
  %965 = vmatmul.f32.gmra.mxu0 %v938
  %v966 = vpop.f32.mrf.mxu0
  %v967 = vadd.f32 %v926, %v966
  %968 = vmatmul.f32.gmra.mxu0 %v941
  %v969 = vpop.f32.mrf.mxu0
  %v970 = vadd.f32 %v929, %v969
  %971 = vmatmul.f32.gmra.mxu0 %v944
  %v972 = vpop.f32.mrf.mxu0
  %v973 = vadd.f32 %v932, %v972
  %974 = vdwg.mxu0
  %v975 = vld [vmem:[%s37] sm:$0xff]
  %v976 = vld [vmem:[%s37 + $0x8] sm:$0xff]
  %v977 = vld [vmem:[%s37 + $0x10] sm:$0xff]
  %v978 = vld [vmem:[%s37 + $0x18] sm:$0xff]
  %v980 = vsel %vm522, %v881, 0
  %v983 = vsel %vm522, %v882, 0
  %v986 = vsel %vm522, %v883, 0
  %v989 = vsel %vm522, %v884, 0
  %991 = vmatpush.msra.mxu0 0.0
  %992 = vmatpush.msra.mxu0 0.0
  %993 = vmatpush.msra.mxu0 0.0
  %994 = vmatpush.msra.mxu0 0.0
  %995 = vmatpush.msra.mxu0 0.0
  %996 = vmatpush.msra.mxu0 0.0
  %997 = vmatpush.msra.mxu0 0.0
  %998 = vmatpush.msra.mxu0 0.0
  %999 = vmatpush.msra.mxu0 0.0
  %1000 = vmatpush.msra.mxu0 0.0
  %1001 = vmatpush.msra.mxu0 0.0
  %1002 = vmatpush.msra.mxu0 0.0
  %1003 = vmatpush.msra.mxu0 %v978
  %1004 = vmatpush.msra.mxu0 %v977
  %1005 = vmatpush.msra.mxu0 %v976
  %1006 = vmatpush.msra.mxu0 %v975
  %1007 = vmatmul.f32.gmra.mxu0 %v980
  %v1008 = vpop.f32.mrf.mxu0
  %v1009 = vadd.f32 0.0, %v1008
  %1010 = vmatmul.f32.gmra.mxu0 %v983
  %v1011 = vpop.f32.mrf.mxu0
  %v1012 = vadd.f32 0.0, %v1011
  %1013 = vmatmul.f32.gmra.mxu0 %v986
  %v1014 = vpop.f32.mrf.mxu0
  %v1015 = vadd.f32 0.0, %v1014
  %1016 = vmatmul.f32.gmra.mxu0 %v989
  %v1017 = vpop.f32.mrf.mxu0
  %v1018 = vadd.f32 0.0, %v1017
  %1019 = vdwg.mxu0
  %v1020 = vadd.f32 %v964, %v1009
  %v1021 = vadd.f32 %v967, %v1012
  %v1022 = vadd.f32 %v970, %v1015
  %v1023 = vadd.f32 %v973, %v1018
  %v1024 = vld [vmem:[%s39] sm:$0x1]
  %v1026 = vperm.slane %v1024, 0
  %v1028 = vmul.f32 %v1020, %v1026
  %v1029 = vmul.f32 %v1021, %v1026
  %v1030 = vmul.f32 %v1022, %v1026
  %v1031 = vmul.f32 %v1023, %v1026
  %v1032 = vld [vmem:[%s41] sm:$0x1]
  %v1034 = vperm.slane %v1032, 0
  %v1036 = vadd.f32 %v1028, %v1034
  %v1037 = vadd.f32 %v1029, %v1034
  %v1038 = vadd.f32 %v1030, %v1034
  %v1039 = vadd.f32 %v1031, %v1034
  %v1040 = vmax.f32 %v1036, 0.0
  %v1041 = vmax.f32 %v1037, 0.0
  %v1042 = vmax.f32 %v1038, 0.0
  %v1043 = vmax.f32 %v1039, 0.0
  %v1044 = vrot.slane %v1040, 7
  %v1045 = vrot.slane %v1041, 7
  %v1046 = vrot.slane %v1042, 7
  %v1047 = vrot.slane %v1043, 7
  %v1048 = vsel %vm307, %v1046, %v1047
  %v1049 = vsel %vm307, %v1045, %v1046
  %v1050 = vsel %vm307, %v1044, %v1045
  %v1051 = vsel %vm307, %v1047, %v1044
  %v1052 = vmul.f32 %v1051, %v287
  %v1053 = vmul.f32 %v1050, %v288
  %v1054 = vmul.f32 %v1049, %v289
  %v1055 = vmul.f32 %v1048, %v290
  %v1056 = vrot.slane %v1040, 1
  %v1057 = vrot.slane %v1041, 1
  %v1058 = vrot.slane %v1042, 1
  %v1059 = vrot.slane %v1043, 1
  %v1060 = vsel %vm320, %v1058, %v1059
  %v1061 = vsel %vm320, %v1057, %v1058
  %v1062 = vsel %vm320, %v1056, %v1057
  %v1063 = vsel %vm320, %v1059, %v1056
  %v1064 = vmul.f32 %v1062, %v299
  %v1065 = vmul.f32 %v1061, %v300
  %v1066 = vmul.f32 %v1060, %v301
  %v1067 = vmul.f32 %v1063, %v302
  %v1068 = vld [vmem:[%s45] sm:$0xff]
  %v1069 = vld [vmem:[%s45 + $0x8] sm:$0xff]
  %v1070 = vld [vmem:[%s45 + $0x10] sm:$0xff]
  %v1071 = vld [vmem:[%s45 + $0x18] sm:$0xff]
  %v1072 = vld [vmem:[%s45 + $0x20] sm:$0xff]
  %v1073 = vld [vmem:[%s45 + $0x28] sm:$0xff]
  %v1074 = vld [vmem:[%s45 + $0x30] sm:$0xff]
  %v1075 = vld [vmem:[%s45 + $0x38] sm:$0xff]
  %v1076 = vld [vmem:[%s43] sm:$0xff]
  %v1077 = vld [vmem:[%s43 + $0x8] sm:$0xff]
  %v1078 = vld [vmem:[%s43 + $0x10] sm:$0xff]
  %v1079 = vld [vmem:[%s43 + $0x18] sm:$0xff]
  %v1080 = vld [vmem:[%s43 + $0x20] sm:$0xff]
  %v1081 = vld [vmem:[%s43 + $0x28] sm:$0xff]
  %v1082 = vld [vmem:[%s43 + $0x30] sm:$0xff]
  %v1083 = vld [vmem:[%s43 + $0x38] sm:$0xff]
  %vm1084 = vcmask 523264
  %v1086 = vsel %vm1084, %v1052, 0
  %v1089 = vsel %vm1084, %v1053, 0
  %v1092 = vsel %vm1084, %v1054, 0
  %v1095 = vsel %vm1084, %v1055, 0
  %1097 = vmatpush.msra.mxu0 0.0
  %1098 = vmatpush.msra.mxu0 0.0
  %1099 = vmatpush.msra.mxu0 0.0
  %1100 = vmatpush.msra.mxu0 0.0
  %1101 = vmatpush.msra.mxu0 0.0
  %1102 = vmatpush.msra.mxu0 0.0
  %1103 = vmatpush.msra.mxu0 0.0
  %1104 = vmatpush.msra.mxu0 0.0
  %1105 = vmatpush.msra.mxu0 %v1083
  %1106 = vmatpush.msra.mxu0 %v1082
  %1107 = vmatpush.msra.mxu0 %v1081
  %1108 = vmatpush.msra.mxu0 %v1080
  %1109 = vmatpush.msra.mxu0 %v1079
  %1110 = vmatpush.msra.mxu0 %v1078
  %1111 = vmatpush.msra.mxu0 %v1077
  %1112 = vmatpush.msra.mxu0 %v1076
  %1113 = vmatmul.f32.gmra.mxu0 %v1086
  %v1114 = vpop.f32.mrf.mxu0
  %v1115 = vadd.f32 0.0, %v1114
  %1116 = vmatmul.f32.gmra.mxu0 %v1089
  %v1117 = vpop.f32.mrf.mxu0
  %v1118 = vadd.f32 0.0, %v1117
  %1119 = vmatmul.f32.gmra.mxu0 %v1092
  %v1120 = vpop.f32.mrf.mxu0
  %v1121 = vadd.f32 0.0, %v1120
  %1122 = vmatmul.f32.gmra.mxu0 %v1095
  %v1123 = vpop.f32.mrf.mxu0
  %v1124 = vadd.f32 0.0, %v1123
  %1125 = vdwg.mxu0
  %v1127 = vsel %vm1084, %v1040, 0
  %v1130 = vsel %vm1084, %v1041, 0
  %v1133 = vsel %vm1084, %v1042, 0
  %v1136 = vsel %vm1084, %v1043, 0
  %1138 = vmatpush.msra.mxu0 0.0
  %1139 = vmatpush.msra.mxu0 0.0
  %1140 = vmatpush.msra.mxu0 0.0
  %1141 = vmatpush.msra.mxu0 0.0
  %1142 = vmatpush.msra.mxu0 0.0
  %1143 = vmatpush.msra.mxu0 0.0
  %1144 = vmatpush.msra.mxu0 0.0
  %1145 = vmatpush.msra.mxu0 0.0
  %1146 = vmatpush.msra.mxu0 %v1075
  %1147 = vmatpush.msra.mxu0 %v1074
  %1148 = vmatpush.msra.mxu0 %v1073
  %1149 = vmatpush.msra.mxu0 %v1072
  %1150 = vmatpush.msra.mxu0 %v1071
  %1151 = vmatpush.msra.mxu0 %v1070
  %1152 = vmatpush.msra.mxu0 %v1069
  %1153 = vmatpush.msra.mxu0 %v1068
  %1154 = vmatmul.f32.gmra.mxu0 %v1127
  %v1155 = vpop.f32.mrf.mxu0
  %v1156 = vadd.f32 %v1115, %v1155
  %1157 = vmatmul.f32.gmra.mxu0 %v1130
  %v1158 = vpop.f32.mrf.mxu0
  %v1159 = vadd.f32 %v1118, %v1158
  %1160 = vmatmul.f32.gmra.mxu0 %v1133
  %v1161 = vpop.f32.mrf.mxu0
  %v1162 = vadd.f32 %v1121, %v1161
  %1163 = vmatmul.f32.gmra.mxu0 %v1136
  %v1164 = vpop.f32.mrf.mxu0
  %v1165 = vadd.f32 %v1124, %v1164
  %1166 = vdwg.mxu0
  %v1167 = vld [vmem:[%s47] sm:$0xff]
  %v1168 = vld [vmem:[%s47 + $0x8] sm:$0xff]
  %v1169 = vld [vmem:[%s47 + $0x10] sm:$0xff]
  %v1170 = vld [vmem:[%s47 + $0x18] sm:$0xff]
  %v1171 = vld [vmem:[%s47 + $0x20] sm:$0xff]
  %v1172 = vld [vmem:[%s47 + $0x28] sm:$0xff]
  %v1173 = vld [vmem:[%s47 + $0x30] sm:$0xff]
  %v1174 = vld [vmem:[%s47 + $0x38] sm:$0xff]
  %v1176 = vsel %vm1084, %v1064, 0
  %v1179 = vsel %vm1084, %v1065, 0
  %v1182 = vsel %vm1084, %v1066, 0
  %v1185 = vsel %vm1084, %v1067, 0
  %1187 = vmatpush.msra.mxu0 0.0
  %1188 = vmatpush.msra.mxu0 0.0
  %1189 = vmatpush.msra.mxu0 0.0
  %1190 = vmatpush.msra.mxu0 0.0
  %1191 = vmatpush.msra.mxu0 0.0
  %1192 = vmatpush.msra.mxu0 0.0
  %1193 = vmatpush.msra.mxu0 0.0
  %1194 = vmatpush.msra.mxu0 0.0
  %1195 = vmatpush.msra.mxu0 %v1174
  %1196 = vmatpush.msra.mxu0 %v1173
  %1197 = vmatpush.msra.mxu0 %v1172
  %1198 = vmatpush.msra.mxu0 %v1171
  %1199 = vmatpush.msra.mxu0 %v1170
  %1200 = vmatpush.msra.mxu0 %v1169
  %1201 = vmatpush.msra.mxu0 %v1168
  %1202 = vmatpush.msra.mxu0 %v1167
  %1203 = vmatmul.f32.gmra.mxu0 %v1176
  %v1204 = vpop.f32.mrf.mxu0
  %v1205 = vadd.f32 0.0, %v1204
  %1206 = vmatmul.f32.gmra.mxu0 %v1179
  %v1207 = vpop.f32.mrf.mxu0
  %v1208 = vadd.f32 0.0, %v1207
  %1209 = vmatmul.f32.gmra.mxu0 %v1182
  %v1210 = vpop.f32.mrf.mxu0
  %v1211 = vadd.f32 0.0, %v1210
  %1212 = vmatmul.f32.gmra.mxu0 %v1185
  %v1213 = vpop.f32.mrf.mxu0
  %v1214 = vadd.f32 0.0, %v1213
  %1215 = vdwg.mxu0
  %v1216 = vadd.f32 %v1156, %v1205
  %v1217 = vadd.f32 %v1159, %v1208
  %v1218 = vadd.f32 %v1162, %v1211
  %v1219 = vadd.f32 %v1165, %v1214
  %v1220 = vld [vmem:[%s49] sm:$0x1]
  %v1222 = vperm.slane %v1220, 0
  %v1224 = vmul.f32 %v1216, %v1222
  %v1225 = vmul.f32 %v1217, %v1222
  %v1226 = vmul.f32 %v1218, %v1222
  %v1227 = vmul.f32 %v1219, %v1222
  %v1228 = vld [vmem:[%s51] sm:$0x1]
  %v1230 = vperm.slane %v1228, 0
  %v1232 = vadd.f32 %v1224, %v1230
  %v1233 = vadd.f32 %v1225, %v1230
  %v1234 = vadd.f32 %v1226, %v1230
  %v1235 = vadd.f32 %v1227, %v1230
  %v1236 = vld [vmem:[%s53] sm:$0xff]
  %v1237 = vld [vmem:[%s53 + $0x8] sm:$0xff]
  %v1238 = vld [vmem:[%s53 + $0x10] sm:$0xff]
  %v1239 = vld [vmem:[%s53 + $0x18] sm:$0xff]
  %v1240 = vld [vmem:[%s55] sm:$0x1]
  %v1242 = vperm.slane %v1240, 0
  %1244 = vmatpush.msra.mxu0 0.0
  %1245 = vmatpush.msra.mxu0 0.0
  %1246 = vmatpush.msra.mxu0 0.0
  %1247 = vmatpush.msra.mxu0 0.0
  %1248 = vmatpush.msra.mxu0 0.0
  %1249 = vmatpush.msra.mxu0 0.0
  %1250 = vmatpush.msra.mxu0 0.0
  %1251 = vmatpush.msra.mxu0 0.0
  %1252 = vmatpush.msra.mxu0 0.0
  %1253 = vmatpush.msra.mxu0 0.0
  %1254 = vmatpush.msra.mxu0 0.0
  %1255 = vmatpush.msra.mxu0 0.0
  %1256 = vmatpush.msra.mxu0 %v1239
  %1257 = vmatpush.msra.mxu0 %v1238
  %1258 = vmatpush.msra.mxu0 %v1237
  %1259 = vmatpush.msra.mxu0 %v1236
  %1260 = vmatmul.f32.gmra.mxu0 %v935
  %v1261 = vpop.f32.mrf.mxu0
  %v1262 = vadd.f32 %v1242, %v1261
  %1263 = vmatmul.f32.gmra.mxu0 %v938
  %v1264 = vpop.f32.mrf.mxu0
  %v1265 = vadd.f32 %v1242, %v1264
  %1266 = vmatmul.f32.gmra.mxu0 %v941
  %v1267 = vpop.f32.mrf.mxu0
  %v1268 = vadd.f32 %v1242, %v1267
  %1269 = vmatmul.f32.gmra.mxu0 %v944
  %v1270 = vpop.f32.mrf.mxu0
  %v1271 = vadd.f32 %v1242, %v1270
  %1272 = vdwg.mxu0
  %v1273 = vadd.f32 %v1232, %v1262
  %v1274 = vadd.f32 %v1233, %v1265
  %v1275 = vadd.f32 %v1234, %v1268
  %v1276 = vadd.f32 %v1235, %v1271
  %v1277 = vmax.f32 %v1273, 0.0
  %v1278 = vmax.f32 %v1274, 0.0
  %v1279 = vmax.f32 %v1275, 0.0
  %v1280 = vmax.f32 %v1276, 0.0
  %v1281 = vrot.slane %v1277, 7
  %v1282 = vrot.slane %v1278, 7
  %v1283 = vrot.slane %v1279, 7
  %v1284 = vrot.slane %v1280, 7
  %v1285 = vsel %vm307, %v1283, %v1284
  %v1286 = vsel %vm307, %v1282, %v1283
  %v1287 = vsel %vm307, %v1281, %v1282
  %v1288 = vsel %vm307, %v1284, %v1281
  %v1289 = vmul.f32 %v1288, %v287
  %v1290 = vmul.f32 %v1287, %v288
  %v1291 = vmul.f32 %v1286, %v289
  %v1292 = vmul.f32 %v1285, %v290
  %v1293 = vrot.slane %v1277, 1
  %v1294 = vrot.slane %v1278, 1
  %v1295 = vrot.slane %v1279, 1
  %v1296 = vrot.slane %v1280, 1
  %v1297 = vsel %vm320, %v1295, %v1296
  %v1298 = vsel %vm320, %v1294, %v1295
  %v1299 = vsel %vm320, %v1293, %v1294
  %v1300 = vsel %vm320, %v1296, %v1293
  %v1301 = vmul.f32 %v1299, %v299
  %v1302 = vmul.f32 %v1298, %v300
  %v1303 = vmul.f32 %v1297, %v301
  %v1304 = vmul.f32 %v1300, %v302
  %v1305 = vld [vmem:[%s59] sm:$0xff]
  %v1306 = vld [vmem:[%s59 + $0x8] sm:$0xff]
  %v1307 = vld [vmem:[%s59 + $0x10] sm:$0xff]
  %v1308 = vld [vmem:[%s59 + $0x18] sm:$0xff]
  %v1309 = vld [vmem:[%s59 + $0x20] sm:$0xff]
  %v1310 = vld [vmem:[%s59 + $0x28] sm:$0xff]
  %v1311 = vld [vmem:[%s59 + $0x30] sm:$0xff]
  %v1312 = vld [vmem:[%s59 + $0x38] sm:$0xff]
  %v1313 = vld [vmem:[%s57] sm:$0xff]
  %v1314 = vld [vmem:[%s57 + $0x8] sm:$0xff]
  %v1315 = vld [vmem:[%s57 + $0x10] sm:$0xff]
  %v1316 = vld [vmem:[%s57 + $0x18] sm:$0xff]
  %v1317 = vld [vmem:[%s57 + $0x20] sm:$0xff]
  %v1318 = vld [vmem:[%s57 + $0x28] sm:$0xff]
  %v1319 = vld [vmem:[%s57 + $0x30] sm:$0xff]
  %v1320 = vld [vmem:[%s57 + $0x38] sm:$0xff]
  %v1322 = vsel %vm1084, %v1289, 0
  %v1325 = vsel %vm1084, %v1290, 0
  %v1328 = vsel %vm1084, %v1291, 0
  %v1331 = vsel %vm1084, %v1292, 0
  %1333 = vmatpush.msra.mxu0 0.0
  %1334 = vmatpush.msra.mxu0 0.0
  %1335 = vmatpush.msra.mxu0 0.0
  %1336 = vmatpush.msra.mxu0 0.0
  %1337 = vmatpush.msra.mxu0 0.0
  %1338 = vmatpush.msra.mxu0 0.0
  %1339 = vmatpush.msra.mxu0 0.0
  %1340 = vmatpush.msra.mxu0 0.0
  %1341 = vmatpush.msra.mxu0 %v1320
  %1342 = vmatpush.msra.mxu0 %v1319
  %1343 = vmatpush.msra.mxu0 %v1318
  %1344 = vmatpush.msra.mxu0 %v1317
  %1345 = vmatpush.msra.mxu0 %v1316
  %1346 = vmatpush.msra.mxu0 %v1315
  %1347 = vmatpush.msra.mxu0 %v1314
  %1348 = vmatpush.msra.mxu0 %v1313
  %1349 = vmatmul.f32.gmra.mxu0 %v1322
  %v1350 = vpop.f32.mrf.mxu0
  %v1351 = vadd.f32 0.0, %v1350
  %1352 = vmatmul.f32.gmra.mxu0 %v1325
  %v1353 = vpop.f32.mrf.mxu0
  %v1354 = vadd.f32 0.0, %v1353
  %1355 = vmatmul.f32.gmra.mxu0 %v1328
  %v1356 = vpop.f32.mrf.mxu0
  %v1357 = vadd.f32 0.0, %v1356
  %1358 = vmatmul.f32.gmra.mxu0 %v1331
  %v1359 = vpop.f32.mrf.mxu0
  %v1360 = vadd.f32 0.0, %v1359
  %1361 = vdwg.mxu0
  %v1363 = vsel %vm1084, %v1277, 0
  %v1366 = vsel %vm1084, %v1278, 0
  %v1369 = vsel %vm1084, %v1279, 0
  %v1372 = vsel %vm1084, %v1280, 0
  %1374 = vmatpush.msra.mxu0 0.0
  %1375 = vmatpush.msra.mxu0 0.0
  %1376 = vmatpush.msra.mxu0 0.0
  %1377 = vmatpush.msra.mxu0 0.0
  %1378 = vmatpush.msra.mxu0 0.0
  %1379 = vmatpush.msra.mxu0 0.0
  %1380 = vmatpush.msra.mxu0 0.0
  %1381 = vmatpush.msra.mxu0 0.0
  %1382 = vmatpush.msra.mxu0 %v1312
  %1383 = vmatpush.msra.mxu0 %v1311
  %1384 = vmatpush.msra.mxu0 %v1310
  %1385 = vmatpush.msra.mxu0 %v1309
  %1386 = vmatpush.msra.mxu0 %v1308
  %1387 = vmatpush.msra.mxu0 %v1307
  %1388 = vmatpush.msra.mxu0 %v1306
  %1389 = vmatpush.msra.mxu0 %v1305
  %1390 = vmatmul.f32.gmra.mxu0 %v1363
  %v1391 = vpop.f32.mrf.mxu0
  %v1392 = vadd.f32 %v1351, %v1391
  %1393 = vmatmul.f32.gmra.mxu0 %v1366
  %v1394 = vpop.f32.mrf.mxu0
  %v1395 = vadd.f32 %v1354, %v1394
  %1396 = vmatmul.f32.gmra.mxu0 %v1369
  %v1397 = vpop.f32.mrf.mxu0
  %v1398 = vadd.f32 %v1357, %v1397
  %1399 = vmatmul.f32.gmra.mxu0 %v1372
  %v1400 = vpop.f32.mrf.mxu0
  %v1401 = vadd.f32 %v1360, %v1400
  %1402 = vdwg.mxu0
  %v1403 = vld [vmem:[%s61] sm:$0xff]
  %v1404 = vld [vmem:[%s61 + $0x8] sm:$0xff]
  %v1405 = vld [vmem:[%s61 + $0x10] sm:$0xff]
  %v1406 = vld [vmem:[%s61 + $0x18] sm:$0xff]
  %v1407 = vld [vmem:[%s61 + $0x20] sm:$0xff]
  %v1408 = vld [vmem:[%s61 + $0x28] sm:$0xff]
  %v1409 = vld [vmem:[%s61 + $0x30] sm:$0xff]
  %v1410 = vld [vmem:[%s61 + $0x38] sm:$0xff]
  %v1412 = vsel %vm1084, %v1301, 0
  %v1415 = vsel %vm1084, %v1302, 0
  %v1418 = vsel %vm1084, %v1303, 0
  %v1421 = vsel %vm1084, %v1304, 0
  %1423 = vmatpush.msra.mxu0 0.0
  %1424 = vmatpush.msra.mxu0 0.0
  %1425 = vmatpush.msra.mxu0 0.0
  %1426 = vmatpush.msra.mxu0 0.0
  %1427 = vmatpush.msra.mxu0 0.0
  %1428 = vmatpush.msra.mxu0 0.0
  %1429 = vmatpush.msra.mxu0 0.0
  %1430 = vmatpush.msra.mxu0 0.0
  %1431 = vmatpush.msra.mxu0 %v1410
  %1432 = vmatpush.msra.mxu0 %v1409
  %1433 = vmatpush.msra.mxu0 %v1408
  %1434 = vmatpush.msra.mxu0 %v1407
  %1435 = vmatpush.msra.mxu0 %v1406
  %1436 = vmatpush.msra.mxu0 %v1405
  %1437 = vmatpush.msra.mxu0 %v1404
  %1438 = vmatpush.msra.mxu0 %v1403
  %1439 = vmatmul.f32.gmra.mxu0 %v1412
  %v1440 = vpop.f32.mrf.mxu0
  %v1441 = vadd.f32 0.0, %v1440
  %1442 = vmatmul.f32.gmra.mxu0 %v1415
  %v1443 = vpop.f32.mrf.mxu0
  %v1444 = vadd.f32 0.0, %v1443
  %1445 = vmatmul.f32.gmra.mxu0 %v1418
  %v1446 = vpop.f32.mrf.mxu0
  %v1447 = vadd.f32 0.0, %v1446
  %1448 = vmatmul.f32.gmra.mxu0 %v1421
  %v1449 = vpop.f32.mrf.mxu0
  %v1450 = vadd.f32 0.0, %v1449
  %1451 = vdwg.mxu0
  %v1452 = vadd.f32 %v1392, %v1441
  %v1453 = vadd.f32 %v1395, %v1444
  %v1454 = vadd.f32 %v1398, %v1447
  %v1455 = vadd.f32 %v1401, %v1450
  %v1456 = vld [vmem:[%s63] sm:$0x1]
  %v1458 = vperm.slane %v1456, 0
  %v1460 = vmul.f32 %v1452, %v1458
  %v1461 = vmul.f32 %v1453, %v1458
  %v1462 = vmul.f32 %v1454, %v1458
  %v1463 = vmul.f32 %v1455, %v1458
  %v1464 = vld [vmem:[%s65] sm:$0x1]
  %v1466 = vperm.slane %v1464, 0
  %v1468 = vadd.f32 %v1460, %v1466
  %v1469 = vadd.f32 %v1461, %v1466
  %v1470 = vadd.f32 %v1462, %v1466
  %v1471 = vadd.f32 %v1463, %v1466
  %v1472 = vmax.f32 %v1468, 0.0
  %v1473 = vmax.f32 %v1469, 0.0
  %v1474 = vmax.f32 %v1470, 0.0
  %v1475 = vmax.f32 %v1471, 0.0
  %v1476 = vrot.slane %v1472, 7
  %v1477 = vrot.slane %v1473, 7
  %v1478 = vrot.slane %v1474, 7
  %v1479 = vrot.slane %v1475, 7
  %v1480 = vsel %vm307, %v1478, %v1479
  %v1481 = vsel %vm307, %v1477, %v1478
  %v1482 = vsel %vm307, %v1476, %v1477
  %v1483 = vsel %vm307, %v1479, %v1476
  %v1484 = vmul.f32 %v1483, %v287
  %v1485 = vmul.f32 %v1482, %v288
  %v1486 = vmul.f32 %v1481, %v289
  %v1487 = vmul.f32 %v1480, %v290
  %v1488 = vrot.slane %v1472, 1
  %v1489 = vrot.slane %v1473, 1
  %v1490 = vrot.slane %v1474, 1
  %v1491 = vrot.slane %v1475, 1
  %v1492 = vsel %vm320, %v1490, %v1491
  %v1493 = vsel %vm320, %v1489, %v1490
  %v1494 = vsel %vm320, %v1488, %v1489
  %v1495 = vsel %vm320, %v1491, %v1488
  %v1496 = vmul.f32 %v1494, %v299
  %v1497 = vmul.f32 %v1493, %v300
  %v1498 = vmul.f32 %v1492, %v301
  %v1499 = vmul.f32 %v1495, %v302
  %v1500 = vld [vmem:[%s69] sm:$0xff]
  %v1501 = vld [vmem:[%s69 + $0x8] sm:$0xff]
  %v1502 = vld [vmem:[%s69 + $0x10] sm:$0xff]
  %v1503 = vld [vmem:[%s69 + $0x18] sm:$0xff]
  %v1504 = vld [vmem:[%s69 + $0x20] sm:$0xff]
  %v1505 = vld [vmem:[%s69 + $0x28] sm:$0xff]
  %v1506 = vld [vmem:[%s69 + $0x30] sm:$0xff]
  %v1507 = vld [vmem:[%s69 + $0x38] sm:$0xff]
  %v1508 = vld [vmem:[%s69 + $0x40] sm:$0xff]
  %v1509 = vld [vmem:[%s69 + $0x48] sm:$0xff]
  %v1510 = vld [vmem:[%s69 + $0x50] sm:$0xff]
  %v1511 = vld [vmem:[%s69 + $0x58] sm:$0xff]
  %v1512 = vld [vmem:[%s69 + $0x60] sm:$0xff]
  %v1513 = vld [vmem:[%s69 + $0x68] sm:$0xff]
  %v1514 = vld [vmem:[%s69 + $0x70] sm:$0xff]
  %v1515 = vld [vmem:[%s69 + $0x78] sm:$0xff]
  %v1516 = vld [vmem:[%s67] sm:$0xff]
  %v1517 = vld [vmem:[%s67 + $0x8] sm:$0xff]
  %v1518 = vld [vmem:[%s67 + $0x10] sm:$0xff]
  %v1519 = vld [vmem:[%s67 + $0x18] sm:$0xff]
  %v1520 = vld [vmem:[%s67 + $0x20] sm:$0xff]
  %v1521 = vld [vmem:[%s67 + $0x28] sm:$0xff]
  %v1522 = vld [vmem:[%s67 + $0x30] sm:$0xff]
  %v1523 = vld [vmem:[%s67 + $0x38] sm:$0xff]
  %v1524 = vld [vmem:[%s67 + $0x40] sm:$0xff]
  %v1525 = vld [vmem:[%s67 + $0x48] sm:$0xff]
  %v1526 = vld [vmem:[%s67 + $0x50] sm:$0xff]
  %v1527 = vld [vmem:[%s67 + $0x58] sm:$0xff]
  %v1528 = vld [vmem:[%s67 + $0x60] sm:$0xff]
  %v1529 = vld [vmem:[%s67 + $0x68] sm:$0xff]
  %v1530 = vld [vmem:[%s67 + $0x70] sm:$0xff]
  %v1531 = vld [vmem:[%s67 + $0x78] sm:$0xff]
  %1532 = vmatpush.msra.mxu0 %v1531
  %1533 = vmatpush.msra.mxu0 %v1530
  %1534 = vmatpush.msra.mxu0 %v1529
  %1535 = vmatpush.msra.mxu0 %v1528
  %1536 = vmatpush.msra.mxu0 %v1527
  %1537 = vmatpush.msra.mxu0 %v1526
  %1538 = vmatpush.msra.mxu0 %v1525
  %1539 = vmatpush.msra.mxu0 %v1524
  %1540 = vmatpush.msra.mxu0 %v1523
  %1541 = vmatpush.msra.mxu0 %v1522
  %1542 = vmatpush.msra.mxu0 %v1521
  %1543 = vmatpush.msra.mxu0 %v1520
  %1544 = vmatpush.msra.mxu0 %v1519
  %1545 = vmatpush.msra.mxu0 %v1518
  %1546 = vmatpush.msra.mxu0 %v1517
  %1547 = vmatpush.msra.mxu0 %v1516
  %1548 = vmatmul.f32.gmra.mxu0 %v1484
  %v1549 = vpop.f32.mrf.mxu0
  %v1550 = vadd.f32 0.0, %v1549
  %1551 = vmatmul.f32.gmra.mxu0 %v1485
  %v1552 = vpop.f32.mrf.mxu0
  %v1553 = vadd.f32 0.0, %v1552
  %1554 = vmatmul.f32.gmra.mxu0 %v1486
  %v1555 = vpop.f32.mrf.mxu0
  %v1556 = vadd.f32 0.0, %v1555
  %1557 = vmatmul.f32.gmra.mxu0 %v1487
  %v1558 = vpop.f32.mrf.mxu0
  %v1559 = vadd.f32 0.0, %v1558
  %1560 = vdwg.mxu0
  %1561 = vmatpush.msra.mxu0 %v1515
  %1562 = vmatpush.msra.mxu0 %v1514
  %1563 = vmatpush.msra.mxu0 %v1513
  %1564 = vmatpush.msra.mxu0 %v1512
  %1565 = vmatpush.msra.mxu0 %v1511
  %1566 = vmatpush.msra.mxu0 %v1510
  %1567 = vmatpush.msra.mxu0 %v1509
  %1568 = vmatpush.msra.mxu0 %v1508
  %1569 = vmatpush.msra.mxu0 %v1507
  %1570 = vmatpush.msra.mxu0 %v1506
  %1571 = vmatpush.msra.mxu0 %v1505
  %1572 = vmatpush.msra.mxu0 %v1504
  %1573 = vmatpush.msra.mxu0 %v1503
  %1574 = vmatpush.msra.mxu0 %v1502
  %1575 = vmatpush.msra.mxu0 %v1501
  %1576 = vmatpush.msra.mxu0 %v1500
  %1577 = vmatmul.f32.gmra.mxu0 %v1472
  %v1578 = vpop.f32.mrf.mxu0
  %v1579 = vadd.f32 %v1550, %v1578
  %1580 = vmatmul.f32.gmra.mxu0 %v1473
  %v1581 = vpop.f32.mrf.mxu0
  %v1582 = vadd.f32 %v1553, %v1581
  %1583 = vmatmul.f32.gmra.mxu0 %v1474
  %v1584 = vpop.f32.mrf.mxu0
  %v1585 = vadd.f32 %v1556, %v1584
  %1586 = vmatmul.f32.gmra.mxu0 %v1475
  %v1587 = vpop.f32.mrf.mxu0
  %v1588 = vadd.f32 %v1559, %v1587
  %1589 = vdwg.mxu0
  %v1590 = vld [vmem:[%s71] sm:$0xff]
  %v1591 = vld [vmem:[%s71 + $0x8] sm:$0xff]
  %v1592 = vld [vmem:[%s71 + $0x10] sm:$0xff]
  %v1593 = vld [vmem:[%s71 + $0x18] sm:$0xff]
  %v1594 = vld [vmem:[%s71 + $0x20] sm:$0xff]
  %v1595 = vld [vmem:[%s71 + $0x28] sm:$0xff]
  %v1596 = vld [vmem:[%s71 + $0x30] sm:$0xff]
  %v1597 = vld [vmem:[%s71 + $0x38] sm:$0xff]
  %v1598 = vld [vmem:[%s71 + $0x40] sm:$0xff]
  %v1599 = vld [vmem:[%s71 + $0x48] sm:$0xff]
  %v1600 = vld [vmem:[%s71 + $0x50] sm:$0xff]
  %v1601 = vld [vmem:[%s71 + $0x58] sm:$0xff]
  %v1602 = vld [vmem:[%s71 + $0x60] sm:$0xff]
  %v1603 = vld [vmem:[%s71 + $0x68] sm:$0xff]
  %v1604 = vld [vmem:[%s71 + $0x70] sm:$0xff]
  %v1605 = vld [vmem:[%s71 + $0x78] sm:$0xff]
  %1606 = vmatpush.msra.mxu0 %v1605
  %1607 = vmatpush.msra.mxu0 %v1604
  %1608 = vmatpush.msra.mxu0 %v1603
  %1609 = vmatpush.msra.mxu0 %v1602
  %1610 = vmatpush.msra.mxu0 %v1601
  %1611 = vmatpush.msra.mxu0 %v1600
  %1612 = vmatpush.msra.mxu0 %v1599
  %1613 = vmatpush.msra.mxu0 %v1598
  %1614 = vmatpush.msra.mxu0 %v1597
  %1615 = vmatpush.msra.mxu0 %v1596
  %1616 = vmatpush.msra.mxu0 %v1595
  %1617 = vmatpush.msra.mxu0 %v1594
  %1618 = vmatpush.msra.mxu0 %v1593
  %1619 = vmatpush.msra.mxu0 %v1592
  %1620 = vmatpush.msra.mxu0 %v1591
  %1621 = vmatpush.msra.mxu0 %v1590
  %1622 = vmatmul.f32.gmra.mxu0 %v1496
  %v1623 = vpop.f32.mrf.mxu0
  %v1624 = vadd.f32 0.0, %v1623
  %1625 = vmatmul.f32.gmra.mxu0 %v1497
  %v1626 = vpop.f32.mrf.mxu0
  %v1627 = vadd.f32 0.0, %v1626
  %1628 = vmatmul.f32.gmra.mxu0 %v1498
  %v1629 = vpop.f32.mrf.mxu0
  %v1630 = vadd.f32 0.0, %v1629
  %1631 = vmatmul.f32.gmra.mxu0 %v1499
  %v1632 = vpop.f32.mrf.mxu0
  %v1633 = vadd.f32 0.0, %v1632
  %1634 = vdwg.mxu0
  %v1635 = vadd.f32 %v1579, %v1624
  %v1636 = vadd.f32 %v1582, %v1627
  %v1637 = vadd.f32 %v1585, %v1630
  %v1638 = vadd.f32 %v1588, %v1633
  %v1639 = vld [vmem:[%s73] sm:$0x1]
  %v1641 = vperm.slane %v1639, 0
  %v1643 = vmul.f32 %v1635, %v1641
  %v1644 = vmul.f32 %v1636, %v1641
  %v1645 = vmul.f32 %v1637, %v1641
  %v1646 = vmul.f32 %v1638, %v1641
  %v1647 = vld [vmem:[%s75] sm:$0x1]
  %v1649 = vperm.slane %v1647, 0
  %v1651 = vadd.f32 %v1643, %v1649
  %v1652 = vadd.f32 %v1644, %v1649
  %v1653 = vadd.f32 %v1645, %v1649
  %v1654 = vadd.f32 %v1646, %v1649
  %v1655 = vld [vmem:[%s77] sm:$0xff]
  %v1656 = vld [vmem:[%s77 + $0x8] sm:$0xff]
  %v1657 = vld [vmem:[%s77 + $0x10] sm:$0xff]
  %v1658 = vld [vmem:[%s77 + $0x18] sm:$0xff]
  %v1659 = vld [vmem:[%s77 + $0x20] sm:$0xff]
  %v1660 = vld [vmem:[%s77 + $0x28] sm:$0xff]
  %v1661 = vld [vmem:[%s77 + $0x30] sm:$0xff]
  %v1662 = vld [vmem:[%s77 + $0x38] sm:$0xff]
  %v1663 = vld [vmem:[%s79] sm:$0x1]
  %v1665 = vperm.slane %v1663, 0
  %1667 = vmatpush.msra.mxu0 0.0
  %1668 = vmatpush.msra.mxu0 0.0
  %1669 = vmatpush.msra.mxu0 0.0
  %1670 = vmatpush.msra.mxu0 0.0
  %1671 = vmatpush.msra.mxu0 0.0
  %1672 = vmatpush.msra.mxu0 0.0
  %1673 = vmatpush.msra.mxu0 0.0
  %1674 = vmatpush.msra.mxu0 0.0
  %1675 = vmatpush.msra.mxu0 %v1662
  %1676 = vmatpush.msra.mxu0 %v1661
  %1677 = vmatpush.msra.mxu0 %v1660
  %1678 = vmatpush.msra.mxu0 %v1659
  %1679 = vmatpush.msra.mxu0 %v1658
  %1680 = vmatpush.msra.mxu0 %v1657
  %1681 = vmatpush.msra.mxu0 %v1656
  %1682 = vmatpush.msra.mxu0 %v1655
  %1683 = vmatmul.f32.gmra.mxu0 %v1363
  %v1684 = vpop.f32.mrf.mxu0
  %v1685 = vadd.f32 %v1665, %v1684
  %1686 = vmatmul.f32.gmra.mxu0 %v1366
  %v1687 = vpop.f32.mrf.mxu0
  %v1688 = vadd.f32 %v1665, %v1687
  %1689 = vmatmul.f32.gmra.mxu0 %v1369
  %v1690 = vpop.f32.mrf.mxu0
  %v1691 = vadd.f32 %v1665, %v1690
  %1692 = vmatmul.f32.gmra.mxu0 %v1372
  %v1693 = vpop.f32.mrf.mxu0
  %v1694 = vadd.f32 %v1665, %v1693
  %1695 = vdwg.mxu0
  %v1696 = vadd.f32 %v1651, %v1685
  %v1697 = vadd.f32 %v1652, %v1688
  %v1698 = vadd.f32 %v1653, %v1691
  %v1699 = vadd.f32 %v1654, %v1694
  %v1700 = vmax.f32 %v1696, 0.0
  %v1701 = vmax.f32 %v1697, 0.0
  %v1702 = vmax.f32 %v1698, 0.0
  %v1703 = vmax.f32 %v1699, 0.0
  %v1704 = vrot.slane %v1700, 7
  %v1705 = vrot.slane %v1701, 7
  %v1706 = vrot.slane %v1702, 7
  %v1707 = vrot.slane %v1703, 7
  %v1708 = vsel %vm307, %v1706, %v1707
  %v1709 = vsel %vm307, %v1705, %v1706
  %v1710 = vsel %vm307, %v1704, %v1705
  %v1711 = vsel %vm307, %v1707, %v1704
  %v1712 = vmul.f32 %v1711, %v287
  %v1713 = vmul.f32 %v1710, %v288
  %v1714 = vmul.f32 %v1709, %v289
  %v1715 = vmul.f32 %v1708, %v290
  %v1716 = vrot.slane %v1700, 1
  %v1717 = vrot.slane %v1701, 1
  %v1718 = vrot.slane %v1702, 1
  %v1719 = vrot.slane %v1703, 1
  %v1720 = vsel %vm320, %v1718, %v1719
  %v1721 = vsel %vm320, %v1717, %v1718
  %v1722 = vsel %vm320, %v1716, %v1717
  %v1723 = vsel %vm320, %v1719, %v1716
  %v1724 = vmul.f32 %v1722, %v299
  %v1725 = vmul.f32 %v1721, %v300
  %v1726 = vmul.f32 %v1720, %v301
  %v1727 = vmul.f32 %v1723, %v302
  %v1728 = vld [vmem:[%s83] sm:$0xff]
  %v1729 = vld [vmem:[%s83 + $0x8] sm:$0xff]
  %v1730 = vld [vmem:[%s83 + $0x10] sm:$0xff]
  %v1731 = vld [vmem:[%s83 + $0x18] sm:$0xff]
  %v1732 = vld [vmem:[%s83 + $0x20] sm:$0xff]
  %v1733 = vld [vmem:[%s83 + $0x28] sm:$0xff]
  %v1734 = vld [vmem:[%s83 + $0x30] sm:$0xff]
  %v1735 = vld [vmem:[%s83 + $0x38] sm:$0xff]
  %v1736 = vld [vmem:[%s83 + $0x40] sm:$0xff]
  %v1737 = vld [vmem:[%s83 + $0x48] sm:$0xff]
  %v1738 = vld [vmem:[%s83 + $0x50] sm:$0xff]
  %v1739 = vld [vmem:[%s83 + $0x58] sm:$0xff]
  %v1740 = vld [vmem:[%s83 + $0x60] sm:$0xff]
  %v1741 = vld [vmem:[%s83 + $0x68] sm:$0xff]
  %v1742 = vld [vmem:[%s83 + $0x70] sm:$0xff]
  %v1743 = vld [vmem:[%s83 + $0x78] sm:$0xff]
  %v1744 = vld [vmem:[%s83 + $0x80] sm:$0xff]
  %v1745 = vld [vmem:[%s83 + $0x88] sm:$0xff]
  %v1746 = vld [vmem:[%s83 + $0x90] sm:$0xff]
  %v1747 = vld [vmem:[%s83 + $0x98] sm:$0xff]
  %v1748 = vld [vmem:[%s83 + $0xa0] sm:$0xff]
  %v1749 = vld [vmem:[%s83 + $0xa8] sm:$0xff]
  %v1750 = vld [vmem:[%s83 + $0xb0] sm:$0xff]
  %v1751 = vld [vmem:[%s83 + $0xb8] sm:$0xff]
  %v1752 = vld [vmem:[%s83 + $0xc0] sm:$0xff]
  %v1753 = vld [vmem:[%s83 + $0xc8] sm:$0xff]
  %v1754 = vld [vmem:[%s83 + $0xd0] sm:$0xff]
  %v1755 = vld [vmem:[%s83 + $0xd8] sm:$0xff]
  %v1756 = vld [vmem:[%s83 + $0xe0] sm:$0xff]
  %v1757 = vld [vmem:[%s83 + $0xe8] sm:$0xff]
  %v1758 = vld [vmem:[%s83 + $0xf0] sm:$0xff]
  %v1759 = vld [vmem:[%s83 + $0xf8] sm:$0xff]
  %v1760 = vld [vmem:[%s81] sm:$0xff]
  %v1761 = vld [vmem:[%s81 + $0x8] sm:$0xff]
  %v1762 = vld [vmem:[%s81 + $0x10] sm:$0xff]
  %v1763 = vld [vmem:[%s81 + $0x18] sm:$0xff]
  %v1764 = vld [vmem:[%s81 + $0x20] sm:$0xff]
  %v1765 = vld [vmem:[%s81 + $0x28] sm:$0xff]
  %v1766 = vld [vmem:[%s81 + $0x30] sm:$0xff]
  %v1767 = vld [vmem:[%s81 + $0x38] sm:$0xff]
  %v1768 = vld [vmem:[%s81 + $0x40] sm:$0xff]
  %v1769 = vld [vmem:[%s81 + $0x48] sm:$0xff]
  %v1770 = vld [vmem:[%s81 + $0x50] sm:$0xff]
  %v1771 = vld [vmem:[%s81 + $0x58] sm:$0xff]
  %v1772 = vld [vmem:[%s81 + $0x60] sm:$0xff]
  %v1773 = vld [vmem:[%s81 + $0x68] sm:$0xff]
  %v1774 = vld [vmem:[%s81 + $0x70] sm:$0xff]
  %v1775 = vld [vmem:[%s81 + $0x78] sm:$0xff]
  %v1776 = vld [vmem:[%s81 + $0x80] sm:$0xff]
  %v1777 = vld [vmem:[%s81 + $0x88] sm:$0xff]
  %v1778 = vld [vmem:[%s81 + $0x90] sm:$0xff]
  %v1779 = vld [vmem:[%s81 + $0x98] sm:$0xff]
  %v1780 = vld [vmem:[%s81 + $0xa0] sm:$0xff]
  %v1781 = vld [vmem:[%s81 + $0xa8] sm:$0xff]
  %v1782 = vld [vmem:[%s81 + $0xb0] sm:$0xff]
  %v1783 = vld [vmem:[%s81 + $0xb8] sm:$0xff]
  %v1784 = vld [vmem:[%s81 + $0xc0] sm:$0xff]
  %v1785 = vld [vmem:[%s81 + $0xc8] sm:$0xff]
  %v1786 = vld [vmem:[%s81 + $0xd0] sm:$0xff]
  %v1787 = vld [vmem:[%s81 + $0xd8] sm:$0xff]
  %v1788 = vld [vmem:[%s81 + $0xe0] sm:$0xff]
  %v1789 = vld [vmem:[%s81 + $0xe8] sm:$0xff]
  %v1790 = vld [vmem:[%s81 + $0xf0] sm:$0xff]
  %v1791 = vld [vmem:[%s81 + $0xf8] sm:$0xff]
  %1792 = vmatpush.msra.mxu0 %v1790
  %1793 = vmatpush.msra.mxu0 %v1788
  %1794 = vmatpush.msra.mxu0 %v1786
  %1795 = vmatpush.msra.mxu0 %v1784
  %1796 = vmatpush.msra.mxu0 %v1782
  %1797 = vmatpush.msra.mxu0 %v1780
  %1798 = vmatpush.msra.mxu0 %v1778
  %1799 = vmatpush.msra.mxu0 %v1776
  %1800 = vmatpush.msra.mxu0 %v1774
  %1801 = vmatpush.msra.mxu0 %v1772
  %1802 = vmatpush.msra.mxu0 %v1770
  %1803 = vmatpush.msra.mxu0 %v1768
  %1804 = vmatpush.msra.mxu0 %v1766
  %1805 = vmatpush.msra.mxu0 %v1764
  %1806 = vmatpush.msra.mxu0 %v1762
  %1807 = vmatpush.msra.mxu0 %v1760
  %1808 = vmatmul.f32.gmra.mxu0 %v1712
  %v1809 = vpop.f32.mrf.mxu0
  %v1810 = vadd.f32 0.0, %v1809
  %1811 = vmatmul.f32.gmra.mxu0 %v1713
  %v1812 = vpop.f32.mrf.mxu0
  %v1813 = vadd.f32 0.0, %v1812
  %1814 = vmatmul.f32.gmra.mxu0 %v1714
  %v1815 = vpop.f32.mrf.mxu0
  %v1816 = vadd.f32 0.0, %v1815
  %1817 = vmatmul.f32.gmra.mxu0 %v1715
  %v1818 = vpop.f32.mrf.mxu0
  %v1819 = vadd.f32 0.0, %v1818
  %1820 = vdwg.mxu0
  %1821 = vmatpush.msra.mxu0 %v1791
  %1822 = vmatpush.msra.mxu0 %v1789
  %1823 = vmatpush.msra.mxu0 %v1787
  %1824 = vmatpush.msra.mxu0 %v1785
  %1825 = vmatpush.msra.mxu0 %v1783
  %1826 = vmatpush.msra.mxu0 %v1781
  %1827 = vmatpush.msra.mxu0 %v1779
  %1828 = vmatpush.msra.mxu0 %v1777
  %1829 = vmatpush.msra.mxu0 %v1775
  %1830 = vmatpush.msra.mxu0 %v1773
  %1831 = vmatpush.msra.mxu0 %v1771
  %1832 = vmatpush.msra.mxu0 %v1769
  %1833 = vmatpush.msra.mxu0 %v1767
  %1834 = vmatpush.msra.mxu0 %v1765
  %1835 = vmatpush.msra.mxu0 %v1763
  %1836 = vmatpush.msra.mxu0 %v1761
  %1837 = vmatmul.f32.gmra.mxu0 %v1712
  %v1838 = vpop.f32.mrf.mxu0
  %v1839 = vadd.f32 0.0, %v1838
  %1840 = vmatmul.f32.gmra.mxu0 %v1713
  %v1841 = vpop.f32.mrf.mxu0
  %v1842 = vadd.f32 0.0, %v1841
  %1843 = vmatmul.f32.gmra.mxu0 %v1714
  %v1844 = vpop.f32.mrf.mxu0
  %v1845 = vadd.f32 0.0, %v1844
  %1846 = vmatmul.f32.gmra.mxu0 %v1715
  %v1847 = vpop.f32.mrf.mxu0
  %v1848 = vadd.f32 0.0, %v1847
  %1849 = vdwg.mxu0
  %1850 = vmatpush.msra.mxu0 %v1758
  %1851 = vmatpush.msra.mxu0 %v1756
  %1852 = vmatpush.msra.mxu0 %v1754
  %1853 = vmatpush.msra.mxu0 %v1752
  %1854 = vmatpush.msra.mxu0 %v1750
  %1855 = vmatpush.msra.mxu0 %v1748
  %1856 = vmatpush.msra.mxu0 %v1746
  %1857 = vmatpush.msra.mxu0 %v1744
  %1858 = vmatpush.msra.mxu0 %v1742
  %1859 = vmatpush.msra.mxu0 %v1740
  %1860 = vmatpush.msra.mxu0 %v1738
  %1861 = vmatpush.msra.mxu0 %v1736
  %1862 = vmatpush.msra.mxu0 %v1734
  %1863 = vmatpush.msra.mxu0 %v1732
  %1864 = vmatpush.msra.mxu0 %v1730
  %1865 = vmatpush.msra.mxu0 %v1728
  %1866 = vmatmul.f32.gmra.mxu0 %v1700
  %v1867 = vpop.f32.mrf.mxu0
  %v1868 = vadd.f32 %v1810, %v1867
  %1869 = vmatmul.f32.gmra.mxu0 %v1701
  %v1870 = vpop.f32.mrf.mxu0
  %v1871 = vadd.f32 %v1813, %v1870
  %1872 = vmatmul.f32.gmra.mxu0 %v1702
  %v1873 = vpop.f32.mrf.mxu0
  %v1874 = vadd.f32 %v1816, %v1873
  %1875 = vmatmul.f32.gmra.mxu0 %v1703
  %v1876 = vpop.f32.mrf.mxu0
  %v1877 = vadd.f32 %v1819, %v1876
  %1878 = vdwg.mxu0
  %1879 = vmatpush.msra.mxu0 %v1759
  %1880 = vmatpush.msra.mxu0 %v1757
  %1881 = vmatpush.msra.mxu0 %v1755
  %1882 = vmatpush.msra.mxu0 %v1753
  %1883 = vmatpush.msra.mxu0 %v1751
  %1884 = vmatpush.msra.mxu0 %v1749
  %1885 = vmatpush.msra.mxu0 %v1747
  %1886 = vmatpush.msra.mxu0 %v1745
  %1887 = vmatpush.msra.mxu0 %v1743
  %1888 = vmatpush.msra.mxu0 %v1741
  %1889 = vmatpush.msra.mxu0 %v1739
  %1890 = vmatpush.msra.mxu0 %v1737
  %1891 = vmatpush.msra.mxu0 %v1735
  %1892 = vmatpush.msra.mxu0 %v1733
  %1893 = vmatpush.msra.mxu0 %v1731
  %1894 = vmatpush.msra.mxu0 %v1729
  %1895 = vmatmul.f32.gmra.mxu0 %v1700
  %v1896 = vpop.f32.mrf.mxu0
  %v1897 = vadd.f32 %v1839, %v1896
  %1898 = vmatmul.f32.gmra.mxu0 %v1701
  %v1899 = vpop.f32.mrf.mxu0
  %v1900 = vadd.f32 %v1842, %v1899
  %1901 = vmatmul.f32.gmra.mxu0 %v1702
  %v1902 = vpop.f32.mrf.mxu0
  %v1903 = vadd.f32 %v1845, %v1902
  %1904 = vmatmul.f32.gmra.mxu0 %v1703
  %v1905 = vpop.f32.mrf.mxu0
  %v1906 = vadd.f32 %v1848, %v1905
  %1907 = vdwg.mxu0
  %v1908 = vld [vmem:[%s85] sm:$0xff]
  %v1909 = vld [vmem:[%s85 + $0x8] sm:$0xff]
  %v1910 = vld [vmem:[%s85 + $0x10] sm:$0xff]
  %v1911 = vld [vmem:[%s85 + $0x18] sm:$0xff]
  %v1912 = vld [vmem:[%s85 + $0x20] sm:$0xff]
  %v1913 = vld [vmem:[%s85 + $0x28] sm:$0xff]
  %v1914 = vld [vmem:[%s85 + $0x30] sm:$0xff]
  %v1915 = vld [vmem:[%s85 + $0x38] sm:$0xff]
  %v1916 = vld [vmem:[%s85 + $0x40] sm:$0xff]
  %v1917 = vld [vmem:[%s85 + $0x48] sm:$0xff]
  %v1918 = vld [vmem:[%s85 + $0x50] sm:$0xff]
  %v1919 = vld [vmem:[%s85 + $0x58] sm:$0xff]
  %v1920 = vld [vmem:[%s85 + $0x60] sm:$0xff]
  %v1921 = vld [vmem:[%s85 + $0x68] sm:$0xff]
  %v1922 = vld [vmem:[%s85 + $0x70] sm:$0xff]
  %v1923 = vld [vmem:[%s85 + $0x78] sm:$0xff]
  %v1924 = vld [vmem:[%s85 + $0x80] sm:$0xff]
  %v1925 = vld [vmem:[%s85 + $0x88] sm:$0xff]
  %v1926 = vld [vmem:[%s85 + $0x90] sm:$0xff]
  %v1927 = vld [vmem:[%s85 + $0x98] sm:$0xff]
  %v1928 = vld [vmem:[%s85 + $0xa0] sm:$0xff]
  %v1929 = vld [vmem:[%s85 + $0xa8] sm:$0xff]
  %v1930 = vld [vmem:[%s85 + $0xb0] sm:$0xff]
  %v1931 = vld [vmem:[%s85 + $0xb8] sm:$0xff]
  %v1932 = vld [vmem:[%s85 + $0xc0] sm:$0xff]
  %v1933 = vld [vmem:[%s85 + $0xc8] sm:$0xff]
  %v1934 = vld [vmem:[%s85 + $0xd0] sm:$0xff]
  %v1935 = vld [vmem:[%s85 + $0xd8] sm:$0xff]
  %v1936 = vld [vmem:[%s85 + $0xe0] sm:$0xff]
  %v1937 = vld [vmem:[%s85 + $0xe8] sm:$0xff]
  %v1938 = vld [vmem:[%s85 + $0xf0] sm:$0xff]
  %v1939 = vld [vmem:[%s85 + $0xf8] sm:$0xff]
  %1940 = vmatpush.msra.mxu0 %v1938
  %1941 = vmatpush.msra.mxu0 %v1936
  %1942 = vmatpush.msra.mxu0 %v1934
  %1943 = vmatpush.msra.mxu0 %v1932
  %1944 = vmatpush.msra.mxu0 %v1930
  %1945 = vmatpush.msra.mxu0 %v1928
  %1946 = vmatpush.msra.mxu0 %v1926
  %1947 = vmatpush.msra.mxu0 %v1924
  %1948 = vmatpush.msra.mxu0 %v1922
  %1949 = vmatpush.msra.mxu0 %v1920
  %1950 = vmatpush.msra.mxu0 %v1918
  %1951 = vmatpush.msra.mxu0 %v1916
  %1952 = vmatpush.msra.mxu0 %v1914
  %1953 = vmatpush.msra.mxu0 %v1912
  %1954 = vmatpush.msra.mxu0 %v1910
  %1955 = vmatpush.msra.mxu0 %v1908
  %1956 = vmatmul.f32.gmra.mxu0 %v1724
  %v1957 = vpop.f32.mrf.mxu0
  %v1958 = vadd.f32 0.0, %v1957
  %1959 = vmatmul.f32.gmra.mxu0 %v1725
  %v1960 = vpop.f32.mrf.mxu0
  %v1961 = vadd.f32 0.0, %v1960
  %1962 = vmatmul.f32.gmra.mxu0 %v1726
  %v1963 = vpop.f32.mrf.mxu0
  %v1964 = vadd.f32 0.0, %v1963
  %1965 = vmatmul.f32.gmra.mxu0 %v1727
  %v1966 = vpop.f32.mrf.mxu0
  %v1967 = vadd.f32 0.0, %v1966
  %1968 = vdwg.mxu0
  %1969 = vmatpush.msra.mxu0 %v1939
  %1970 = vmatpush.msra.mxu0 %v1937
  %1971 = vmatpush.msra.mxu0 %v1935
  %1972 = vmatpush.msra.mxu0 %v1933
  %1973 = vmatpush.msra.mxu0 %v1931
  %1974 = vmatpush.msra.mxu0 %v1929
  %1975 = vmatpush.msra.mxu0 %v1927
  %1976 = vmatpush.msra.mxu0 %v1925
  %1977 = vmatpush.msra.mxu0 %v1923
  %1978 = vmatpush.msra.mxu0 %v1921
  %1979 = vmatpush.msra.mxu0 %v1919
  %1980 = vmatpush.msra.mxu0 %v1917
  %1981 = vmatpush.msra.mxu0 %v1915
  %1982 = vmatpush.msra.mxu0 %v1913
  %1983 = vmatpush.msra.mxu0 %v1911
  %1984 = vmatpush.msra.mxu0 %v1909
  %1985 = vmatmul.f32.gmra.mxu0 %v1724
  %v1986 = vpop.f32.mrf.mxu0
  %v1987 = vadd.f32 0.0, %v1986
  %1988 = vmatmul.f32.gmra.mxu0 %v1725
  %v1989 = vpop.f32.mrf.mxu0
  %v1990 = vadd.f32 0.0, %v1989
  %1991 = vmatmul.f32.gmra.mxu0 %v1726
  %v1992 = vpop.f32.mrf.mxu0
  %v1993 = vadd.f32 0.0, %v1992
  %1994 = vmatmul.f32.gmra.mxu0 %v1727
  %v1995 = vpop.f32.mrf.mxu0
  %v1996 = vadd.f32 0.0, %v1995
  %1997 = vdwg.mxu0
  %v1998 = vadd.f32 %v1868, %v1958
  %v1999 = vadd.f32 %v1897, %v1987
  %v2000 = vadd.f32 %v1871, %v1961
  %v2001 = vadd.f32 %v1900, %v1990
  %v2002 = vadd.f32 %v1874, %v1964
  %v2003 = vadd.f32 %v1903, %v1993
  %v2004 = vadd.f32 %v1877, %v1967
  %v2005 = vadd.f32 %v1906, %v1996
  %v2006 = vld [vmem:[%s87] sm:$0x3]
  %v2008 = vperm.slane %v2006, 0
  %v2009 = vperm.slane %v2006, 1
  %v2012 = vmul.f32 %v1998, %v2008
  %v2013 = vmul.f32 %v1999, %v2009
  %v2014 = vmul.f32 %v2000, %v2008
  %v2015 = vmul.f32 %v2001, %v2009
  %v2016 = vmul.f32 %v2002, %v2008
  %v2017 = vmul.f32 %v2003, %v2009
  %v2018 = vmul.f32 %v2004, %v2008
  %v2019 = vmul.f32 %v2005, %v2009
  %v2020 = vld [vmem:[%s89] sm:$0x3]
  %v2022 = vperm.slane %v2020, 0
  %v2023 = vperm.slane %v2020, 1
  %v2026 = vadd.f32 %v2012, %v2022
  %v2027 = vadd.f32 %v2013, %v2023
  %v2028 = vadd.f32 %v2014, %v2022
  %v2029 = vadd.f32 %v2015, %v2023
  %v2030 = vadd.f32 %v2016, %v2022
  %v2031 = vadd.f32 %v2017, %v2023
  %v2032 = vadd.f32 %v2018, %v2022
  %v2033 = vadd.f32 %v2019, %v2023
  %v2034 = vmax.f32 %v2026, 0.0
  %v2035 = vmax.f32 %v2027, 0.0
  %v2036 = vmax.f32 %v2028, 0.0
  %v2037 = vmax.f32 %v2029, 0.0
  %v2038 = vmax.f32 %v2030, 0.0
  %v2039 = vmax.f32 %v2031, 0.0
  %v2040 = vmax.f32 %v2032, 0.0
  %v2041 = vmax.f32 %v2033, 0.0
  %v2042 = vrot.slane %v2034, 7
  %v2043 = vrot.slane %v2035, 7
  %v2044 = vrot.slane %v2036, 7
  %v2045 = vrot.slane %v2037, 7
  %v2046 = vrot.slane %v2038, 7
  %v2047 = vrot.slane %v2039, 7
  %v2048 = vrot.slane %v2040, 7
  %v2049 = vrot.slane %v2041, 7
  %v2050 = vsel %vm307, %v2046, %v2048
  %v2051 = vsel %vm307, %v2047, %v2049
  %v2052 = vsel %vm307, %v2044, %v2046
  %v2053 = vsel %vm307, %v2045, %v2047
  %v2054 = vsel %vm307, %v2042, %v2044
  %v2055 = vsel %vm307, %v2043, %v2045
  %v2056 = vsel %vm307, %v2048, %v2042
  %v2057 = vsel %vm307, %v2049, %v2043
  %v2058 = vmul.f32 %v2056, %v287
  %v2059 = vmul.f32 %v2057, %v287
  %v2060 = vmul.f32 %v2054, %v288
  %v2061 = vmul.f32 %v2055, %v288
  %v2062 = vmul.f32 %v2052, %v289
  %v2063 = vmul.f32 %v2053, %v289
  %v2064 = vmul.f32 %v2050, %v290
  %v2065 = vmul.f32 %v2051, %v290
  %v2066 = vrot.slane %v2034, 1
  %v2067 = vrot.slane %v2035, 1
  %v2068 = vrot.slane %v2036, 1
  %v2069 = vrot.slane %v2037, 1
  %v2070 = vrot.slane %v2038, 1
  %v2071 = vrot.slane %v2039, 1
  %v2072 = vrot.slane %v2040, 1
  %v2073 = vrot.slane %v2041, 1
  %v2074 = vsel %vm320, %v2070, %v2072
  %v2075 = vsel %vm320, %v2071, %v2073
  %v2076 = vsel %vm320, %v2068, %v2070
  %v2077 = vsel %vm320, %v2069, %v2071
  %v2078 = vsel %vm320, %v2066, %v2068
  %v2079 = vsel %vm320, %v2067, %v2069
  %v2080 = vsel %vm320, %v2072, %v2066
  %v2081 = vsel %vm320, %v2073, %v2067
  %v2082 = vmul.f32 %v2078, %v299
  %v2083 = vmul.f32 %v2079, %v299
  %v2084 = vmul.f32 %v2076, %v300
  %v2085 = vmul.f32 %v2077, %v300
  %v2086 = vmul.f32 %v2074, %v301
  %v2087 = vmul.f32 %v2075, %v301
  %v2088 = vmul.f32 %v2080, %v302
  %v2089 = vmul.f32 %v2081, %v302
  %v2090 = vld [vmem:[%s93] sm:$0xff]
  %v2091 = vld [vmem:[%s93 + $0x8] sm:$0xff]
  %v2092 = vld [vmem:[%s93 + $0x10] sm:$0xff]
  %v2093 = vld [vmem:[%s93 + $0x18] sm:$0xff]
  %v2094 = vld [vmem:[%s93 + $0x20] sm:$0xff]
  %v2095 = vld [vmem:[%s93 + $0x28] sm:$0xff]
  %v2096 = vld [vmem:[%s93 + $0x30] sm:$0xff]
  %v2097 = vld [vmem:[%s93 + $0x38] sm:$0xff]
  %v2098 = vld [vmem:[%s93 + $0x40] sm:$0xff]
  %v2099 = vld [vmem:[%s93 + $0x48] sm:$0xff]
  %v2100 = vld [vmem:[%s93 + $0x50] sm:$0xff]
  %v2101 = vld [vmem:[%s93 + $0x58] sm:$0xff]
  %v2102 = vld [vmem:[%s93 + $0x60] sm:$0xff]
  %v2103 = vld [vmem:[%s93 + $0x68] sm:$0xff]
  %v2104 = vld [vmem:[%s93 + $0x70] sm:$0xff]
  %v2105 = vld [vmem:[%s93 + $0x78] sm:$0xff]
  %v2106 = vld [vmem:[%s93 + $0x80] sm:$0xff]
  %v2107 = vld [vmem:[%s93 + $0x88] sm:$0xff]
  %v2108 = vld [vmem:[%s93 + $0x90] sm:$0xff]
  %v2109 = vld [vmem:[%s93 + $0x98] sm:$0xff]
  %v2110 = vld [vmem:[%s93 + $0xa0] sm:$0xff]
  %v2111 = vld [vmem:[%s93 + $0xa8] sm:$0xff]
  %v2112 = vld [vmem:[%s93 + $0xb0] sm:$0xff]
  %v2113 = vld [vmem:[%s93 + $0xb8] sm:$0xff]
  %v2114 = vld [vmem:[%s93 + $0xc0] sm:$0xff]
  %v2115 = vld [vmem:[%s93 + $0xc8] sm:$0xff]
  %v2116 = vld [vmem:[%s93 + $0xd0] sm:$0xff]
  %v2117 = vld [vmem:[%s93 + $0xd8] sm:$0xff]
  %v2118 = vld [vmem:[%s93 + $0xe0] sm:$0xff]
  %v2119 = vld [vmem:[%s93 + $0xe8] sm:$0xff]
  %v2120 = vld [vmem:[%s93 + $0xf0] sm:$0xff]
  %v2121 = vld [vmem:[%s93 + $0xf8] sm:$0xff]
  %v2122 = vld [vmem:[%s93 + $0x100] sm:$0xff]
  %v2123 = vld [vmem:[%s93 + $0x108] sm:$0xff]
  %v2124 = vld [vmem:[%s93 + $0x110] sm:$0xff]
  %v2125 = vld [vmem:[%s93 + $0x118] sm:$0xff]
  %v2126 = vld [vmem:[%s93 + $0x120] sm:$0xff]
  %v2127 = vld [vmem:[%s93 + $0x128] sm:$0xff]
  %v2128 = vld [vmem:[%s93 + $0x130] sm:$0xff]
  %v2129 = vld [vmem:[%s93 + $0x138] sm:$0xff]
  %v2130 = vld [vmem:[%s93 + $0x140] sm:$0xff]
  %v2131 = vld [vmem:[%s93 + $0x148] sm:$0xff]
  %v2132 = vld [vmem:[%s93 + $0x150] sm:$0xff]
  %v2133 = vld [vmem:[%s93 + $0x158] sm:$0xff]
  %v2134 = vld [vmem:[%s93 + $0x160] sm:$0xff]
  %v2135 = vld [vmem:[%s93 + $0x168] sm:$0xff]
  %v2136 = vld [vmem:[%s93 + $0x170] sm:$0xff]
  %v2137 = vld [vmem:[%s93 + $0x178] sm:$0xff]
  %v2138 = vld [vmem:[%s93 + $0x180] sm:$0xff]
  %v2139 = vld [vmem:[%s93 + $0x188] sm:$0xff]
  %v2140 = vld [vmem:[%s93 + $0x190] sm:$0xff]
  %v2141 = vld [vmem:[%s93 + $0x198] sm:$0xff]
  %v2142 = vld [vmem:[%s93 + $0x1a0] sm:$0xff]
  %v2143 = vld [vmem:[%s93 + $0x1a8] sm:$0xff]
  %v2144 = vld [vmem:[%s93 + $0x1b0] sm:$0xff]
  %v2145 = vld [vmem:[%s93 + $0x1b8] sm:$0xff]
  %v2146 = vld [vmem:[%s93 + $0x1c0] sm:$0xff]
  %v2147 = vld [vmem:[%s93 + $0x1c8] sm:$0xff]
  %v2148 = vld [vmem:[%s93 + $0x1d0] sm:$0xff]
  %v2149 = vld [vmem:[%s93 + $0x1d8] sm:$0xff]
  %v2150 = vld [vmem:[%s93 + $0x1e0] sm:$0xff]
  %v2151 = vld [vmem:[%s93 + $0x1e8] sm:$0xff]
  %v2152 = vld [vmem:[%s93 + $0x1f0] sm:$0xff]
  %v2153 = vld [vmem:[%s93 + $0x1f8] sm:$0xff]
  %v2154 = vld [vmem:[%s91] sm:$0xff]
  %v2155 = vld [vmem:[%s91 + $0x8] sm:$0xff]
  %v2156 = vld [vmem:[%s91 + $0x10] sm:$0xff]
  %v2157 = vld [vmem:[%s91 + $0x18] sm:$0xff]
  %v2158 = vld [vmem:[%s91 + $0x20] sm:$0xff]
  %v2159 = vld [vmem:[%s91 + $0x28] sm:$0xff]
  %v2160 = vld [vmem:[%s91 + $0x30] sm:$0xff]
  %v2161 = vld [vmem:[%s91 + $0x38] sm:$0xff]
  %v2162 = vld [vmem:[%s91 + $0x40] sm:$0xff]
  %v2163 = vld [vmem:[%s91 + $0x48] sm:$0xff]
  %v2164 = vld [vmem:[%s91 + $0x50] sm:$0xff]
  %v2165 = vld [vmem:[%s91 + $0x58] sm:$0xff]
  %v2166 = vld [vmem:[%s91 + $0x60] sm:$0xff]
  %v2167 = vld [vmem:[%s91 + $0x68] sm:$0xff]
  %v2168 = vld [vmem:[%s91 + $0x70] sm:$0xff]
  %v2169 = vld [vmem:[%s91 + $0x78] sm:$0xff]
  %v2170 = vld [vmem:[%s91 + $0x80] sm:$0xff]
  %v2171 = vld [vmem:[%s91 + $0x88] sm:$0xff]
  %v2172 = vld [vmem:[%s91 + $0x90] sm:$0xff]
  %v2173 = vld [vmem:[%s91 + $0x98] sm:$0xff]
  %v2174 = vld [vmem:[%s91 + $0xa0] sm:$0xff]
  %v2175 = vld [vmem:[%s91 + $0xa8] sm:$0xff]
  %v2176 = vld [vmem:[%s91 + $0xb0] sm:$0xff]
  %v2177 = vld [vmem:[%s91 + $0xb8] sm:$0xff]
  %v2178 = vld [vmem:[%s91 + $0xc0] sm:$0xff]
  %v2179 = vld [vmem:[%s91 + $0xc8] sm:$0xff]
  %v2180 = vld [vmem:[%s91 + $0xd0] sm:$0xff]
  %v2181 = vld [vmem:[%s91 + $0xd8] sm:$0xff]
  %v2182 = vld [vmem:[%s91 + $0xe0] sm:$0xff]
  %v2183 = vld [vmem:[%s91 + $0xe8] sm:$0xff]
  %v2184 = vld [vmem:[%s91 + $0xf0] sm:$0xff]
  %v2185 = vld [vmem:[%s91 + $0xf8] sm:$0xff]
  %v2186 = vld [vmem:[%s91 + $0x100] sm:$0xff]
  %v2187 = vld [vmem:[%s91 + $0x108] sm:$0xff]
  %v2188 = vld [vmem:[%s91 + $0x110] sm:$0xff]
  %v2189 = vld [vmem:[%s91 + $0x118] sm:$0xff]
  %v2190 = vld [vmem:[%s91 + $0x120] sm:$0xff]
  %v2191 = vld [vmem:[%s91 + $0x128] sm:$0xff]
  %v2192 = vld [vmem:[%s91 + $0x130] sm:$0xff]
  %v2193 = vld [vmem:[%s91 + $0x138] sm:$0xff]
  %v2194 = vld [vmem:[%s91 + $0x140] sm:$0xff]
  %v2195 = vld [vmem:[%s91 + $0x148] sm:$0xff]
  %v2196 = vld [vmem:[%s91 + $0x150] sm:$0xff]
  %v2197 = vld [vmem:[%s91 + $0x158] sm:$0xff]
  %v2198 = vld [vmem:[%s91 + $0x160] sm:$0xff]
  %v2199 = vld [vmem:[%s91 + $0x168] sm:$0xff]
  %v2200 = vld [vmem:[%s91 + $0x170] sm:$0xff]
  %v2201 = vld [vmem:[%s91 + $0x178] sm:$0xff]
  %v2202 = vld [vmem:[%s91 + $0x180] sm:$0xff]
  %v2203 = vld [vmem:[%s91 + $0x188] sm:$0xff]
  %v2204 = vld [vmem:[%s91 + $0x190] sm:$0xff]
  %v2205 = vld [vmem:[%s91 + $0x198] sm:$0xff]
  %v2206 = vld [vmem:[%s91 + $0x1a0] sm:$0xff]
  %v2207 = vld [vmem:[%s91 + $0x1a8] sm:$0xff]
  %v2208 = vld [vmem:[%s91 + $0x1b0] sm:$0xff]
  %v2209 = vld [vmem:[%s91 + $0x1b8] sm:$0xff]
  %v2210 = vld [vmem:[%s91 + $0x1c0] sm:$0xff]
  %v2211 = vld [vmem:[%s91 + $0x1c8] sm:$0xff]
  %v2212 = vld [vmem:[%s91 + $0x1d0] sm:$0xff]
  %v2213 = vld [vmem:[%s91 + $0x1d8] sm:$0xff]
  %v2214 = vld [vmem:[%s91 + $0x1e0] sm:$0xff]
  %v2215 = vld [vmem:[%s91 + $0x1e8] sm:$0xff]
  %v2216 = vld [vmem:[%s91 + $0x1f0] sm:$0xff]
  %v2217 = vld [vmem:[%s91 + $0x1f8] sm:$0xff]
  %2218 = vmatpush.msra.mxu0 %v2184
  %2219 = vmatpush.msra.mxu0 %v2182
  %2220 = vmatpush.msra.mxu0 %v2180
  %2221 = vmatpush.msra.mxu0 %v2178
  %2222 = vmatpush.msra.mxu0 %v2176
  %2223 = vmatpush.msra.mxu0 %v2174
  %2224 = vmatpush.msra.mxu0 %v2172
  %2225 = vmatpush.msra.mxu0 %v2170
  %2226 = vmatpush.msra.mxu0 %v2168
  %2227 = vmatpush.msra.mxu0 %v2166
  %2228 = vmatpush.msra.mxu0 %v2164
  %2229 = vmatpush.msra.mxu0 %v2162
  %2230 = vmatpush.msra.mxu0 %v2160
  %2231 = vmatpush.msra.mxu0 %v2158
  %2232 = vmatpush.msra.mxu0 %v2156
  %2233 = vmatpush.msra.mxu0 %v2154
  %2234 = vmatmul.f32.gmra.mxu0 %v2058
  %v2235 = vpop.f32.mrf.mxu0
  %v2236 = vadd.f32 0.0, %v2235
  %2237 = vmatmul.f32.gmra.mxu0 %v2060
  %v2238 = vpop.f32.mrf.mxu0
  %v2239 = vadd.f32 0.0, %v2238
  %2240 = vmatmul.f32.gmra.mxu0 %v2062
  %v2241 = vpop.f32.mrf.mxu0
  %v2242 = vadd.f32 0.0, %v2241
  %2243 = vmatmul.f32.gmra.mxu0 %v2064
  %v2244 = vpop.f32.mrf.mxu0
  %v2245 = vadd.f32 0.0, %v2244
  %2246 = vdwg.mxu0
  %2247 = vmatpush.msra.mxu0 %v2216
  %2248 = vmatpush.msra.mxu0 %v2214
  %2249 = vmatpush.msra.mxu0 %v2212
  %2250 = vmatpush.msra.mxu0 %v2210
  %2251 = vmatpush.msra.mxu0 %v2208
  %2252 = vmatpush.msra.mxu0 %v2206
  %2253 = vmatpush.msra.mxu0 %v2204
  %2254 = vmatpush.msra.mxu0 %v2202
  %2255 = vmatpush.msra.mxu0 %v2200
  %2256 = vmatpush.msra.mxu0 %v2198
  %2257 = vmatpush.msra.mxu0 %v2196
  %2258 = vmatpush.msra.mxu0 %v2194
  %2259 = vmatpush.msra.mxu0 %v2192
  %2260 = vmatpush.msra.mxu0 %v2190
  %2261 = vmatpush.msra.mxu0 %v2188
  %2262 = vmatpush.msra.mxu0 %v2186
  %2263 = vmatmul.f32.gmra.mxu0 %v2059
  %v2264 = vpop.f32.mrf.mxu0
  %v2265 = vadd.f32 %v2236, %v2264
  %2266 = vmatmul.f32.gmra.mxu0 %v2061
  %v2267 = vpop.f32.mrf.mxu0
  %v2268 = vadd.f32 %v2239, %v2267
  %2269 = vmatmul.f32.gmra.mxu0 %v2063
  %v2270 = vpop.f32.mrf.mxu0
  %v2271 = vadd.f32 %v2242, %v2270
  %2272 = vmatmul.f32.gmra.mxu0 %v2065
  %v2273 = vpop.f32.mrf.mxu0
  %v2274 = vadd.f32 %v2245, %v2273
  %2275 = vdwg.mxu0
  %2276 = vmatpush.msra.mxu0 %v2185
  %2277 = vmatpush.msra.mxu0 %v2183
  %2278 = vmatpush.msra.mxu0 %v2181
  %2279 = vmatpush.msra.mxu0 %v2179
  %2280 = vmatpush.msra.mxu0 %v2177
  %2281 = vmatpush.msra.mxu0 %v2175
  %2282 = vmatpush.msra.mxu0 %v2173
  %2283 = vmatpush.msra.mxu0 %v2171
  %2284 = vmatpush.msra.mxu0 %v2169
  %2285 = vmatpush.msra.mxu0 %v2167
  %2286 = vmatpush.msra.mxu0 %v2165
  %2287 = vmatpush.msra.mxu0 %v2163
  %2288 = vmatpush.msra.mxu0 %v2161
  %2289 = vmatpush.msra.mxu0 %v2159
  %2290 = vmatpush.msra.mxu0 %v2157
  %2291 = vmatpush.msra.mxu0 %v2155
  %2292 = vmatmul.f32.gmra.mxu0 %v2058
  %v2293 = vpop.f32.mrf.mxu0
  %v2294 = vadd.f32 0.0, %v2293
  %2295 = vmatmul.f32.gmra.mxu0 %v2060
  %v2296 = vpop.f32.mrf.mxu0
  %v2297 = vadd.f32 0.0, %v2296
  %2298 = vmatmul.f32.gmra.mxu0 %v2062
  %v2299 = vpop.f32.mrf.mxu0
  %v2300 = vadd.f32 0.0, %v2299
  %2301 = vmatmul.f32.gmra.mxu0 %v2064
  %v2302 = vpop.f32.mrf.mxu0
  %v2303 = vadd.f32 0.0, %v2302
  %2304 = vdwg.mxu0
  %2305 = vmatpush.msra.mxu0 %v2217
  %2306 = vmatpush.msra.mxu0 %v2215
  %2307 = vmatpush.msra.mxu0 %v2213
  %2308 = vmatpush.msra.mxu0 %v2211
  %2309 = vmatpush.msra.mxu0 %v2209
  %2310 = vmatpush.msra.mxu0 %v2207
  %2311 = vmatpush.msra.mxu0 %v2205
  %2312 = vmatpush.msra.mxu0 %v2203
  %2313 = vmatpush.msra.mxu0 %v2201
  %2314 = vmatpush.msra.mxu0 %v2199
  %2315 = vmatpush.msra.mxu0 %v2197
  %2316 = vmatpush.msra.mxu0 %v2195
  %2317 = vmatpush.msra.mxu0 %v2193
  %2318 = vmatpush.msra.mxu0 %v2191
  %2319 = vmatpush.msra.mxu0 %v2189
  %2320 = vmatpush.msra.mxu0 %v2187
  %2321 = vmatmul.f32.gmra.mxu0 %v2059
  %v2322 = vpop.f32.mrf.mxu0
  %v2323 = vadd.f32 %v2294, %v2322
  %2324 = vmatmul.f32.gmra.mxu0 %v2061
  %v2325 = vpop.f32.mrf.mxu0
  %v2326 = vadd.f32 %v2297, %v2325
  %2327 = vmatmul.f32.gmra.mxu0 %v2063
  %v2328 = vpop.f32.mrf.mxu0
  %v2329 = vadd.f32 %v2300, %v2328
  %2330 = vmatmul.f32.gmra.mxu0 %v2065
  %v2331 = vpop.f32.mrf.mxu0
  %v2332 = vadd.f32 %v2303, %v2331
  %2333 = vdwg.mxu0
  %2334 = vmatpush.msra.mxu0 %v2120
  %2335 = vmatpush.msra.mxu0 %v2118
  %2336 = vmatpush.msra.mxu0 %v2116
  %2337 = vmatpush.msra.mxu0 %v2114
  %2338 = vmatpush.msra.mxu0 %v2112
  %2339 = vmatpush.msra.mxu0 %v2110
  %2340 = vmatpush.msra.mxu0 %v2108
  %2341 = vmatpush.msra.mxu0 %v2106
  %2342 = vmatpush.msra.mxu0 %v2104
  %2343 = vmatpush.msra.mxu0 %v2102
  %2344 = vmatpush.msra.mxu0 %v2100
  %2345 = vmatpush.msra.mxu0 %v2098
  %2346 = vmatpush.msra.mxu0 %v2096
  %2347 = vmatpush.msra.mxu0 %v2094
  %2348 = vmatpush.msra.mxu0 %v2092
  %2349 = vmatpush.msra.mxu0 %v2090
  %2350 = vmatmul.f32.gmra.mxu0 %v2034
  %v2351 = vpop.f32.mrf.mxu0
  %v2352 = vadd.f32 %v2265, %v2351
  %2353 = vmatmul.f32.gmra.mxu0 %v2036
  %v2354 = vpop.f32.mrf.mxu0
  %v2355 = vadd.f32 %v2268, %v2354
  %2356 = vmatmul.f32.gmra.mxu0 %v2038
  %v2357 = vpop.f32.mrf.mxu0
  %v2358 = vadd.f32 %v2271, %v2357
  %2359 = vmatmul.f32.gmra.mxu0 %v2040
  %v2360 = vpop.f32.mrf.mxu0
  %v2361 = vadd.f32 %v2274, %v2360
  %2362 = vdwg.mxu0
  %2363 = vmatpush.msra.mxu0 %v2152
  %2364 = vmatpush.msra.mxu0 %v2150
  %2365 = vmatpush.msra.mxu0 %v2148
  %2366 = vmatpush.msra.mxu0 %v2146
  %2367 = vmatpush.msra.mxu0 %v2144
  %2368 = vmatpush.msra.mxu0 %v2142
  %2369 = vmatpush.msra.mxu0 %v2140
  %2370 = vmatpush.msra.mxu0 %v2138
  %2371 = vmatpush.msra.mxu0 %v2136
  %2372 = vmatpush.msra.mxu0 %v2134
  %2373 = vmatpush.msra.mxu0 %v2132
  %2374 = vmatpush.msra.mxu0 %v2130
  %2375 = vmatpush.msra.mxu0 %v2128
  %2376 = vmatpush.msra.mxu0 %v2126
  %2377 = vmatpush.msra.mxu0 %v2124
  %2378 = vmatpush.msra.mxu0 %v2122
  %2379 = vmatmul.f32.gmra.mxu0 %v2035
  %v2380 = vpop.f32.mrf.mxu0
  %v2381 = vadd.f32 %v2352, %v2380
  %2382 = vmatmul.f32.gmra.mxu0 %v2037
  %v2383 = vpop.f32.mrf.mxu0
  %v2384 = vadd.f32 %v2355, %v2383
  %2385 = vmatmul.f32.gmra.mxu0 %v2039
  %v2386 = vpop.f32.mrf.mxu0
  %v2387 = vadd.f32 %v2358, %v2386
  %2388 = vmatmul.f32.gmra.mxu0 %v2041
  %v2389 = vpop.f32.mrf.mxu0
  %v2390 = vadd.f32 %v2361, %v2389
  %2391 = vdwg.mxu0
  %2392 = vmatpush.msra.mxu0 %v2121
  %2393 = vmatpush.msra.mxu0 %v2119
  %2394 = vmatpush.msra.mxu0 %v2117
  %2395 = vmatpush.msra.mxu0 %v2115
  %2396 = vmatpush.msra.mxu0 %v2113
  %2397 = vmatpush.msra.mxu0 %v2111
  %2398 = vmatpush.msra.mxu0 %v2109
  %2399 = vmatpush.msra.mxu0 %v2107
  %2400 = vmatpush.msra.mxu0 %v2105
  %2401 = vmatpush.msra.mxu0 %v2103
  %2402 = vmatpush.msra.mxu0 %v2101
  %2403 = vmatpush.msra.mxu0 %v2099
  %2404 = vmatpush.msra.mxu0 %v2097
  %2405 = vmatpush.msra.mxu0 %v2095
  %2406 = vmatpush.msra.mxu0 %v2093
  %2407 = vmatpush.msra.mxu0 %v2091
  %2408 = vmatmul.f32.gmra.mxu0 %v2034
  %v2409 = vpop.f32.mrf.mxu0
  %v2410 = vadd.f32 %v2323, %v2409
  %2411 = vmatmul.f32.gmra.mxu0 %v2036
  %v2412 = vpop.f32.mrf.mxu0
  %v2413 = vadd.f32 %v2326, %v2412
  %2414 = vmatmul.f32.gmra.mxu0 %v2038
  %v2415 = vpop.f32.mrf.mxu0
  %v2416 = vadd.f32 %v2329, %v2415
  %2417 = vmatmul.f32.gmra.mxu0 %v2040
  %v2418 = vpop.f32.mrf.mxu0
  %v2419 = vadd.f32 %v2332, %v2418
  %2420 = vdwg.mxu0
  %2421 = vmatpush.msra.mxu0 %v2153
  %2422 = vmatpush.msra.mxu0 %v2151
  %2423 = vmatpush.msra.mxu0 %v2149
  %2424 = vmatpush.msra.mxu0 %v2147
  %2425 = vmatpush.msra.mxu0 %v2145
  %2426 = vmatpush.msra.mxu0 %v2143
  %2427 = vmatpush.msra.mxu0 %v2141
  %2428 = vmatpush.msra.mxu0 %v2139
  %2429 = vmatpush.msra.mxu0 %v2137
  %2430 = vmatpush.msra.mxu0 %v2135
  %2431 = vmatpush.msra.mxu0 %v2133
  %2432 = vmatpush.msra.mxu0 %v2131
  %2433 = vmatpush.msra.mxu0 %v2129
  %2434 = vmatpush.msra.mxu0 %v2127
  %2435 = vmatpush.msra.mxu0 %v2125
  %2436 = vmatpush.msra.mxu0 %v2123
  %2437 = vmatmul.f32.gmra.mxu0 %v2035
  %v2438 = vpop.f32.mrf.mxu0
  %v2439 = vadd.f32 %v2410, %v2438
  %2440 = vmatmul.f32.gmra.mxu0 %v2037
  %v2441 = vpop.f32.mrf.mxu0
  %v2442 = vadd.f32 %v2413, %v2441
  %2443 = vmatmul.f32.gmra.mxu0 %v2039
  %v2444 = vpop.f32.mrf.mxu0
  %v2445 = vadd.f32 %v2416, %v2444
  %2446 = vmatmul.f32.gmra.mxu0 %v2041
  %v2447 = vpop.f32.mrf.mxu0
  %v2448 = vadd.f32 %v2419, %v2447
  %2449 = vdwg.mxu0
  %v2450 = vld [vmem:[%s95] sm:$0xff]
  %v2451 = vld [vmem:[%s95 + $0x8] sm:$0xff]
  %v2452 = vld [vmem:[%s95 + $0x10] sm:$0xff]
  %v2453 = vld [vmem:[%s95 + $0x18] sm:$0xff]
  %v2454 = vld [vmem:[%s95 + $0x20] sm:$0xff]
  %v2455 = vld [vmem:[%s95 + $0x28] sm:$0xff]
  %v2456 = vld [vmem:[%s95 + $0x30] sm:$0xff]
  %v2457 = vld [vmem:[%s95 + $0x38] sm:$0xff]
  %v2458 = vld [vmem:[%s95 + $0x40] sm:$0xff]
  %v2459 = vld [vmem:[%s95 + $0x48] sm:$0xff]
  %v2460 = vld [vmem:[%s95 + $0x50] sm:$0xff]
  %v2461 = vld [vmem:[%s95 + $0x58] sm:$0xff]
  %v2462 = vld [vmem:[%s95 + $0x60] sm:$0xff]
  %v2463 = vld [vmem:[%s95 + $0x68] sm:$0xff]
  %v2464 = vld [vmem:[%s95 + $0x70] sm:$0xff]
  %v2465 = vld [vmem:[%s95 + $0x78] sm:$0xff]
  %v2466 = vld [vmem:[%s95 + $0x80] sm:$0xff]
  %v2467 = vld [vmem:[%s95 + $0x88] sm:$0xff]
  %v2468 = vld [vmem:[%s95 + $0x90] sm:$0xff]
  %v2469 = vld [vmem:[%s95 + $0x98] sm:$0xff]
  %v2470 = vld [vmem:[%s95 + $0xa0] sm:$0xff]
  %v2471 = vld [vmem:[%s95 + $0xa8] sm:$0xff]
  %v2472 = vld [vmem:[%s95 + $0xb0] sm:$0xff]
  %v2473 = vld [vmem:[%s95 + $0xb8] sm:$0xff]
  %v2474 = vld [vmem:[%s95 + $0xc0] sm:$0xff]
  %v2475 = vld [vmem:[%s95 + $0xc8] sm:$0xff]
  %v2476 = vld [vmem:[%s95 + $0xd0] sm:$0xff]
  %v2477 = vld [vmem:[%s95 + $0xd8] sm:$0xff]
  %v2478 = vld [vmem:[%s95 + $0xe0] sm:$0xff]
  %v2479 = vld [vmem:[%s95 + $0xe8] sm:$0xff]
  %v2480 = vld [vmem:[%s95 + $0xf0] sm:$0xff]
  %v2481 = vld [vmem:[%s95 + $0xf8] sm:$0xff]
  %v2482 = vld [vmem:[%s95 + $0x100] sm:$0xff]
  %v2483 = vld [vmem:[%s95 + $0x108] sm:$0xff]
  %v2484 = vld [vmem:[%s95 + $0x110] sm:$0xff]
  %v2485 = vld [vmem:[%s95 + $0x118] sm:$0xff]
  %v2486 = vld [vmem:[%s95 + $0x120] sm:$0xff]
  %v2487 = vld [vmem:[%s95 + $0x128] sm:$0xff]
  %v2488 = vld [vmem:[%s95 + $0x130] sm:$0xff]
  %v2489 = vld [vmem:[%s95 + $0x138] sm:$0xff]
  %v2490 = vld [vmem:[%s95 + $0x140] sm:$0xff]
  %v2491 = vld [vmem:[%s95 + $0x148] sm:$0xff]
  %v2492 = vld [vmem:[%s95 + $0x150] sm:$0xff]
  %v2493 = vld [vmem:[%s95 + $0x158] sm:$0xff]
  %v2494 = vld [vmem:[%s95 + $0x160] sm:$0xff]
  %v2495 = vld [vmem:[%s95 + $0x168] sm:$0xff]
  %v2496 = vld [vmem:[%s95 + $0x170] sm:$0xff]
  %v2497 = vld [vmem:[%s95 + $0x178] sm:$0xff]
  %v2498 = vld [vmem:[%s95 + $0x180] sm:$0xff]
  %v2499 = vld [vmem:[%s95 + $0x188] sm:$0xff]
  %v2500 = vld [vmem:[%s95 + $0x190] sm:$0xff]
  %v2501 = vld [vmem:[%s95 + $0x198] sm:$0xff]
  %v2502 = vld [vmem:[%s95 + $0x1a0] sm:$0xff]
  %v2503 = vld [vmem:[%s95 + $0x1a8] sm:$0xff]
  %v2504 = vld [vmem:[%s95 + $0x1b0] sm:$0xff]
  %v2505 = vld [vmem:[%s95 + $0x1b8] sm:$0xff]
  %v2506 = vld [vmem:[%s95 + $0x1c0] sm:$0xff]
  %v2507 = vld [vmem:[%s95 + $0x1c8] sm:$0xff]
  %v2508 = vld [vmem:[%s95 + $0x1d0] sm:$0xff]
  %v2509 = vld [vmem:[%s95 + $0x1d8] sm:$0xff]
  %v2510 = vld [vmem:[%s95 + $0x1e0] sm:$0xff]
  %v2511 = vld [vmem:[%s95 + $0x1e8] sm:$0xff]
  %v2512 = vld [vmem:[%s95 + $0x1f0] sm:$0xff]
  %v2513 = vld [vmem:[%s95 + $0x1f8] sm:$0xff]
  %2514 = vmatpush.msra.mxu0 %v2480
  %2515 = vmatpush.msra.mxu0 %v2478
  %2516 = vmatpush.msra.mxu0 %v2476
  %2517 = vmatpush.msra.mxu0 %v2474
  %2518 = vmatpush.msra.mxu0 %v2472
  %2519 = vmatpush.msra.mxu0 %v2470
  %2520 = vmatpush.msra.mxu0 %v2468
  %2521 = vmatpush.msra.mxu0 %v2466
  %2522 = vmatpush.msra.mxu0 %v2464
  %2523 = vmatpush.msra.mxu0 %v2462
  %2524 = vmatpush.msra.mxu0 %v2460
  %2525 = vmatpush.msra.mxu0 %v2458
  %2526 = vmatpush.msra.mxu0 %v2456
  %2527 = vmatpush.msra.mxu0 %v2454
  %2528 = vmatpush.msra.mxu0 %v2452
  %2529 = vmatpush.msra.mxu0 %v2450
  %2530 = vmatmul.f32.gmra.mxu0 %v2082
  %v2531 = vpop.f32.mrf.mxu0
  %v2532 = vadd.f32 0.0, %v2531
  %2533 = vmatmul.f32.gmra.mxu0 %v2084
  %v2534 = vpop.f32.mrf.mxu0
  %v2535 = vadd.f32 0.0, %v2534
  %2536 = vmatmul.f32.gmra.mxu0 %v2086
  %v2537 = vpop.f32.mrf.mxu0
  %v2538 = vadd.f32 0.0, %v2537
  %2539 = vmatmul.f32.gmra.mxu0 %v2088
  %v2540 = vpop.f32.mrf.mxu0
  %v2541 = vadd.f32 0.0, %v2540
  %2542 = vdwg.mxu0
  %2543 = vmatpush.msra.mxu0 %v2512
  %2544 = vmatpush.msra.mxu0 %v2510
  %2545 = vmatpush.msra.mxu0 %v2508
  %2546 = vmatpush.msra.mxu0 %v2506
  %2547 = vmatpush.msra.mxu0 %v2504
  %2548 = vmatpush.msra.mxu0 %v2502
  %2549 = vmatpush.msra.mxu0 %v2500
  %2550 = vmatpush.msra.mxu0 %v2498
  %2551 = vmatpush.msra.mxu0 %v2496
  %2552 = vmatpush.msra.mxu0 %v2494
  %2553 = vmatpush.msra.mxu0 %v2492
  %2554 = vmatpush.msra.mxu0 %v2490
  %2555 = vmatpush.msra.mxu0 %v2488
  %2556 = vmatpush.msra.mxu0 %v2486
  %2557 = vmatpush.msra.mxu0 %v2484
  %2558 = vmatpush.msra.mxu0 %v2482
  %2559 = vmatmul.f32.gmra.mxu0 %v2083
  %v2560 = vpop.f32.mrf.mxu0
  %v2561 = vadd.f32 %v2532, %v2560
  %2562 = vmatmul.f32.gmra.mxu0 %v2085
  %v2563 = vpop.f32.mrf.mxu0
  %v2564 = vadd.f32 %v2535, %v2563
  %2565 = vmatmul.f32.gmra.mxu0 %v2087
  %v2566 = vpop.f32.mrf.mxu0
  %v2567 = vadd.f32 %v2538, %v2566
  %2568 = vmatmul.f32.gmra.mxu0 %v2089
  %v2569 = vpop.f32.mrf.mxu0
  %v2570 = vadd.f32 %v2541, %v2569
  %2571 = vdwg.mxu0
  %2572 = vmatpush.msra.mxu0 %v2481
  %2573 = vmatpush.msra.mxu0 %v2479
  %2574 = vmatpush.msra.mxu0 %v2477
  %2575 = vmatpush.msra.mxu0 %v2475
  %2576 = vmatpush.msra.mxu0 %v2473
  %2577 = vmatpush.msra.mxu0 %v2471
  %2578 = vmatpush.msra.mxu0 %v2469
  %2579 = vmatpush.msra.mxu0 %v2467
  %2580 = vmatpush.msra.mxu0 %v2465
  %2581 = vmatpush.msra.mxu0 %v2463
  %2582 = vmatpush.msra.mxu0 %v2461
  %2583 = vmatpush.msra.mxu0 %v2459
  %2584 = vmatpush.msra.mxu0 %v2457
  %2585 = vmatpush.msra.mxu0 %v2455
  %2586 = vmatpush.msra.mxu0 %v2453
  %2587 = vmatpush.msra.mxu0 %v2451
  %2588 = vmatmul.f32.gmra.mxu0 %v2082
  %v2589 = vpop.f32.mrf.mxu0
  %v2590 = vadd.f32 0.0, %v2589
  %2591 = vmatmul.f32.gmra.mxu0 %v2084
  %v2592 = vpop.f32.mrf.mxu0
  %v2593 = vadd.f32 0.0, %v2592
  %2594 = vmatmul.f32.gmra.mxu0 %v2086
  %v2595 = vpop.f32.mrf.mxu0
  %v2596 = vadd.f32 0.0, %v2595
  %2597 = vmatmul.f32.gmra.mxu0 %v2088
  %v2598 = vpop.f32.mrf.mxu0
  %v2599 = vadd.f32 0.0, %v2598
  %2600 = vdwg.mxu0
  %2601 = vmatpush.msra.mxu0 %v2513
  %2602 = vmatpush.msra.mxu0 %v2511
  %2603 = vmatpush.msra.mxu0 %v2509
  %2604 = vmatpush.msra.mxu0 %v2507
  %2605 = vmatpush.msra.mxu0 %v2505
  %2606 = vmatpush.msra.mxu0 %v2503
  %2607 = vmatpush.msra.mxu0 %v2501
  %2608 = vmatpush.msra.mxu0 %v2499
  %2609 = vmatpush.msra.mxu0 %v2497
  %2610 = vmatpush.msra.mxu0 %v2495
  %2611 = vmatpush.msra.mxu0 %v2493
  %2612 = vmatpush.msra.mxu0 %v2491
  %2613 = vmatpush.msra.mxu0 %v2489
  %2614 = vmatpush.msra.mxu0 %v2487
  %2615 = vmatpush.msra.mxu0 %v2485
  %2616 = vmatpush.msra.mxu0 %v2483
  %2617 = vmatmul.f32.gmra.mxu0 %v2083
  %v2618 = vpop.f32.mrf.mxu0
  %v2619 = vadd.f32 %v2590, %v2618
  %2620 = vmatmul.f32.gmra.mxu0 %v2085
  %v2621 = vpop.f32.mrf.mxu0
  %v2622 = vadd.f32 %v2593, %v2621
  %2623 = vmatmul.f32.gmra.mxu0 %v2087
  %v2624 = vpop.f32.mrf.mxu0
  %v2625 = vadd.f32 %v2596, %v2624
  %2626 = vmatmul.f32.gmra.mxu0 %v2089
  %v2627 = vpop.f32.mrf.mxu0
  %v2628 = vadd.f32 %v2599, %v2627
  %2629 = vdwg.mxu0
  %v2630 = vadd.f32 %v2381, %v2561
  %v2631 = vadd.f32 %v2439, %v2619
  %v2632 = vadd.f32 %v2384, %v2564
  %v2633 = vadd.f32 %v2442, %v2622
  %v2634 = vadd.f32 %v2387, %v2567
  %v2635 = vadd.f32 %v2445, %v2625
  %v2636 = vadd.f32 %v2390, %v2570
  %v2637 = vadd.f32 %v2448, %v2628
  %v2638 = vld [vmem:[%s97] sm:$0x3]
  %v2640 = vperm.slane %v2638, 0
  %v2641 = vperm.slane %v2638, 1
  %v2644 = vmul.f32 %v2630, %v2640
  %v2645 = vmul.f32 %v2631, %v2641
  %v2646 = vmul.f32 %v2632, %v2640
  %v2647 = vmul.f32 %v2633, %v2641
  %v2648 = vmul.f32 %v2634, %v2640
  %v2649 = vmul.f32 %v2635, %v2641
  %v2650 = vmul.f32 %v2636, %v2640
  %v2651 = vmul.f32 %v2637, %v2641
  %v2652 = vld [vmem:[%s99] sm:$0x3]
  %v2654 = vperm.slane %v2652, 0
  %v2655 = vperm.slane %v2652, 1
  %v2658 = vadd.f32 %v2644, %v2654
  %v2659 = vadd.f32 %v2645, %v2655
  %v2660 = vadd.f32 %v2646, %v2654
  %v2661 = vadd.f32 %v2647, %v2655
  %v2662 = vadd.f32 %v2648, %v2654
  %v2663 = vadd.f32 %v2649, %v2655
  %v2664 = vadd.f32 %v2650, %v2654
  %v2665 = vadd.f32 %v2651, %v2655
  %v2666 = vld [vmem:[%s101] sm:$0xff]
  %v2667 = vld [vmem:[%s101 + $0x8] sm:$0xff]
  %v2668 = vld [vmem:[%s101 + $0x10] sm:$0xff]
  %v2669 = vld [vmem:[%s101 + $0x18] sm:$0xff]
  %v2670 = vld [vmem:[%s101 + $0x20] sm:$0xff]
  %v2671 = vld [vmem:[%s101 + $0x28] sm:$0xff]
  %v2672 = vld [vmem:[%s101 + $0x30] sm:$0xff]
  %v2673 = vld [vmem:[%s101 + $0x38] sm:$0xff]
  %v2674 = vld [vmem:[%s101 + $0x40] sm:$0xff]
  %v2675 = vld [vmem:[%s101 + $0x48] sm:$0xff]
  %v2676 = vld [vmem:[%s101 + $0x50] sm:$0xff]
  %v2677 = vld [vmem:[%s101 + $0x58] sm:$0xff]
  %v2678 = vld [vmem:[%s101 + $0x60] sm:$0xff]
  %v2679 = vld [vmem:[%s101 + $0x68] sm:$0xff]
  %v2680 = vld [vmem:[%s101 + $0x70] sm:$0xff]
  %v2681 = vld [vmem:[%s101 + $0x78] sm:$0xff]
  %v2682 = vld [vmem:[%s101 + $0x80] sm:$0xff]
  %v2683 = vld [vmem:[%s101 + $0x88] sm:$0xff]
  %v2684 = vld [vmem:[%s101 + $0x90] sm:$0xff]
  %v2685 = vld [vmem:[%s101 + $0x98] sm:$0xff]
  %v2686 = vld [vmem:[%s101 + $0xa0] sm:$0xff]
  %v2687 = vld [vmem:[%s101 + $0xa8] sm:$0xff]
  %v2688 = vld [vmem:[%s101 + $0xb0] sm:$0xff]
  %v2689 = vld [vmem:[%s101 + $0xb8] sm:$0xff]
  %v2690 = vld [vmem:[%s101 + $0xc0] sm:$0xff]
  %v2691 = vld [vmem:[%s101 + $0xc8] sm:$0xff]
  %v2692 = vld [vmem:[%s101 + $0xd0] sm:$0xff]
  %v2693 = vld [vmem:[%s101 + $0xd8] sm:$0xff]
  %v2694 = vld [vmem:[%s101 + $0xe0] sm:$0xff]
  %v2695 = vld [vmem:[%s101 + $0xe8] sm:$0xff]
  %v2696 = vld [vmem:[%s101 + $0xf0] sm:$0xff]
  %v2697 = vld [vmem:[%s101 + $0xf8] sm:$0xff]
  %v2698 = vld [vmem:[%s103] sm:$0x3]
  %v2700 = vperm.slane %v2698, 0
  %v2701 = vperm.slane %v2698, 1
  %2704 = vmatpush.msra.mxu0 %v2696
  %2705 = vmatpush.msra.mxu0 %v2694
  %2706 = vmatpush.msra.mxu0 %v2692
  %2707 = vmatpush.msra.mxu0 %v2690
  %2708 = vmatpush.msra.mxu0 %v2688
  %2709 = vmatpush.msra.mxu0 %v2686
  %2710 = vmatpush.msra.mxu0 %v2684
  %2711 = vmatpush.msra.mxu0 %v2682
  %2712 = vmatpush.msra.mxu0 %v2680
  %2713 = vmatpush.msra.mxu0 %v2678
  %2714 = vmatpush.msra.mxu0 %v2676
  %2715 = vmatpush.msra.mxu0 %v2674
  %2716 = vmatpush.msra.mxu0 %v2672
  %2717 = vmatpush.msra.mxu0 %v2670
  %2718 = vmatpush.msra.mxu0 %v2668
  %2719 = vmatpush.msra.mxu0 %v2666
  %2720 = vmatmul.f32.gmra.mxu0 %v1700
  %v2721 = vpop.f32.mrf.mxu0
  %v2722 = vadd.f32 %v2700, %v2721
  %2723 = vmatmul.f32.gmra.mxu0 %v1701
  %v2724 = vpop.f32.mrf.mxu0
  %v2725 = vadd.f32 %v2700, %v2724
  %2726 = vmatmul.f32.gmra.mxu0 %v1702
  %v2727 = vpop.f32.mrf.mxu0
  %v2728 = vadd.f32 %v2700, %v2727
  %2729 = vmatmul.f32.gmra.mxu0 %v1703
  %v2730 = vpop.f32.mrf.mxu0
  %v2731 = vadd.f32 %v2700, %v2730
  %2732 = vdwg.mxu0
  %2733 = vmatpush.msra.mxu0 %v2697
  %2734 = vmatpush.msra.mxu0 %v2695
  %2735 = vmatpush.msra.mxu0 %v2693
  %2736 = vmatpush.msra.mxu0 %v2691
  %2737 = vmatpush.msra.mxu0 %v2689
  %2738 = vmatpush.msra.mxu0 %v2687
  %2739 = vmatpush.msra.mxu0 %v2685
  %2740 = vmatpush.msra.mxu0 %v2683
  %2741 = vmatpush.msra.mxu0 %v2681
  %2742 = vmatpush.msra.mxu0 %v2679
  %2743 = vmatpush.msra.mxu0 %v2677
  %2744 = vmatpush.msra.mxu0 %v2675
  %2745 = vmatpush.msra.mxu0 %v2673
  %2746 = vmatpush.msra.mxu0 %v2671
  %2747 = vmatpush.msra.mxu0 %v2669
  %2748 = vmatpush.msra.mxu0 %v2667
  %2749 = vmatmul.f32.gmra.mxu0 %v1700
  %v2750 = vpop.f32.mrf.mxu0
  %v2751 = vadd.f32 %v2701, %v2750
  %2752 = vmatmul.f32.gmra.mxu0 %v1701
  %v2753 = vpop.f32.mrf.mxu0
  %v2754 = vadd.f32 %v2701, %v2753
  %2755 = vmatmul.f32.gmra.mxu0 %v1702
  %v2756 = vpop.f32.mrf.mxu0
  %v2757 = vadd.f32 %v2701, %v2756
  %2758 = vmatmul.f32.gmra.mxu0 %v1703
  %v2759 = vpop.f32.mrf.mxu0
  %v2760 = vadd.f32 %v2701, %v2759
  %2761 = vdwg.mxu0
  %v2762 = vadd.f32 %v2658, %v2722
  %v2763 = vadd.f32 %v2659, %v2751
  %v2764 = vadd.f32 %v2660, %v2725
  %v2765 = vadd.f32 %v2661, %v2754
  %v2766 = vadd.f32 %v2662, %v2728
  %v2767 = vadd.f32 %v2663, %v2757
  %v2768 = vadd.f32 %v2664, %v2731
  %v2769 = vadd.f32 %v2665, %v2760
  %v2770 = vmax.f32 %v2762, 0.0
  %v2771 = vmax.f32 %v2763, 0.0
  %v2772 = vmax.f32 %v2764, 0.0
  %v2773 = vmax.f32 %v2765, 0.0
  %v2774 = vmax.f32 %v2766, 0.0
  %v2775 = vmax.f32 %v2767, 0.0
  %v2776 = vmax.f32 %v2768, 0.0
  %v2777 = vmax.f32 %v2769, 0.0
  %v2778 = vld [vmem:[%s105] sm:$0xff]
  %v2779 = vld [vmem:[%s105 + $0x8] sm:$0xff]
  %v2780 = vld [vmem:[%s105 + $0x10] sm:$0xff]
  %v2781 = vld [vmem:[%s105 + $0x18] sm:$0xff]
  %v2782 = vld [vmem:[%s105 + $0x20] sm:$0xff]
  %v2783 = vld [vmem:[%s105 + $0x28] sm:$0xff]
  %v2784 = vld [vmem:[%s105 + $0x30] sm:$0xff]
  %v2785 = vld [vmem:[%s105 + $0x38] sm:$0xff]
  %v2786 = vld [vmem:[%s105 + $0x40] sm:$0xff]
  %v2787 = vld [vmem:[%s105 + $0x48] sm:$0xff]
  %v2788 = vld [vmem:[%s105 + $0x50] sm:$0xff]
  %v2789 = vld [vmem:[%s105 + $0x58] sm:$0xff]
  %v2790 = vld [vmem:[%s105 + $0x60] sm:$0xff]
  %v2791 = vld [vmem:[%s105 + $0x68] sm:$0xff]
  %v2792 = vld [vmem:[%s105 + $0x70] sm:$0xff]
  %v2793 = vld [vmem:[%s105 + $0x78] sm:$0xff]
  %v2794 = vld [vmem:[%s105 + $0x80] sm:$0xff]
  %v2795 = vld [vmem:[%s105 + $0x88] sm:$0xff]
  %v2796 = vld [vmem:[%s105 + $0x90] sm:$0xff]
  %v2797 = vld [vmem:[%s105 + $0x98] sm:$0xff]
  %v2798 = vld [vmem:[%s105 + $0xa0] sm:$0xff]
  %v2799 = vld [vmem:[%s105 + $0xa8] sm:$0xff]
  %v2800 = vld [vmem:[%s105 + $0xb0] sm:$0xff]
  %v2801 = vld [vmem:[%s105 + $0xb8] sm:$0xff]
  %v2802 = vld [vmem:[%s105 + $0xc0] sm:$0xff]
  %v2803 = vld [vmem:[%s105 + $0xc8] sm:$0xff]
  %v2804 = vld [vmem:[%s105 + $0xd0] sm:$0xff]
  %v2805 = vld [vmem:[%s105 + $0xd8] sm:$0xff]
  %v2806 = vld [vmem:[%s105 + $0xe0] sm:$0xff]
  %v2807 = vld [vmem:[%s105 + $0xe8] sm:$0xff]
  %v2808 = vld [vmem:[%s105 + $0xf0] sm:$0xff]
  %v2809 = vld [vmem:[%s105 + $0xf8] sm:$0xff]
  %v2810 = vld [vmem:[%s107] sm:$0x1]
  %v2812 = vperm.slane %v2810, 0
  %2814 = vmatpush.msra.mxu0 %v2793
  %2815 = vmatpush.msra.mxu0 %v2792
  %2816 = vmatpush.msra.mxu0 %v2791
  %2817 = vmatpush.msra.mxu0 %v2790
  %2818 = vmatpush.msra.mxu0 %v2789
  %2819 = vmatpush.msra.mxu0 %v2788
  %2820 = vmatpush.msra.mxu0 %v2787
  %2821 = vmatpush.msra.mxu0 %v2786
  %2822 = vmatpush.msra.mxu0 %v2785
  %2823 = vmatpush.msra.mxu0 %v2784
  %2824 = vmatpush.msra.mxu0 %v2783
  %2825 = vmatpush.msra.mxu0 %v2782
  %2826 = vmatpush.msra.mxu0 %v2781
  %2827 = vmatpush.msra.mxu0 %v2780
  %2828 = vmatpush.msra.mxu0 %v2779
  %2829 = vmatpush.msra.mxu0 %v2778
  %2830 = vmatmul.f32.gmra.mxu0 %v2770
  %v2831 = vpop.f32.mrf.mxu0
  %v2832 = vadd.f32 %v2812, %v2831
  %2833 = vmatmul.f32.gmra.mxu0 %v2772
  %v2834 = vpop.f32.mrf.mxu0
  %v2835 = vadd.f32 %v2812, %v2834
  %2836 = vmatmul.f32.gmra.mxu0 %v2774
  %v2837 = vpop.f32.mrf.mxu0
  %v2838 = vadd.f32 %v2812, %v2837
  %2839 = vmatmul.f32.gmra.mxu0 %v2776
  %v2840 = vpop.f32.mrf.mxu0
  %v2841 = vadd.f32 %v2812, %v2840
  %2842 = vdwg.mxu0
  %2843 = vmatpush.msra.mxu0 %v2809
  %2844 = vmatpush.msra.mxu0 %v2808
  %2845 = vmatpush.msra.mxu0 %v2807
  %2846 = vmatpush.msra.mxu0 %v2806
  %2847 = vmatpush.msra.mxu0 %v2805
  %2848 = vmatpush.msra.mxu0 %v2804
  %2849 = vmatpush.msra.mxu0 %v2803
  %2850 = vmatpush.msra.mxu0 %v2802
  %2851 = vmatpush.msra.mxu0 %v2801
  %2852 = vmatpush.msra.mxu0 %v2800
  %2853 = vmatpush.msra.mxu0 %v2799
  %2854 = vmatpush.msra.mxu0 %v2798
  %2855 = vmatpush.msra.mxu0 %v2797
  %2856 = vmatpush.msra.mxu0 %v2796
  %2857 = vmatpush.msra.mxu0 %v2795
  %2858 = vmatpush.msra.mxu0 %v2794
  %2859 = vmatmul.f32.gmra.mxu0 %v2771
  %v2860 = vpop.f32.mrf.mxu0
  %v2861 = vadd.f32 %v2832, %v2860
  %2862 = vmatmul.f32.gmra.mxu0 %v2773
  %v2863 = vpop.f32.mrf.mxu0
  %v2864 = vadd.f32 %v2835, %v2863
  %2865 = vmatmul.f32.gmra.mxu0 %v2775
  %v2866 = vpop.f32.mrf.mxu0
  %v2867 = vadd.f32 %v2838, %v2866
  %2868 = vmatmul.f32.gmra.mxu0 %v2777
  %v2869 = vpop.f32.mrf.mxu0
  %v2870 = vadd.f32 %v2841, %v2869
  %2871 = vdwg.mxu0
  %2872 = vst [vmem:[%s109] sm:$0xff] %v2861
  %2873 = vst [vmem:[%s109 + $0x8] sm:$0xff] %v2864
  %2874 = vst [vmem:[%s109 + $0x10] sm:$0xff] %v2867
  %2875 = vst [vmem:[%s109 + $0x18] sm:$0xff] %v2870
  // Predicated region
  $region218: #{forward_pallas.1} parent=0 // pred_check
    _
  $region219: #{forward_pallas.1} parent=0 // pred_check_branch
    %2877 = sbr.rel (0) target = $region221
  $region220: #{forward_pallas.1} parent=0 // pred_region
    _
  $region221: #{forward_pallas.1} parent=0 // pred_fallthru
    _
  // Predicated region
  $region222: #{forward_pallas.1} parent=0 // pred_check
    _
  $region223: #{forward_pallas.1} parent=0 // pred_check_branch
    %2879 = sbr.rel (0) target = $region225
  $region224: #{forward_pallas.1} parent=0 // pred_region
    _
  $region225: #{forward_pallas.1} parent=0 // pred_fallthru
    _

// kernel: forward_pallas.1
$region0: #{forward_pallas.1}
  #allocation0 [shape = 'u32[]', space=smem, size = 0x4, offset = 0x4, fixed_abs, tag = 'smem constant byte address 0x4 - core index']
  #allocation1 [shape = 'u32[72,128]{1,0:T(1,128)}', space=vmem, size = 0x9000, scoped, tag = 'internal scratch']
  %s0 = inlined_call_operand.smem [shape: u32[55], index: -1, kind: input, shape index: {}]
  %s1 = sld [smem:[%s0]]
  %s2 = scalar_lea.smem %s0, 1
  %s3 = sld [smem:[%s2]]
  %s4 = scalar_lea.smem %s0, 2
  %s5 = sld [smem:[%s4]]
  %s6 = scalar_lea.smem %s0, 3
  %s7 = sld [smem:[%s6]]
  %s8 = scalar_lea.smem %s0, 4
  %s9 = sld [smem:[%s8]]
  %s10 = scalar_lea.smem %s0, 5
  %s11 = sld [smem:[%s10]]
  %s12 = scalar_lea.smem %s0, 6
  %s13 = sld [smem:[%s12]]
  %s14 = scalar_lea.smem %s0, 7
  %s15 = sld [smem:[%s14]]
  %s16 = scalar_lea.smem %s0, 8
  %s17 = sld [smem:[%s16]]
  %s18 = scalar_lea.smem %s0, 9
  %s19 = sld [smem:[%s18]]
  %s20 = scalar_lea.smem %s0, 10
  %s21 = sld [smem:[%s20]]
  %s22 = scalar_lea.smem %s0, 11
  %s23 = sld [smem:[%s22]]
  %s24 = scalar_lea.smem %s0, 12
  %s25 = sld [smem:[%s24]]
  %s26 = scalar_lea.smem %s0, 13
  %s27 = sld [smem:[%s26]]
  %s28 = scalar_lea.smem %s0, 14
  %s29 = sld [smem:[%s28]]
  %s30 = scalar_lea.smem %s0, 15
  %s31 = sld [smem:[%s30]]
  %s32 = scalar_lea.smem %s0, 16
  %s33 = sld [smem:[%s32]]
  %s34 = scalar_lea.smem %s0, 17
  %s35 = sld [smem:[%s34]]
  %s36 = scalar_lea.smem %s0, 18
  %s37 = sld [smem:[%s36]]
  %s38 = scalar_lea.smem %s0, 19
  %s39 = sld [smem:[%s38]]
  %s40 = scalar_lea.smem %s0, 20
  %s41 = sld [smem:[%s40]]
  %s42 = scalar_lea.smem %s0, 21
  %s43 = sld [smem:[%s42]]
  %s44 = scalar_lea.smem %s0, 22
  %s45 = sld [smem:[%s44]]
  %s46 = scalar_lea.smem %s0, 23
  %s47 = sld [smem:[%s46]]
  %s48 = scalar_lea.smem %s0, 24
  %s49 = sld [smem:[%s48]]
  %s50 = scalar_lea.smem %s0, 25
  %s51 = sld [smem:[%s50]]
  %s52 = scalar_lea.smem %s0, 26
  %s53 = sld [smem:[%s52]]
  %s54 = scalar_lea.smem %s0, 27
  %s55 = sld [smem:[%s54]]
  %s56 = scalar_lea.smem %s0, 28
  %s57 = sld [smem:[%s56]]
  %s58 = scalar_lea.smem %s0, 29
  %s59 = sld [smem:[%s58]]
  %s60 = scalar_lea.smem %s0, 30
  %s61 = sld [smem:[%s60]]
  %s62 = scalar_lea.smem %s0, 31
  %s63 = sld [smem:[%s62]]
  %s64 = scalar_lea.smem %s0, 32
  %s65 = sld [smem:[%s64]]
  %s66 = scalar_lea.smem %s0, 33
  %s67 = sld [smem:[%s66]]
  %s68 = scalar_lea.smem %s0, 34
  %s69 = sld [smem:[%s68]]
  %s70 = scalar_lea.smem %s0, 35
  %s71 = sld [smem:[%s70]]
  %s72 = scalar_lea.smem %s0, 36
  %s73 = sld [smem:[%s72]]
  %s74 = scalar_lea.smem %s0, 37
  %s75 = sld [smem:[%s74]]
  %s76 = scalar_lea.smem %s0, 38
  %s77 = sld [smem:[%s76]]
  %s78 = scalar_lea.smem %s0, 39
  %s79 = sld [smem:[%s78]]
  %s80 = scalar_lea.smem %s0, 40
  %s81 = sld [smem:[%s80]]
  %s82 = scalar_lea.smem %s0, 41
  %s83 = sld [smem:[%s82]]
  %s84 = scalar_lea.smem %s0, 42
  %s85 = sld [smem:[%s84]]
  %s86 = scalar_lea.smem %s0, 43
  %s87 = sld [smem:[%s86]]
  %s88 = scalar_lea.smem %s0, 44
  %s89 = sld [smem:[%s88]]
  %s90 = scalar_lea.smem %s0, 45
  %s91 = sld [smem:[%s90]]
  %s92 = scalar_lea.smem %s0, 46
  %s93 = sld [smem:[%s92]]
  %s94 = scalar_lea.smem %s0, 47
  %s95 = sld [smem:[%s94]]
  %s96 = scalar_lea.smem %s0, 48
  %s97 = sld [smem:[%s96]]
  %s98 = scalar_lea.smem %s0, 49
  %s99 = sld [smem:[%s98]]
  %s100 = scalar_lea.smem %s0, 50
  %s101 = sld [smem:[%s100]]
  %s102 = scalar_lea.smem %s0, 51
  %s103 = sld [smem:[%s102]]
  %s104 = scalar_lea.smem %s0, 52
  %s105 = sld [smem:[%s104]]
  %s106 = scalar_lea.smem %s0, 53
  %s107 = sld [smem:[%s106]]
  %s108 = scalar_lea.smem %s0, 54
  %s109 = sld [smem:[%s108]]
  %s110 = sld [smem:[#allocation0]]
  $region226: #{forward_pallas.1} parent=0
    _
  %s112 = ssub.s32 1, %s110
  %s113 = scalar_select 0, %s112, %s110
  // Predicated region
  $region2: #{forward_pallas.1} parent=0 // pred_check
    _
  $region3: #{forward_pallas.1} parent=0 // pred_check_branch
    %115 = sbr.rel (0) target = $region5
  $region4: #{forward_pallas.1} parent=0 // pred_region
    _
  $region5: #{forward_pallas.1} parent=0 // pred_fallthru
    _
  // Predicated region
  $region6: #{forward_pallas.1} parent=0 // pred_check
    _
  $region7: #{forward_pallas.1} parent=0 // pred_check_branch
    %117 = sbr.rel (0) target = $region9
  $region8: #{forward_pallas.1} parent=0 // pred_region
    _
  $region9: #{forward_pallas.1} parent=0 // pred_fallthru
    _
  // Predicated region
  $region10: #{forward_pallas.1} parent=0 // pred_check
    _
  $region11: #{forward_pallas.1} parent=0 // pred_check_branch
    %119 = sbr.rel (0) target = $region13
  $region12: #{forward_pallas.1} parent=0 // pred_region
    _
  $region13: #{forward_pallas.1} parent=0 // pred_fallthru
    _
  // Predicated region
  $region14: #{forward_pallas.1} parent=0 // pred_check
    _
  $region15: #{forward_pallas.1} parent=0 // pred_check_branch
    %121 = sbr.rel (0) target = $region17
  $region16: #{forward_pallas.1} parent=0 // pred_region
    _
  $region17: #{forward_pallas.1} parent=0 // pred_fallthru
    _
  // Predicated region
  $region18: #{forward_pallas.1} parent=0 // pred_check
    _
  $region19: #{forward_pallas.1} parent=0 // pred_check_branch
    %123 = sbr.rel (0) target = $region21
  $region20: #{forward_pallas.1} parent=0 // pred_region
    _
  $region21: #{forward_pallas.1} parent=0 // pred_fallthru
    _
  // Predicated region
  $region22: #{forward_pallas.1} parent=0 // pred_check
    _
  $region23: #{forward_pallas.1} parent=0 // pred_check_branch
    %125 = sbr.rel (0) target = $region25
  $region24: #{forward_pallas.1} parent=0 // pred_region
    _
  $region25: #{forward_pallas.1} parent=0 // pred_fallthru
    _
  // Predicated region
  $region26: #{forward_pallas.1} parent=0 // pred_check
    _
  $region27: #{forward_pallas.1} parent=0 // pred_check_branch
    %127 = sbr.rel (0) target = $region29
  $region28: #{forward_pallas.1} parent=0 // pred_region
    _
  $region29: #{forward_pallas.1} parent=0 // pred_fallthru
    _
  // Predicated region
  $region30: #{forward_pallas.1} parent=0 // pred_check
    _
  $region31: #{forward_pallas.1} parent=0 // pred_check_branch
    %129 = sbr.rel (0) target = $region33
  $region32: #{forward_pallas.1} parent=0 // pred_region
    _
  $region33: #{forward_pallas.1} parent=0 // pred_fallthru
    _
  // Predicated region
  $region34: #{forward_pallas.1} parent=0 // pred_check
    _
  $region35: #{forward_pallas.1} parent=0 // pred_check_branch
    %131 = sbr.rel (0) target = $region37
  $region36: #{forward_pallas.1} parent=0 // pred_region
    _
  $region37: #{forward_pallas.1} parent=0 // pred_fallthru
    _
  // Predicated region
  $region38: #{forward_pallas.1} parent=0 // pred_check
    _
  $region39: #{forward_pallas.1} parent=0 // pred_check_branch
    %133 = sbr.rel (0) target = $region41
  $region40: #{forward_pallas.1} parent=0 // pred_region
    _
  $region41: #{forward_pallas.1} parent=0 // pred_fallthru
    _
  // Predicated region
  $region42: #{forward_pallas.1} parent=0 // pred_check
    _
  $region43: #{forward_pallas.1} parent=0 // pred_check_branch
    %135 = sbr.rel (0) target = $region45
  $region44: #{forward_pallas.1} parent=0 // pred_region
    _
  $region45: #{forward_pallas.1} parent=0 // pred_fallthru
    _
  // Predicated region
  $region46: #{forward_pallas.1} parent=0 // pred_check
    _
  $region47: #{forward_pallas.1} parent=0 // pred_check_branch
    %137 = sbr.rel (0) target = $region49
  $region48: #{forward_pallas.1} parent=0 // pred_region
    _
  $region49: #{forward_pallas.1} parent=0 // pred_fallthru
    _
  // Predicated region
  $region50: #{forward_pallas.1} parent=0 // pred_check
    _
  $region51: #{forward_pallas.1} parent=0 // pred_check_branch
    %139 = sbr.rel (0) target = $region53
  $region52: #{forward_pallas.1} parent=0 // pred_region
    _
  $region53: #{forward_pallas.1} parent=0 // pred_fallthru
    _
  // Predicated region
  $region54: #{forward_pallas.1} parent=0 // pred_check
    _
  $region55: #{forward_pallas.1} parent=0 // pred_check_branch
    %141 = sbr.rel (0) target = $region57
  $region56: #{forward_pallas.1} parent=0 // pred_region
    _
  $region57: #{forward_pallas.1} parent=0 // pred_fallthru
    _
  // Predicated region
  $region58: #{forward_pallas.1} parent=0 // pred_check
    _
  $region59: #{forward_pallas.1} parent=0 // pred_check_branch
    %143 = sbr.rel (0) target = $region61
  $region60: #{forward_pallas.1} parent=0 // pred_region
    _
  $region61: #{forward_pallas.1} parent=0 // pred_fallthru
    _
  // Predicated region
  $region62: #{forward_pallas.1} parent=0 // pred_check
    _
  $region63: #{forward_pallas.1} parent=0 // pred_check_branch
    %145 = sbr.rel (0) target = $region65
  $region64: #{forward_pallas.1} parent=0 // pred_region
    _
  $region65: #{forward_pallas.1} parent=0 // pred_fallthru
    _
  // Predicated region
  $region66: #{forward_pallas.1} parent=0 // pred_check
    _
  $region67: #{forward_pallas.1} parent=0 // pred_check_branch
    %147 = sbr.rel (0) target = $region69
  $region68: #{forward_pallas.1} parent=0 // pred_region
    _
  $region69: #{forward_pallas.1} parent=0 // pred_fallthru
    _
  // Predicated region
  $region70: #{forward_pallas.1} parent=0 // pred_check
    _
  $region71: #{forward_pallas.1} parent=0 // pred_check_branch
    %149 = sbr.rel (0) target = $region73
  $region72: #{forward_pallas.1} parent=0 // pred_region
    _
  $region73: #{forward_pallas.1} parent=0 // pred_fallthru
    _
  // Predicated region
  $region74: #{forward_pallas.1} parent=0 // pred_check
    _
  $region75: #{forward_pallas.1} parent=0 // pred_check_branch
    %151 = sbr.rel (0) target = $region77
  $region76: #{forward_pallas.1} parent=0 // pred_region
    _
  $region77: #{forward_pallas.1} parent=0 // pred_fallthru
    _
  // Predicated region
  $region78: #{forward_pallas.1} parent=0 // pred_check
    _
  $region79: #{forward_pallas.1} parent=0 // pred_check_branch
    %153 = sbr.rel (0) target = $region81
  $region80: #{forward_pallas.1} parent=0 // pred_region
    _
  $region81: #{forward_pallas.1} parent=0 // pred_fallthru
    _
  // Predicated region
  $region82: #{forward_pallas.1} parent=0 // pred_check
    _
  $region83: #{forward_pallas.1} parent=0 // pred_check_branch
    %155 = sbr.rel (0) target = $region85
  $region84: #{forward_pallas.1} parent=0 // pred_region
    _
  $region85: #{forward_pallas.1} parent=0 // pred_fallthru
    _
  // Predicated region
  $region86: #{forward_pallas.1} parent=0 // pred_check
    _
  $region87: #{forward_pallas.1} parent=0 // pred_check_branch
    %157 = sbr.rel (0) target = $region89
  $region88: #{forward_pallas.1} parent=0 // pred_region
    _
  $region89: #{forward_pallas.1} parent=0 // pred_fallthru
    _
  // Predicated region
  $region90: #{forward_pallas.1} parent=0 // pred_check
    _
  $region91: #{forward_pallas.1} parent=0 // pred_check_branch
    %159 = sbr.rel (0) target = $region93
  $region92: #{forward_pallas.1} parent=0 // pred_region
    _
  $region93: #{forward_pallas.1} parent=0 // pred_fallthru
    _
  // Predicated region
  $region94: #{forward_pallas.1} parent=0 // pred_check
    _
  $region95: #{forward_pallas.1} parent=0 // pred_check_branch
    %161 = sbr.rel (0) target = $region97
  $region96: #{forward_pallas.1} parent=0 // pred_region
    _
  $region97: #{forward_pallas.1} parent=0 // pred_fallthru
    _
  // Predicated region
  $region98: #{forward_pallas.1} parent=0 // pred_check
    _
  $region99: #{forward_pallas.1} parent=0 // pred_check_branch
    %163 = sbr.rel (0) target = $region101
  $region100: #{forward_pallas.1} parent=0 // pred_region
    _
  $region101: #{forward_pallas.1} parent=0 // pred_fallthru
    _
  // Predicated region
  $region102: #{forward_pallas.1} parent=0 // pred_check
    _
  $region103: #{forward_pallas.1} parent=0 // pred_check_branch
    %165 = sbr.rel (0) target = $region105
  $region104: #{forward_pallas.1} parent=0 // pred_region
    _
  $region105: #{forward_pallas.1} parent=0 // pred_fallthru
    _
  // Predicated region
  $region106: #{forward_pallas.1} parent=0 // pred_check
    _
  $region107: #{forward_pallas.1} parent=0 // pred_check_branch
    %167 = sbr.rel (0) target = $region109
  $region108: #{forward_pallas.1} parent=0 // pred_region
    _
  $region109: #{forward_pallas.1} parent=0 // pred_fallthru
    _
  // Predicated region
  $region110: #{forward_pallas.1} parent=0 // pred_check
    _
  $region111: #{forward_pallas.1} parent=0 // pred_check_branch
    %169 = sbr.rel (0) target = $region113
  $region112: #{forward_pallas.1} parent=0 // pred_region
    _
  $region113: #{forward_pallas.1} parent=0 // pred_fallthru
    _
  // Predicated region
  $region114: #{forward_pallas.1} parent=0 // pred_check
    _
  $region115: #{forward_pallas.1} parent=0 // pred_check_branch
    %171 = sbr.rel (0) target = $region117
  $region116: #{forward_pallas.1} parent=0 // pred_region
    _
  $region117: #{forward_pallas.1} parent=0 // pred_fallthru
    _
  // Predicated region
  $region118: #{forward_pallas.1} parent=0 // pred_check
    _
  $region119: #{forward_pallas.1} parent=0 // pred_check_branch
    %173 = sbr.rel (0) target = $region121
  $region120: #{forward_pallas.1} parent=0 // pred_region
    _
  $region121: #{forward_pallas.1} parent=0 // pred_fallthru
    _
  // Predicated region
  $region122: #{forward_pallas.1} parent=0 // pred_check
    _
  $region123: #{forward_pallas.1} parent=0 // pred_check_branch
    %175 = sbr.rel (0) target = $region125
  $region124: #{forward_pallas.1} parent=0 // pred_region
    _
  $region125: #{forward_pallas.1} parent=0 // pred_fallthru
    _
  // Predicated region
  $region126: #{forward_pallas.1} parent=0 // pred_check
    _
  $region127: #{forward_pallas.1} parent=0 // pred_check_branch
    %177 = sbr.rel (0) target = $region129
  $region128: #{forward_pallas.1} parent=0 // pred_region
    _
  $region129: #{forward_pallas.1} parent=0 // pred_fallthru
    _
  // Predicated region
  $region130: #{forward_pallas.1} parent=0 // pred_check
    _
  $region131: #{forward_pallas.1} parent=0 // pred_check_branch
    %179 = sbr.rel (0) target = $region133
  $region132: #{forward_pallas.1} parent=0 // pred_region
    _
  $region133: #{forward_pallas.1} parent=0 // pred_fallthru
    _
  // Predicated region
  $region134: #{forward_pallas.1} parent=0 // pred_check
    _
  $region135: #{forward_pallas.1} parent=0 // pred_check_branch
    %181 = sbr.rel (0) target = $region137
  $region136: #{forward_pallas.1} parent=0 // pred_region
    _
  $region137: #{forward_pallas.1} parent=0 // pred_fallthru
    _
  // Predicated region
  $region138: #{forward_pallas.1} parent=0 // pred_check
    _
  $region139: #{forward_pallas.1} parent=0 // pred_check_branch
    %183 = sbr.rel (0) target = $region141
  $region140: #{forward_pallas.1} parent=0 // pred_region
    _
  $region141: #{forward_pallas.1} parent=0 // pred_fallthru
    _
  // Predicated region
  $region142: #{forward_pallas.1} parent=0 // pred_check
    _
  $region143: #{forward_pallas.1} parent=0 // pred_check_branch
    %185 = sbr.rel (0) target = $region145
  $region144: #{forward_pallas.1} parent=0 // pred_region
    _
  $region145: #{forward_pallas.1} parent=0 // pred_fallthru
    _
  // Predicated region
  $region146: #{forward_pallas.1} parent=0 // pred_check
    _
  $region147: #{forward_pallas.1} parent=0 // pred_check_branch
    %187 = sbr.rel (0) target = $region149
  $region148: #{forward_pallas.1} parent=0 // pred_region
    _
  $region149: #{forward_pallas.1} parent=0 // pred_fallthru
    _
  // Predicated region
  $region150: #{forward_pallas.1} parent=0 // pred_check
    _
  $region151: #{forward_pallas.1} parent=0 // pred_check_branch
    %189 = sbr.rel (0) target = $region153
  $region152: #{forward_pallas.1} parent=0 // pred_region
    _
  $region153: #{forward_pallas.1} parent=0 // pred_fallthru
    _
  // Predicated region
  $region154: #{forward_pallas.1} parent=0 // pred_check
    _
  $region155: #{forward_pallas.1} parent=0 // pred_check_branch
    %191 = sbr.rel (0) target = $region157
  $region156: #{forward_pallas.1} parent=0 // pred_region
    _
  $region157: #{forward_pallas.1} parent=0 // pred_fallthru
    _
  // Predicated region
  $region158: #{forward_pallas.1} parent=0 // pred_check
    _
  $region159: #{forward_pallas.1} parent=0 // pred_check_branch
    %193 = sbr.rel (0) target = $region161
  $region160: #{forward_pallas.1} parent=0 // pred_region
    _
  $region161: #{forward_pallas.1} parent=0 // pred_fallthru
    _
  // Predicated region
  $region162: #{forward_pallas.1} parent=0 // pred_check
    _
  $region163: #{forward_pallas.1} parent=0 // pred_check_branch
    %195 = sbr.rel (0) target = $region165
  $region164: #{forward_pallas.1} parent=0 // pred_region
    _
  $region165: #{forward_pallas.1} parent=0 // pred_fallthru
    _
  // Predicated region
  $region166: #{forward_pallas.1} parent=0 // pred_check
    _
  $region167: #{forward_pallas.1} parent=0 // pred_check_branch
    %197 = sbr.rel (0) target = $region169
  $region168: #{forward_pallas.1} parent=0 // pred_region
    _
  $region169: #{forward_pallas.1} parent=0 // pred_fallthru
    _
  // Predicated region
  $region170: #{forward_pallas.1} parent=0 // pred_check
    _
  $region171: #{forward_pallas.1} parent=0 // pred_check_branch
    %199 = sbr.rel (0) target = $region173
  $region172: #{forward_pallas.1} parent=0 // pred_region
    _
  $region173: #{forward_pallas.1} parent=0 // pred_fallthru
    _
  // Predicated region
  $region174: #{forward_pallas.1} parent=0 // pred_check
    _
  $region175: #{forward_pallas.1} parent=0 // pred_check_branch
    %201 = sbr.rel (0) target = $region177
  $region176: #{forward_pallas.1} parent=0 // pred_region
    _
  $region177: #{forward_pallas.1} parent=0 // pred_fallthru
    _
  // Predicated region
  $region178: #{forward_pallas.1} parent=0 // pred_check
    _
  $region179: #{forward_pallas.1} parent=0 // pred_check_branch
    %203 = sbr.rel (0) target = $region181
  $region180: #{forward_pallas.1} parent=0 // pred_region
    _
  $region181: #{forward_pallas.1} parent=0 // pred_fallthru
    _
  // Predicated region
  $region182: #{forward_pallas.1} parent=0 // pred_check
    _
  $region183: #{forward_pallas.1} parent=0 // pred_check_branch
    %205 = sbr.rel (0) target = $region185
  $region184: #{forward_pallas.1} parent=0 // pred_region
    _
  $region185: #{forward_pallas.1} parent=0 // pred_fallthru
    _
  // Predicated region
  $region186: #{forward_pallas.1} parent=0 // pred_check
    _
  $region187: #{forward_pallas.1} parent=0 // pred_check_branch
    %207 = sbr.rel (0) target = $region189
  $region188: #{forward_pallas.1} parent=0 // pred_region
    _
  $region189: #{forward_pallas.1} parent=0 // pred_fallthru
    _
  // Predicated region
  $region190: #{forward_pallas.1} parent=0 // pred_check
    _
  $region191: #{forward_pallas.1} parent=0 // pred_check_branch
    %209 = sbr.rel (0) target = $region193
  $region192: #{forward_pallas.1} parent=0 // pred_region
    _
  $region193: #{forward_pallas.1} parent=0 // pred_fallthru
    _
  // Predicated region
  $region194: #{forward_pallas.1} parent=0 // pred_check
    _
  $region195: #{forward_pallas.1} parent=0 // pred_check_branch
    %211 = sbr.rel (0) target = $region197
  $region196: #{forward_pallas.1} parent=0 // pred_region
    _
  $region197: #{forward_pallas.1} parent=0 // pred_fallthru
    _
  // Predicated region
  $region198: #{forward_pallas.1} parent=0 // pred_check
    _
  $region199: #{forward_pallas.1} parent=0 // pred_check_branch
    %213 = sbr.rel (0) target = $region201
  $region200: #{forward_pallas.1} parent=0 // pred_region
    _
  $region201: #{forward_pallas.1} parent=0 // pred_fallthru
    _
  // Predicated region
  $region202: #{forward_pallas.1} parent=0 // pred_check
    _
  $region203: #{forward_pallas.1} parent=0 // pred_check_branch
    %215 = sbr.rel (0) target = $region205
  $region204: #{forward_pallas.1} parent=0 // pred_region
    _
  $region205: #{forward_pallas.1} parent=0 // pred_fallthru
    _
  // Predicated region
  $region206: #{forward_pallas.1} parent=0 // pred_check
    _
  $region207: #{forward_pallas.1} parent=0 // pred_check_branch
    %217 = sbr.rel (0) target = $region209
  $region208: #{forward_pallas.1} parent=0 // pred_region
    _
  $region209: #{forward_pallas.1} parent=0 // pred_fallthru
    _
  // Predicated region
  $region210: #{forward_pallas.1} parent=0 // pred_check
    _
  $region211: #{forward_pallas.1} parent=0 // pred_check_branch
    %219 = sbr.rel (0) target = $region213
  $region212: #{forward_pallas.1} parent=0 // pred_region
    _
  $region213: #{forward_pallas.1} parent=0 // pred_fallthru
    _
  // Predicated region
  $region214: #{forward_pallas.1} parent=0 // pred_check
    _
  $region215: #{forward_pallas.1} parent=0 // pred_check_branch
    %221 = sbr.rel (0) target = $region217
  $region216: #{forward_pallas.1} parent=0 // pred_region
    _
  $region217: #{forward_pallas.1} parent=0 // pred_fallthru
    _
  %v222 = vld [vmem:[%s1] sm:$0xff]
  %v223 = vld [vmem:[%s1 + $0x8] sm:$0xff]
  %v224 = vld [vmem:[%s1 + $0x10] sm:$0xff]
  %v225 = vld [vmem:[%s1 + $0x18] sm:$0xff]
  %v226 = vlaneseq
  %v227 = vshrl.u32 %v226, 7
  %v228 = vadd.s32 %v227, 8
  %v229 = vadd.s32 %v227, 16
  %v230 = vadd.s32 %v227, 24
  %vm231 = vcmp.lt.s32.totalorder %v227, 0
  %v232 = vsub.s32 0, %v227
  %v233 = vsel %vm231, %v232, %v227
  %v234 = vshrl.u32 %v233, 4
  %v235 = vand.u32 %v233, 15
  %v236 = vsub.s32 0, %v235
  %v237 = vsel %vm231, %v236, %v235
  %vm238 = vcmp.lt.s32.totalorder %v228, 0
  %v239 = vsub.s32 0, %v228
  %v240 = vsel %vm238, %v239, %v228
  %v241 = vshrl.u32 %v240, 4
  %v242 = vand.u32 %v240, 15
  %v243 = vsub.s32 0, %v242
  %v244 = vsel %vm238, %v243, %v242
  %vm245 = vcmp.lt.s32.totalorder %v229, 0
  %v246 = vsub.s32 0, %v229
  %v247 = vsel %vm245, %v246, %v229
  %v248 = vshrl.u32 %v247, 4
  %v249 = vand.u32 %v247, 15
  %v250 = vsub.s32 0, %v249
  %v251 = vsel %vm245, %v250, %v249
  %vm252 = vcmp.lt.s32.totalorder %v230, 0
  %v253 = vsub.s32 0, %v230
  %v254 = vsel %vm252, %v253, %v230
  %v255 = vshrl.u32 %v254, 4
  %v256 = vand.u32 %v254, 15
  %v257 = vsub.s32 0, %v256
  %v258 = vsel %vm252, %v257, %v256
  %vm259 = vcmp.ne.s32.totalorder %v237, 0
  %vm260 = vcmp.ne.s32.totalorder %v244, 0
  %vm261 = vcmp.ne.s32.totalorder %v251, 0
  %vm262 = vcmp.ne.s32.totalorder %v258, 0
  %vm263 = vcmp.lt.s32.totalorder %v237, 0
  %vm264 = vcmp.lt.s32.totalorder %v244, 0
  %vm265 = vcmp.lt.s32.totalorder %v251, 0
  %vm266 = vcmp.lt.s32.totalorder %v258, 0
  %vm267 = vmand %vm263, %vm259
  %vm268 = vmand %vm264, %vm260
  %vm269 = vmand %vm265, %vm261
  %vm270 = vmand %vm266, %vm262
  %v271 = vadd.s32 %v237, 16
  %v272 = vadd.s32 %v244, 16
  %v273 = vadd.s32 %v251, 16
  %v274 = vadd.s32 %v258, 16
  %v275 = vsel %vm267, %v271, %v237
  %v276 = vsel %vm268, %v272, %v244
  %v277 = vsel %vm269, %v273, %v251
  %v278 = vsel %vm270, %v274, %v258
  %vm279 = vcmp.ne.s32.totalorder %v275, 0
  %vm280 = vcmp.ne.s32.totalorder %v276, 0
  %vm281 = vcmp.ne.s32.totalorder %v277, 0
  %vm282 = vcmp.ne.s32.totalorder %v278, 0
  %v283 = vsel %vm279, 1, 0
  %v284 = vsel %vm280, 1, 0
  %v285 = vsel %vm281, 1, 0
  %v286 = vsel %vm282, 1, 0
  %v287 = vcvt.s32.f32 %v283
  %v288 = vcvt.s32.f32 %v284
  %v289 = vcvt.s32.f32 %v285
  %v290 = vcvt.s32.f32 %v286
  %vm291 = vcmp.ne.s32.totalorder %v275, 15
  %vm292 = vcmp.ne.s32.totalorder %v276, 15
  %vm293 = vcmp.ne.s32.totalorder %v277, 15
  %vm294 = vcmp.ne.s32.totalorder %v278, 15
  %v295 = vsel %vm291, 1, 0
  %v296 = vsel %vm292, 1, 0
  %v297 = vsel %vm293, 1, 0
  %v298 = vsel %vm294, 1, 0
  %v299 = vcvt.s32.f32 %v295
  %v300 = vcvt.s32.f32 %v296
  %v301 = vcvt.s32.f32 %v297
  %v302 = vcvt.s32.f32 %v298
  %v303 = vrot.slane %v222, 7
  %v304 = vrot.slane %v223, 7
  %v305 = vrot.slane %v224, 7
  %v306 = vrot.slane %v225, 7
  %vm307 = vcmp.lt.s32.totalorder %v227, 1
  %v308 = vsel %vm307, %v305, %v306
  %v309 = vsel %vm307, %v304, %v305
  %v310 = vsel %vm307, %v303, %v304
  %v311 = vsel %vm307, %v306, %v303
  %v312 = vmul.f32 %v311, %v287
  %v313 = vmul.f32 %v310, %v288
  %v314 = vmul.f32 %v309, %v289
  %v315 = vmul.f32 %v308, %v290
  %v316 = vrot.slane %v222, 1
  %v317 = vrot.slane %v223, 1
  %v318 = vrot.slane %v224, 1
  %v319 = vrot.slane %v225, 1
  %vm320 = vcmp.lt.s32.totalorder %v227, 7
  %v321 = vsel %vm320, %v318, %v319
  %v322 = vsel %vm320, %v317, %v318
  %v323 = vsel %vm320, %v316, %v317
  %v324 = vsel %vm320, %v319, %v316
  %v325 = vmul.f32 %v323, %v299
  %v326 = vmul.f32 %v322, %v300
  %v327 = vmul.f32 %v321, %v301
  %v328 = vmul.f32 %v324, %v302
  %v329 = vld [vmem:[%s5] sm:$0xf]
  %v330 = vld [vmem:[%s3] sm:$0xf]
  %vm331 = vcmask 31744
  %v333 = vsel %vm331, %v312, 0
  %v336 = vsel %vm331, %v313, 0
  %v339 = vsel %vm331, %v314, 0
  %v342 = vsel %vm331, %v315, 0
  %vm344 = vcmask 1043456
  %v346 = vsel %vm344, %v330, 0
  %348 = vmatpush.msra.mxu0 0.0
  %349 = vmatpush.msra.mxu0 0.0
  %350 = vmatpush.msra.mxu0 0.0
  %351 = vmatpush.msra.mxu0 0.0
  %352 = vmatpush.msra.mxu0 0.0
  %353 = vmatpush.msra.mxu0 0.0
  %354 = vmatpush.msra.mxu0 0.0
  %355 = vmatpush.msra.mxu0 0.0
  %356 = vmatpush.msra.mxu0 0.0
  %357 = vmatpush.msra.mxu0 0.0
  %358 = vmatpush.msra.mxu0 0.0
  %359 = vmatpush.msra.mxu0 0.0
  %360 = vmatpush.msra.mxu0 0.0
  %361 = vmatpush.msra.mxu0 0.0
  %362 = vmatpush.msra.mxu0 0.0
  %363 = vmatpush.msra.mxu0 %v346
  %364 = vmatmul.f32.gmra.mxu0 %v333
  %v365 = vpop.f32.mrf.mxu0
  %v366 = vadd.f32 0.0, %v365
  %367 = vmatmul.f32.gmra.mxu0 %v336
  %v368 = vpop.f32.mrf.mxu0
  %v369 = vadd.f32 0.0, %v368
  %370 = vmatmul.f32.gmra.mxu0 %v339
  %v371 = vpop.f32.mrf.mxu0
  %v372 = vadd.f32 0.0, %v371
  %373 = vmatmul.f32.gmra.mxu0 %v342
  %v374 = vpop.f32.mrf.mxu0
  %v375 = vadd.f32 0.0, %v374
  %376 = vdwg.mxu0
  %v378 = vsel %vm331, %v222, 0
  %v381 = vsel %vm331, %v223, 0
  %v384 = vsel %vm331, %v224, 0
  %v387 = vsel %vm331, %v225, 0
  %v390 = vsel %vm344, %v329, 0
  %392 = vmatpush.msra.mxu0 0.0
  %393 = vmatpush.msra.mxu0 0.0
  %394 = vmatpush.msra.mxu0 0.0
  %395 = vmatpush.msra.mxu0 0.0
  %396 = vmatpush.msra.mxu0 0.0
  %397 = vmatpush.msra.mxu0 0.0
  %398 = vmatpush.msra.mxu0 0.0
  %399 = vmatpush.msra.mxu0 0.0
  %400 = vmatpush.msra.mxu0 0.0
  %401 = vmatpush.msra.mxu0 0.0
  %402 = vmatpush.msra.mxu0 0.0
  %403 = vmatpush.msra.mxu0 0.0
  %404 = vmatpush.msra.mxu0 0.0
  %405 = vmatpush.msra.mxu0 0.0
  %406 = vmatpush.msra.mxu0 0.0
  %407 = vmatpush.msra.mxu0 %v390
  %408 = vmatmul.f32.gmra.mxu0 %v378
  %v409 = vpop.f32.mrf.mxu0
  %v410 = vadd.f32 %v366, %v409
  %411 = vmatmul.f32.gmra.mxu0 %v381
  %v412 = vpop.f32.mrf.mxu0
  %v413 = vadd.f32 %v369, %v412
  %414 = vmatmul.f32.gmra.mxu0 %v384
  %v415 = vpop.f32.mrf.mxu0
  %v416 = vadd.f32 %v372, %v415
  %417 = vmatmul.f32.gmra.mxu0 %v387
  %v418 = vpop.f32.mrf.mxu0
  %v419 = vadd.f32 %v375, %v418
  %420 = vdwg.mxu0
  %v421 = vld [vmem:[%s7] sm:$0xf]
  %v423 = vsel %vm331, %v325, 0
  %v426 = vsel %vm331, %v326, 0
  %v429 = vsel %vm331, %v327, 0
  %v432 = vsel %vm331, %v328, 0
  %v435 = vsel %vm344, %v421, 0
  %437 = vmatpush.msra.mxu0 0.0
  %438 = vmatpush.msra.mxu0 0.0
  %439 = vmatpush.msra.mxu0 0.0
  %440 = vmatpush.msra.mxu0 0.0
  %441 = vmatpush.msra.mxu0 0.0
  %442 = vmatpush.msra.mxu0 0.0
  %443 = vmatpush.msra.mxu0 0.0
  %444 = vmatpush.msra.mxu0 0.0
  %445 = vmatpush.msra.mxu0 0.0
  %446 = vmatpush.msra.mxu0 0.0
  %447 = vmatpush.msra.mxu0 0.0
  %448 = vmatpush.msra.mxu0 0.0
  %449 = vmatpush.msra.mxu0 0.0
  %450 = vmatpush.msra.mxu0 0.0
  %451 = vmatpush.msra.mxu0 0.0
  %452 = vmatpush.msra.mxu0 %v435
  %453 = vmatmul.f32.gmra.mxu0 %v423
  %v454 = vpop.f32.mrf.mxu0
  %v455 = vadd.f32 0.0, %v454
  %456 = vmatmul.f32.gmra.mxu0 %v426
  %v457 = vpop.f32.mrf.mxu0
  %v458 = vadd.f32 0.0, %v457
  %459 = vmatmul.f32.gmra.mxu0 %v429
  %v460 = vpop.f32.mrf.mxu0
  %v461 = vadd.f32 0.0, %v460
  %462 = vmatmul.f32.gmra.mxu0 %v432
  %v463 = vpop.f32.mrf.mxu0
  %v464 = vadd.f32 0.0, %v463
  %465 = vdwg.mxu0
  %v466 = vadd.f32 %v410, %v455
  %v467 = vadd.f32 %v413, %v458
  %v468 = vadd.f32 %v416, %v461
  %v469 = vadd.f32 %v419, %v464
  %v470 = vld [vmem:[%s9] sm:$0x1]
  %v472 = vperm.slane %v470, 0
  %v474 = vmul.f32 %v466, %v472
  %v475 = vmul.f32 %v467, %v472
  %v476 = vmul.f32 %v468, %v472
  %v477 = vmul.f32 %v469, %v472
  %v478 = vld [vmem:[%s11] sm:$0x1]
  %v480 = vperm.slane %v478, 0
  %v482 = vadd.f32 %v474, %v480
  %v483 = vadd.f32 %v475, %v480
  %v484 = vadd.f32 %v476, %v480
  %v485 = vadd.f32 %v477, %v480
  %v486 = vmax.f32 %v482, 0.0
  %v487 = vmax.f32 %v483, 0.0
  %v488 = vmax.f32 %v484, 0.0
  %v489 = vmax.f32 %v485, 0.0
  %v490 = vrot.slane %v486, 7
  %v491 = vrot.slane %v487, 7
  %v492 = vrot.slane %v488, 7
  %v493 = vrot.slane %v489, 7
  %v494 = vsel %vm307, %v492, %v493
  %v495 = vsel %vm307, %v491, %v492
  %v496 = vsel %vm307, %v490, %v491
  %v497 = vsel %vm307, %v493, %v490
  %v498 = vmul.f32 %v497, %v287
  %v499 = vmul.f32 %v496, %v288
  %v500 = vmul.f32 %v495, %v289
  %v501 = vmul.f32 %v494, %v290
  %v502 = vrot.slane %v486, 1
  %v503 = vrot.slane %v487, 1
  %v504 = vrot.slane %v488, 1
  %v505 = vrot.slane %v489, 1
  %v506 = vsel %vm320, %v504, %v505
  %v507 = vsel %vm320, %v503, %v504
  %v508 = vsel %vm320, %v502, %v503
  %v509 = vsel %vm320, %v505, %v502
  %v510 = vmul.f32 %v508, %v299
  %v511 = vmul.f32 %v507, %v300
  %v512 = vmul.f32 %v506, %v301
  %v513 = vmul.f32 %v509, %v302
  %v514 = vld [vmem:[%s15] sm:$0xff]
  %v515 = vld [vmem:[%s15 + $0x8] sm:$0xff]
  %v516 = vld [vmem:[%s15 + $0x10] sm:$0xff]
  %v517 = vld [vmem:[%s15 + $0x18] sm:$0xff]
  %v518 = vld [vmem:[%s13] sm:$0xff]
  %v519 = vld [vmem:[%s13 + $0x8] sm:$0xff]
  %v520 = vld [vmem:[%s13 + $0x10] sm:$0xff]
  %v521 = vld [vmem:[%s13 + $0x18] sm:$0xff]
  %vm522 = vcmask 261120
  %v524 = vsel %vm522, %v498, 0
  %v527 = vsel %vm522, %v499, 0
  %v530 = vsel %vm522, %v500, 0
  %v533 = vsel %vm522, %v501, 0
  %535 = vmatpush.msra.mxu0 0.0
  %536 = vmatpush.msra.mxu0 0.0
  %537 = vmatpush.msra.mxu0 0.0
  %538 = vmatpush.msra.mxu0 0.0
  %539 = vmatpush.msra.mxu0 0.0
  %540 = vmatpush.msra.mxu0 0.0
  %541 = vmatpush.msra.mxu0 0.0
  %542 = vmatpush.msra.mxu0 0.0
  %543 = vmatpush.msra.mxu0 0.0
  %544 = vmatpush.msra.mxu0 0.0
  %545 = vmatpush.msra.mxu0 0.0
  %546 = vmatpush.msra.mxu0 0.0
  %547 = vmatpush.msra.mxu0 %v521
  %548 = vmatpush.msra.mxu0 %v520
  %549 = vmatpush.msra.mxu0 %v519
  %550 = vmatpush.msra.mxu0 %v518
  %551 = vmatmul.f32.gmra.mxu0 %v524
  %v552 = vpop.f32.mrf.mxu0
  %v553 = vadd.f32 0.0, %v552
  %554 = vmatmul.f32.gmra.mxu0 %v527
  %v555 = vpop.f32.mrf.mxu0
  %v556 = vadd.f32 0.0, %v555
  %557 = vmatmul.f32.gmra.mxu0 %v530
  %v558 = vpop.f32.mrf.mxu0
  %v559 = vadd.f32 0.0, %v558
  %560 = vmatmul.f32.gmra.mxu0 %v533
  %v561 = vpop.f32.mrf.mxu0
  %v562 = vadd.f32 0.0, %v561
  %563 = vdwg.mxu0
  %v565 = vsel %vm522, %v486, 0
  %v568 = vsel %vm522, %v487, 0
  %v571 = vsel %vm522, %v488, 0
  %v574 = vsel %vm522, %v489, 0
  %576 = vmatpush.msra.mxu0 0.0
  %577 = vmatpush.msra.mxu0 0.0
  %578 = vmatpush.msra.mxu0 0.0
  %579 = vmatpush.msra.mxu0 0.0
  %580 = vmatpush.msra.mxu0 0.0
  %581 = vmatpush.msra.mxu0 0.0
  %582 = vmatpush.msra.mxu0 0.0
  %583 = vmatpush.msra.mxu0 0.0
  %584 = vmatpush.msra.mxu0 0.0
  %585 = vmatpush.msra.mxu0 0.0
  %586 = vmatpush.msra.mxu0 0.0
  %587 = vmatpush.msra.mxu0 0.0
  %588 = vmatpush.msra.mxu0 %v517
  %589 = vmatpush.msra.mxu0 %v516
  %590 = vmatpush.msra.mxu0 %v515
  %591 = vmatpush.msra.mxu0 %v514
  %592 = vmatmul.f32.gmra.mxu0 %v565
  %v593 = vpop.f32.mrf.mxu0
  %v594 = vadd.f32 %v553, %v593
  %595 = vmatmul.f32.gmra.mxu0 %v568
  %v596 = vpop.f32.mrf.mxu0
  %v597 = vadd.f32 %v556, %v596
  %598 = vmatmul.f32.gmra.mxu0 %v571
  %v599 = vpop.f32.mrf.mxu0
  %v600 = vadd.f32 %v559, %v599
  %601 = vmatmul.f32.gmra.mxu0 %v574
  %v602 = vpop.f32.mrf.mxu0
  %v603 = vadd.f32 %v562, %v602
  %604 = vdwg.mxu0
  %v605 = vld [vmem:[%s17] sm:$0xff]
  %v606 = vld [vmem:[%s17 + $0x8] sm:$0xff]
  %v607 = vld [vmem:[%s17 + $0x10] sm:$0xff]
  %v608 = vld [vmem:[%s17 + $0x18] sm:$0xff]
  %v610 = vsel %vm522, %v510, 0
  %v613 = vsel %vm522, %v511, 0
  %v616 = vsel %vm522, %v512, 0
  %v619 = vsel %vm522, %v513, 0
  %621 = vmatpush.msra.mxu0 0.0
  %622 = vmatpush.msra.mxu0 0.0
  %623 = vmatpush.msra.mxu0 0.0
  %624 = vmatpush.msra.mxu0 0.0
  %625 = vmatpush.msra.mxu0 0.0
  %626 = vmatpush.msra.mxu0 0.0
  %627 = vmatpush.msra.mxu0 0.0
  %628 = vmatpush.msra.mxu0 0.0
  %629 = vmatpush.msra.mxu0 0.0
  %630 = vmatpush.msra.mxu0 0.0
  %631 = vmatpush.msra.mxu0 0.0
  %632 = vmatpush.msra.mxu0 0.0
  %633 = vmatpush.msra.mxu0 %v608
  %634 = vmatpush.msra.mxu0 %v607
  %635 = vmatpush.msra.mxu0 %v606
  %636 = vmatpush.msra.mxu0 %v605
  %637 = vmatmul.f32.gmra.mxu0 %v610
  %v638 = vpop.f32.mrf.mxu0
  %v639 = vadd.f32 0.0, %v638
  %640 = vmatmul.f32.gmra.mxu0 %v613
  %v641 = vpop.f32.mrf.mxu0
  %v642 = vadd.f32 0.0, %v641
  %643 = vmatmul.f32.gmra.mxu0 %v616
  %v644 = vpop.f32.mrf.mxu0
  %v645 = vadd.f32 0.0, %v644
  %646 = vmatmul.f32.gmra.mxu0 %v619
  %v647 = vpop.f32.mrf.mxu0
  %v648 = vadd.f32 0.0, %v647
  %649 = vdwg.mxu0
  %v650 = vadd.f32 %v594, %v639
  %v651 = vadd.f32 %v597, %v642
  %v652 = vadd.f32 %v600, %v645
  %v653 = vadd.f32 %v603, %v648
  %v654 = vld [vmem:[%s19] sm:$0x1]
  %v656 = vperm.slane %v654, 0
  %v658 = vmul.f32 %v650, %v656
  %v659 = vmul.f32 %v651, %v656
  %v660 = vmul.f32 %v652, %v656
  %v661 = vmul.f32 %v653, %v656
  %v662 = vld [vmem:[%s21] sm:$0x1]
  %v664 = vperm.slane %v662, 0
  %v666 = vadd.f32 %v658, %v664
  %v667 = vadd.f32 %v659, %v664
  %v668 = vadd.f32 %v660, %v664
  %v669 = vadd.f32 %v661, %v664
  %v670 = vmax.f32 %v666, 0.0
  %v671 = vmax.f32 %v667, 0.0
  %v672 = vmax.f32 %v668, 0.0
  %v673 = vmax.f32 %v669, 0.0
  %v674 = vrot.slane %v670, 7
  %v675 = vrot.slane %v671, 7
  %v676 = vrot.slane %v672, 7
  %v677 = vrot.slane %v673, 7
  %v678 = vsel %vm307, %v676, %v677
  %v679 = vsel %vm307, %v675, %v676
  %v680 = vsel %vm307, %v674, %v675
  %v681 = vsel %vm307, %v677, %v674
  %v682 = vmul.f32 %v681, %v287
  %v683 = vmul.f32 %v680, %v288
  %v684 = vmul.f32 %v679, %v289
  %v685 = vmul.f32 %v678, %v290
  %v686 = vrot.slane %v670, 1
  %v687 = vrot.slane %v671, 1
  %v688 = vrot.slane %v672, 1
  %v689 = vrot.slane %v673, 1
  %v690 = vsel %vm320, %v688, %v689
  %v691 = vsel %vm320, %v687, %v688
  %v692 = vsel %vm320, %v686, %v687
  %v693 = vsel %vm320, %v689, %v686
  %v694 = vmul.f32 %v692, %v299
  %v695 = vmul.f32 %v691, %v300
  %v696 = vmul.f32 %v690, %v301
  %v697 = vmul.f32 %v693, %v302
  %v698 = vld [vmem:[%s25] sm:$0xff]
  %v699 = vld [vmem:[%s25 + $0x8] sm:$0xff]
  %v700 = vld [vmem:[%s25 + $0x10] sm:$0xff]
  %v701 = vld [vmem:[%s25 + $0x18] sm:$0xff]
  %v702 = vld [vmem:[%s23] sm:$0xff]
  %v703 = vld [vmem:[%s23 + $0x8] sm:$0xff]
  %v704 = vld [vmem:[%s23 + $0x10] sm:$0xff]
  %v705 = vld [vmem:[%s23 + $0x18] sm:$0xff]
  %v707 = vsel %vm522, %v682, 0
  %v710 = vsel %vm522, %v683, 0
  %v713 = vsel %vm522, %v684, 0
  %v716 = vsel %vm522, %v685, 0
  %718 = vmatpush.msra.mxu0 0.0
  %719 = vmatpush.msra.mxu0 0.0
  %720 = vmatpush.msra.mxu0 0.0
  %721 = vmatpush.msra.mxu0 0.0
  %722 = vmatpush.msra.mxu0 0.0
  %723 = vmatpush.msra.mxu0 0.0
  %724 = vmatpush.msra.mxu0 0.0
  %725 = vmatpush.msra.mxu0 0.0
  %726 = vmatpush.msra.mxu0 0.0
  %727 = vmatpush.msra.mxu0 0.0
  %728 = vmatpush.msra.mxu0 0.0
  %729 = vmatpush.msra.mxu0 0.0
  %730 = vmatpush.msra.mxu0 %v705
  %731 = vmatpush.msra.mxu0 %v704
  %732 = vmatpush.msra.mxu0 %v703
  %733 = vmatpush.msra.mxu0 %v702
  %734 = vmatmul.f32.gmra.mxu0 %v707
  %v735 = vpop.f32.mrf.mxu0
  %v736 = vadd.f32 0.0, %v735
  %737 = vmatmul.f32.gmra.mxu0 %v710
  %v738 = vpop.f32.mrf.mxu0
  %v739 = vadd.f32 0.0, %v738
  %740 = vmatmul.f32.gmra.mxu0 %v713
  %v741 = vpop.f32.mrf.mxu0
  %v742 = vadd.f32 0.0, %v741
  %743 = vmatmul.f32.gmra.mxu0 %v716
  %v744 = vpop.f32.mrf.mxu0
  %v745 = vadd.f32 0.0, %v744
  %746 = vdwg.mxu0
  %v748 = vsel %vm522, %v670, 0
  %v751 = vsel %vm522, %v671, 0
  %v754 = vsel %vm522, %v672, 0
  %v757 = vsel %vm522, %v673, 0
  %759 = vmatpush.msra.mxu0 0.0
  %760 = vmatpush.msra.mxu0 0.0
  %761 = vmatpush.msra.mxu0 0.0
  %762 = vmatpush.msra.mxu0 0.0
  %763 = vmatpush.msra.mxu0 0.0
  %764 = vmatpush.msra.mxu0 0.0
  %765 = vmatpush.msra.mxu0 0.0
  %766 = vmatpush.msra.mxu0 0.0
  %767 = vmatpush.msra.mxu0 0.0
  %768 = vmatpush.msra.mxu0 0.0
  %769 = vmatpush.msra.mxu0 0.0
  %770 = vmatpush.msra.mxu0 0.0
  %771 = vmatpush.msra.mxu0 %v701
  %772 = vmatpush.msra.mxu0 %v700
  %773 = vmatpush.msra.mxu0 %v699
  %774 = vmatpush.msra.mxu0 %v698
  %775 = vmatmul.f32.gmra.mxu0 %v748
  %v776 = vpop.f32.mrf.mxu0
  %v777 = vadd.f32 %v736, %v776
  %778 = vmatmul.f32.gmra.mxu0 %v751
  %v779 = vpop.f32.mrf.mxu0
  %v780 = vadd.f32 %v739, %v779
  %781 = vmatmul.f32.gmra.mxu0 %v754
  %v782 = vpop.f32.mrf.mxu0
  %v783 = vadd.f32 %v742, %v782
  %784 = vmatmul.f32.gmra.mxu0 %v757
  %v785 = vpop.f32.mrf.mxu0
  %v786 = vadd.f32 %v745, %v785
  %787 = vdwg.mxu0
  %v788 = vld [vmem:[%s27] sm:$0xff]
  %v789 = vld [vmem:[%s27 + $0x8] sm:$0xff]
  %v790 = vld [vmem:[%s27 + $0x10] sm:$0xff]
  %v791 = vld [vmem:[%s27 + $0x18] sm:$0xff]
  %v793 = vsel %vm522, %v694, 0
  %v796 = vsel %vm522, %v695, 0
  %v799 = vsel %vm522, %v696, 0
  %v802 = vsel %vm522, %v697, 0
  %804 = vmatpush.msra.mxu0 0.0
  %805 = vmatpush.msra.mxu0 0.0
  %806 = vmatpush.msra.mxu0 0.0
  %807 = vmatpush.msra.mxu0 0.0
  %808 = vmatpush.msra.mxu0 0.0
  %809 = vmatpush.msra.mxu0 0.0
  %810 = vmatpush.msra.mxu0 0.0
  %811 = vmatpush.msra.mxu0 0.0
  %812 = vmatpush.msra.mxu0 0.0
  %813 = vmatpush.msra.mxu0 0.0
  %814 = vmatpush.msra.mxu0 0.0
  %815 = vmatpush.msra.mxu0 0.0
  %816 = vmatpush.msra.mxu0 %v791
  %817 = vmatpush.msra.mxu0 %v790
  %818 = vmatpush.msra.mxu0 %v789
  %819 = vmatpush.msra.mxu0 %v788
  %820 = vmatmul.f32.gmra.mxu0 %v793
  %v821 = vpop.f32.mrf.mxu0
  %v822 = vadd.f32 0.0, %v821
  %823 = vmatmul.f32.gmra.mxu0 %v796
  %v824 = vpop.f32.mrf.mxu0
  %v825 = vadd.f32 0.0, %v824
  %826 = vmatmul.f32.gmra.mxu0 %v799
  %v827 = vpop.f32.mrf.mxu0
  %v828 = vadd.f32 0.0, %v827
  %829 = vmatmul.f32.gmra.mxu0 %v802
  %v830 = vpop.f32.mrf.mxu0
  %v831 = vadd.f32 0.0, %v830
  %832 = vdwg.mxu0
  %v833 = vadd.f32 %v777, %v822
  %v834 = vadd.f32 %v780, %v825
  %v835 = vadd.f32 %v783, %v828
  %v836 = vadd.f32 %v786, %v831
  %v837 = vld [vmem:[%s29] sm:$0x1]
  %v839 = vperm.slane %v837, 0
  %v841 = vmul.f32 %v833, %v839
  %v842 = vmul.f32 %v834, %v839
  %v843 = vmul.f32 %v835, %v839
  %v844 = vmul.f32 %v836, %v839
  %v845 = vld [vmem:[%s31] sm:$0x1]
  %v847 = vperm.slane %v845, 0
  %v849 = vadd.f32 %v841, %v847
  %v850 = vadd.f32 %v842, %v847
  %v851 = vadd.f32 %v843, %v847
  %v852 = vadd.f32 %v844, %v847
  %v853 = vadd.f32 %v849, %v486
  %v854 = vadd.f32 %v850, %v487
  %v855 = vadd.f32 %v851, %v488
  %v856 = vadd.f32 %v852, %v489
  %v857 = vmax.f32 %v853, 0.0
  %v858 = vmax.f32 %v854, 0.0
  %v859 = vmax.f32 %v855, 0.0
  %v860 = vmax.f32 %v856, 0.0
  %v861 = vrot.slane %v857, 7
  %v862 = vrot.slane %v858, 7
  %v863 = vrot.slane %v859, 7
  %v864 = vrot.slane %v860, 7
  %v865 = vsel %vm307, %v863, %v864
  %v866 = vsel %vm307, %v862, %v863
  %v867 = vsel %vm307, %v861, %v862
  %v868 = vsel %vm307, %v864, %v861
  %v869 = vmul.f32 %v868, %v287
  %v870 = vmul.f32 %v867, %v288
  %v871 = vmul.f32 %v866, %v289
  %v872 = vmul.f32 %v865, %v290
  %v873 = vrot.slane %v857, 1
  %v874 = vrot.slane %v858, 1
  %v875 = vrot.slane %v859, 1
  %v876 = vrot.slane %v860, 1
  %v877 = vsel %vm320, %v875, %v876
  %v878 = vsel %vm320, %v874, %v875
  %v879 = vsel %vm320, %v873, %v874
  %v880 = vsel %vm320, %v876, %v873
  %v881 = vmul.f32 %v879, %v299
  %v882 = vmul.f32 %v878, %v300
  %v883 = vmul.f32 %v877, %v301
  %v884 = vmul.f32 %v880, %v302
  %v885 = vld [vmem:[%s35] sm:$0xff]
  %v886 = vld [vmem:[%s35 + $0x8] sm:$0xff]
  %v887 = vld [vmem:[%s35 + $0x10] sm:$0xff]
  %v888 = vld [vmem:[%s35 + $0x18] sm:$0xff]
  %v889 = vld [vmem:[%s33] sm:$0xff]
  %v890 = vld [vmem:[%s33 + $0x8] sm:$0xff]
  %v891 = vld [vmem:[%s33 + $0x10] sm:$0xff]
  %v892 = vld [vmem:[%s33 + $0x18] sm:$0xff]
  %v894 = vsel %vm522, %v869, 0
  %v897 = vsel %vm522, %v870, 0
  %v900 = vsel %vm522, %v871, 0
  %v903 = vsel %vm522, %v872, 0
  %905 = vmatpush.msra.mxu0 0.0
  %906 = vmatpush.msra.mxu0 0.0
  %907 = vmatpush.msra.mxu0 0.0
  %908 = vmatpush.msra.mxu0 0.0
  %909 = vmatpush.msra.mxu0 0.0
  %910 = vmatpush.msra.mxu0 0.0
  %911 = vmatpush.msra.mxu0 0.0
  %912 = vmatpush.msra.mxu0 0.0
  %913 = vmatpush.msra.mxu0 0.0
  %914 = vmatpush.msra.mxu0 0.0
  %915 = vmatpush.msra.mxu0 0.0
  %916 = vmatpush.msra.mxu0 0.0
  %917 = vmatpush.msra.mxu0 %v892
  %918 = vmatpush.msra.mxu0 %v891
  %919 = vmatpush.msra.mxu0 %v890
  %920 = vmatpush.msra.mxu0 %v889
  %921 = vmatmul.f32.gmra.mxu0 %v894
  %v922 = vpop.f32.mrf.mxu0
  %v923 = vadd.f32 0.0, %v922
  %924 = vmatmul.f32.gmra.mxu0 %v897
  %v925 = vpop.f32.mrf.mxu0
  %v926 = vadd.f32 0.0, %v925
  %927 = vmatmul.f32.gmra.mxu0 %v900
  %v928 = vpop.f32.mrf.mxu0
  %v929 = vadd.f32 0.0, %v928
  %930 = vmatmul.f32.gmra.mxu0 %v903
  %v931 = vpop.f32.mrf.mxu0
  %v932 = vadd.f32 0.0, %v931
  %933 = vdwg.mxu0
  %v935 = vsel %vm522, %v857, 0
  %v938 = vsel %vm522, %v858, 0
  %v941 = vsel %vm522, %v859, 0
  %v944 = vsel %vm522, %v860, 0
  %946 = vmatpush.msra.mxu0 0.0
  %947 = vmatpush.msra.mxu0 0.0
  %948 = vmatpush.msra.mxu0 0.0
  %949 = vmatpush.msra.mxu0 0.0
  %950 = vmatpush.msra.mxu0 0.0
  %951 = vmatpush.msra.mxu0 0.0
  %952 = vmatpush.msra.mxu0 0.0
  %953 = vmatpush.msra.mxu0 0.0
  %954 = vmatpush.msra.mxu0 0.0
  %955 = vmatpush.msra.mxu0 0.0
  %956 = vmatpush.msra.mxu0 0.0
  %957 = vmatpush.msra.mxu0 0.0
  %958 = vmatpush.msra.mxu0 %v888
  %959 = vmatpush.msra.mxu0 %v887
  %960 = vmatpush.msra.mxu0 %v886
  %961 = vmatpush.msra.mxu0 %v885
  %962 = vmatmul.f32.gmra.mxu0 %v935
  %v963 = vpop.f32.mrf.mxu0
  %v964 = vadd.f32 %v923, %v963
  %965 = vmatmul.f32.gmra.mxu0 %v938
  %v966 = vpop.f32.mrf.mxu0
  %v967 = vadd.f32 %v926, %v966
  %968 = vmatmul.f32.gmra.mxu0 %v941
  %v969 = vpop.f32.mrf.mxu0
  %v970 = vadd.f32 %v929, %v969
  %971 = vmatmul.f32.gmra.mxu0 %v944
  %v972 = vpop.f32.mrf.mxu0
  %v973 = vadd.f32 %v932, %v972
  %974 = vdwg.mxu0
  %v975 = vld [vmem:[%s37] sm:$0xff]
  %v976 = vld [vmem:[%s37 + $0x8] sm:$0xff]
  %v977 = vld [vmem:[%s37 + $0x10] sm:$0xff]
  %v978 = vld [vmem:[%s37 + $0x18] sm:$0xff]
  %v980 = vsel %vm522, %v881, 0
  %v983 = vsel %vm522, %v882, 0
  %v986 = vsel %vm522, %v883, 0
  %v989 = vsel %vm522, %v884, 0
  %991 = vmatpush.msra.mxu0 0.0
  %992 = vmatpush.msra.mxu0 0.0
  %993 = vmatpush.msra.mxu0 0.0
  %994 = vmatpush.msra.mxu0 0.0
  %995 = vmatpush.msra.mxu0 0.0
  %996 = vmatpush.msra.mxu0 0.0
  %997 = vmatpush.msra.mxu0 0.0
  %998 = vmatpush.msra.mxu0 0.0
  %999 = vmatpush.msra.mxu0 0.0
  %1000 = vmatpush.msra.mxu0 0.0
  %1001 = vmatpush.msra.mxu0 0.0
  %1002 = vmatpush.msra.mxu0 0.0
  %1003 = vmatpush.msra.mxu0 %v978
  %1004 = vmatpush.msra.mxu0 %v977
  %1005 = vmatpush.msra.mxu0 %v976
  %1006 = vmatpush.msra.mxu0 %v975
  %1007 = vmatmul.f32.gmra.mxu0 %v980
  %v1008 = vpop.f32.mrf.mxu0
  %v1009 = vadd.f32 0.0, %v1008
  %1010 = vmatmul.f32.gmra.mxu0 %v983
  %v1011 = vpop.f32.mrf.mxu0
  %v1012 = vadd.f32 0.0, %v1011
  %1013 = vmatmul.f32.gmra.mxu0 %v986
  %v1014 = vpop.f32.mrf.mxu0
  %v1015 = vadd.f32 0.0, %v1014
  %1016 = vmatmul.f32.gmra.mxu0 %v989
  %v1017 = vpop.f32.mrf.mxu0
  %v1018 = vadd.f32 0.0, %v1017
  %1019 = vdwg.mxu0
  %v1020 = vadd.f32 %v964, %v1009
  %v1021 = vadd.f32 %v967, %v1012
  %v1022 = vadd.f32 %v970, %v1015
  %v1023 = vadd.f32 %v973, %v1018
  %v1024 = vld [vmem:[%s39] sm:$0x1]
  %v1026 = vperm.slane %v1024, 0
  %v1028 = vmul.f32 %v1020, %v1026
  %v1029 = vmul.f32 %v1021, %v1026
  %v1030 = vmul.f32 %v1022, %v1026
  %v1031 = vmul.f32 %v1023, %v1026
  %v1032 = vld [vmem:[%s41] sm:$0x1]
  %v1034 = vperm.slane %v1032, 0
  %v1036 = vadd.f32 %v1028, %v1034
  %v1037 = vadd.f32 %v1029, %v1034
  %v1038 = vadd.f32 %v1030, %v1034
  %v1039 = vadd.f32 %v1031, %v1034
  %v1040 = vmax.f32 %v1036, 0.0
  %v1041 = vmax.f32 %v1037, 0.0
  %v1042 = vmax.f32 %v1038, 0.0
  %v1043 = vmax.f32 %v1039, 0.0
  %v1044 = vrot.slane %v1040, 7
  %v1045 = vrot.slane %v1041, 7
  %v1046 = vrot.slane %v1042, 7
  %v1047 = vrot.slane %v1043, 7
  %v1048 = vsel %vm307, %v1046, %v1047
  %v1049 = vsel %vm307, %v1045, %v1046
  %v1050 = vsel %vm307, %v1044, %v1045
  %v1051 = vsel %vm307, %v1047, %v1044
  %v1052 = vmul.f32 %v1051, %v287
  %v1053 = vmul.f32 %v1050, %v288
  %v1054 = vmul.f32 %v1049, %v289
  %v1055 = vmul.f32 %v1048, %v290
  %v1056 = vrot.slane %v1040, 1
  %v1057 = vrot.slane %v1041, 1
  %v1058 = vrot.slane %v1042, 1
  %v1059 = vrot.slane %v1043, 1
  %v1060 = vsel %vm320, %v1058, %v1059
  %v1061 = vsel %vm320, %v1057, %v1058
  %v1062 = vsel %vm320, %v1056, %v1057
  %v1063 = vsel %vm320, %v1059, %v1056
  %v1064 = vmul.f32 %v1062, %v299
  %v1065 = vmul.f32 %v1061, %v300
  %v1066 = vmul.f32 %v1060, %v301
  %v1067 = vmul.f32 %v1063, %v302
  %v1068 = vld [vmem:[%s45] sm:$0xff]
  %v1069 = vld [vmem:[%s45 + $0x8] sm:$0xff]
  %v1070 = vld [vmem:[%s45 + $0x10] sm:$0xff]
  %v1071 = vld [vmem:[%s45 + $0x18] sm:$0xff]
  %v1072 = vld [vmem:[%s45 + $0x20] sm:$0xff]
  %v1073 = vld [vmem:[%s45 + $0x28] sm:$0xff]
  %v1074 = vld [vmem:[%s45 + $0x30] sm:$0xff]
  %v1075 = vld [vmem:[%s45 + $0x38] sm:$0xff]
  %v1076 = vld [vmem:[%s43] sm:$0xff]
  %v1077 = vld [vmem:[%s43 + $0x8] sm:$0xff]
  %v1078 = vld [vmem:[%s43 + $0x10] sm:$0xff]
  %v1079 = vld [vmem:[%s43 + $0x18] sm:$0xff]
  %v1080 = vld [vmem:[%s43 + $0x20] sm:$0xff]
  %v1081 = vld [vmem:[%s43 + $0x28] sm:$0xff]
  %v1082 = vld [vmem:[%s43 + $0x30] sm:$0xff]
  %v1083 = vld [vmem:[%s43 + $0x38] sm:$0xff]
  %vm1084 = vcmask 523264
  %v1086 = vsel %vm1084, %v1052, 0
  %v1089 = vsel %vm1084, %v1053, 0
  %v1092 = vsel %vm1084, %v1054, 0
  %v1095 = vsel %vm1084, %v1055, 0
  %1097 = vmatpush.msra.mxu0 0.0
  %1098 = vmatpush.msra.mxu0 0.0
  %1099 = vmatpush.msra.mxu0 0.0
  %1100 = vmatpush.msra.mxu0 0.0
  %1101 = vmatpush.msra.mxu0 0.0
  %1102 = vmatpush.msra.mxu0 0.0
  %1103 = vmatpush.msra.mxu0 0.0
  %1104 = vmatpush.msra.mxu0 0.0
  %1105 = vmatpush.msra.mxu0 %v1083
  %1106 = vmatpush.msra.mxu0 %v1082
  %1107 = vmatpush.msra.mxu0 %v1081
  %1108 = vmatpush.msra.mxu0 %v1080
  %1109 = vmatpush.msra.mxu0 %v1079
  %1110 = vmatpush.msra.mxu0 %v1078
  %1111 = vmatpush.msra.mxu0 %v1077
  %1112 = vmatpush.msra.mxu0 %v1076
  %1113 = vmatmul.f32.gmra.mxu0 %v1086
  %v1114 = vpop.f32.mrf.mxu0
  %v1115 = vadd.f32 0.0, %v1114
  %1116 = vmatmul.f32.gmra.mxu0 %v1089
  %v1117 = vpop.f32.mrf.mxu0
  %v1118 = vadd.f32 0.0, %v1117
  %1119 = vmatmul.f32.gmra.mxu0 %v1092
  %v1120 = vpop.f32.mrf.mxu0
  %v1121 = vadd.f32 0.0, %v1120
  %1122 = vmatmul.f32.gmra.mxu0 %v1095
  %v1123 = vpop.f32.mrf.mxu0
  %v1124 = vadd.f32 0.0, %v1123
  %1125 = vdwg.mxu0
  %v1127 = vsel %vm1084, %v1040, 0
  %v1130 = vsel %vm1084, %v1041, 0
  %v1133 = vsel %vm1084, %v1042, 0
  %v1136 = vsel %vm1084, %v1043, 0
  %1138 = vmatpush.msra.mxu0 0.0
  %1139 = vmatpush.msra.mxu0 0.0
  %1140 = vmatpush.msra.mxu0 0.0
  %1141 = vmatpush.msra.mxu0 0.0
  %1142 = vmatpush.msra.mxu0 0.0
  %1143 = vmatpush.msra.mxu0 0.0
  %1144 = vmatpush.msra.mxu0 0.0
  %1145 = vmatpush.msra.mxu0 0.0
  %1146 = vmatpush.msra.mxu0 %v1075
  %1147 = vmatpush.msra.mxu0 %v1074
  %1148 = vmatpush.msra.mxu0 %v1073
  %1149 = vmatpush.msra.mxu0 %v1072
  %1150 = vmatpush.msra.mxu0 %v1071
  %1151 = vmatpush.msra.mxu0 %v1070
  %1152 = vmatpush.msra.mxu0 %v1069
  %1153 = vmatpush.msra.mxu0 %v1068
  %1154 = vmatmul.f32.gmra.mxu0 %v1127
  %v1155 = vpop.f32.mrf.mxu0
  %v1156 = vadd.f32 %v1115, %v1155
  %1157 = vmatmul.f32.gmra.mxu0 %v1130
  %v1158 = vpop.f32.mrf.mxu0
  %v1159 = vadd.f32 %v1118, %v1158
  %1160 = vmatmul.f32.gmra.mxu0 %v1133
  %v1161 = vpop.f32.mrf.mxu0
  %v1162 = vadd.f32 %v1121, %v1161
  %1163 = vmatmul.f32.gmra.mxu0 %v1136
  %v1164 = vpop.f32.mrf.mxu0
  %v1165 = vadd.f32 %v1124, %v1164
  %1166 = vdwg.mxu0
  %v1167 = vld [vmem:[%s47] sm:$0xff]
  %v1168 = vld [vmem:[%s47 + $0x8] sm:$0xff]
  %v1169 = vld [vmem:[%s47 + $0x10] sm:$0xff]
  %v1170 = vld [vmem:[%s47 + $0x18] sm:$0xff]
  %v1171 = vld [vmem:[%s47 + $0x20] sm:$0xff]
  %v1172 = vld [vmem:[%s47 + $0x28] sm:$0xff]
  %v1173 = vld [vmem:[%s47 + $0x30] sm:$0xff]
  %v1174 = vld [vmem:[%s47 + $0x38] sm:$0xff]
  %v1176 = vsel %vm1084, %v1064, 0
  %v1179 = vsel %vm1084, %v1065, 0
  %v1182 = vsel %vm1084, %v1066, 0
  %v1185 = vsel %vm1084, %v1067, 0
  %1187 = vmatpush.msra.mxu0 0.0
  %1188 = vmatpush.msra.mxu0 0.0
  %1189 = vmatpush.msra.mxu0 0.0
  %1190 = vmatpush.msra.mxu0 0.0
  %1191 = vmatpush.msra.mxu0 0.0
  %1192 = vmatpush.msra.mxu0 0.0
  %1193 = vmatpush.msra.mxu0 0.0
  %1194 = vmatpush.msra.mxu0 0.0
  %1195 = vmatpush.msra.mxu0 %v1174
  %1196 = vmatpush.msra.mxu0 %v1173
  %1197 = vmatpush.msra.mxu0 %v1172
  %1198 = vmatpush.msra.mxu0 %v1171
  %1199 = vmatpush.msra.mxu0 %v1170
  %1200 = vmatpush.msra.mxu0 %v1169
  %1201 = vmatpush.msra.mxu0 %v1168
  %1202 = vmatpush.msra.mxu0 %v1167
  %1203 = vmatmul.f32.gmra.mxu0 %v1176
  %v1204 = vpop.f32.mrf.mxu0
  %v1205 = vadd.f32 0.0, %v1204
  %1206 = vmatmul.f32.gmra.mxu0 %v1179
  %v1207 = vpop.f32.mrf.mxu0
  %v1208 = vadd.f32 0.0, %v1207
  %1209 = vmatmul.f32.gmra.mxu0 %v1182
  %v1210 = vpop.f32.mrf.mxu0
  %v1211 = vadd.f32 0.0, %v1210
  %1212 = vmatmul.f32.gmra.mxu0 %v1185
  %v1213 = vpop.f32.mrf.mxu0
  %v1214 = vadd.f32 0.0, %v1213
  %1215 = vdwg.mxu0
  %v1216 = vadd.f32 %v1156, %v1205
  %v1217 = vadd.f32 %v1159, %v1208
  %v1218 = vadd.f32 %v1162, %v1211
  %v1219 = vadd.f32 %v1165, %v1214
  %v1220 = vld [vmem:[%s49] sm:$0x1]
  %v1222 = vperm.slane %v1220, 0
  %v1224 = vmul.f32 %v1216, %v1222
  %v1225 = vmul.f32 %v1217, %v1222
  %v1226 = vmul.f32 %v1218, %v1222
  %v1227 = vmul.f32 %v1219, %v1222
  %v1228 = vld [vmem:[%s51] sm:$0x1]
  %v1230 = vperm.slane %v1228, 0
  %v1232 = vadd.f32 %v1224, %v1230
  %v1233 = vadd.f32 %v1225, %v1230
  %v1234 = vadd.f32 %v1226, %v1230
  %v1235 = vadd.f32 %v1227, %v1230
  %v1236 = vld [vmem:[%s53] sm:$0xff]
  %v1237 = vld [vmem:[%s53 + $0x8] sm:$0xff]
  %v1238 = vld [vmem:[%s53 + $0x10] sm:$0xff]
  %v1239 = vld [vmem:[%s53 + $0x18] sm:$0xff]
  %v1240 = vld [vmem:[%s55] sm:$0x1]
  %v1242 = vperm.slane %v1240, 0
  %1244 = vmatpush.msra.mxu0 0.0
  %1245 = vmatpush.msra.mxu0 0.0
  %1246 = vmatpush.msra.mxu0 0.0
  %1247 = vmatpush.msra.mxu0 0.0
  %1248 = vmatpush.msra.mxu0 0.0
  %1249 = vmatpush.msra.mxu0 0.0
  %1250 = vmatpush.msra.mxu0 0.0
  %1251 = vmatpush.msra.mxu0 0.0
  %1252 = vmatpush.msra.mxu0 0.0
  %1253 = vmatpush.msra.mxu0 0.0
  %1254 = vmatpush.msra.mxu0 0.0
  %1255 = vmatpush.msra.mxu0 0.0
  %1256 = vmatpush.msra.mxu0 %v1239
  %1257 = vmatpush.msra.mxu0 %v1238
  %1258 = vmatpush.msra.mxu0 %v1237
  %1259 = vmatpush.msra.mxu0 %v1236
  %1260 = vmatmul.f32.gmra.mxu0 %v935
  %v1261 = vpop.f32.mrf.mxu0
  %v1262 = vadd.f32 %v1242, %v1261
  %1263 = vmatmul.f32.gmra.mxu0 %v938
  %v1264 = vpop.f32.mrf.mxu0
  %v1265 = vadd.f32 %v1242, %v1264
  %1266 = vmatmul.f32.gmra.mxu0 %v941
  %v1267 = vpop.f32.mrf.mxu0
  %v1268 = vadd.f32 %v1242, %v1267
  %1269 = vmatmul.f32.gmra.mxu0 %v944
  %v1270 = vpop.f32.mrf.mxu0
  %v1271 = vadd.f32 %v1242, %v1270
  %1272 = vdwg.mxu0
  %v1273 = vadd.f32 %v1232, %v1262
  %v1274 = vadd.f32 %v1233, %v1265
  %v1275 = vadd.f32 %v1234, %v1268
  %v1276 = vadd.f32 %v1235, %v1271
  %v1277 = vmax.f32 %v1273, 0.0
  %v1278 = vmax.f32 %v1274, 0.0
  %v1279 = vmax.f32 %v1275, 0.0
  %v1280 = vmax.f32 %v1276, 0.0
  %v1281 = vrot.slane %v1277, 7
  %v1282 = vrot.slane %v1278, 7
  %v1283 = vrot.slane %v1279, 7
  %v1284 = vrot.slane %v1280, 7
  %v1285 = vsel %vm307, %v1283, %v1284
  %v1286 = vsel %vm307, %v1282, %v1283
  %v1287 = vsel %vm307, %v1281, %v1282
  %v1288 = vsel %vm307, %v1284, %v1281
  %v1289 = vmul.f32 %v1288, %v287
  %v1290 = vmul.f32 %v1287, %v288
  %v1291 = vmul.f32 %v1286, %v289
  %v1292 = vmul.f32 %v1285, %v290
  %v1293 = vrot.slane %v1277, 1
  %v1294 = vrot.slane %v1278, 1
  %v1295 = vrot.slane %v1279, 1
  %v1296 = vrot.slane %v1280, 1
  %v1297 = vsel %vm320, %v1295, %v1296
  %v1298 = vsel %vm320, %v1294, %v1295
  %v1299 = vsel %vm320, %v1293, %v1294
  %v1300 = vsel %vm320, %v1296, %v1293
  %v1301 = vmul.f32 %v1299, %v299
  %v1302 = vmul.f32 %v1298, %v300
  %v1303 = vmul.f32 %v1297, %v301
  %v1304 = vmul.f32 %v1300, %v302
  %v1305 = vld [vmem:[%s59] sm:$0xff]
  %v1306 = vld [vmem:[%s59 + $0x8] sm:$0xff]
  %v1307 = vld [vmem:[%s59 + $0x10] sm:$0xff]
  %v1308 = vld [vmem:[%s59 + $0x18] sm:$0xff]
  %v1309 = vld [vmem:[%s59 + $0x20] sm:$0xff]
  %v1310 = vld [vmem:[%s59 + $0x28] sm:$0xff]
  %v1311 = vld [vmem:[%s59 + $0x30] sm:$0xff]
  %v1312 = vld [vmem:[%s59 + $0x38] sm:$0xff]
  %v1313 = vld [vmem:[%s57] sm:$0xff]
  %v1314 = vld [vmem:[%s57 + $0x8] sm:$0xff]
  %v1315 = vld [vmem:[%s57 + $0x10] sm:$0xff]
  %v1316 = vld [vmem:[%s57 + $0x18] sm:$0xff]
  %v1317 = vld [vmem:[%s57 + $0x20] sm:$0xff]
  %v1318 = vld [vmem:[%s57 + $0x28] sm:$0xff]
  %v1319 = vld [vmem:[%s57 + $0x30] sm:$0xff]
  %v1320 = vld [vmem:[%s57 + $0x38] sm:$0xff]
  %v1322 = vsel %vm1084, %v1289, 0
  %v1325 = vsel %vm1084, %v1290, 0
  %v1328 = vsel %vm1084, %v1291, 0
  %v1331 = vsel %vm1084, %v1292, 0
  %1333 = vmatpush.msra.mxu0 0.0
  %1334 = vmatpush.msra.mxu0 0.0
  %1335 = vmatpush.msra.mxu0 0.0
  %1336 = vmatpush.msra.mxu0 0.0
  %1337 = vmatpush.msra.mxu0 0.0
  %1338 = vmatpush.msra.mxu0 0.0
  %1339 = vmatpush.msra.mxu0 0.0
  %1340 = vmatpush.msra.mxu0 0.0
  %1341 = vmatpush.msra.mxu0 %v1320
  %1342 = vmatpush.msra.mxu0 %v1319
  %1343 = vmatpush.msra.mxu0 %v1318
  %1344 = vmatpush.msra.mxu0 %v1317
  %1345 = vmatpush.msra.mxu0 %v1316
  %1346 = vmatpush.msra.mxu0 %v1315
  %1347 = vmatpush.msra.mxu0 %v1314
  %1348 = vmatpush.msra.mxu0 %v1313
  %1349 = vmatmul.f32.gmra.mxu0 %v1322
  %v1350 = vpop.f32.mrf.mxu0
  %v1351 = vadd.f32 0.0, %v1350
  %1352 = vmatmul.f32.gmra.mxu0 %v1325
  %v1353 = vpop.f32.mrf.mxu0
  %v1354 = vadd.f32 0.0, %v1353
  %1355 = vmatmul.f32.gmra.mxu0 %v1328
  %v1356 = vpop.f32.mrf.mxu0
  %v1357 = vadd.f32 0.0, %v1356
  %1358 = vmatmul.f32.gmra.mxu0 %v1331
  %v1359 = vpop.f32.mrf.mxu0
  %v1360 = vadd.f32 0.0, %v1359
  %1361 = vdwg.mxu0
  %v1363 = vsel %vm1084, %v1277, 0
  %v1366 = vsel %vm1084, %v1278, 0
  %v1369 = vsel %vm1084, %v1279, 0
  %v1372 = vsel %vm1084, %v1280, 0
  %1374 = vmatpush.msra.mxu0 0.0
  %1375 = vmatpush.msra.mxu0 0.0
  %1376 = vmatpush.msra.mxu0 0.0
  %1377 = vmatpush.msra.mxu0 0.0
  %1378 = vmatpush.msra.mxu0 0.0
  %1379 = vmatpush.msra.mxu0 0.0
  %1380 = vmatpush.msra.mxu0 0.0
  %1381 = vmatpush.msra.mxu0 0.0
  %1382 = vmatpush.msra.mxu0 %v1312
  %1383 = vmatpush.msra.mxu0 %v1311
  %1384 = vmatpush.msra.mxu0 %v1310
  %1385 = vmatpush.msra.mxu0 %v1309
  %1386 = vmatpush.msra.mxu0 %v1308
  %1387 = vmatpush.msra.mxu0 %v1307
  %1388 = vmatpush.msra.mxu0 %v1306
  %1389 = vmatpush.msra.mxu0 %v1305
  %1390 = vmatmul.f32.gmra.mxu0 %v1363
  %v1391 = vpop.f32.mrf.mxu0
  %v1392 = vadd.f32 %v1351, %v1391
  %1393 = vmatmul.f32.gmra.mxu0 %v1366
  %v1394 = vpop.f32.mrf.mxu0
  %v1395 = vadd.f32 %v1354, %v1394
  %1396 = vmatmul.f32.gmra.mxu0 %v1369
  %v1397 = vpop.f32.mrf.mxu0
  %v1398 = vadd.f32 %v1357, %v1397
  %1399 = vmatmul.f32.gmra.mxu0 %v1372
  %v1400 = vpop.f32.mrf.mxu0
  %v1401 = vadd.f32 %v1360, %v1400
  %1402 = vdwg.mxu0
  %v1403 = vld [vmem:[%s61] sm:$0xff]
  %v1404 = vld [vmem:[%s61 + $0x8] sm:$0xff]
  %v1405 = vld [vmem:[%s61 + $0x10] sm:$0xff]
  %v1406 = vld [vmem:[%s61 + $0x18] sm:$0xff]
  %v1407 = vld [vmem:[%s61 + $0x20] sm:$0xff]
  %v1408 = vld [vmem:[%s61 + $0x28] sm:$0xff]
  %v1409 = vld [vmem:[%s61 + $0x30] sm:$0xff]
  %v1410 = vld [vmem:[%s61 + $0x38] sm:$0xff]
  %v1412 = vsel %vm1084, %v1301, 0
  %v1415 = vsel %vm1084, %v1302, 0
  %v1418 = vsel %vm1084, %v1303, 0
  %v1421 = vsel %vm1084, %v1304, 0
  %1423 = vmatpush.msra.mxu0 0.0
  %1424 = vmatpush.msra.mxu0 0.0
  %1425 = vmatpush.msra.mxu0 0.0
  %1426 = vmatpush.msra.mxu0 0.0
  %1427 = vmatpush.msra.mxu0 0.0
  %1428 = vmatpush.msra.mxu0 0.0
  %1429 = vmatpush.msra.mxu0 0.0
  %1430 = vmatpush.msra.mxu0 0.0
  %1431 = vmatpush.msra.mxu0 %v1410
  %1432 = vmatpush.msra.mxu0 %v1409
  %1433 = vmatpush.msra.mxu0 %v1408
  %1434 = vmatpush.msra.mxu0 %v1407
  %1435 = vmatpush.msra.mxu0 %v1406
  %1436 = vmatpush.msra.mxu0 %v1405
  %1437 = vmatpush.msra.mxu0 %v1404
  %1438 = vmatpush.msra.mxu0 %v1403
  %1439 = vmatmul.f32.gmra.mxu0 %v1412
  %v1440 = vpop.f32.mrf.mxu0
  %v1441 = vadd.f32 0.0, %v1440
  %1442 = vmatmul.f32.gmra.mxu0 %v1415
  %v1443 = vpop.f32.mrf.mxu0
  %v1444 = vadd.f32 0.0, %v1443
  %1445 = vmatmul.f32.gmra.mxu0 %v1418
  %v1446 = vpop.f32.mrf.mxu0
  %v1447 = vadd.f32 0.0, %v1446
  %1448 = vmatmul.f32.gmra.mxu0 %v1421
  %v1449 = vpop.f32.mrf.mxu0
  %v1450 = vadd.f32 0.0, %v1449
  %1451 = vdwg.mxu0
  %v1452 = vadd.f32 %v1392, %v1441
  %v1453 = vadd.f32 %v1395, %v1444
  %v1454 = vadd.f32 %v1398, %v1447
  %v1455 = vadd.f32 %v1401, %v1450
  %v1456 = vld [vmem:[%s63] sm:$0x1]
  %v1458 = vperm.slane %v1456, 0
  %v1460 = vmul.f32 %v1452, %v1458
  %v1461 = vmul.f32 %v1453, %v1458
  %v1462 = vmul.f32 %v1454, %v1458
  %v1463 = vmul.f32 %v1455, %v1458
  %v1464 = vld [vmem:[%s65] sm:$0x1]
  %v1466 = vperm.slane %v1464, 0
  %v1468 = vadd.f32 %v1460, %v1466
  %v1469 = vadd.f32 %v1461, %v1466
  %v1470 = vadd.f32 %v1462, %v1466
  %v1471 = vadd.f32 %v1463, %v1466
  %v1472 = vmax.f32 %v1468, 0.0
  %v1473 = vmax.f32 %v1469, 0.0
  %v1474 = vmax.f32 %v1470, 0.0
  %v1475 = vmax.f32 %v1471, 0.0
  %v1476 = vrot.slane %v1472, 7
  %v1477 = vrot.slane %v1473, 7
  %v1478 = vrot.slane %v1474, 7
  %v1479 = vrot.slane %v1475, 7
  %v1480 = vsel %vm307, %v1478, %v1479
  %v1481 = vsel %vm307, %v1477, %v1478
  %v1482 = vsel %vm307, %v1476, %v1477
  %v1483 = vsel %vm307, %v1479, %v1476
  %v1484 = vmul.f32 %v1483, %v287
  %v1485 = vmul.f32 %v1482, %v288
  %v1486 = vmul.f32 %v1481, %v289
  %v1487 = vmul.f32 %v1480, %v290
  %v1488 = vrot.slane %v1472, 1
  %v1489 = vrot.slane %v1473, 1
  %v1490 = vrot.slane %v1474, 1
  %v1491 = vrot.slane %v1475, 1
  %v1492 = vsel %vm320, %v1490, %v1491
  %v1493 = vsel %vm320, %v1489, %v1490
  %v1494 = vsel %vm320, %v1488, %v1489
  %v1495 = vsel %vm320, %v1491, %v1488
  %v1496 = vmul.f32 %v1494, %v299
  %v1497 = vmul.f32 %v1493, %v300
  %v1498 = vmul.f32 %v1492, %v301
  %v1499 = vmul.f32 %v1495, %v302
  %v1500 = vld [vmem:[%s69] sm:$0xff]
  %v1501 = vld [vmem:[%s69 + $0x8] sm:$0xff]
  %v1502 = vld [vmem:[%s69 + $0x10] sm:$0xff]
  %v1503 = vld [vmem:[%s69 + $0x18] sm:$0xff]
  %v1504 = vld [vmem:[%s69 + $0x20] sm:$0xff]
  %v1505 = vld [vmem:[%s69 + $0x28] sm:$0xff]
  %v1506 = vld [vmem:[%s69 + $0x30] sm:$0xff]
  %v1507 = vld [vmem:[%s69 + $0x38] sm:$0xff]
  %v1508 = vld [vmem:[%s69 + $0x40] sm:$0xff]
  %v1509 = vld [vmem:[%s69 + $0x48] sm:$0xff]
  %v1510 = vld [vmem:[%s69 + $0x50] sm:$0xff]
  %v1511 = vld [vmem:[%s69 + $0x58] sm:$0xff]
  %v1512 = vld [vmem:[%s69 + $0x60] sm:$0xff]
  %v1513 = vld [vmem:[%s69 + $0x68] sm:$0xff]
  %v1514 = vld [vmem:[%s69 + $0x70] sm:$0xff]
  %v1515 = vld [vmem:[%s69 + $0x78] sm:$0xff]
  %v1516 = vld [vmem:[%s67] sm:$0xff]
  %v1517 = vld [vmem:[%s67 + $0x8] sm:$0xff]
  %v1518 = vld [vmem:[%s67 + $0x10] sm:$0xff]
  %v1519 = vld [vmem:[%s67 + $0x18] sm:$0xff]
  %v1520 = vld [vmem:[%s67 + $0x20] sm:$0xff]
  %v1521 = vld [vmem:[%s67 + $0x28] sm:$0xff]
  %v1522 = vld [vmem:[%s67 + $0x30] sm:$0xff]
  %v1523 = vld [vmem:[%s67 + $0x38] sm:$0xff]
  %v1524 = vld [vmem:[%s67 + $0x40] sm:$0xff]
  %v1525 = vld [vmem:[%s67 + $0x48] sm:$0xff]
  %v1526 = vld [vmem:[%s67 + $0x50] sm:$0xff]
  %v1527 = vld [vmem:[%s67 + $0x58] sm:$0xff]
  %v1528 = vld [vmem:[%s67 + $0x60] sm:$0xff]
  %v1529 = vld [vmem:[%s67 + $0x68] sm:$0xff]
  %v1530 = vld [vmem:[%s67 + $0x70] sm:$0xff]
  %v1531 = vld [vmem:[%s67 + $0x78] sm:$0xff]
  %1532 = vmatpush.msra.mxu0 %v1531
  %1533 = vmatpush.msra.mxu0 %v1530
  %1534 = vmatpush.msra.mxu0 %v1529
  %1535 = vmatpush.msra.mxu0 %v1528
  %1536 = vmatpush.msra.mxu0 %v1527
  %1537 = vmatpush.msra.mxu0 %v1526
  %1538 = vmatpush.msra.mxu0 %v1525
  %1539 = vmatpush.msra.mxu0 %v1524
  %1540 = vmatpush.msra.mxu0 %v1523
  %1541 = vmatpush.msra.mxu0 %v1522
  %1542 = vmatpush.msra.mxu0 %v1521
  %1543 = vmatpush.msra.mxu0 %v1520
  %1544 = vmatpush.msra.mxu0 %v1519
  %1545 = vmatpush.msra.mxu0 %v1518
  %1546 = vmatpush.msra.mxu0 %v1517
  %1547 = vmatpush.msra.mxu0 %v1516
  %1548 = vmatmul.f32.gmra.mxu0 %v1484
  %v1549 = vpop.f32.mrf.mxu0
  %v1550 = vadd.f32 0.0, %v1549
  %1551 = vmatmul.f32.gmra.mxu0 %v1485
  %v1552 = vpop.f32.mrf.mxu0
  %v1553 = vadd.f32 0.0, %v1552
  %1554 = vmatmul.f32.gmra.mxu0 %v1486
  %v1555 = vpop.f32.mrf.mxu0
  %v1556 = vadd.f32 0.0, %v1555
  %1557 = vmatmul.f32.gmra.mxu0 %v1487
  %v1558 = vpop.f32.mrf.mxu0
  %v1559 = vadd.f32 0.0, %v1558
  %1560 = vdwg.mxu0
  %1561 = vmatpush.msra.mxu0 %v1515
  %1562 = vmatpush.msra.mxu0 %v1514
  %1563 = vmatpush.msra.mxu0 %v1513
  %1564 = vmatpush.msra.mxu0 %v1512
  %1565 = vmatpush.msra.mxu0 %v1511
  %1566 = vmatpush.msra.mxu0 %v1510
  %1567 = vmatpush.msra.mxu0 %v1509
  %1568 = vmatpush.msra.mxu0 %v1508
  %1569 = vmatpush.msra.mxu0 %v1507
  %1570 = vmatpush.msra.mxu0 %v1506
  %1571 = vmatpush.msra.mxu0 %v1505
  %1572 = vmatpush.msra.mxu0 %v1504
  %1573 = vmatpush.msra.mxu0 %v1503
  %1574 = vmatpush.msra.mxu0 %v1502
  %1575 = vmatpush.msra.mxu0 %v1501
  %1576 = vmatpush.msra.mxu0 %v1500
  %1577 = vmatmul.f32.gmra.mxu0 %v1472
  %v1578 = vpop.f32.mrf.mxu0
  %v1579 = vadd.f32 %v1550, %v1578
  %1580 = vmatmul.f32.gmra.mxu0 %v1473
  %v1581 = vpop.f32.mrf.mxu0
  %v1582 = vadd.f32 %v1553, %v1581
  %1583 = vmatmul.f32.gmra.mxu0 %v1474
  %v1584 = vpop.f32.mrf.mxu0
  %v1585 = vadd.f32 %v1556, %v1584
  %1586 = vmatmul.f32.gmra.mxu0 %v1475
  %v1587 = vpop.f32.mrf.mxu0
  %v1588 = vadd.f32 %v1559, %v1587
  %1589 = vdwg.mxu0
  %v1590 = vld [vmem:[%s71] sm:$0xff]
  %v1591 = vld [vmem:[%s71 + $0x8] sm:$0xff]
  %v1592 = vld [vmem:[%s71 + $0x10] sm:$0xff]
  %v1593 = vld [vmem:[%s71 + $0x18] sm:$0xff]
  %v1594 = vld [vmem:[%s71 + $0x20] sm:$0xff]
  %v1595 = vld [vmem:[%s71 + $0x28] sm:$0xff]
  %v1596 = vld [vmem:[%s71 + $0x30] sm:$0xff]
  %v1597 = vld [vmem:[%s71 + $0x38] sm:$0xff]
  %v1598 = vld [vmem:[%s71 + $0x40] sm:$0xff]
  %v1599 = vld [vmem:[%s71 + $0x48] sm:$0xff]
  %v1600 = vld [vmem:[%s71 + $0x50] sm:$0xff]
  %v1601 = vld [vmem:[%s71 + $0x58] sm:$0xff]
  %v1602 = vld [vmem:[%s71 + $0x60] sm:$0xff]
  %v1603 = vld [vmem:[%s71 + $0x68] sm:$0xff]
  %v1604 = vld [vmem:[%s71 + $0x70] sm:$0xff]
  %v1605 = vld [vmem:[%s71 + $0x78] sm:$0xff]
  %1606 = vmatpush.msra.mxu0 %v1605
  %1607 = vmatpush.msra.mxu0 %v1604
  %1608 = vmatpush.msra.mxu0 %v1603
  %1609 = vmatpush.msra.mxu0 %v1602
  %1610 = vmatpush.msra.mxu0 %v1601
  %1611 = vmatpush.msra.mxu0 %v1600
  %1612 = vmatpush.msra.mxu0 %v1599
  %1613 = vmatpush.msra.mxu0 %v1598
  %1614 = vmatpush.msra.mxu0 %v1597
  %1615 = vmatpush.msra.mxu0 %v1596
  %1616 = vmatpush.msra.mxu0 %v1595
  %1617 = vmatpush.msra.mxu0 %v1594
  %1618 = vmatpush.msra.mxu0 %v1593
  %1619 = vmatpush.msra.mxu0 %v1592
  %1620 = vmatpush.msra.mxu0 %v1591
  %1621 = vmatpush.msra.mxu0 %v1590
  %1622 = vmatmul.f32.gmra.mxu0 %v1496
  %v1623 = vpop.f32.mrf.mxu0
  %v1624 = vadd.f32 0.0, %v1623
  %1625 = vmatmul.f32.gmra.mxu0 %v1497
  %v1626 = vpop.f32.mrf.mxu0
  %v1627 = vadd.f32 0.0, %v1626
  %1628 = vmatmul.f32.gmra.mxu0 %v1498
  %v1629 = vpop.f32.mrf.mxu0
  %v1630 = vadd.f32 0.0, %v1629
  %1631 = vmatmul.f32.gmra.mxu0 %v1499
  %v1632 = vpop.f32.mrf.mxu0
  %v1633 = vadd.f32 0.0, %v1632
  %1634 = vdwg.mxu0
  %v1635 = vadd.f32 %v1579, %v1624
  %v1636 = vadd.f32 %v1582, %v1627
  %v1637 = vadd.f32 %v1585, %v1630
  %v1638 = vadd.f32 %v1588, %v1633
  %v1639 = vld [vmem:[%s73] sm:$0x1]
  %v1641 = vperm.slane %v1639, 0
  %v1643 = vmul.f32 %v1635, %v1641
  %v1644 = vmul.f32 %v1636, %v1641
  %v1645 = vmul.f32 %v1637, %v1641
  %v1646 = vmul.f32 %v1638, %v1641
  %v1647 = vld [vmem:[%s75] sm:$0x1]
  %v1649 = vperm.slane %v1647, 0
  %v1651 = vadd.f32 %v1643, %v1649
  %v1652 = vadd.f32 %v1644, %v1649
  %v1653 = vadd.f32 %v1645, %v1649
  %v1654 = vadd.f32 %v1646, %v1649
  %v1655 = vld [vmem:[%s77] sm:$0xff]
  %v1656 = vld [vmem:[%s77 + $0x8] sm:$0xff]
  %v1657 = vld [vmem:[%s77 + $0x10] sm:$0xff]
  %v1658 = vld [vmem:[%s77 + $0x18] sm:$0xff]
  %v1659 = vld [vmem:[%s77 + $0x20] sm:$0xff]
  %v1660 = vld [vmem:[%s77 + $0x28] sm:$0xff]
  %v1661 = vld [vmem:[%s77 + $0x30] sm:$0xff]
  %v1662 = vld [vmem:[%s77 + $0x38] sm:$0xff]
  %v1663 = vld [vmem:[%s79] sm:$0x1]
  %v1665 = vperm.slane %v1663, 0
  %1667 = vmatpush.msra.mxu0 0.0
  %1668 = vmatpush.msra.mxu0 0.0
  %1669 = vmatpush.msra.mxu0 0.0
  %1670 = vmatpush.msra.mxu0 0.0
  %1671 = vmatpush.msra.mxu0 0.0
  %1672 = vmatpush.msra.mxu0 0.0
  %1673 = vmatpush.msra.mxu0 0.0
  %1674 = vmatpush.msra.mxu0 0.0
  %1675 = vmatpush.msra.mxu0 %v1662
  %1676 = vmatpush.msra.mxu0 %v1661
  %1677 = vmatpush.msra.mxu0 %v1660
  %1678 = vmatpush.msra.mxu0 %v1659
  %1679 = vmatpush.msra.mxu0 %v1658
  %1680 = vmatpush.msra.mxu0 %v1657
  %1681 = vmatpush.msra.mxu0 %v1656
  %1682 = vmatpush.msra.mxu0 %v1655
  %1683 = vmatmul.f32.gmra.mxu0 %v1363
  %v1684 = vpop.f32.mrf.mxu0
  %v1685 = vadd.f32 %v1665, %v1684
  %1686 = vmatmul.f32.gmra.mxu0 %v1366
  %v1687 = vpop.f32.mrf.mxu0
  %v1688 = vadd.f32 %v1665, %v1687
  %1689 = vmatmul.f32.gmra.mxu0 %v1369
  %v1690 = vpop.f32.mrf.mxu0
  %v1691 = vadd.f32 %v1665, %v1690
  %1692 = vmatmul.f32.gmra.mxu0 %v1372
  %v1693 = vpop.f32.mrf.mxu0
  %v1694 = vadd.f32 %v1665, %v1693
  %1695 = vdwg.mxu0
  %v1696 = vadd.f32 %v1651, %v1685
  %v1697 = vadd.f32 %v1652, %v1688
  %v1698 = vadd.f32 %v1653, %v1691
  %v1699 = vadd.f32 %v1654, %v1694
  %v1700 = vmax.f32 %v1696, 0.0
  %v1701 = vmax.f32 %v1697, 0.0
  %v1702 = vmax.f32 %v1698, 0.0
  %v1703 = vmax.f32 %v1699, 0.0
  %v1704 = vrot.slane %v1700, 7
  %v1705 = vrot.slane %v1701, 7
  %v1706 = vrot.slane %v1702, 7
  %v1707 = vrot.slane %v1703, 7
  %v1708 = vsel %vm307, %v1706, %v1707
  %v1709 = vsel %vm307, %v1705, %v1706
  %v1710 = vsel %vm307, %v1704, %v1705
  %v1711 = vsel %vm307, %v1707, %v1704
  %v1712 = vmul.f32 %v1711, %v287
  %v1713 = vmul.f32 %v1710, %v288
  %v1714 = vmul.f32 %v1709, %v289
  %v1715 = vmul.f32 %v1708, %v290
  %v1716 = vrot.slane %v1700, 1
  %v1717 = vrot.slane %v1701, 1
  %v1718 = vrot.slane %v1702, 1
  %v1719 = vrot.slane %v1703, 1
  %v1720 = vsel %vm320, %v1718, %v1719
  %v1721 = vsel %vm320, %v1717, %v1718
  %v1722 = vsel %vm320, %v1716, %v1717
  %v1723 = vsel %vm320, %v1719, %v1716
  %v1724 = vmul.f32 %v1722, %v299
  %v1725 = vmul.f32 %v1721, %v300
  %v1726 = vmul.f32 %v1720, %v301
  %v1727 = vmul.f32 %v1723, %v302
  %v1728 = vld [vmem:[%s83] sm:$0xff]
  %v1729 = vld [vmem:[%s83 + $0x8] sm:$0xff]
  %v1730 = vld [vmem:[%s83 + $0x10] sm:$0xff]
  %v1731 = vld [vmem:[%s83 + $0x18] sm:$0xff]
  %v1732 = vld [vmem:[%s83 + $0x20] sm:$0xff]
  %v1733 = vld [vmem:[%s83 + $0x28] sm:$0xff]
  %v1734 = vld [vmem:[%s83 + $0x30] sm:$0xff]
  %v1735 = vld [vmem:[%s83 + $0x38] sm:$0xff]
  %v1736 = vld [vmem:[%s83 + $0x40] sm:$0xff]
  %v1737 = vld [vmem:[%s83 + $0x48] sm:$0xff]
  %v1738 = vld [vmem:[%s83 + $0x50] sm:$0xff]
  %v1739 = vld [vmem:[%s83 + $0x58] sm:$0xff]
  %v1740 = vld [vmem:[%s83 + $0x60] sm:$0xff]
  %v1741 = vld [vmem:[%s83 + $0x68] sm:$0xff]
  %v1742 = vld [vmem:[%s83 + $0x70] sm:$0xff]
  %v1743 = vld [vmem:[%s83 + $0x78] sm:$0xff]
  %v1744 = vld [vmem:[%s83 + $0x80] sm:$0xff]
  %v1745 = vld [vmem:[%s83 + $0x88] sm:$0xff]
  %v1746 = vld [vmem:[%s83 + $0x90] sm:$0xff]
  %v1747 = vld [vmem:[%s83 + $0x98] sm:$0xff]
  %v1748 = vld [vmem:[%s83 + $0xa0] sm:$0xff]
  %v1749 = vld [vmem:[%s83 + $0xa8] sm:$0xff]
  %v1750 = vld [vmem:[%s83 + $0xb0] sm:$0xff]
  %v1751 = vld [vmem:[%s83 + $0xb8] sm:$0xff]
  %v1752 = vld [vmem:[%s83 + $0xc0] sm:$0xff]
  %v1753 = vld [vmem:[%s83 + $0xc8] sm:$0xff]
  %v1754 = vld [vmem:[%s83 + $0xd0] sm:$0xff]
  %v1755 = vld [vmem:[%s83 + $0xd8] sm:$0xff]
  %v1756 = vld [vmem:[%s83 + $0xe0] sm:$0xff]
  %v1757 = vld [vmem:[%s83 + $0xe8] sm:$0xff]
  %v1758 = vld [vmem:[%s83 + $0xf0] sm:$0xff]
  %v1759 = vld [vmem:[%s83 + $0xf8] sm:$0xff]
  %v1760 = vld [vmem:[%s81] sm:$0xff]
  %v1761 = vld [vmem:[%s81 + $0x8] sm:$0xff]
  %v1762 = vld [vmem:[%s81 + $0x10] sm:$0xff]
  %v1763 = vld [vmem:[%s81 + $0x18] sm:$0xff]
  %v1764 = vld [vmem:[%s81 + $0x20] sm:$0xff]
  %v1765 = vld [vmem:[%s81 + $0x28] sm:$0xff]
  %v1766 = vld [vmem:[%s81 + $0x30] sm:$0xff]
  %v1767 = vld [vmem:[%s81 + $0x38] sm:$0xff]
  %v1768 = vld [vmem:[%s81 + $0x40] sm:$0xff]
  %v1769 = vld [vmem:[%s81 + $0x48] sm:$0xff]
  %v1770 = vld [vmem:[%s81 + $0x50] sm:$0xff]
  %v1771 = vld [vmem:[%s81 + $0x58] sm:$0xff]
  %v1772 = vld [vmem:[%s81 + $0x60] sm:$0xff]
  %v1773 = vld [vmem:[%s81 + $0x68] sm:$0xff]
  %v1774 = vld [vmem:[%s81 + $0x70] sm:$0xff]
  %v1775 = vld [vmem:[%s81 + $0x78] sm:$0xff]
  %v1776 = vld [vmem:[%s81 + $0x80] sm:$0xff]
  %v1777 = vld [vmem:[%s81 + $0x88] sm:$0xff]
  %v1778 = vld [vmem:[%s81 + $0x90] sm:$0xff]
  %v1779 = vld [vmem:[%s81 + $0x98] sm:$0xff]
  %v1780 = vld [vmem:[%s81 + $0xa0] sm:$0xff]
  %v1781 = vld [vmem:[%s81 + $0xa8] sm:$0xff]
  %v1782 = vld [vmem:[%s81 + $0xb0] sm:$0xff]
  %v1783 = vld [vmem:[%s81 + $0xb8] sm:$0xff]
  %v1784 = vld [vmem:[%s81 + $0xc0] sm:$0xff]
  %v1785 = vld [vmem:[%s81 + $0xc8] sm:$0xff]
  %v1786 = vld [vmem:[%s81 + $0xd0] sm:$0xff]
  %v1787 = vld [vmem:[%s81 + $0xd8] sm:$0xff]
  %v1788 = vld [vmem:[%s81 + $0xe0] sm:$0xff]
  %v1789 = vld [vmem:[%s81 + $0xe8] sm:$0xff]
  %v1790 = vld [vmem:[%s81 + $0xf0] sm:$0xff]
  %v1791 = vld [vmem:[%s81 + $0xf8] sm:$0xff]
  %1792 = vmatpush.msra.mxu0 %v1790
  %1793 = vmatpush.msra.mxu0 %v1788
  %1794 = vmatpush.msra.mxu0 %v1786
  %1795 = vmatpush.msra.mxu0 %v1784
  %1796 = vmatpush.msra.mxu0 %v1782
  %1797 = vmatpush.msra.mxu0 %v1780
  %1798 = vmatpush.msra.mxu0 %v1778
  %1799 = vmatpush.msra.mxu0 %v1776
  %1800 = vmatpush.msra.mxu0 %v1774
  %1801 = vmatpush.msra.mxu0 %v1772
  %1802 = vmatpush.msra.mxu0 %v1770
  %1803 = vmatpush.msra.mxu0 %v1768
  %1804 = vmatpush.msra.mxu0 %v1766
  %1805 = vmatpush.msra.mxu0 %v1764
  %1806 = vmatpush.msra.mxu0 %v1762
  %1807 = vmatpush.msra.mxu0 %v1760
  %1808 = vmatmul.f32.gmra.mxu0 %v1712
  %v1809 = vpop.f32.mrf.mxu0
  %v1810 = vadd.f32 0.0, %v1809
  %1811 = vmatmul.f32.gmra.mxu0 %v1713
  %v1812 = vpop.f32.mrf.mxu0
  %v1813 = vadd.f32 0.0, %v1812
  %1814 = vmatmul.f32.gmra.mxu0 %v1714
  %v1815 = vpop.f32.mrf.mxu0
  %v1816 = vadd.f32 0.0, %v1815
  %1817 = vmatmul.f32.gmra.mxu0 %v1715
  %v1818 = vpop.f32.mrf.mxu0
  %v1819 = vadd.f32 0.0, %v1818
  %1820 = vdwg.mxu0
  %1821 = vmatpush.msra.mxu0 %v1791
  %1822 = vmatpush.msra.mxu0 %v1789
  %1823 = vmatpush.msra.mxu0 %v1787
  %1824 = vmatpush.msra.mxu0 %v1785
  %1825 = vmatpush.msra.mxu0 %v1783
  %1826 = vmatpush.msra.mxu0 %v1781
  %1827 = vmatpush.msra.mxu0 %v1779
  %1828 = vmatpush.msra.mxu0 %v1777
  %1829 = vmatpush.msra.mxu0 %v1775
  %1830 = vmatpush.msra.mxu0 %v1773
  %1831 = vmatpush.msra.mxu0 %v1771
  %1832 = vmatpush.msra.mxu0 %v1769
  %1833 = vmatpush.msra.mxu0 %v1767
  %1834 = vmatpush.msra.mxu0 %v1765
  %1835 = vmatpush.msra.mxu0 %v1763
  %1836 = vmatpush.msra.mxu0 %v1761
  %1837 = vmatmul.f32.gmra.mxu0 %v1712
  %v1838 = vpop.f32.mrf.mxu0
  %v1839 = vadd.f32 0.0, %v1838
  %1840 = vmatmul.f32.gmra.mxu0 %v1713
  %v1841 = vpop.f32.mrf.mxu0
  %v1842 = vadd.f32 0.0, %v1841
  %1843 = vmatmul.f32.gmra.mxu0 %v1714
  %v1844 = vpop.f32.mrf.mxu0
  %v1845 = vadd.f32 0.0, %v1844
  %1846 = vmatmul.f32.gmra.mxu0 %v1715
  %v1847 = vpop.f32.mrf.mxu0
  %v1848 = vadd.f32 0.0, %v1847
  %1849 = vdwg.mxu0
  %1850 = vmatpush.msra.mxu0 %v1758
  %1851 = vmatpush.msra.mxu0 %v1756
  %1852 = vmatpush.msra.mxu0 %v1754
  %1853 = vmatpush.msra.mxu0 %v1752
  %1854 = vmatpush.msra.mxu0 %v1750
  %1855 = vmatpush.msra.mxu0 %v1748
  %1856 = vmatpush.msra.mxu0 %v1746
  %1857 = vmatpush.msra.mxu0 %v1744
  %1858 = vmatpush.msra.mxu0 %v1742
  %1859 = vmatpush.msra.mxu0 %v1740
  %1860 = vmatpush.msra.mxu0 %v1738
  %1861 = vmatpush.msra.mxu0 %v1736
  %1862 = vmatpush.msra.mxu0 %v1734
  %1863 = vmatpush.msra.mxu0 %v1732
  %1864 = vmatpush.msra.mxu0 %v1730
  %1865 = vmatpush.msra.mxu0 %v1728
  %1866 = vmatmul.f32.gmra.mxu0 %v1700
  %v1867 = vpop.f32.mrf.mxu0
  %v1868 = vadd.f32 %v1810, %v1867
  %1869 = vmatmul.f32.gmra.mxu0 %v1701
  %v1870 = vpop.f32.mrf.mxu0
  %v1871 = vadd.f32 %v1813, %v1870
  %1872 = vmatmul.f32.gmra.mxu0 %v1702
  %v1873 = vpop.f32.mrf.mxu0
  %v1874 = vadd.f32 %v1816, %v1873
  %1875 = vmatmul.f32.gmra.mxu0 %v1703
  %v1876 = vpop.f32.mrf.mxu0
  %v1877 = vadd.f32 %v1819, %v1876
  %1878 = vdwg.mxu0
  %1879 = vmatpush.msra.mxu0 %v1759
  %1880 = vmatpush.msra.mxu0 %v1757
  %1881 = vmatpush.msra.mxu0 %v1755
  %1882 = vmatpush.msra.mxu0 %v1753
  %1883 = vmatpush.msra.mxu0 %v1751
  %1884 = vmatpush.msra.mxu0 %v1749
  %1885 = vmatpush.msra.mxu0 %v1747
  %1886 = vmatpush.msra.mxu0 %v1745
  %1887 = vmatpush.msra.mxu0 %v1743
  %1888 = vmatpush.msra.mxu0 %v1741
  %1889 = vmatpush.msra.mxu0 %v1739
  %1890 = vmatpush.msra.mxu0 %v1737
  %1891 = vmatpush.msra.mxu0 %v1735
  %1892 = vmatpush.msra.mxu0 %v1733
  %1893 = vmatpush.msra.mxu0 %v1731
  %1894 = vmatpush.msra.mxu0 %v1729
  %1895 = vmatmul.f32.gmra.mxu0 %v1700
  %v1896 = vpop.f32.mrf.mxu0
  %v1897 = vadd.f32 %v1839, %v1896
  %1898 = vmatmul.f32.gmra.mxu0 %v1701
  %v1899 = vpop.f32.mrf.mxu0
  %v1900 = vadd.f32 %v1842, %v1899
  %1901 = vmatmul.f32.gmra.mxu0 %v1702
  %v1902 = vpop.f32.mrf.mxu0
  %v1903 = vadd.f32 %v1845, %v1902
  %1904 = vmatmul.f32.gmra.mxu0 %v1703
  %v1905 = vpop.f32.mrf.mxu0
  %v1906 = vadd.f32 %v1848, %v1905
  %1907 = vdwg.mxu0
  %v1908 = vld [vmem:[%s85] sm:$0xff]
  %v1909 = vld [vmem:[%s85 + $0x8] sm:$0xff]
  %v1910 = vld [vmem:[%s85 + $0x10] sm:$0xff]
  %v1911 = vld [vmem:[%s85 + $0x18] sm:$0xff]
  %v1912 = vld [vmem:[%s85 + $0x20] sm:$0xff]
  %v1913 = vld [vmem:[%s85 + $0x28] sm:$0xff]
  %v1914 = vld [vmem:[%s85 + $0x30] sm:$0xff]
  %v1915 = vld [vmem:[%s85 + $0x38] sm:$0xff]
  %v1916 = vld [vmem:[%s85 + $0x40] sm:$0xff]
  %v1917 = vld [vmem:[%s85 + $0x48] sm:$0xff]
  %v1918 = vld [vmem:[%s85 + $0x50] sm:$0xff]
  %v1919 = vld [vmem:[%s85 + $0x58] sm:$0xff]
  %v1920 = vld [vmem:[%s85 + $0x60] sm:$0xff]
  %v1921 = vld [vmem:[%s85 + $0x68] sm:$0xff]
  %v1922 = vld [vmem:[%s85 + $0x70] sm:$0xff]
  %v1923 = vld [vmem:[%s85 + $0x78] sm:$0xff]
  %v1924 = vld [vmem:[%s85 + $0x80] sm:$0xff]
  %v1925 = vld [vmem:[%s85 + $0x88] sm:$0xff]
  %v1926 = vld [vmem:[%s85 + $0x90] sm:$0xff]
  %v1927 = vld [vmem:[%s85 + $0x98] sm:$0xff]
  %v1928 = vld [vmem:[%s85 + $0xa0] sm:$0xff]
  %v1929 = vld [vmem:[%s85 + $0xa8] sm:$0xff]
  %v1930 = vld [vmem:[%s85 + $0xb0] sm:$0xff]
  %v1931 = vld [vmem:[%s85 + $0xb8] sm:$0xff]
  %v1932 = vld [vmem:[%s85 + $0xc0] sm:$0xff]
  %v1933 = vld [vmem:[%s85 + $0xc8] sm:$0xff]
  %v1934 = vld [vmem:[%s85 + $0xd0] sm:$0xff]
  %v1935 = vld [vmem:[%s85 + $0xd8] sm:$0xff]
  %v1936 = vld [vmem:[%s85 + $0xe0] sm:$0xff]
  %v1937 = vld [vmem:[%s85 + $0xe8] sm:$0xff]
  %v1938 = vld [vmem:[%s85 + $0xf0] sm:$0xff]
  %v1939 = vld [vmem:[%s85 + $0xf8] sm:$0xff]
  %1940 = vmatpush.msra.mxu0 %v1938
  %1941 = vmatpush.msra.mxu0 %v1936
  %1942 = vmatpush.msra.mxu0 %v1934
  %1943 = vmatpush.msra.mxu0 %v1932
  %1944 = vmatpush.msra.mxu0 %v1930
  %1945 = vmatpush.msra.mxu0 %v1928
  %1946 = vmatpush.msra.mxu0 %v1926
  %1947 = vmatpush.msra.mxu0 %v1924
  %1948 = vmatpush.msra.mxu0 %v1922
  %1949 = vmatpush.msra.mxu0 %v1920
  %1950 = vmatpush.msra.mxu0 %v1918
  %1951 = vmatpush.msra.mxu0 %v1916
  %1952 = vmatpush.msra.mxu0 %v1914
  %1953 = vmatpush.msra.mxu0 %v1912
  %1954 = vmatpush.msra.mxu0 %v1910
  %1955 = vmatpush.msra.mxu0 %v1908
  %1956 = vmatmul.f32.gmra.mxu0 %v1724
  %v1957 = vpop.f32.mrf.mxu0
  %v1958 = vadd.f32 0.0, %v1957
  %1959 = vmatmul.f32.gmra.mxu0 %v1725
  %v1960 = vpop.f32.mrf.mxu0
  %v1961 = vadd.f32 0.0, %v1960
  %1962 = vmatmul.f32.gmra.mxu0 %v1726
  %v1963 = vpop.f32.mrf.mxu0
  %v1964 = vadd.f32 0.0, %v1963
  %1965 = vmatmul.f32.gmra.mxu0 %v1727
  %v1966 = vpop.f32.mrf.mxu0
  %v1967 = vadd.f32 0.0, %v1966
  %1968 = vdwg.mxu0
  %1969 = vmatpush.msra.mxu0 %v1939
  %1970 = vmatpush.msra.mxu0 %v1937
  %1971 = vmatpush.msra.mxu0 %v1935
  %1972 = vmatpush.msra.mxu0 %v1933
  %1973 = vmatpush.msra.mxu0 %v1931
  %1974 = vmatpush.msra.mxu0 %v1929
  %1975 = vmatpush.msra.mxu0 %v1927
  %1976 = vmatpush.msra.mxu0 %v1925
  %1977 = vmatpush.msra.mxu0 %v1923
  %1978 = vmatpush.msra.mxu0 %v1921
  %1979 = vmatpush.msra.mxu0 %v1919
  %1980 = vmatpush.msra.mxu0 %v1917
  %1981 = vmatpush.msra.mxu0 %v1915
  %1982 = vmatpush.msra.mxu0 %v1913
  %1983 = vmatpush.msra.mxu0 %v1911
  %1984 = vmatpush.msra.mxu0 %v1909
  %1985 = vmatmul.f32.gmra.mxu0 %v1724
  %v1986 = vpop.f32.mrf.mxu0
  %v1987 = vadd.f32 0.0, %v1986
  %1988 = vmatmul.f32.gmra.mxu0 %v1725
  %v1989 = vpop.f32.mrf.mxu0
  %v1990 = vadd.f32 0.0, %v1989
  %1991 = vmatmul.f32.gmra.mxu0 %v1726
  %v1992 = vpop.f32.mrf.mxu0
  %v1993 = vadd.f32 0.0, %v1992
  %1994 = vmatmul.f32.gmra.mxu0 %v1727
  %v1995 = vpop.f32.mrf.mxu0
  %v1996 = vadd.f32 0.0, %v1995
  %1997 = vdwg.mxu0
  %v1998 = vadd.f32 %v1868, %v1958
  %v1999 = vadd.f32 %v1897, %v1987
  %v2000 = vadd.f32 %v1871, %v1961
  %v2001 = vadd.f32 %v1900, %v1990
  %v2002 = vadd.f32 %v1874, %v1964
  %v2003 = vadd.f32 %v1903, %v1993
  %v2004 = vadd.f32 %v1877, %v1967
  %v2005 = vadd.f32 %v1906, %v1996
  %v2006 = vld [vmem:[%s87] sm:$0x3]
  %v2008 = vperm.slane %v2006, 0
  %v2009 = vperm.slane %v2006, 1
  %v2012 = vmul.f32 %v1998, %v2008
  %v2013 = vmul.f32 %v1999, %v2009
  %v2014 = vmul.f32 %v2000, %v2008
  %v2015 = vmul.f32 %v2001, %v2009
  %v2016 = vmul.f32 %v2002, %v2008
  %v2017 = vmul.f32 %v2003, %v2009
  %v2018 = vmul.f32 %v2004, %v2008
  %v2019 = vmul.f32 %v2005, %v2009
  %v2020 = vld [vmem:[%s89] sm:$0x3]
  %v2022 = vperm.slane %v2020, 0
  %v2023 = vperm.slane %v2020, 1
  %v2026 = vadd.f32 %v2012, %v2022
  %v2027 = vadd.f32 %v2013, %v2023
  %v2028 = vadd.f32 %v2014, %v2022
  %v2029 = vadd.f32 %v2015, %v2023
  %v2030 = vadd.f32 %v2016, %v2022
  %v2031 = vadd.f32 %v2017, %v2023
  %v2032 = vadd.f32 %v2018, %v2022
  %v2033 = vadd.f32 %v2019, %v2023
  %v2034 = vmax.f32 %v2026, 0.0
  %v2035 = vmax.f32 %v2027, 0.0
  %v2036 = vmax.f32 %v2028, 0.0
  %v2037 = vmax.f32 %v2029, 0.0
  %v2038 = vmax.f32 %v2030, 0.0
  %v2039 = vmax.f32 %v2031, 0.0
  %v2040 = vmax.f32 %v2032, 0.0
  %v2041 = vmax.f32 %v2033, 0.0
  %v2042 = vrot.slane %v2034, 7
  %v2043 = vrot.slane %v2035, 7
  %v2044 = vrot.slane %v2036, 7
  %v2045 = vrot.slane %v2037, 7
  %v2046 = vrot.slane %v2038, 7
  %v2047 = vrot.slane %v2039, 7
  %v2048 = vrot.slane %v2040, 7
  %v2049 = vrot.slane %v2041, 7
  %v2050 = vsel %vm307, %v2046, %v2048
  %v2051 = vsel %vm307, %v2047, %v2049
  %v2052 = vsel %vm307, %v2044, %v2046
  %v2053 = vsel %vm307, %v2045, %v2047
  %v2054 = vsel %vm307, %v2042, %v2044
  %v2055 = vsel %vm307, %v2043, %v2045
  %v2056 = vsel %vm307, %v2048, %v2042
  %v2057 = vsel %vm307, %v2049, %v2043
  %v2058 = vmul.f32 %v2056, %v287
  %v2059 = vmul.f32 %v2057, %v287
  %v2060 = vmul.f32 %v2054, %v288
  %v2061 = vmul.f32 %v2055, %v288
  %v2062 = vmul.f32 %v2052, %v289
  %v2063 = vmul.f32 %v2053, %v289
  %v2064 = vmul.f32 %v2050, %v290
  %v2065 = vmul.f32 %v2051, %v290
  %v2066 = vrot.slane %v2034, 1
  %v2067 = vrot.slane %v2035, 1
  %v2068 = vrot.slane %v2036, 1
  %v2069 = vrot.slane %v2037, 1
  %v2070 = vrot.slane %v2038, 1
  %v2071 = vrot.slane %v2039, 1
  %v2072 = vrot.slane %v2040, 1
  %v2073 = vrot.slane %v2041, 1
  %v2074 = vsel %vm320, %v2070, %v2072
  %v2075 = vsel %vm320, %v2071, %v2073
  %v2076 = vsel %vm320, %v2068, %v2070
  %v2077 = vsel %vm320, %v2069, %v2071
  %v2078 = vsel %vm320, %v2066, %v2068
  %v2079 = vsel %vm320, %v2067, %v2069
  %v2080 = vsel %vm320, %v2072, %v2066
  %v2081 = vsel %vm320, %v2073, %v2067
  %v2082 = vmul.f32 %v2078, %v299
  %v2083 = vmul.f32 %v2079, %v299
  %v2084 = vmul.f32 %v2076, %v300
  %v2085 = vmul.f32 %v2077, %v300
  %v2086 = vmul.f32 %v2074, %v301
  %v2087 = vmul.f32 %v2075, %v301
  %v2088 = vmul.f32 %v2080, %v302
  %v2089 = vmul.f32 %v2081, %v302
  %v2090 = vld [vmem:[%s93] sm:$0xff]
  %v2091 = vld [vmem:[%s93 + $0x8] sm:$0xff]
  %v2092 = vld [vmem:[%s93 + $0x10] sm:$0xff]
  %v2093 = vld [vmem:[%s93 + $0x18] sm:$0xff]
  %v2094 = vld [vmem:[%s93 + $0x20] sm:$0xff]
  %v2095 = vld [vmem:[%s93 + $0x28] sm:$0xff]
  %v2096 = vld [vmem:[%s93 + $0x30] sm:$0xff]
  %v2097 = vld [vmem:[%s93 + $0x38] sm:$0xff]
  %v2098 = vld [vmem:[%s93 + $0x40] sm:$0xff]
  %v2099 = vld [vmem:[%s93 + $0x48] sm:$0xff]
  %v2100 = vld [vmem:[%s93 + $0x50] sm:$0xff]
  %v2101 = vld [vmem:[%s93 + $0x58] sm:$0xff]
  %v2102 = vld [vmem:[%s93 + $0x60] sm:$0xff]
  %v2103 = vld [vmem:[%s93 + $0x68] sm:$0xff]
  %v2104 = vld [vmem:[%s93 + $0x70] sm:$0xff]
  %v2105 = vld [vmem:[%s93 + $0x78] sm:$0xff]
  %v2106 = vld [vmem:[%s93 + $0x80] sm:$0xff]
  %v2107 = vld [vmem:[%s93 + $0x88] sm:$0xff]
  %v2108 = vld [vmem:[%s93 + $0x90] sm:$0xff]
  %v2109 = vld [vmem:[%s93 + $0x98] sm:$0xff]
  %v2110 = vld [vmem:[%s93 + $0xa0] sm:$0xff]
  %v2111 = vld [vmem:[%s93 + $0xa8] sm:$0xff]
  %v2112 = vld [vmem:[%s93 + $0xb0] sm:$0xff]
  %v2113 = vld [vmem:[%s93 + $0xb8] sm:$0xff]
  %v2114 = vld [vmem:[%s93 + $0xc0] sm:$0xff]
  %v2115 = vld [vmem:[%s93 + $0xc8] sm:$0xff]
  %v2116 = vld [vmem:[%s93 + $0xd0] sm:$0xff]
  %v2117 = vld [vmem:[%s93 + $0xd8] sm:$0xff]
  %v2118 = vld [vmem:[%s93 + $0xe0] sm:$0xff]
  %v2119 = vld [vmem:[%s93 + $0xe8] sm:$0xff]
  %v2120 = vld [vmem:[%s93 + $0xf0] sm:$0xff]
  %v2121 = vld [vmem:[%s93 + $0xf8] sm:$0xff]
  %v2122 = vld [vmem:[%s93 + $0x100] sm:$0xff]
  %v2123 = vld [vmem:[%s93 + $0x108] sm:$0xff]
  %v2124 = vld [vmem:[%s93 + $0x110] sm:$0xff]
  %v2125 = vld [vmem:[%s93 + $0x118] sm:$0xff]
  %v2126 = vld [vmem:[%s93 + $0x120] sm:$0xff]
  %v2127 = vld [vmem:[%s93 + $0x128] sm:$0xff]
  %v2128 = vld [vmem:[%s93 + $0x130] sm:$0xff]
  %v2129 = vld [vmem:[%s93 + $0x138] sm:$0xff]
  %v2130 = vld [vmem:[%s93 + $0x140] sm:$0xff]
  %v2131 = vld [vmem:[%s93 + $0x148] sm:$0xff]
  %v2132 = vld [vmem:[%s93 + $0x150] sm:$0xff]
  %v2133 = vld [vmem:[%s93 + $0x158] sm:$0xff]
  %v2134 = vld [vmem:[%s93 + $0x160] sm:$0xff]
  %v2135 = vld [vmem:[%s93 + $0x168] sm:$0xff]
  %v2136 = vld [vmem:[%s93 + $0x170] sm:$0xff]
  %v2137 = vld [vmem:[%s93 + $0x178] sm:$0xff]
  %v2138 = vld [vmem:[%s93 + $0x180] sm:$0xff]
  %v2139 = vld [vmem:[%s93 + $0x188] sm:$0xff]
  %v2140 = vld [vmem:[%s93 + $0x190] sm:$0xff]
  %v2141 = vld [vmem:[%s93 + $0x198] sm:$0xff]
  %v2142 = vld [vmem:[%s93 + $0x1a0] sm:$0xff]
  %v2143 = vld [vmem:[%s93 + $0x1a8] sm:$0xff]
  %v2144 = vld [vmem:[%s93 + $0x1b0] sm:$0xff]
  %v2145 = vld [vmem:[%s93 + $0x1b8] sm:$0xff]
  %v2146 = vld [vmem:[%s93 + $0x1c0] sm:$0xff]
  %v2147 = vld [vmem:[%s93 + $0x1c8] sm:$0xff]
  %v2148 = vld [vmem:[%s93 + $0x1d0] sm:$0xff]
  %v2149 = vld [vmem:[%s93 + $0x1d8] sm:$0xff]
  %v2150 = vld [vmem:[%s93 + $0x1e0] sm:$0xff]
  %v2151 = vld [vmem:[%s93 + $0x1e8] sm:$0xff]
  %v2152 = vld [vmem:[%s93 + $0x1f0] sm:$0xff]
  %v2153 = vld [vmem:[%s93 + $0x1f8] sm:$0xff]
  %v2154 = vld [vmem:[%s91] sm:$0xff]
  %v2155 = vld [vmem:[%s91 + $0x8] sm:$0xff]
  %v2156 = vld [vmem:[%s91 + $0x10] sm:$0xff]
  %v2157 = vld [vmem:[%s91 + $0x18] sm:$0xff]
  %v2158 = vld [vmem:[%s91 + $0x20] sm:$0xff]
  %v2159 = vld [vmem:[%s91 + $0x28] sm:$0xff]
  %v2160 = vld [vmem:[%s91 + $0x30] sm:$0xff]
  %v2161 = vld [vmem:[%s91 + $0x38] sm:$0xff]
  %v2162 = vld [vmem:[%s91 + $0x40] sm:$0xff]
  %v2163 = vld [vmem:[%s91 + $0x48] sm:$0xff]
  %v2164 = vld [vmem:[%s91 + $0x50] sm:$0xff]
  %v2165 = vld [vmem:[%s91 + $0x58] sm:$0xff]
  %v2166 = vld [vmem:[%s91 + $0x60] sm:$0xff]
  %v2167 = vld [vmem:[%s91 + $0x68] sm:$0xff]
  %v2168 = vld [vmem:[%s91 + $0x70] sm:$0xff]
  %v2169 = vld [vmem:[%s91 + $0x78] sm:$0xff]
  %v2170 = vld [vmem:[%s91 + $0x80] sm:$0xff]
  %v2171 = vld [vmem:[%s91 + $0x88] sm:$0xff]
  %v2172 = vld [vmem:[%s91 + $0x90] sm:$0xff]
  %v2173 = vld [vmem:[%s91 + $0x98] sm:$0xff]
  %v2174 = vld [vmem:[%s91 + $0xa0] sm:$0xff]
  %v2175 = vld [vmem:[%s91 + $0xa8] sm:$0xff]
  %v2176 = vld [vmem:[%s91 + $0xb0] sm:$0xff]
  %v2177 = vld [vmem:[%s91 + $0xb8] sm:$0xff]
  %v2178 = vld [vmem:[%s91 + $0xc0] sm:$0xff]
  %v2179 = vld [vmem:[%s91 + $0xc8] sm:$0xff]
  %v2180 = vld [vmem:[%s91 + $0xd0] sm:$0xff]
  %v2181 = vld [vmem:[%s91 + $0xd8] sm:$0xff]
  %v2182 = vld [vmem:[%s91 + $0xe0] sm:$0xff]
  %v2183 = vld [vmem:[%s91 + $0xe8] sm:$0xff]
  %v2184 = vld [vmem:[%s91 + $0xf0] sm:$0xff]
  %v2185 = vld [vmem:[%s91 + $0xf8] sm:$0xff]
  %v2186 = vld [vmem:[%s91 + $0x100] sm:$0xff]
  %v2187 = vld [vmem:[%s91 + $0x108] sm:$0xff]
  %v2188 = vld [vmem:[%s91 + $0x110] sm:$0xff]
  %v2189 = vld [vmem:[%s91 + $0x118] sm:$0xff]
  %v2190 = vld [vmem:[%s91 + $0x120] sm:$0xff]
  %v2191 = vld [vmem:[%s91 + $0x128] sm:$0xff]
  %v2192 = vld [vmem:[%s91 + $0x130] sm:$0xff]
  %v2193 = vld [vmem:[%s91 + $0x138] sm:$0xff]
  %v2194 = vld [vmem:[%s91 + $0x140] sm:$0xff]
  %v2195 = vld [vmem:[%s91 + $0x148] sm:$0xff]
  %v2196 = vld [vmem:[%s91 + $0x150] sm:$0xff]
  %v2197 = vld [vmem:[%s91 + $0x158] sm:$0xff]
  %v2198 = vld [vmem:[%s91 + $0x160] sm:$0xff]
  %v2199 = vld [vmem:[%s91 + $0x168] sm:$0xff]
  %v2200 = vld [vmem:[%s91 + $0x170] sm:$0xff]
  %v2201 = vld [vmem:[%s91 + $0x178] sm:$0xff]
  %v2202 = vld [vmem:[%s91 + $0x180] sm:$0xff]
  %v2203 = vld [vmem:[%s91 + $0x188] sm:$0xff]
  %v2204 = vld [vmem:[%s91 + $0x190] sm:$0xff]
  %v2205 = vld [vmem:[%s91 + $0x198] sm:$0xff]
  %v2206 = vld [vmem:[%s91 + $0x1a0] sm:$0xff]
  %v2207 = vld [vmem:[%s91 + $0x1a8] sm:$0xff]
  %v2208 = vld [vmem:[%s91 + $0x1b0] sm:$0xff]
  %v2209 = vld [vmem:[%s91 + $0x1b8] sm:$0xff]
  %v2210 = vld [vmem:[%s91 + $0x1c0] sm:$0xff]
  %v2211 = vld [vmem:[%s91 + $0x1c8] sm:$0xff]
  %v2212 = vld [vmem:[%s91 + $0x1d0] sm:$0xff]
  %v2213 = vld [vmem:[%s91 + $0x1d8] sm:$0xff]
  %v2214 = vld [vmem:[%s91 + $0x1e0] sm:$0xff]
  %v2215 = vld [vmem:[%s91 + $0x1e8] sm:$0xff]
  %v2216 = vld [vmem:[%s91 + $0x1f0] sm:$0xff]
  %v2217 = vld [vmem:[%s91 + $0x1f8] sm:$0xff]
  %2218 = vmatpush.msra.mxu0 %v2184
  %2219 = vmatpush.msra.mxu0 %v2182
  %2220 = vmatpush.msra.mxu0 %v2180
  %2221 = vmatpush.msra.mxu0 %v2178
  %2222 = vmatpush.msra.mxu0 %v2176
  %2223 = vmatpush.msra.mxu0 %v2174
  %2224 = vmatpush.msra.mxu0 %v2172
  %2225 = vmatpush.msra.mxu0 %v2170
  %2226 = vmatpush.msra.mxu0 %v2168
  %2227 = vmatpush.msra.mxu0 %v2166
  %2228 = vmatpush.msra.mxu0 %v2164
  %2229 = vmatpush.msra.mxu0 %v2162
  %2230 = vmatpush.msra.mxu0 %v2160
  %2231 = vmatpush.msra.mxu0 %v2158
  %2232 = vmatpush.msra.mxu0 %v2156
  %2233 = vmatpush.msra.mxu0 %v2154
  %2234 = vmatmul.f32.gmra.mxu0 %v2058
  %v2235 = vpop.f32.mrf.mxu0
  %v2236 = vadd.f32 0.0, %v2235
  %2237 = vmatmul.f32.gmra.mxu0 %v2060
  %v2238 = vpop.f32.mrf.mxu0
  %v2239 = vadd.f32 0.0, %v2238
  %2240 = vmatmul.f32.gmra.mxu0 %v2062
  %v2241 = vpop.f32.mrf.mxu0
  %v2242 = vadd.f32 0.0, %v2241
  %2243 = vmatmul.f32.gmra.mxu0 %v2064
  %v2244 = vpop.f32.mrf.mxu0
  %v2245 = vadd.f32 0.0, %v2244
  %2246 = vdwg.mxu0
  %2247 = vmatpush.msra.mxu0 %v2216
  %2248 = vmatpush.msra.mxu0 %v2214
  %2249 = vmatpush.msra.mxu0 %v2212
  %2250 = vmatpush.msra.mxu0 %v2210
  %2251 = vmatpush.msra.mxu0 %v2208
  %2252 = vmatpush.msra.mxu0 %v2206
  %2253 = vmatpush.msra.mxu0 %v2204
  %2254 = vmatpush.msra.mxu0 %v2202
  %2255 = vmatpush.msra.mxu0 %v2200
  %2256 = vmatpush.msra.mxu0 %v2198
  %2257 = vmatpush.msra.mxu0 %v2196
  %2258 = vmatpush.msra.mxu0 %v2194
  %2259 = vmatpush.msra.mxu0 %v2192
  %2260 = vmatpush.msra.mxu0 %v2190
  %2261 = vmatpush.msra.mxu0 %v2188
  %2262 = vmatpush.msra.mxu0 %v2186
  %2263 = vmatmul.f32.gmra.mxu0 %v2059
  %v2264 = vpop.f32.mrf.mxu0
  %v2265 = vadd.f32 %v2236, %v2264
  %2266 = vmatmul.f32.gmra.mxu0 %v2061
  %v2267 = vpop.f32.mrf.mxu0
  %v2268 = vadd.f32 %v2239, %v2267
  %2269 = vmatmul.f32.gmra.mxu0 %v2063
  %v2270 = vpop.f32.mrf.mxu0
  %v2271 = vadd.f32 %v2242, %v2270
  %2272 = vmatmul.f32.gmra.mxu0 %v2065
  %v2273 = vpop.f32.mrf.mxu0
  %v2274 = vadd.f32 %v2245, %v2273
  %2275 = vdwg.mxu0
  %2276 = vmatpush.msra.mxu0 %v2185
  %2277 = vmatpush.msra.mxu0 %v2183
  %2278 = vmatpush.msra.mxu0 %v2181
  %2279 = vmatpush.msra.mxu0 %v2179
  %2280 = vmatpush.msra.mxu0 %v2177
  %2281 = vmatpush.msra.mxu0 %v2175
  %2282 = vmatpush.msra.mxu0 %v2173
  %2283 = vmatpush.msra.mxu0 %v2171
  %2284 = vmatpush.msra.mxu0 %v2169
  %2285 = vmatpush.msra.mxu0 %v2167
  %2286 = vmatpush.msra.mxu0 %v2165
  %2287 = vmatpush.msra.mxu0 %v2163
  %2288 = vmatpush.msra.mxu0 %v2161
  %2289 = vmatpush.msra.mxu0 %v2159
  %2290 = vmatpush.msra.mxu0 %v2157
  %2291 = vmatpush.msra.mxu0 %v2155
  %2292 = vmatmul.f32.gmra.mxu0 %v2058
  %v2293 = vpop.f32.mrf.mxu0
  %v2294 = vadd.f32 0.0, %v2293
  %2295 = vmatmul.f32.gmra.mxu0 %v2060
  %v2296 = vpop.f32.mrf.mxu0
  %v2297 = vadd.f32 0.0, %v2296
  %2298 = vmatmul.f32.gmra.mxu0 %v2062
  %v2299 = vpop.f32.mrf.mxu0
  %v2300 = vadd.f32 0.0, %v2299
  %2301 = vmatmul.f32.gmra.mxu0 %v2064
  %v2302 = vpop.f32.mrf.mxu0
  %v2303 = vadd.f32 0.0, %v2302
  %2304 = vdwg.mxu0
  %2305 = vmatpush.msra.mxu0 %v2217
  %2306 = vmatpush.msra.mxu0 %v2215
  %2307 = vmatpush.msra.mxu0 %v2213
  %2308 = vmatpush.msra.mxu0 %v2211
  %2309 = vmatpush.msra.mxu0 %v2209
  %2310 = vmatpush.msra.mxu0 %v2207
  %2311 = vmatpush.msra.mxu0 %v2205
  %2312 = vmatpush.msra.mxu0 %v2203
  %2313 = vmatpush.msra.mxu0 %v2201
  %2314 = vmatpush.msra.mxu0 %v2199
  %2315 = vmatpush.msra.mxu0 %v2197
  %2316 = vmatpush.msra.mxu0 %v2195
  %2317 = vmatpush.msra.mxu0 %v2193
  %2318 = vmatpush.msra.mxu0 %v2191
  %2319 = vmatpush.msra.mxu0 %v2189
  %2320 = vmatpush.msra.mxu0 %v2187
  %2321 = vmatmul.f32.gmra.mxu0 %v2059
  %v2322 = vpop.f32.mrf.mxu0
  %v2323 = vadd.f32 %v2294, %v2322
  %2324 = vmatmul.f32.gmra.mxu0 %v2061
  %v2325 = vpop.f32.mrf.mxu0
  %v2326 = vadd.f32 %v2297, %v2325
  %2327 = vmatmul.f32.gmra.mxu0 %v2063
  %v2328 = vpop.f32.mrf.mxu0
  %v2329 = vadd.f32 %v2300, %v2328
  %2330 = vmatmul.f32.gmra.mxu0 %v2065
  %v2331 = vpop.f32.mrf.mxu0
  %v2332 = vadd.f32 %v2303, %v2331
  %2333 = vdwg.mxu0
  %2334 = vmatpush.msra.mxu0 %v2120
  %2335 = vmatpush.msra.mxu0 %v2118
  %2336 = vmatpush.msra.mxu0 %v2116
  %2337 = vmatpush.msra.mxu0 %v2114
  %2338 = vmatpush.msra.mxu0 %v2112
  %2339 = vmatpush.msra.mxu0 %v2110
  %2340 = vmatpush.msra.mxu0 %v2108
  %2341 = vmatpush.msra.mxu0 %v2106
  %2342 = vmatpush.msra.mxu0 %v2104
  %2343 = vmatpush.msra.mxu0 %v2102
  %2344 = vmatpush.msra.mxu0 %v2100
  %2345 = vmatpush.msra.mxu0 %v2098
  %2346 = vmatpush.msra.mxu0 %v2096
  %2347 = vmatpush.msra.mxu0 %v2094
  %2348 = vmatpush.msra.mxu0 %v2092
  %2349 = vmatpush.msra.mxu0 %v2090
  %2350 = vmatmul.f32.gmra.mxu0 %v2034
  %v2351 = vpop.f32.mrf.mxu0
  %v2352 = vadd.f32 %v2265, %v2351
  %2353 = vmatmul.f32.gmra.mxu0 %v2036
  %v2354 = vpop.f32.mrf.mxu0
  %v2355 = vadd.f32 %v2268, %v2354
  %2356 = vmatmul.f32.gmra.mxu0 %v2038
  %v2357 = vpop.f32.mrf.mxu0
  %v2358 = vadd.f32 %v2271, %v2357
  %2359 = vmatmul.f32.gmra.mxu0 %v2040
  %v2360 = vpop.f32.mrf.mxu0
  %v2361 = vadd.f32 %v2274, %v2360
  %2362 = vdwg.mxu0
  %2363 = vmatpush.msra.mxu0 %v2152
  %2364 = vmatpush.msra.mxu0 %v2150
  %2365 = vmatpush.msra.mxu0 %v2148
  %2366 = vmatpush.msra.mxu0 %v2146
  %2367 = vmatpush.msra.mxu0 %v2144
  %2368 = vmatpush.msra.mxu0 %v2142
  %2369 = vmatpush.msra.mxu0 %v2140
  %2370 = vmatpush.msra.mxu0 %v2138
  %2371 = vmatpush.msra.mxu0 %v2136
  %2372 = vmatpush.msra.mxu0 %v2134
  %2373 = vmatpush.msra.mxu0 %v2132
  %2374 = vmatpush.msra.mxu0 %v2130
  %2375 = vmatpush.msra.mxu0 %v2128
  %2376 = vmatpush.msra.mxu0 %v2126
  %2377 = vmatpush.msra.mxu0 %v2124
  %2378 = vmatpush.msra.mxu0 %v2122
  %2379 = vmatmul.f32.gmra.mxu0 %v2035
  %v2380 = vpop.f32.mrf.mxu0
  %v2381 = vadd.f32 %v2352, %v2380
  %2382 = vmatmul.f32.gmra.mxu0 %v2037
  %v2383 = vpop.f32.mrf.mxu0
  %v2384 = vadd.f32 %v2355, %v2383
  %2385 = vmatmul.f32.gmra.mxu0 %v2039
  %v2386 = vpop.f32.mrf.mxu0
  %v2387 = vadd.f32 %v2358, %v2386
  %2388 = vmatmul.f32.gmra.mxu0 %v2041
  %v2389 = vpop.f32.mrf.mxu0
  %v2390 = vadd.f32 %v2361, %v2389
  %2391 = vdwg.mxu0
  %2392 = vmatpush.msra.mxu0 %v2121
  %2393 = vmatpush.msra.mxu0 %v2119
  %2394 = vmatpush.msra.mxu0 %v2117
  %2395 = vmatpush.msra.mxu0 %v2115
  %2396 = vmatpush.msra.mxu0 %v2113
  %2397 = vmatpush.msra.mxu0 %v2111
  %2398 = vmatpush.msra.mxu0 %v2109
  %2399 = vmatpush.msra.mxu0 %v2107
  %2400 = vmatpush.msra.mxu0 %v2105
  %2401 = vmatpush.msra.mxu0 %v2103
  %2402 = vmatpush.msra.mxu0 %v2101
  %2403 = vmatpush.msra.mxu0 %v2099
  %2404 = vmatpush.msra.mxu0 %v2097
  %2405 = vmatpush.msra.mxu0 %v2095
  %2406 = vmatpush.msra.mxu0 %v2093
  %2407 = vmatpush.msra.mxu0 %v2091
  %2408 = vmatmul.f32.gmra.mxu0 %v2034
  %v2409 = vpop.f32.mrf.mxu0
  %v2410 = vadd.f32 %v2323, %v2409
  %2411 = vmatmul.f32.gmra.mxu0 %v2036
  %v2412 = vpop.f32.mrf.mxu0
  %v2413 = vadd.f32 %v2326, %v2412
  %2414 = vmatmul.f32.gmra.mxu0 %v2038
  %v2415 = vpop.f32.mrf.mxu0
  %v2416 = vadd.f32 %v2329, %v2415
  %2417 = vmatmul.f32.gmra.mxu0 %v2040
  %v2418 = vpop.f32.mrf.mxu0
  %v2419 = vadd.f32 %v2332, %v2418
  %2420 = vdwg.mxu0
  %2421 = vmatpush.msra.mxu0 %v2153
  %2422 = vmatpush.msra.mxu0 %v2151
  %2423 = vmatpush.msra.mxu0 %v2149
  %2424 = vmatpush.msra.mxu0 %v2147
  %2425 = vmatpush.msra.mxu0 %v2145
  %2426 = vmatpush.msra.mxu0 %v2143
  %2427 = vmatpush.msra.mxu0 %v2141
  %2428 = vmatpush.msra.mxu0 %v2139
  %2429 = vmatpush.msra.mxu0 %v2137
  %2430 = vmatpush.msra.mxu0 %v2135
  %2431 = vmatpush.msra.mxu0 %v2133
  %2432 = vmatpush.msra.mxu0 %v2131
  %2433 = vmatpush.msra.mxu0 %v2129
  %2434 = vmatpush.msra.mxu0 %v2127
  %2435 = vmatpush.msra.mxu0 %v2125
  %2436 = vmatpush.msra.mxu0 %v2123
  %2437 = vmatmul.f32.gmra.mxu0 %v2035
  %v2438 = vpop.f32.mrf.mxu0
  %v2439 = vadd.f32 %v2410, %v2438
  %2440 = vmatmul.f32.gmra.mxu0 %v2037
  %v2441 = vpop.f32.mrf.mxu0
  %v2442 = vadd.f32 %v2413, %v2441
  %2443 = vmatmul.f32.gmra.mxu0 %v2039
  %v2444 = vpop.f32.mrf.mxu0
  %v2445 = vadd.f32 %v2416, %v2444
  %2446 = vmatmul.f32.gmra.mxu0 %v2041
  %v2447 = vpop.f32.mrf.mxu0
  %v2448 = vadd.f32 %v2419, %v2447
  %2449 = vdwg.mxu0
  %v2450 = vld [vmem:[%s95] sm:$0xff]
  %v2451 = vld [vmem:[%s95 + $0x8] sm:$0xff]
  %v2452 = vld [vmem:[%s95 + $0x10] sm:$0xff]
  %v2453 = vld [vmem:[%s95 + $0x18] sm:$0xff]
  %v2454 = vld [vmem:[%s95 + $0x20] sm:$0xff]
  %v2455 = vld [vmem:[%s95 + $0x28] sm:$0xff]
  %v2456 = vld [vmem:[%s95 + $0x30] sm:$0xff]
  %v2457 = vld [vmem:[%s95 + $0x38] sm:$0xff]
  %v2458 = vld [vmem:[%s95 + $0x40] sm:$0xff]
  %v2459 = vld [vmem:[%s95 + $0x48] sm:$0xff]
  %v2460 = vld [vmem:[%s95 + $0x50] sm:$0xff]
  %v2461 = vld [vmem:[%s95 + $0x58] sm:$0xff]
  %v2462 = vld [vmem:[%s95 + $0x60] sm:$0xff]
  %v2463 = vld [vmem:[%s95 + $0x68] sm:$0xff]
  %v2464 = vld [vmem:[%s95 + $0x70] sm:$0xff]
  %v2465 = vld [vmem:[%s95 + $0x78] sm:$0xff]
  %v2466 = vld [vmem:[%s95 + $0x80] sm:$0xff]
  %v2467 = vld [vmem:[%s95 + $0x88] sm:$0xff]
  %v2468 = vld [vmem:[%s95 + $0x90] sm:$0xff]
  %v2469 = vld [vmem:[%s95 + $0x98] sm:$0xff]
  %v2470 = vld [vmem:[%s95 + $0xa0] sm:$0xff]
  %v2471 = vld [vmem:[%s95 + $0xa8] sm:$0xff]
  %v2472 = vld [vmem:[%s95 + $0xb0] sm:$0xff]
  %v2473 = vld [vmem:[%s95 + $0xb8] sm:$0xff]
  %v2474 = vld [vmem:[%s95 + $0xc0] sm:$0xff]
  %v2475 = vld [vmem:[%s95 + $0xc8] sm:$0xff]
  %v2476 = vld [vmem:[%s95 + $0xd0] sm:$0xff]
  %v2477 = vld [vmem:[%s95 + $0xd8] sm:$0xff]
  %v2478 = vld [vmem:[%s95 + $0xe0] sm:$0xff]
  %v2479 = vld [vmem:[%s95 + $0xe8] sm:$0xff]
  %v2480 = vld [vmem:[%s95 + $0xf0] sm:$0xff]
  %v2481 = vld [vmem:[%s95 + $0xf8] sm:$0xff]
  %v2482 = vld [vmem:[%s95 + $0x100] sm:$0xff]
  %v2483 = vld [vmem:[%s95 + $0x108] sm:$0xff]
  %v2484 = vld [vmem:[%s95 + $0x110] sm:$0xff]
  %v2485 = vld [vmem:[%s95 + $0x118] sm:$0xff]
  %v2486 = vld [vmem:[%s95 + $0x120] sm:$0xff]
  %v2487 = vld [vmem:[%s95 + $0x128] sm:$0xff]
  %v2488 = vld [vmem:[%s95 + $0x130] sm:$0xff]
  %v2489 = vld [vmem:[%s95 + $0x138] sm:$0xff]
  %v2490 = vld [vmem:[%s95 + $0x140] sm:$0xff]
  %v2491 = vld [vmem:[%s95 + $0x148] sm:$0xff]
  %v2492 = vld [vmem:[%s95 + $0x150] sm:$0xff]
  %v2493 = vld [vmem:[%s95 + $0x158] sm:$0xff]
  %v2494 = vld [vmem:[%s95 + $0x160] sm:$0xff]
  %v2495 = vld [vmem:[%s95 + $0x168] sm:$0xff]
  %v2496 = vld [vmem:[%s95 + $0x170] sm:$0xff]
  %v2497 = vld [vmem:[%s95 + $0x178] sm:$0xff]
  %v2498 = vld [vmem:[%s95 + $0x180] sm:$0xff]
  %v2499 = vld [vmem:[%s95 + $0x188] sm:$0xff]
  %v2500 = vld [vmem:[%s95 + $0x190] sm:$0xff]
  %v2501 = vld [vmem:[%s95 + $0x198] sm:$0xff]
  %v2502 = vld [vmem:[%s95 + $0x1a0] sm:$0xff]
  %v2503 = vld [vmem:[%s95 + $0x1a8] sm:$0xff]
  %v2504 = vld [vmem:[%s95 + $0x1b0] sm:$0xff]
  %v2505 = vld [vmem:[%s95 + $0x1b8] sm:$0xff]
  %v2506 = vld [vmem:[%s95 + $0x1c0] sm:$0xff]
  %v2507 = vld [vmem:[%s95 + $0x1c8] sm:$0xff]
  %v2508 = vld [vmem:[%s95 + $0x1d0] sm:$0xff]
  %v2509 = vld [vmem:[%s95 + $0x1d8] sm:$0xff]
  %v2510 = vld [vmem:[%s95 + $0x1e0] sm:$0xff]
  %v2511 = vld [vmem:[%s95 + $0x1e8] sm:$0xff]
  %v2512 = vld [vmem:[%s95 + $0x1f0] sm:$0xff]
  %v2513 = vld [vmem:[%s95 + $0x1f8] sm:$0xff]
  %2514 = vmatpush.msra.mxu0 %v2480
  %2515 = vmatpush.msra.mxu0 %v2478
  %2516 = vmatpush.msra.mxu0 %v2476
  %2517 = vmatpush.msra.mxu0 %v2474
  %2518 = vmatpush.msra.mxu0 %v2472
  %2519 = vmatpush.msra.mxu0 %v2470
  %2520 = vmatpush.msra.mxu0 %v2468
  %2521 = vmatpush.msra.mxu0 %v2466
  %2522 = vmatpush.msra.mxu0 %v2464
  %2523 = vmatpush.msra.mxu0 %v2462
  %2524 = vmatpush.msra.mxu0 %v2460
  %2525 = vmatpush.msra.mxu0 %v2458
  %2526 = vmatpush.msra.mxu0 %v2456
  %2527 = vmatpush.msra.mxu0 %v2454
  %2528 = vmatpush.msra.mxu0 %v2452
  %2529 = vmatpush.msra.mxu0 %v2450
  %2530 = vmatmul.f32.gmra.mxu0 %v2082
  %v2531 = vpop.f32.mrf.mxu0
  %v2532 = vadd.f32 0.0, %v2531
  %2533 = vmatmul.f32.gmra.mxu0 %v2084
  %v2534 = vpop.f32.mrf.mxu0
  %v2535 = vadd.f32 0.0, %v2534
  %2536 = vmatmul.f32.gmra.mxu0 %v2086
  %v2537 = vpop.f32.mrf.mxu0
  %v2538 = vadd.f32 0.0, %v2537
  %2539 = vmatmul.f32.gmra.mxu0 %v2088
  %v2540 = vpop.f32.mrf.mxu0
  %v2541 = vadd.f32 0.0, %v2540
  %2542 = vdwg.mxu0
  %2543 = vmatpush.msra.mxu0 %v2512
  %2544 = vmatpush.msra.mxu0 %v2510
  %2545 = vmatpush.msra.mxu0 %v2508
  %2546 = vmatpush.msra.mxu0 %v2506
  %2547 = vmatpush.msra.mxu0 %v2504
  %2548 = vmatpush.msra.mxu0 %v2502
  %2549 = vmatpush.msra.mxu0 %v2500
  %2550 = vmatpush.msra.mxu0 %v2498
  %2551 = vmatpush.msra.mxu0 %v2496
  %2552 = vmatpush.msra.mxu0 %v2494
  %2553 = vmatpush.msra.mxu0 %v2492
  %2554 = vmatpush.msra.mxu0 %v2490
  %2555 = vmatpush.msra.mxu0 %v2488
  %2556 = vmatpush.msra.mxu0 %v2486
  %2557 = vmatpush.msra.mxu0 %v2484
  %2558 = vmatpush.msra.mxu0 %v2482
  %2559 = vmatmul.f32.gmra.mxu0 %v2083
  %v2560 = vpop.f32.mrf.mxu0
  %v2561 = vadd.f32 %v2532, %v2560
  %2562 = vmatmul.f32.gmra.mxu0 %v2085
  %v2563 = vpop.f32.mrf.mxu0
  %v2564 = vadd.f32 %v2535, %v2563
  %2565 = vmatmul.f32.gmra.mxu0 %v2087
  %v2566 = vpop.f32.mrf.mxu0
  %v2567 = vadd.f32 %v2538, %v2566
  %2568 = vmatmul.f32.gmra.mxu0 %v2089
  %v2569 = vpop.f32.mrf.mxu0
  %v2570 = vadd.f32 %v2541, %v2569
  %2571 = vdwg.mxu0
  %2572 = vmatpush.msra.mxu0 %v2481
  %2573 = vmatpush.msra.mxu0 %v2479
  %2574 = vmatpush.msra.mxu0 %v2477
  %2575 = vmatpush.msra.mxu0 %v2475
  %2576 = vmatpush.msra.mxu0 %v2473
  %2577 = vmatpush.msra.mxu0 %v2471
  %2578 = vmatpush.msra.mxu0 %v2469
  %2579 = vmatpush.msra.mxu0 %v2467
  %2580 = vmatpush.msra.mxu0 %v2465
  %2581 = vmatpush.msra.mxu0 %v2463
  %2582 = vmatpush.msra.mxu0 %v2461
  %2583 = vmatpush.msra.mxu0 %v2459
  %2584 = vmatpush.msra.mxu0 %v2457
  %2585 = vmatpush.msra.mxu0 %v2455
  %2586 = vmatpush.msra.mxu0 %v2453
  %2587 = vmatpush.msra.mxu0 %v2451
  %2588 = vmatmul.f32.gmra.mxu0 %v2082
  %v2589 = vpop.f32.mrf.mxu0
  %v2590 = vadd.f32 0.0, %v2589
  %2591 = vmatmul.f32.gmra.mxu0 %v2084
  %v2592 = vpop.f32.mrf.mxu0
  %v2593 = vadd.f32 0.0, %v2592
  %2594 = vmatmul.f32.gmra.mxu0 %v2086
  %v2595 = vpop.f32.mrf.mxu0
  %v2596 = vadd.f32 0.0, %v2595
  %2597 = vmatmul.f32.gmra.mxu0 %v2088
  %v2598 = vpop.f32.mrf.mxu0
  %v2599 = vadd.f32 0.0, %v2598
  %2600 = vdwg.mxu0
  %2601 = vmatpush.msra.mxu0 %v2513
  %2602 = vmatpush.msra.mxu0 %v2511
  %2603 = vmatpush.msra.mxu0 %v2509
  %2604 = vmatpush.msra.mxu0 %v2507
  %2605 = vmatpush.msra.mxu0 %v2505
  %2606 = vmatpush.msra.mxu0 %v2503
  %2607 = vmatpush.msra.mxu0 %v2501
  %2608 = vmatpush.msra.mxu0 %v2499
  %2609 = vmatpush.msra.mxu0 %v2497
  %2610 = vmatpush.msra.mxu0 %v2495
  %2611 = vmatpush.msra.mxu0 %v2493
  %2612 = vmatpush.msra.mxu0 %v2491
  %2613 = vmatpush.msra.mxu0 %v2489
  %2614 = vmatpush.msra.mxu0 %v2487
  %2615 = vmatpush.msra.mxu0 %v2485
  %2616 = vmatpush.msra.mxu0 %v2483
  %2617 = vmatmul.f32.gmra.mxu0 %v2083
  %v2618 = vpop.f32.mrf.mxu0
  %v2619 = vadd.f32 %v2590, %v2618
  %2620 = vmatmul.f32.gmra.mxu0 %v2085
  %v2621 = vpop.f32.mrf.mxu0
  %v2622 = vadd.f32 %v2593, %v2621
  %2623 = vmatmul.f32.gmra.mxu0 %v2087
  %v2624 = vpop.f32.mrf.mxu0
  %v2625 = vadd.f32 %v2596, %v2624
  %2626 = vmatmul.f32.gmra.mxu0 %v2089
  %v2627 = vpop.f32.mrf.mxu0
  %v2628 = vadd.f32 %v2599, %v2627
  %2629 = vdwg.mxu0
  %v2630 = vadd.f32 %v2381, %v2561
  %v2631 = vadd.f32 %v2439, %v2619
  %v2632 = vadd.f32 %v2384, %v2564
  %v2633 = vadd.f32 %v2442, %v2622
  %v2634 = vadd.f32 %v2387, %v2567
  %v2635 = vadd.f32 %v2445, %v2625
  %v2636 = vadd.f32 %v2390, %v2570
  %v2637 = vadd.f32 %v2448, %v2628
  %v2638 = vld [vmem:[%s97] sm:$0x3]
  %v2640 = vperm.slane %v2638, 0
  %v2641 = vperm.slane %v2638, 1
  %v2644 = vmul.f32 %v2630, %v2640
  %v2645 = vmul.f32 %v2631, %v2641
  %v2646 = vmul.f32 %v2632, %v2640
  %v2647 = vmul.f32 %v2633, %v2641
  %v2648 = vmul.f32 %v2634, %v2640
  %v2649 = vmul.f32 %v2635, %v2641
  %v2650 = vmul.f32 %v2636, %v2640
  %v2651 = vmul.f32 %v2637, %v2641
  %v2652 = vld [vmem:[%s99] sm:$0x3]
  %v2654 = vperm.slane %v2652, 0
  %v2655 = vperm.slane %v2652, 1
  %v2658 = vadd.f32 %v2644, %v2654
  %v2659 = vadd.f32 %v2645, %v2655
  %v2660 = vadd.f32 %v2646, %v2654
  %v2661 = vadd.f32 %v2647, %v2655
  %v2662 = vadd.f32 %v2648, %v2654
  %v2663 = vadd.f32 %v2649, %v2655
  %v2664 = vadd.f32 %v2650, %v2654
  %v2665 = vadd.f32 %v2651, %v2655
  %v2666 = vld [vmem:[%s101] sm:$0xff]
  %v2667 = vld [vmem:[%s101 + $0x8] sm:$0xff]
  %v2668 = vld [vmem:[%s101 + $0x10] sm:$0xff]
  %v2669 = vld [vmem:[%s101 + $0x18] sm:$0xff]
  %v2670 = vld [vmem:[%s101 + $0x20] sm:$0xff]
  %v2671 = vld [vmem:[%s101 + $0x28] sm:$0xff]
  %v2672 = vld [vmem:[%s101 + $0x30] sm:$0xff]
  %v2673 = vld [vmem:[%s101 + $0x38] sm:$0xff]
  %v2674 = vld [vmem:[%s101 + $0x40] sm:$0xff]
  %v2675 = vld [vmem:[%s101 + $0x48] sm:$0xff]
  %v2676 = vld [vmem:[%s101 + $0x50] sm:$0xff]
  %v2677 = vld [vmem:[%s101 + $0x58] sm:$0xff]
  %v2678 = vld [vmem:[%s101 + $0x60] sm:$0xff]
  %v2679 = vld [vmem:[%s101 + $0x68] sm:$0xff]
  %v2680 = vld [vmem:[%s101 + $0x70] sm:$0xff]
  %v2681 = vld [vmem:[%s101 + $0x78] sm:$0xff]
  %v2682 = vld [vmem:[%s101 + $0x80] sm:$0xff]
  %v2683 = vld [vmem:[%s101 + $0x88] sm:$0xff]
  %v2684 = vld [vmem:[%s101 + $0x90] sm:$0xff]
  %v2685 = vld [vmem:[%s101 + $0x98] sm:$0xff]
  %v2686 = vld [vmem:[%s101 + $0xa0] sm:$0xff]
  %v2687 = vld [vmem:[%s101 + $0xa8] sm:$0xff]
  %v2688 = vld [vmem:[%s101 + $0xb0] sm:$0xff]
  %v2689 = vld [vmem:[%s101 + $0xb8] sm:$0xff]
  %v2690 = vld [vmem:[%s101 + $0xc0] sm:$0xff]
  %v2691 = vld [vmem:[%s101 + $0xc8] sm:$0xff]
  %v2692 = vld [vmem:[%s101 + $0xd0] sm:$0xff]
  %v2693 = vld [vmem:[%s101 + $0xd8] sm:$0xff]
  %v2694 = vld [vmem:[%s101 + $0xe0] sm:$0xff]
  %v2695 = vld [vmem:[%s101 + $0xe8] sm:$0xff]
  %v2696 = vld [vmem:[%s101 + $0xf0] sm:$0xff]
  %v2697 = vld [vmem:[%s101 + $0xf8] sm:$0xff]
  %v2698 = vld [vmem:[%s103] sm:$0x3]
  %v2700 = vperm.slane %v2698, 0
  %v2701 = vperm.slane %v2698, 1
  %2704 = vmatpush.msra.mxu0 %v2696
  %2705 = vmatpush.msra.mxu0 %v2694
  %2706 = vmatpush.msra.mxu0 %v2692
  %2707 = vmatpush.msra.mxu0 %v2690
  %2708 = vmatpush.msra.mxu0 %v2688
  %2709 = vmatpush.msra.mxu0 %v2686
  %2710 = vmatpush.msra.mxu0 %v2684
  %2711 = vmatpush.msra.mxu0 %v2682
  %2712 = vmatpush.msra.mxu0 %v2680
  %2713 = vmatpush.msra.mxu0 %v2678
  %2714 = vmatpush.msra.mxu0 %v2676
  %2715 = vmatpush.msra.mxu0 %v2674
  %2716 = vmatpush.msra.mxu0 %v2672
  %2717 = vmatpush.msra.mxu0 %v2670
  %2718 = vmatpush.msra.mxu0 %v2668
  %2719 = vmatpush.msra.mxu0 %v2666
  %2720 = vmatmul.f32.gmra.mxu0 %v1700
  %v2721 = vpop.f32.mrf.mxu0
  %v2722 = vadd.f32 %v2700, %v2721
  %2723 = vmatmul.f32.gmra.mxu0 %v1701
  %v2724 = vpop.f32.mrf.mxu0
  %v2725 = vadd.f32 %v2700, %v2724
  %2726 = vmatmul.f32.gmra.mxu0 %v1702
  %v2727 = vpop.f32.mrf.mxu0
  %v2728 = vadd.f32 %v2700, %v2727
  %2729 = vmatmul.f32.gmra.mxu0 %v1703
  %v2730 = vpop.f32.mrf.mxu0
  %v2731 = vadd.f32 %v2700, %v2730
  %2732 = vdwg.mxu0
  %2733 = vmatpush.msra.mxu0 %v2697
  %2734 = vmatpush.msra.mxu0 %v2695
  %2735 = vmatpush.msra.mxu0 %v2693
  %2736 = vmatpush.msra.mxu0 %v2691
  %2737 = vmatpush.msra.mxu0 %v2689
  %2738 = vmatpush.msra.mxu0 %v2687
  %2739 = vmatpush.msra.mxu0 %v2685
  %2740 = vmatpush.msra.mxu0 %v2683
  %2741 = vmatpush.msra.mxu0 %v2681
  %2742 = vmatpush.msra.mxu0 %v2679
  %2743 = vmatpush.msra.mxu0 %v2677
  %2744 = vmatpush.msra.mxu0 %v2675
  %2745 = vmatpush.msra.mxu0 %v2673
  %2746 = vmatpush.msra.mxu0 %v2671
  %2747 = vmatpush.msra.mxu0 %v2669
  %2748 = vmatpush.msra.mxu0 %v2667
  %2749 = vmatmul.f32.gmra.mxu0 %v1700
  %v2750 = vpop.f32.mrf.mxu0
  %v2751 = vadd.f32 %v2701, %v2750
  %2752 = vmatmul.f32.gmra.mxu0 %v1701
  %v2753 = vpop.f32.mrf.mxu0
  %v2754 = vadd.f32 %v2701, %v2753
  %2755 = vmatmul.f32.gmra.mxu0 %v1702
  %v2756 = vpop.f32.mrf.mxu0
  %v2757 = vadd.f32 %v2701, %v2756
  %2758 = vmatmul.f32.gmra.mxu0 %v1703
  %v2759 = vpop.f32.mrf.mxu0
  %v2760 = vadd.f32 %v2701, %v2759
  %2761 = vdwg.mxu0
  %v2762 = vadd.f32 %v2658, %v2722
  %v2763 = vadd.f32 %v2659, %v2751
  %v2764 = vadd.f32 %v2660, %v2725
  %v2765 = vadd.f32 %v2661, %v2754
  %v2766 = vadd.f32 %v2662, %v2728
  %v2767 = vadd.f32 %v2663, %v2757
  %v2768 = vadd.f32 %v2664, %v2731
  %v2769 = vadd.f32 %v2665, %v2760
  %v2770 = vmax.f32 %v2762, 0.0
  %v2771 = vmax.f32 %v2763, 0.0
  %v2772 = vmax.f32 %v2764, 0.0
  %v2773 = vmax.f32 %v2765, 0.0
  %v2774 = vmax.f32 %v2766, 0.0
  %v2775 = vmax.f32 %v2767, 0.0
  %v2776 = vmax.f32 %v2768, 0.0
  %v2777 = vmax.f32 %v2769, 0.0
  %v2778 = vld [vmem:[%s105] sm:$0xff]
  %v2779 = vld [vmem:[%s105 + $0x8] sm:$0xff]
  %v2780 = vld [vmem:[%s105 + $0x10] sm:$0xff]
  %v2781 = vld [vmem:[%s105 + $0x18] sm:$0xff]
  %v2782 = vld [vmem:[%s105 + $0x20] sm:$0xff]
  %v2783 = vld [vmem:[%s105 + $0x28] sm:$0xff]
  %v2784 = vld [vmem:[%s105 + $0x30] sm:$0xff]
  %v2785 = vld [vmem:[%s105 + $0x38] sm:$0xff]
  %v2786 = vld [vmem:[%s105 + $0x40] sm:$0xff]
  %v2787 = vld [vmem:[%s105 + $0x48] sm:$0xff]
  %v2788 = vld [vmem:[%s105 + $0x50] sm:$0xff]
  %v2789 = vld [vmem:[%s105 + $0x58] sm:$0xff]
  %v2790 = vld [vmem:[%s105 + $0x60] sm:$0xff]
  %v2791 = vld [vmem:[%s105 + $0x68] sm:$0xff]
  %v2792 = vld [vmem:[%s105 + $0x70] sm:$0xff]
  %v2793 = vld [vmem:[%s105 + $0x78] sm:$0xff]
  %v2794 = vld [vmem:[%s105 + $0x80] sm:$0xff]
  %v2795 = vld [vmem:[%s105 + $0x88] sm:$0xff]
  %v2796 = vld [vmem:[%s105 + $0x90] sm:$0xff]
  %v2797 = vld [vmem:[%s105 + $0x98] sm:$0xff]
  %v2798 = vld [vmem:[%s105 + $0xa0] sm:$0xff]
  %v2799 = vld [vmem:[%s105 + $0xa8] sm:$0xff]
  %v2800 = vld [vmem:[%s105 + $0xb0] sm:$0xff]
  %v2801 = vld [vmem:[%s105 + $0xb8] sm:$0xff]
  %v2802 = vld [vmem:[%s105 + $0xc0] sm:$0xff]
  %v2803 = vld [vmem:[%s105 + $0xc8] sm:$0xff]
  %v2804 = vld [vmem:[%s105 + $0xd0] sm:$0xff]
  %v2805 = vld [vmem:[%s105 + $0xd8] sm:$0xff]
  %v2806 = vld [vmem:[%s105 + $0xe0] sm:$0xff]
  %v2807 = vld [vmem:[%s105 + $0xe8] sm:$0xff]
  %v2808 = vld [vmem:[%s105 + $0xf0] sm:$0xff]
  %v2809 = vld [vmem:[%s105 + $0xf8] sm:$0xff]
  %v2810 = vld [vmem:[%s107] sm:$0x1]
  %v2812 = vperm.slane %v2810, 0
  %2814 = vmatpush.msra.mxu0 %v2793
  %2815 = vmatpush.msra.mxu0 %v2792
  %2816 = vmatpush.msra.mxu0 %v2791
  %2817 = vmatpush.msra.mxu0 %v2790
  %2818 = vmatpush.msra.mxu0 %v2789
  %2819 = vmatpush.msra.mxu0 %v2788
  %2820 = vmatpush.msra.mxu0 %v2787
  %2821 = vmatpush.msra.mxu0 %v2786
  %2822 = vmatpush.msra.mxu0 %v2785
  %2823 = vmatpush.msra.mxu0 %v2784
  %2824 = vmatpush.msra.mxu0 %v2783
  %2825 = vmatpush.msra.mxu0 %v2782
  %2826 = vmatpush.msra.mxu0 %v2781
  %2827 = vmatpush.msra.mxu0 %v2780
  %2828 = vmatpush.msra.mxu0 %v2779
  %2829 = vmatpush.msra.mxu0 %v2778
  %2830 = vmatmul.f32.gmra.mxu0 %v2770
  %v2831 = vpop.f32.mrf.mxu0
  %v2832 = vadd.f32 %v2812, %v2831
  %2833 = vmatmul.f32.gmra.mxu0 %v2772
  %v2834 = vpop.f32.mrf.mxu0
  %v2835 = vadd.f32 %v2812, %v2834
  %2836 = vmatmul.f32.gmra.mxu0 %v2774
  %v2837 = vpop.f32.mrf.mxu0
  %v2838 = vadd.f32 %v2812, %v2837
  %2839 = vmatmul.f32.gmra.mxu0 %v2776
  %v2840 = vpop.f32.mrf.mxu0
  %v2841 = vadd.f32 %v2812, %v2840
  %2842 = vdwg.mxu0
  %2843 = vmatpush.msra.mxu0 %v2809
  %2844 = vmatpush.msra.mxu0 %v2808
  %2845 = vmatpush.msra.mxu0 %v2807
  %2846 = vmatpush.msra.mxu0 %v2806
  %2847 = vmatpush.msra.mxu0 %v2805
  %2848 = vmatpush.msra.mxu0 %v2804
  %2849 = vmatpush.msra.mxu0 %v2803
  %2850 = vmatpush.msra.mxu0 %v2802
  %2851 = vmatpush.msra.mxu0 %v2801
  %2852 = vmatpush.msra.mxu0 %v2800
  %2853 = vmatpush.msra.mxu0 %v2799
  %2854 = vmatpush.msra.mxu0 %v2798
  %2855 = vmatpush.msra.mxu0 %v2797
  %2856 = vmatpush.msra.mxu0 %v2796
  %2857 = vmatpush.msra.mxu0 %v2795
  %2858 = vmatpush.msra.mxu0 %v2794
  %2859 = vmatmul.f32.gmra.mxu0 %v2771
  %v2860 = vpop.f32.mrf.mxu0
  %v2861 = vadd.f32 %v2832, %v2860
  %2862 = vmatmul.f32.gmra.mxu0 %v2773
  %v2863 = vpop.f32.mrf.mxu0
  %v2864 = vadd.f32 %v2835, %v2863
  %2865 = vmatmul.f32.gmra.mxu0 %v2775
  %v2866 = vpop.f32.mrf.mxu0
  %v2867 = vadd.f32 %v2838, %v2866
  %2868 = vmatmul.f32.gmra.mxu0 %v2777
  %v2869 = vpop.f32.mrf.mxu0
  %v2870 = vadd.f32 %v2841, %v2869
  %2871 = vdwg.mxu0
  %2872 = vst [vmem:[%s109] sm:$0xff] %v2861
  %2873 = vst [vmem:[%s109 + $0x8] sm:$0xff] %v2864
  %2874 = vst [vmem:[%s109 + $0x10] sm:$0xff] %v2867
  %2875 = vst [vmem:[%s109 + $0x18] sm:$0xff] %v2870
  // Predicated region
  $region218: #{forward_pallas.1} parent=0 // pred_check
    _
  $region219: #{forward_pallas.1} parent=0 // pred_check_branch
    %2877 = sbr.rel (0) target = $region221
  $region220: #{forward_pallas.1} parent=0 // pred_region
    _
  $region221: #{forward_pallas.1} parent=0 // pred_fallthru
    _
  // Predicated region
  $region222: #{forward_pallas.1} parent=0 // pred_check
    _
  $region223: #{forward_pallas.1} parent=0 // pred_check_branch
    %2879 = sbr.rel (0) target = $region225
  $region224: #{forward_pallas.1} parent=0 // pred_region
    _
  $region225: #{forward_pallas.1} parent=0 // pred_fallthru
    _

</llo_original>
